<compile_context>
chip_gen: v6e
topology: v6e:2x2x1
jax: 0.10.0
libtpu: 0.0.40
codegen_flags: <defaults>
</compile_context>

<pallas_src>
import jax
import jax.numpy as jnp
from jax.experimental import pallas as pl
from jax.experimental.pallas import tpu as pltpu

DATA_STEP = 60      # LSTM input size
HIDDEN_CELL = 120   # LSTM hidden size
NUM_LAYERS = 2
HP = 128            # hidden size padded to one lane tile
G = 4 * HP          # 512 gate lanes per layer


# --------------------------- fused whole-model kernel ---------------------------
def _make_fused_kernel(T, BP):
    """Kernel for the full 2-layer LSTM + Linear head (T wave steps, batch BP)."""

    def _gate_step(gates, c):
        # i/f/o gate weights & biases were pre-scaled by 0.5 host-side, so one
        # EUP tanh over all 512 gate lanes gives sigmoid via 0.5*t+0.5.
        t = jnp.tanh(gates)
        i_g = t[:, 0 * HP:1 * HP] * 0.5 + 0.5
        f_g = t[:, 1 * HP:2 * HP] * 0.5 + 0.5
        g_g = t[:, 2 * HP:3 * HP]
        o_g = t[:, 3 * HP:4 * HP] * 0.5 + 0.5
        c_new = f_g * c + i_g * g_g
        h_new = o_g * jnp.tanh(c_new)
        return h_new, c_new

    def kernel(x_ref, wih1_ref, b1_ref, wblk_ref, b2_ref, wout_ref, bout_ref,
               out_ref, xp_sc, h2_sc):
        # Layer-1 input projection for ALL timesteps: one batched MXU matmul,
        # bias folded in here (off the serial path).
        xp_sc[...] = (jnp.dot(x_ref[...], wih1_ref[...],
                              preferred_element_type=jnp.float32)
                      + b1_ref[...])                       # (T*BP, 4*HP) f32

        # Hoist the b2 broadcast out of the recurrence (JAX doesn't CSE it).
        b2_full = jnp.broadcast_to(b2_ref[...], (BP, G))

        c1 = jnp.zeros((BP, HP), jnp.float32)
        h2 = jnp.zeros((BP, HP), jnp.float32)
        c2 = jnp.zeros((BP, HP), jnp.float32)

        # Wave step 0: h1_{-1}=h2_{-1}=0, so the recurrent matmul contributes 0.
        h1, c1 = _gate_step(xp_sc[0:BP, :], c1)

        # Wavefront steps s=1..T: ONE (BP,256)@(256,1024) bf16 matmul yields
        #   blk[:, :G] = h1_{s-1} @ Whh1                  (layer-1 timestep s)
        #   blk[:, G:] = h1_{s-1} @ Wih2 + h2_{s-2} @ Whh2 (layer-2 timestep s-1)
        for s in range(1, T + 1):
            lhs = jnp.concatenate([h1, h2], axis=1).astype(jnp.bfloat16)
            blk = jnp.dot(lhs, wblk_ref[...],
                          preferred_element_type=jnp.float32)       # (BP, 2*G)

            # Layer-2 timestep s-1.
            h2, c2 = _gate_step(blk[:, G:] + b2_full, c2)
            h2_sc[(s - 1) * BP:s * BP, :] = h2            # full (8,128) f32 tile

            # Layer-1 timestep s (skipped once the input sequence is exhausted).
            if s < T:
                h1, c1 = _gate_step(
                    blk[:, :G] + xp_sc[s * BP:(s + 1) * BP, :], c1)

        # Final Linear head (120 -> 1): N=1 wastes the MXU, so use a VPU
        # multiply + XLU lane reduction (slots otherwise idle).
        wrow = jnp.broadcast_to(wout_ref[...], (T * BP, HP))
        out_ref[...] = (jnp.sum(h2_sc[...] * wrow, axis=1, keepdims=True)
                        + bout_ref[...]).astype(out_ref.dtype)

    return kernel


# ------------------------------ host-side helpers --------------------------------
# PyTorch gate order i, f, g, o; pre-scale i/f/o by 0.5 so sigmoid == 0.5*tanh+0.5.
def _prep_gate_matrix(w, d_in, d_pad):
    """(4H, d_in) PyTorch weight -> (d_pad, 4*HP), lane-aligned gates, zero pad,
    i/f/o gate blocks pre-scaled by 0.5."""
    w4 = w.reshape(4, HIDDEN_CELL, d_in)
    scale = jnp.array([0.5, 0.5, 1.0, 0.5], w4.dtype).reshape(4, 1, 1)
    w4 = w4 * scale
    w4 = jnp.pad(w4, ((0, 0), (0, HP - HIDDEN_CELL), (0, d_pad - d_in)))
    return jnp.transpose(w4, (2, 0, 1)).reshape(d_pad, 4 * HP)


def _prep_gate_bias(b_ih, b_hh):
    b = (b_ih + b_hh).reshape(4, HIDDEN_CELL)
    scale = jnp.array([0.5, 0.5, 1.0, 0.5], b.dtype).reshape(4, 1)
    b = jnp.pad(b * scale, ((0, 0), (0, HP - HIDDEN_CELL)))
    return b.reshape(1, 4 * HP)


@jax.jit
def rnn_forward(x, params):
    T, B, D = x.shape
    BP = max(8, ((B + 7) // 8) * 8)          # batch padded to sublane multiple
    DP = ((D + 63) // 64) * 64               # 60 -> 64

    # Pad & flatten input: (T, B, D) -> (T*BP, DP), bf16 matmul operand.
    x_p = jnp.pad(x, ((0, 0), (0, BP - B), (0, DP - D)))
    x_p = x_p.reshape(T * BP, DP).astype(jnp.bfloat16)

    w_ih1, w_hh1, b_ih1, b_hh1 = params["lstm0"]
    w_ih2, w_hh2, b_ih2, b_hh2 = params["lstm1"]

    wih1 = _prep_gate_matrix(w_ih1, D, DP).astype(jnp.bfloat16)     # (DP, 512)
    b1 = _prep_gate_bias(b_ih1, b_hh1)                              # (1, 512)
    b2 = _prep_gate_bias(b_ih2, b_hh2)                              # (1, 512)

    # Block recurrence matrix [[Whh1, Wih2], [0, Whh2]] -> (256, 1024) bf16.
    whh1 = _prep_gate_matrix(w_hh1, HIDDEN_CELL, HP)
    wih2 = _prep_gate_matrix(w_ih2, HIDDEN_CELL, HP)
    whh2 = _prep_gate_matrix(w_hh2, HIDDEN_CELL, HP)
    wblk = jnp.concatenate(
        [jnp.concatenate([whh1, wih2], axis=1),
         jnp.concatenate([jnp.zeros_like(whh2), whh2], axis=1)],
        axis=0).astype(jnp.bfloat16)                                # (2*HP, 8*HP)

    wrow = jnp.pad(params["w_out"], ((0, 0), (0, HP - HIDDEN_CELL)))  # (1, HP) f32
    bout = params["b_out"].reshape(1, 1)

    flops = (2 * T * BP * DP * 4 * HP            # layer-1 batched input proj
             + 2 * T * BP * (2 * HP) * (8 * HP)  # T wavefront block matmuls
             + 2 * T * BP * HP)                  # output head
    transcendentals = 2 * T * BP * (4 * HP + HP)
    bytes_accessed = (x_p.size * 2 + wih1.size * 2 + wblk.size * 2
                      + (b1.size + b2.size + wrow.size + bout.size) * 4
                      + T * BP * 4)

    vmem = pl.BlockSpec(memory_space=pltpu.MemorySpace.VMEM)
    out_flat = pl.pallas_call(
        _make_fused_kernel(T, BP),
        out_shape=jax.ShapeDtypeStruct((T * BP, 1), jnp.float32),
        in_specs=[vmem] * 7,
        out_specs=vmem,
        scratch_shapes=[
            pltpu.VMEM((T * BP, 4 * HP), jnp.float32),   # layer-1 input projections
            pltpu.VMEM((T * BP, HP), jnp.float32),       # layer-2 hidden sequence
        ],
        cost_estimate=pl.CostEstimate(
            flops=flops, transcendentals=transcendentals,
            bytes_accessed=bytes_accessed),
    )(x_p, wih1, b1, wblk, b2, wrow, bout)

    # TODO(synk): at long sequences / large batch, time-chunk xp_sc via a grid
    # (v7x has only 64 MiB VMEM) and add a parallel batch axis for the 2nd TC.
    return out_flat.reshape(T, BP, 1)[:, :B, :]


# ------------------------------- parameter init ----------------------------------
def init_params(key):
    params = {}
    k = 1.0 / jnp.sqrt(HIDDEN_CELL)
    in_sizes = [DATA_STEP] + [HIDDEN_CELL] * (NUM_LAYERS - 1)
    for layer, d_in in enumerate(in_sizes):
        key, k1, k2, k3, k4 = jax.random.split(key, 5)
        params[f"lstm{layer}"] = (
            jax.random.uniform(k1, (4 * HIDDEN_CELL, d_in), jnp.float32, -k, k),
            jax.random.uniform(k2, (4 * HIDDEN_CELL, HIDDEN_CELL), jnp.float32, -k, k),
            jax.random.uniform(k3, (4 * HIDDEN_CELL,), jnp.float32, -k, k),
            jax.random.uniform(k4, (4 * HIDDEN_CELL,), jnp.float32, -k, k),
        )
    key, k1, k2 = jax.random.split(key, 3)
    kl = 1.0 / jnp.sqrt(HIDDEN_CELL)
    params["w_out"] = jax.random.uniform(k1, (1, HIDDEN_CELL), jnp.float32, -kl, kl)
    params["b_out"] = jax.random.uniform(k2, (1,), jnp.float32, -kl, kl)
    return params


# ------------------------------ pure-JAX reference --------------------------------
def _lstm_layer_ref(x, w_ih, w_hh, b_ih, b_hh):
    T, B, _ = x.shape
    H = w_hh.shape[1]

    def step(carry, x_t):
        h, c = carry
        gates = x_t @ w_ih.T + h @ w_hh.T + b_ih + b_hh
        i = jax.nn.sigmoid(gates[:, :H])
        f = jax.nn.sigmoid(gates[:, H:2 * H])
        g = jnp.tanh(gates[:, 2 * H:3 * H])
        o = jax.nn.sigmoid(gates[:, 3 * H:])
        c = f * c + i * g
        h = o * jnp.tanh(c)
        return (h, c), h

    init = (jnp.zeros((B, H), jnp.float32), jnp.zeros((B, H), jnp.float32))
    _, hs = jax.lax.scan(step, init, x)
    return hs


def rnn_forward_ref(x, params):
    h = x
    for layer in range(NUM_LAYERS):
        h = _lstm_layer_ref(h, *params[f"lstm{layer}"])
    T, B, H = h.shape
    out = h.reshape(T * B, H) @ params["w_out"].T + params["b_out"]
    return out.reshape(T, B, -1)


if __name__ == "__main__":
    key = jax.random.PRNGKey(0)
    key, pkey, xkey = jax.random.split(key, 3)
    params = init_params(pkey)

    T, B = 8, 2
    x = jax.random.normal(xkey, (T, B, DATA_STEP), jnp.float32)

    out = rnn_forward(x, params)
    out = jax.block_until_ready(out)
    assert out.shape == (T, B, 1), out.shape

    ref = jax.block_until_ready(rnn_forward_ref(x, params))
    max_err = float(jnp.max(jnp.abs(out - ref)))
    # bf16 matmul operands (f32 accumulation / f32 state) -> small tolerance.
    assert jnp.allclose(out, ref, rtol=2e-2, atol=2e-2), max_err

    print("KERNEL_OK")
</pallas_src>

<mosaic_0001>
module attributes {stable_mosaic.version = 11 : i64} {
  func.func @kernel(%arg0: memref<64x64xbf16, #tpu.memory_space<vmem>>, %arg1: memref<64x512xbf16, #tpu.memory_space<vmem>>, %arg2: memref<1x512xf32, #tpu.memory_space<vmem>>, %arg3: memref<256x1024xbf16, #tpu.memory_space<vmem>>, %arg4: memref<1x512xf32, #tpu.memory_space<vmem>>, %arg5: memref<1x128xf32, #tpu.memory_space<vmem>>, %arg6: memref<1x1xf32, #tpu.memory_space<vmem>>, %arg7: memref<64x1xf32, #tpu.memory_space<vmem>>, %arg8: memref<64x512xf32, #tpu.memory_space<vmem>>, %arg9: memref<64x128xf32, #tpu.memory_space<vmem>>) attributes {dimension_semantics = [], scalar_prefetch = 0 : i64, scratch_operands = 2 : i64, tpu.core_type = #tpu.core_type<tc>} {
    %c0 = arith.constant 0 : index
    %c0_0 = arith.constant 0 : index
    %0 = vector.load %arg0[%c0, %c0_0] : memref<64x64xbf16, #tpu.memory_space<vmem>>, vector<64x64xbf16>
    %c0_1 = arith.constant 0 : index
    %c0_2 = arith.constant 0 : index
    %1 = vector.load %arg1[%c0_1, %c0_2] : memref<64x512xbf16, #tpu.memory_space<vmem>>, vector<64x512xbf16>
    %cst = arith.constant dense<0.000000e+00> : vector<64x512xf32>
    %2 = tpu.matmul %0, %1, %cst {dimension_numbers = #tpu.dot_dimension_numbers<[1], [0], [0], [1], [0, 0, 1, 1], [], []>} : vector<64x64xbf16>, vector<64x512xbf16>, vector<64x512xf32> -> vector<64x512xf32>
    %c0_3 = arith.constant 0 : index
    %c0_4 = arith.constant 0 : index
    %3 = vector.load %arg2[%c0_3, %c0_4] : memref<1x512xf32, #tpu.memory_space<vmem>>, vector<1x512xf32>
    %4 = vector.broadcast %3 : vector<1x512xf32> to vector<64x512xf32>
    %5 = arith.addf %2, %4 : vector<64x512xf32>
    %c0_5 = arith.constant 0 : index
    %c0_6 = arith.constant 0 : index
    %6 = vector.load %arg8[%c0_5, %c0_6] : memref<64x512xf32, #tpu.memory_space<vmem>>, vector<64x512xf32>
    tpu.vector_store %arg8[%c0_5, %c0_6], %5 {strides = array<i32>} : memref<64x512xf32, #tpu.memory_space<vmem>>, vector<64x512xf32>,
    %c0_7 = arith.constant 0 : index
    %c0_8 = arith.constant 0 : index
    %7 = vector.load %arg4[%c0_7, %c0_8] : memref<1x512xf32, #tpu.memory_space<vmem>>, vector<1x512xf32>
    %8 = vector.shape_cast %7 : vector<1x512xf32> to vector<1x512xf32>
    %9 = vector.broadcast %8 : vector<1x512xf32> to vector<8x512xf32>
    %cst_9 = arith.constant 0.000000e+00 : f32
    %10 = vector.broadcast %cst_9 : f32 to vector<8x128xf32>
    %cst_10 = arith.constant 0.000000e+00 : f32
    %11 = vector.broadcast %cst_10 : f32 to vector<8x128xf32>
    %cst_11 = arith.constant 0.000000e+00 : f32
    %12 = vector.broadcast %cst_11 : f32 to vector<8x128xf32>
    %c0_12 = arith.constant 0 : index
    %c0_13 = arith.constant 0 : index
    %13 = vector.load %arg8[%c0_12, %c0_13] : memref<64x512xf32, #tpu.memory_space<vmem>>, vector<8x512xf32>
    %14 = math.tanh %13 : vector<8x512xf32>
    %15 = vector.extract_strided_slice %14 {offsets = [0, 0], sizes = [8, 128], strides = [1, 1]} : vector<8x512xf32> to vector<8x128xf32>
    %cst_14 = arith.constant 5.000000e-01 : f32
    %16 = vector.broadcast %cst_14 : f32 to vector<8x128xf32>
    %17 = arith.mulf %15, %16 : vector<8x128xf32>
    %cst_15 = arith.constant 5.000000e-01 : f32
    %18 = vector.broadcast %cst_15 : f32 to vector<8x128xf32>
    %19 = arith.addf %17, %18 : vector<8x128xf32>
    %20 = vector.extract_strided_slice %14 {offsets = [0, 128], sizes = [8, 128], strides = [1, 1]} : vector<8x512xf32> to vector<8x128xf32>
    %cst_16 = arith.constant 5.000000e-01 : f32
    %21 = vector.broadcast %cst_16 : f32 to vector<8x128xf32>
    %22 = arith.mulf %20, %21 : vector<8x128xf32>
    %cst_17 = arith.constant 5.000000e-01 : f32
    %23 = vector.broadcast %cst_17 : f32 to vector<8x128xf32>
    %24 = arith.addf %22, %23 : vector<8x128xf32>
    %25 = vector.extract_strided_slice %14 {offsets = [0, 256], sizes = [8, 128], strides = [1, 1]} : vector<8x512xf32> to vector<8x128xf32>
    %26 = vector.extract_strided_slice %14 {offsets = [0, 384], sizes = [8, 128], strides = [1, 1]} : vector<8x512xf32> to vector<8x128xf32>
    %cst_18 = arith.constant 5.000000e-01 : f32
    %27 = vector.broadcast %cst_18 : f32 to vector<8x128xf32>
    %28 = arith.mulf %26, %27 : vector<8x128xf32>
    %cst_19 = arith.constant 5.000000e-01 : f32
    %29 = vector.broadcast %cst_19 : f32 to vector<8x128xf32>
    %30 = arith.addf %28, %29 : vector<8x128xf32>
    %31 = arith.mulf %24, %10 : vector<8x128xf32>
    %32 = arith.mulf %19, %25 : vector<8x128xf32>
    %33 = arith.addf %31, %32 : vector<8x128xf32>
    %34 = math.tanh %33 : vector<8x128xf32>
    %35 = arith.mulf %30, %34 : vector<8x128xf32>
    %36 = tpu.concatenate %35, %11 in 1 : vector<8x128xf32>, vector<8x128xf32> -> vector<8x256xf32>
    %37 = arith.truncf %36 : vector<8x256xf32> to vector<8x256xbf16>
    %c0_20 = arith.constant 0 : index
    %c0_21 = arith.constant 0 : index
    %38 = vector.load %arg3[%c0_20, %c0_21] : memref<256x1024xbf16, #tpu.memory_space<vmem>>, vector<256x1024xbf16>
    %cst_22 = arith.constant dense<0.000000e+00> : vector<8x1024xf32>
    %39 = tpu.matmul %37, %38, %cst_22 {dimension_numbers = #tpu.dot_dimension_numbers<[1], [0], [0], [1], [0, 0, 1, 1], [], []>} : vector<8x256xbf16>, vector<256x1024xbf16>, vector<8x1024xf32> -> vector<8x1024xf32>
    %40 = vector.extract_strided_slice %39 {offsets = [0, 512], sizes = [8, 512], strides = [1, 1]} : vector<8x1024xf32> to vector<8x512xf32>
    %41 = arith.addf %40, %9 : vector<8x512xf32>
    %42 = math.tanh %41 : vector<8x512xf32>
    %43 = vector.extract_strided_slice %42 {offsets = [0, 0], sizes = [8, 128], strides = [1, 1]} : vector<8x512xf32> to vector<8x128xf32>
    %cst_23 = arith.constant 5.000000e-01 : f32
    %44 = vector.broadcast %cst_23 : f32 to vector<8x128xf32>
    %45 = arith.mulf %43, %44 : vector<8x128xf32>
    %cst_24 = arith.constant 5.000000e-01 : f32
    %46 = vector.broadcast %cst_24 : f32 to vector<8x128xf32>
    %47 = arith.addf %45, %46 : vector<8x128xf32>
    %48 = vector.extract_strided_slice %42 {offsets = [0, 128], sizes = [8, 128], strides = [1, 1]} : vector<8x512xf32> to vector<8x128xf32>
    %cst_25 = arith.constant 5.000000e-01 : f32
    %49 = vector.broadcast %cst_25 : f32 to vector<8x128xf32>
    %50 = arith.mulf %48, %49 : vector<8x128xf32>
    %cst_26 = arith.constant 5.000000e-01 : f32
    %51 = vector.broadcast %cst_26 : f32 to vector<8x128xf32>
    %52 = arith.addf %50, %51 : vector<8x128xf32>
    %53 = vector.extract_strided_slice %42 {offsets = [0, 256], sizes = [8, 128], strides = [1, 1]} : vector<8x512xf32> to vector<8x128xf32>
    %54 = vector.extract_strided_slice %42 {offsets = [0, 384], sizes = [8, 128], strides = [1, 1]} : vector<8x512xf32> to vector<8x128xf32>
    %cst_27 = arith.constant 5.000000e-01 : f32
    %55 = vector.broadcast %cst_27 : f32 to vector<8x128xf32>
    %56 = arith.mulf %54, %55 : vector<8x128xf32>
    %cst_28 = arith.constant 5.000000e-01 : f32
    %57 = vector.broadcast %cst_28 : f32 to vector<8x128xf32>
    %58 = arith.addf %56, %57 : vector<8x128xf32>
    %59 = arith.mulf %52, %12 : vector<8x128xf32>
    %60 = arith.mulf %47, %53 : vector<8x128xf32>
    %61 = arith.addf %59, %60 : vector<8x128xf32>
    %62 = math.tanh %61 : vector<8x128xf32>
    %63 = arith.mulf %58, %62 : vector<8x128xf32>
    %c0_29 = arith.constant 0 : index
    %c0_30 = arith.constant 0 : index
    %64 = vector.load %arg9[%c0_29, %c0_30] : memref<64x128xf32, #tpu.memory_space<vmem>>, vector<8x128xf32>
    tpu.vector_store %arg9[%c0_29, %c0_30], %63 {strides = array<i32>} : memref<64x128xf32, #tpu.memory_space<vmem>>, vector<8x128xf32>,
    %65 = vector.extract_strided_slice %39 {offsets = [0, 0], sizes = [8, 512], strides = [1, 1]} : vector<8x1024xf32> to vector<8x512xf32>
    %c8 = arith.constant 8 : index
    %c0_31 = arith.constant 0 : index
    %66 = vector.load %arg8[%c8, %c0_31] : memref<64x512xf32, #tpu.memory_space<vmem>>, vector<8x512xf32>
    %67 = arith.addf %65, %66 : vector<8x512xf32>
    %68 = math.tanh %67 : vector<8x512xf32>
    %69 = vector.extract_strided_slice %68 {offsets = [0, 0], sizes = [8, 128], strides = [1, 1]} : vector<8x512xf32> to vector<8x128xf32>
    %cst_32 = arith.constant 5.000000e-01 : f32
    %70 = vector.broadcast %cst_32 : f32 to vector<8x128xf32>
    %71 = arith.mulf %69, %70 : vector<8x128xf32>
    %cst_33 = arith.constant 5.000000e-01 : f32
    %72 = vector.broadcast %cst_33 : f32 to vector<8x128xf32>
    %73 = arith.addf %71, %72 : vector<8x128xf32>
    %74 = vector.extract_strided_slice %68 {offsets = [0, 128], sizes = [8, 128], strides = [1, 1]} : vector<8x512xf32> to vector<8x128xf32>
    %cst_34 = arith.constant 5.000000e-01 : f32
    %75 = vector.broadcast %cst_34 : f32 to vector<8x128xf32>
    %76 = arith.mulf %74, %75 : vector<8x128xf32>
    %cst_35 = arith.constant 5.000000e-01 : f32
    %77 = vector.broadcast %cst_35 : f32 to vector<8x128xf32>
    %78 = arith.addf %76, %77 : vector<8x128xf32>
    %79 = vector.extract_strided_slice %68 {offsets = [0, 256], sizes = [8, 128], strides = [1, 1]} : vector<8x512xf32> to vector<8x128xf32>
    %80 = vector.extract_strided_slice %68 {offsets = [0, 384], sizes = [8, 128], strides = [1, 1]} : vector<8x512xf32> to vector<8x128xf32>
    %cst_36 = arith.constant 5.000000e-01 : f32
    %81 = vector.broadcast %cst_36 : f32 to vector<8x128xf32>
    %82 = arith.mulf %80, %81 : vector<8x128xf32>
    %cst_37 = arith.constant 5.000000e-01 : f32
    %83 = vector.broadcast %cst_37 : f32 to vector<8x128xf32>
    %84 = arith.addf %82, %83 : vector<8x128xf32>
    %85 = arith.mulf %78, %33 : vector<8x128xf32>
    %86 = arith.mulf %73, %79 : vector<8x128xf32>
    %87 = arith.addf %85, %86 : vector<8x128xf32>
    %88 = math.tanh %87 : vector<8x128xf32>
    %89 = arith.mulf %84, %88 : vector<8x128xf32>
    %90 = tpu.concatenate %89, %63 in 1 : vector<8x128xf32>, vector<8x128xf32> -> vector<8x256xf32>
    %91 = arith.truncf %90 : vector<8x256xf32> to vector<8x256xbf16>
    %c0_38 = arith.constant 0 : index
    %c0_39 = arith.constant 0 : index
    %92 = vector.load %arg3[%c0_38, %c0_39] : memref<256x1024xbf16, #tpu.memory_space<vmem>>, vector<256x1024xbf16>
    %cst_40 = arith.constant dense<0.000000e+00> : vector<8x1024xf32>
    %93 = tpu.matmul %91, %92, %cst_40 {dimension_numbers = #tpu.dot_dimension_numbers<[1], [0], [0], [1], [0, 0, 1, 1], [], []>} : vector<8x256xbf16>, vector<256x1024xbf16>, vector<8x1024xf32> -> vector<8x1024xf32>
    %94 = vector.extract_strided_slice %93 {offsets = [0, 512], sizes = [8, 512], strides = [1, 1]} : vector<8x1024xf32> to vector<8x512xf32>
    %95 = arith.addf %94, %9 : vector<8x512xf32>
    %96 = math.tanh %95 : vector<8x512xf32>
    %97 = vector.extract_strided_slice %96 {offsets = [0, 0], sizes = [8, 128], strides = [1, 1]} : vector<8x512xf32> to vector<8x128xf32>
    %cst_41 = arith.constant 5.000000e-01 : f32
    %98 = vector.broadcast %cst_41 : f32 to vector<8x128xf32>
    %99 = arith.mulf %97, %98 : vector<8x128xf32>
    %cst_42 = arith.constant 5.000000e-01 : f32
    %100 = vector.broadcast %cst_42 : f32 to vector<8x128xf32>
    %101 = arith.addf %99, %100 : vector<8x128xf32>
    %102 = vector.extract_strided_slice %96 {offsets = [0, 128], sizes = [8, 128], strides = [1, 1]} : vector<8x512xf32> to vector<8x128xf32>
    %cst_43 = arith.constant 5.000000e-01 : f32
    %103 = vector.broadcast %cst_43 : f32 to vector<8x128xf32>
    %104 = arith.mulf %102, %103 : vector<8x128xf32>
    %cst_44 = arith.constant 5.000000e-01 : f32
    %105 = vector.broadcast %cst_44 : f32 to vector<8x128xf32>
    %106 = arith.addf %104, %105 : vector<8x128xf32>
    %107 = vector.extract_strided_slice %96 {offsets = [0, 256], sizes = [8, 128], strides = [1, 1]} : vector<8x512xf32> to vector<8x128xf32>
    %108 = vector.extract_strided_slice %96 {offsets = [0, 384], sizes = [8, 128], strides = [1, 1]} : vector<8x512xf32> to vector<8x128xf32>
    %cst_45 = arith.constant 5.000000e-01 : f32
    %109 = vector.broadcast %cst_45 : f32 to vector<8x128xf32>
    %110 = arith.mulf %108, %109 : vector<8x128xf32>
    %cst_46 = arith.constant 5.000000e-01 : f32
    %111 = vector.broadcast %cst_46 : f32 to vector<8x128xf32>
    %112 = arith.addf %110, %111 : vector<8x128xf32>
    %113 = arith.mulf %106, %61 : vector<8x128xf32>
    %114 = arith.mulf %101, %107 : vector<8x128xf32>
    %115 = arith.addf %113, %114 : vector<8x128xf32>
    %116 = math.tanh %115 : vector<8x128xf32>
    %117 = arith.mulf %112, %116 : vector<8x128xf32>
    %c8_47 = arith.constant 8 : index
    %c0_48 = arith.constant 0 : index
    %118 = vector.load %arg9[%c8_47, %c0_48] : memref<64x128xf32, #tpu.memory_space<vmem>>, vector<8x128xf32>
    tpu.vector_store %arg9[%c8_47, %c0_48], %117 {strides = array<i32>} : memref<64x128xf32, #tpu.memory_space<vmem>>, vector<8x128xf32>,
    %119 = vector.extract_strided_slice %93 {offsets = [0, 0], sizes = [8, 512], strides = [1, 1]} : vector<8x1024xf32> to vector<8x512xf32>
    %c16 = arith.constant 16 : index
    %c0_49 = arith.constant 0 : index
    %120 = vector.load %arg8[%c16, %c0_49] : memref<64x512xf32, #tpu.memory_space<vmem>>, vector<8x512xf32>
    %121 = arith.addf %119, %120 : vector<8x512xf32>
    %122 = math.tanh %121 : vector<8x512xf32>
    %123 = vector.extract_strided_slice %122 {offsets = [0, 0], sizes = [8, 128], strides = [1, 1]} : vector<8x512xf32> to vector<8x128xf32>
    %cst_50 = arith.constant 5.000000e-01 : f32
    %124 = vector.broadcast %cst_50 : f32 to vector<8x128xf32>
    %125 = arith.mulf %123, %124 : vector<8x128xf32>
    %cst_51 = arith.constant 5.000000e-01 : f32
    %126 = vector.broadcast %cst_51 : f32 to vector<8x128xf32>
    %127 = arith.addf %125, %126 : vector<8x128xf32>
    %128 = vector.extract_strided_slice %122 {offsets = [0, 128], sizes = [8, 128], strides = [1, 1]} : vector<8x512xf32> to vector<8x128xf32>
    %cst_52 = arith.constant 5.000000e-01 : f32
    %129 = vector.broadcast %cst_52 : f32 to vector<8x128xf32>
    %130 = arith.mulf %128, %129 : vector<8x128xf32>
    %cst_53 = arith.constant 5.000000e-01 : f32
    %131 = vector.broadcast %cst_53 : f32 to vector<8x128xf32>
    %132 = arith.addf %130, %131 : vector<8x128xf32>
    %133 = vector.extract_strided_slice %122 {offsets = [0, 256], sizes = [8, 128], strides = [1, 1]} : vector<8x512xf32> to vector<8x128xf32>
    %134 = vector.extract_strided_slice %122 {offsets = [0, 384], sizes = [8, 128], strides = [1, 1]} : vector<8x512xf32> to vector<8x128xf32>
    %cst_54 = arith.constant 5.000000e-01 : f32
    %135 = vector.broadcast %cst_54 : f32 to vector<8x128xf32>
    %136 = arith.mulf %134, %135 : vector<8x128xf32>
    %cst_55 = arith.constant 5.000000e-01 : f32
    %137 = vector.broadcast %cst_55 : f32 to vector<8x128xf32>
    %138 = arith.addf %136, %137 : vector<8x128xf32>
    %139 = arith.mulf %132, %87 : vector<8x128xf32>
    %140 = arith.mulf %127, %133 : vector<8x128xf32>
    %141 = arith.addf %139, %140 : vector<8x128xf32>
    %142 = math.tanh %141 : vector<8x128xf32>
    %143 = arith.mulf %138, %142 : vector<8x128xf32>
    %144 = tpu.concatenate %143, %117 in 1 : vector<8x128xf32>, vector<8x128xf32> -> vector<8x256xf32>
    %145 = arith.truncf %144 : vector<8x256xf32> to vector<8x256xbf16>
    %c0_56 = arith.constant 0 : index
    %c0_57 = arith.constant 0 : index
    %146 = vector.load %arg3[%c0_56, %c0_57] : memref<256x1024xbf16, #tpu.memory_space<vmem>>, vector<256x1024xbf16>
    %cst_58 = arith.constant dense<0.000000e+00> : vector<8x1024xf32>
    %147 = tpu.matmul %145, %146, %cst_58 {dimension_numbers = #tpu.dot_dimension_numbers<[1], [0], [0], [1], [0, 0, 1, 1], [], []>} : vector<8x256xbf16>, vector<256x1024xbf16>, vector<8x1024xf32> -> vector<8x1024xf32>
    %148 = vector.extract_strided_slice %147 {offsets = [0, 512], sizes = [8, 512], strides = [1, 1]} : vector<8x1024xf32> to vector<8x512xf32>
    %149 = arith.addf %148, %9 : vector<8x512xf32>
    %150 = math.tanh %149 : vector<8x512xf32>
    %151 = vector.extract_strided_slice %150 {offsets = [0, 0], sizes = [8, 128], strides = [1, 1]} : vector<8x512xf32> to vector<8x128xf32>
    %cst_59 = arith.constant 5.000000e-01 : f32
    %152 = vector.broadcast %cst_59 : f32 to vector<8x128xf32>
    %153 = arith.mulf %151, %152 : vector<8x128xf32>
    %cst_60 = arith.constant 5.000000e-01 : f32
    %154 = vector.broadcast %cst_60 : f32 to vector<8x128xf32>
    %155 = arith.addf %153, %154 : vector<8x128xf32>
    %156 = vector.extract_strided_slice %150 {offsets = [0, 128], sizes = [8, 128], strides = [1, 1]} : vector<8x512xf32> to vector<8x128xf32>
    %cst_61 = arith.constant 5.000000e-01 : f32
    %157 = vector.broadcast %cst_61 : f32 to vector<8x128xf32>
    %158 = arith.mulf %156, %157 : vector<8x128xf32>
    %cst_62 = arith.constant 5.000000e-01 : f32
    %159 = vector.broadcast %cst_62 : f32 to vector<8x128xf32>
    %160 = arith.addf %158, %159 : vector<8x128xf32>
    %161 = vector.extract_strided_slice %150 {offsets = [0, 256], sizes = [8, 128], strides = [1, 1]} : vector<8x512xf32> to vector<8x128xf32>
    %162 = vector.extract_strided_slice %150 {offsets = [0, 384], sizes = [8, 128], strides = [1, 1]} : vector<8x512xf32> to vector<8x128xf32>
    %cst_63 = arith.constant 5.000000e-01 : f32
    %163 = vector.broadcast %cst_63 : f32 to vector<8x128xf32>
    %164 = arith.mulf %162, %163 : vector<8x128xf32>
    %cst_64 = arith.constant 5.000000e-01 : f32
    %165 = vector.broadcast %cst_64 : f32 to vector<8x128xf32>
    %166 = arith.addf %164, %165 : vector<8x128xf32>
    %167 = arith.mulf %160, %115 : vector<8x128xf32>
    %168 = arith.mulf %155, %161 : vector<8x128xf32>
    %169 = arith.addf %167, %168 : vector<8x128xf32>
    %170 = math.tanh %169 : vector<8x128xf32>
    %171 = arith.mulf %166, %170 : vector<8x128xf32>
    %c16_65 = arith.constant 16 : index
    %c0_66 = arith.constant 0 : index
    %172 = vector.load %arg9[%c16_65, %c0_66] : memref<64x128xf32, #tpu.memory_space<vmem>>, vector<8x128xf32>
    tpu.vector_store %arg9[%c16_65, %c0_66], %171 {strides = array<i32>} : memref<64x128xf32, #tpu.memory_space<vmem>>, vector<8x128xf32>,
    %173 = vector.extract_strided_slice %147 {offsets = [0, 0], sizes = [8, 512], strides = [1, 1]} : vector<8x1024xf32> to vector<8x512xf32>
    %c24 = arith.constant 24 : index
    %c0_67 = arith.constant 0 : index
    %174 = vector.load %arg8[%c24, %c0_67] : memref<64x512xf32, #tpu.memory_space<vmem>>, vector<8x512xf32>
    %175 = arith.addf %173, %174 : vector<8x512xf32>
    %176 = math.tanh %175 : vector<8x512xf32>
    %177 = vector.extract_strided_slice %176 {offsets = [0, 0], sizes = [8, 128], strides = [1, 1]} : vector<8x512xf32> to vector<8x128xf32>
    %cst_68 = arith.constant 5.000000e-01 : f32
    %178 = vector.broadcast %cst_68 : f32 to vector<8x128xf32>
    %179 = arith.mulf %177, %178 : vector<8x128xf32>
    %cst_69 = arith.constant 5.000000e-01 : f32
    %180 = vector.broadcast %cst_69 : f32 to vector<8x128xf32>
    %181 = arith.addf %179, %180 : vector<8x128xf32>
    %182 = vector.extract_strided_slice %176 {offsets = [0, 128], sizes = [8, 128], strides = [1, 1]} : vector<8x512xf32> to vector<8x128xf32>
    %cst_70 = arith.constant 5.000000e-01 : f32
    %183 = vector.broadcast %cst_70 : f32 to vector<8x128xf32>
    %184 = arith.mulf %182, %183 : vector<8x128xf32>
    %cst_71 = arith.constant 5.000000e-01 : f32
    %185 = vector.broadcast %cst_71 : f32 to vector<8x128xf32>
    %186 = arith.addf %184, %185 : vector<8x128xf32>
    %187 = vector.extract_strided_slice %176 {offsets = [0, 256], sizes = [8, 128], strides = [1, 1]} : vector<8x512xf32> to vector<8x128xf32>
    %188 = vector.extract_strided_slice %176 {offsets = [0, 384], sizes = [8, 128], strides = [1, 1]} : vector<8x512xf32> to vector<8x128xf32>
    %cst_72 = arith.constant 5.000000e-01 : f32
    %189 = vector.broadcast %cst_72 : f32 to vector<8x128xf32>
    %190 = arith.mulf %188, %189 : vector<8x128xf32>
    %cst_73 = arith.constant 5.000000e-01 : f32
    %191 = vector.broadcast %cst_73 : f32 to vector<8x128xf32>
    %192 = arith.addf %190, %191 : vector<8x128xf32>
    %193 = arith.mulf %186, %141 : vector<8x128xf32>
    %194 = arith.mulf %181, %187 : vector<8x128xf32>
    %195 = arith.addf %193, %194 : vector<8x128xf32>
    %196 = math.tanh %195 : vector<8x128xf32>
    %197 = arith.mulf %192, %196 : vector<8x128xf32>
    %198 = tpu.concatenate %197, %171 in 1 : vector<8x128xf32>, vector<8x128xf32> -> vector<8x256xf32>
    %199 = arith.truncf %198 : vector<8x256xf32> to vector<8x256xbf16>
    %c0_74 = arith.constant 0 : index
    %c0_75 = arith.constant 0 : index
    %200 = vector.load %arg3[%c0_74, %c0_75] : memref<256x1024xbf16, #tpu.memory_space<vmem>>, vector<256x1024xbf16>
    %cst_76 = arith.constant dense<0.000000e+00> : vector<8x1024xf32>
    %201 = tpu.matmul %199, %200, %cst_76 {dimension_numbers = #tpu.dot_dimension_numbers<[1], [0], [0], [1], [0, 0, 1, 1], [], []>} : vector<8x256xbf16>, vector<256x1024xbf16>, vector<8x1024xf32> -> vector<8x1024xf32>
    %202 = vector.extract_strided_slice %201 {offsets = [0, 512], sizes = [8, 512], strides = [1, 1]} : vector<8x1024xf32> to vector<8x512xf32>
    %203 = arith.addf %202, %9 : vector<8x512xf32>
    %204 = math.tanh %203 : vector<8x512xf32>
    %205 = vector.extract_strided_slice %204 {offsets = [0, 0], sizes = [8, 128], strides = [1, 1]} : vector<8x512xf32> to vector<8x128xf32>
    %cst_77 = arith.constant 5.000000e-01 : f32
    %206 = vector.broadcast %cst_77 : f32 to vector<8x128xf32>
    %207 = arith.mulf %205, %206 : vector<8x128xf32>
    %cst_78 = arith.constant 5.000000e-01 : f32
    %208 = vector.broadcast %cst_78 : f32 to vector<8x128xf32>
    %209 = arith.addf %207, %208 : vector<8x128xf32>
    %210 = vector.extract_strided_slice %204 {offsets = [0, 128], sizes = [8, 128], strides = [1, 1]} : vector<8x512xf32> to vector<8x128xf32>
    %cst_79 = arith.constant 5.000000e-01 : f32
    %211 = vector.broadcast %cst_79 : f32 to vector<8x128xf32>
    %212 = arith.mulf %210, %211 : vector<8x128xf32>
    %cst_80 = arith.constant 5.000000e-01 : f32
    %213 = vector.broadcast %cst_80 : f32 to vector<8x128xf32>
    %214 = arith.addf %212, %213 : vector<8x128xf32>
    %215 = vector.extract_strided_slice %204 {offsets = [0, 256], sizes = [8, 128], strides = [1, 1]} : vector<8x512xf32> to vector<8x128xf32>
    %216 = vector.extract_strided_slice %204 {offsets = [0, 384], sizes = [8, 128], strides = [1, 1]} : vector<8x512xf32> to vector<8x128xf32>
    %cst_81 = arith.constant 5.000000e-01 : f32
    %217 = vector.broadcast %cst_81 : f32 to vector<8x128xf32>
    %218 = arith.mulf %216, %217 : vector<8x128xf32>
    %cst_82 = arith.constant 5.000000e-01 : f32
    %219 = vector.broadcast %cst_82 : f32 to vector<8x128xf32>
    %220 = arith.addf %218, %219 : vector<8x128xf32>
    %221 = arith.mulf %214, %169 : vector<8x128xf32>
    %222 = arith.mulf %209, %215 : vector<8x128xf32>
    %223 = arith.addf %221, %222 : vector<8x128xf32>
    %224 = math.tanh %223 : vector<8x128xf32>
    %225 = arith.mulf %220, %224 : vector<8x128xf32>
    %c24_83 = arith.constant 24 : index
    %c0_84 = arith.constant 0 : index
    %226 = vector.load %arg9[%c24_83, %c0_84] : memref<64x128xf32, #tpu.memory_space<vmem>>, vector<8x128xf32>
    tpu.vector_store %arg9[%c24_83, %c0_84], %225 {strides = array<i32>} : memref<64x128xf32, #tpu.memory_space<vmem>>, vector<8x128xf32>,
    %227 = vector.extract_strided_slice %201 {offsets = [0, 0], sizes = [8, 512], strides = [1, 1]} : vector<8x1024xf32> to vector<8x512xf32>
    %c32 = arith.constant 32 : index
    %c0_85 = arith.constant 0 : index
    %228 = vector.load %arg8[%c32, %c0_85] : memref<64x512xf32, #tpu.memory_space<vmem>>, vector<8x512xf32>
    %229 = arith.addf %227, %228 : vector<8x512xf32>
    %230 = math.tanh %229 : vector<8x512xf32>
    %231 = vector.extract_strided_slice %230 {offsets = [0, 0], sizes = [8, 128], strides = [1, 1]} : vector<8x512xf32> to vector<8x128xf32>
    %cst_86 = arith.constant 5.000000e-01 : f32
    %232 = vector.broadcast %cst_86 : f32 to vector<8x128xf32>
    %233 = arith.mulf %231, %232 : vector<8x128xf32>
    %cst_87 = arith.constant 5.000000e-01 : f32
    %234 = vector.broadcast %cst_87 : f32 to vector<8x128xf32>
    %235 = arith.addf %233, %234 : vector<8x128xf32>
    %236 = vector.extract_strided_slice %230 {offsets = [0, 128], sizes = [8, 128], strides = [1, 1]} : vector<8x512xf32> to vector<8x128xf32>
    %cst_88 = arith.constant 5.000000e-01 : f32
    %237 = vector.broadcast %cst_88 : f32 to vector<8x128xf32>
    %238 = arith.mulf %236, %237 : vector<8x128xf32>
    %cst_89 = arith.constant 5.000000e-01 : f32
    %239 = vector.broadcast %cst_89 : f32 to vector<8x128xf32>
    %240 = arith.addf %238, %239 : vector<8x128xf32>
    %241 = vector.extract_strided_slice %230 {offsets = [0, 256], sizes = [8, 128], strides = [1, 1]} : vector<8x512xf32> to vector<8x128xf32>
    %242 = vector.extract_strided_slice %230 {offsets = [0, 384], sizes = [8, 128], strides = [1, 1]} : vector<8x512xf32> to vector<8x128xf32>
    %cst_90 = arith.constant 5.000000e-01 : f32
    %243 = vector.broadcast %cst_90 : f32 to vector<8x128xf32>
    %244 = arith.mulf %242, %243 : vector<8x128xf32>
    %cst_91 = arith.constant 5.000000e-01 : f32
    %245 = vector.broadcast %cst_91 : f32 to vector<8x128xf32>
    %246 = arith.addf %244, %245 : vector<8x128xf32>
    %247 = arith.mulf %240, %195 : vector<8x128xf32>
    %248 = arith.mulf %235, %241 : vector<8x128xf32>
    %249 = arith.addf %247, %248 : vector<8x128xf32>
    %250 = math.tanh %249 : vector<8x128xf32>
    %251 = arith.mulf %246, %250 : vector<8x128xf32>
    %252 = tpu.concatenate %251, %225 in 1 : vector<8x128xf32>, vector<8x128xf32> -> vector<8x256xf32>
    %253 = arith.truncf %252 : vector<8x256xf32> to vector<8x256xbf16>
    %c0_92 = arith.constant 0 : index
    %c0_93 = arith.constant 0 : index
    %254 = vector.load %arg3[%c0_92, %c0_93] : memref<256x1024xbf16, #tpu.memory_space<vmem>>, vector<256x1024xbf16>
    %cst_94 = arith.constant dense<0.000000e+00> : vector<8x1024xf32>
    %255 = tpu.matmul %253, %254, %cst_94 {dimension_numbers = #tpu.dot_dimension_numbers<[1], [0], [0], [1], [0, 0, 1, 1], [], []>} : vector<8x256xbf16>, vector<256x1024xbf16>, vector<8x1024xf32> -> vector<8x1024xf32>
    %256 = vector.extract_strided_slice %255 {offsets = [0, 512], sizes = [8, 512], strides = [1, 1]} : vector<8x1024xf32> to vector<8x512xf32>
    %257 = arith.addf %256, %9 : vector<8x512xf32>
    %258 = math.tanh %257 : vector<8x512xf32>
    %259 = vector.extract_strided_slice %258 {offsets = [0, 0], sizes = [8, 128], strides = [1, 1]} : vector<8x512xf32> to vector<8x128xf32>
    %cst_95 = arith.constant 5.000000e-01 : f32
    %260 = vector.broadcast %cst_95 : f32 to vector<8x128xf32>
    %261 = arith.mulf %259, %260 : vector<8x128xf32>
    %cst_96 = arith.constant 5.000000e-01 : f32
    %262 = vector.broadcast %cst_96 : f32 to vector<8x128xf32>
    %263 = arith.addf %261, %262 : vector<8x128xf32>
    %264 = vector.extract_strided_slice %258 {offsets = [0, 128], sizes = [8, 128], strides = [1, 1]} : vector<8x512xf32> to vector<8x128xf32>
    %cst_97 = arith.constant 5.000000e-01 : f32
    %265 = vector.broadcast %cst_97 : f32 to vector<8x128xf32>
    %266 = arith.mulf %264, %265 : vector<8x128xf32>
    %cst_98 = arith.constant 5.000000e-01 : f32
    %267 = vector.broadcast %cst_98 : f32 to vector<8x128xf32>
    %268 = arith.addf %266, %267 : vector<8x128xf32>
    %269 = vector.extract_strided_slice %258 {offsets = [0, 256], sizes = [8, 128], strides = [1, 1]} : vector<8x512xf32> to vector<8x128xf32>
    %270 = vector.extract_strided_slice %258 {offsets = [0, 384], sizes = [8, 128], strides = [1, 1]} : vector<8x512xf32> to vector<8x128xf32>
    %cst_99 = arith.constant 5.000000e-01 : f32
    %271 = vector.broadcast %cst_99 : f32 to vector<8x128xf32>
    %272 = arith.mulf %270, %271 : vector<8x128xf32>
    %cst_100 = arith.constant 5.000000e-01 : f32
    %273 = vector.broadcast %cst_100 : f32 to vector<8x128xf32>
    %274 = arith.addf %272, %273 : vector<8x128xf32>
    %275 = arith.mulf %268, %223 : vector<8x128xf32>
    %276 = arith.mulf %263, %269 : vector<8x128xf32>
    %277 = arith.addf %275, %276 : vector<8x128xf32>
    %278 = math.tanh %277 : vector<8x128xf32>
    %279 = arith.mulf %274, %278 : vector<8x128xf32>
    %c32_101 = arith.constant 32 : index
    %c0_102 = arith.constant 0 : index
    %280 = vector.load %arg9[%c32_101, %c0_102] : memref<64x128xf32, #tpu.memory_space<vmem>>, vector<8x128xf32>
    tpu.vector_store %arg9[%c32_101, %c0_102], %279 {strides = array<i32>} : memref<64x128xf32, #tpu.memory_space<vmem>>, vector<8x128xf32>,
    %281 = vector.extract_strided_slice %255 {offsets = [0, 0], sizes = [8, 512], strides = [1, 1]} : vector<8x1024xf32> to vector<8x512xf32>
    %c40 = arith.constant 40 : index
    %c0_103 = arith.constant 0 : index
    %282 = vector.load %arg8[%c40, %c0_103] : memref<64x512xf32, #tpu.memory_space<vmem>>, vector<8x512xf32>
    %283 = arith.addf %281, %282 : vector<8x512xf32>
    %284 = math.tanh %283 : vector<8x512xf32>
    %285 = vector.extract_strided_slice %284 {offsets = [0, 0], sizes = [8, 128], strides = [1, 1]} : vector<8x512xf32> to vector<8x128xf32>
    %cst_104 = arith.constant 5.000000e-01 : f32
    %286 = vector.broadcast %cst_104 : f32 to vector<8x128xf32>
    %287 = arith.mulf %285, %286 : vector<8x128xf32>
    %cst_105 = arith.constant 5.000000e-01 : f32
    %288 = vector.broadcast %cst_105 : f32 to vector<8x128xf32>
    %289 = arith.addf %287, %288 : vector<8x128xf32>
    %290 = vector.extract_strided_slice %284 {offsets = [0, 128], sizes = [8, 128], strides = [1, 1]} : vector<8x512xf32> to vector<8x128xf32>
    %cst_106 = arith.constant 5.000000e-01 : f32
    %291 = vector.broadcast %cst_106 : f32 to vector<8x128xf32>
    %292 = arith.mulf %290, %291 : vector<8x128xf32>
    %cst_107 = arith.constant 5.000000e-01 : f32
    %293 = vector.broadcast %cst_107 : f32 to vector<8x128xf32>
    %294 = arith.addf %292, %293 : vector<8x128xf32>
    %295 = vector.extract_strided_slice %284 {offsets = [0, 256], sizes = [8, 128], strides = [1, 1]} : vector<8x512xf32> to vector<8x128xf32>
    %296 = vector.extract_strided_slice %284 {offsets = [0, 384], sizes = [8, 128], strides = [1, 1]} : vector<8x512xf32> to vector<8x128xf32>
    %cst_108 = arith.constant 5.000000e-01 : f32
    %297 = vector.broadcast %cst_108 : f32 to vector<8x128xf32>
    %298 = arith.mulf %296, %297 : vector<8x128xf32>
    %cst_109 = arith.constant 5.000000e-01 : f32
    %299 = vector.broadcast %cst_109 : f32 to vector<8x128xf32>
    %300 = arith.addf %298, %299 : vector<8x128xf32>
    %301 = arith.mulf %294, %249 : vector<8x128xf32>
    %302 = arith.mulf %289, %295 : vector<8x128xf32>
    %303 = arith.addf %301, %302 : vector<8x128xf32>
    %304 = math.tanh %303 : vector<8x128xf32>
    %305 = arith.mulf %300, %304 : vector<8x128xf32>
    %306 = tpu.concatenate %305, %279 in 1 : vector<8x128xf32>, vector<8x128xf32> -> vector<8x256xf32>
    %307 = arith.truncf %306 : vector<8x256xf32> to vector<8x256xbf16>
    %c0_110 = arith.constant 0 : index
    %c0_111 = arith.constant 0 : index
    %308 = vector.load %arg3[%c0_110, %c0_111] : memref<256x1024xbf16, #tpu.memory_space<vmem>>, vector<256x1024xbf16>
    %cst_112 = arith.constant dense<0.000000e+00> : vector<8x1024xf32>
    %309 = tpu.matmul %307, %308, %cst_112 {dimension_numbers = #tpu.dot_dimension_numbers<[1], [0], [0], [1], [0, 0, 1, 1], [], []>} : vector<8x256xbf16>, vector<256x1024xbf16>, vector<8x1024xf32> -> vector<8x1024xf32>
    %310 = vector.extract_strided_slice %309 {offsets = [0, 512], sizes = [8, 512], strides = [1, 1]} : vector<8x1024xf32> to vector<8x512xf32>
    %311 = arith.addf %310, %9 : vector<8x512xf32>
    %312 = math.tanh %311 : vector<8x512xf32>
    %313 = vector.extract_strided_slice %312 {offsets = [0, 0], sizes = [8, 128], strides = [1, 1]} : vector<8x512xf32> to vector<8x128xf32>
    %cst_113 = arith.constant 5.000000e-01 : f32
    %314 = vector.broadcast %cst_113 : f32 to vector<8x128xf32>
    %315 = arith.mulf %313, %314 : vector<8x128xf32>
    %cst_114 = arith.constant 5.000000e-01 : f32
    %316 = vector.broadcast %cst_114 : f32 to vector<8x128xf32>
    %317 = arith.addf %315, %316 : vector<8x128xf32>
    %318 = vector.extract_strided_slice %312 {offsets = [0, 128], sizes = [8, 128], strides = [1, 1]} : vector<8x512xf32> to vector<8x128xf32>
    %cst_115 = arith.constant 5.000000e-01 : f32
    %319 = vector.broadcast %cst_115 : f32 to vector<8x128xf32>
    %320 = arith.mulf %318, %319 : vector<8x128xf32>
    %cst_116 = arith.constant 5.000000e-01 : f32
    %321 = vector.broadcast %cst_116 : f32 to vector<8x128xf32>
    %322 = arith.addf %320, %321 : vector<8x128xf32>
    %323 = vector.extract_strided_slice %312 {offsets = [0, 256], sizes = [8, 128], strides = [1, 1]} : vector<8x512xf32> to vector<8x128xf32>
    %324 = vector.extract_strided_slice %312 {offsets = [0, 384], sizes = [8, 128], strides = [1, 1]} : vector<8x512xf32> to vector<8x128xf32>
    %cst_117 = arith.constant 5.000000e-01 : f32
    %325 = vector.broadcast %cst_117 : f32 to vector<8x128xf32>
    %326 = arith.mulf %324, %325 : vector<8x128xf32>
    %cst_118 = arith.constant 5.000000e-01 : f32
    %327 = vector.broadcast %cst_118 : f32 to vector<8x128xf32>
    %328 = arith.addf %326, %327 : vector<8x128xf32>
    %329 = arith.mulf %322, %277 : vector<8x128xf32>
    %330 = arith.mulf %317, %323 : vector<8x128xf32>
    %331 = arith.addf %329, %330 : vector<8x128xf32>
    %332 = math.tanh %331 : vector<8x128xf32>
    %333 = arith.mulf %328, %332 : vector<8x128xf32>
    %c40_119 = arith.constant 40 : index
    %c0_120 = arith.constant 0 : index
    %334 = vector.load %arg9[%c40_119, %c0_120] : memref<64x128xf32, #tpu.memory_space<vmem>>, vector<8x128xf32>
    tpu.vector_store %arg9[%c40_119, %c0_120], %333 {strides = array<i32>} : memref<64x128xf32, #tpu.memory_space<vmem>>, vector<8x128xf32>,
    %335 = vector.extract_strided_slice %309 {offsets = [0, 0], sizes = [8, 512], strides = [1, 1]} : vector<8x1024xf32> to vector<8x512xf32>
    %c48 = arith.constant 48 : index
    %c0_121 = arith.constant 0 : index
    %336 = vector.load %arg8[%c48, %c0_121] : memref<64x512xf32, #tpu.memory_space<vmem>>, vector<8x512xf32>
    %337 = arith.addf %335, %336 : vector<8x512xf32>
    %338 = math.tanh %337 : vector<8x512xf32>
    %339 = vector.extract_strided_slice %338 {offsets = [0, 0], sizes = [8, 128], strides = [1, 1]} : vector<8x512xf32> to vector<8x128xf32>
    %cst_122 = arith.constant 5.000000e-01 : f32
    %340 = vector.broadcast %cst_122 : f32 to vector<8x128xf32>
    %341 = arith.mulf %339, %340 : vector<8x128xf32>
    %cst_123 = arith.constant 5.000000e-01 : f32
    %342 = vector.broadcast %cst_123 : f32 to vector<8x128xf32>
    %343 = arith.addf %341, %342 : vector<8x128xf32>
    %344 = vector.extract_strided_slice %338 {offsets = [0, 128], sizes = [8, 128], strides = [1, 1]} : vector<8x512xf32> to vector<8x128xf32>
    %cst_124 = arith.constant 5.000000e-01 : f32
    %345 = vector.broadcast %cst_124 : f32 to vector<8x128xf32>
    %346 = arith.mulf %344, %345 : vector<8x128xf32>
    %cst_125 = arith.constant 5.000000e-01 : f32
    %347 = vector.broadcast %cst_125 : f32 to vector<8x128xf32>
    %348 = arith.addf %346, %347 : vector<8x128xf32>
    %349 = vector.extract_strided_slice %338 {offsets = [0, 256], sizes = [8, 128], strides = [1, 1]} : vector<8x512xf32> to vector<8x128xf32>
    %350 = vector.extract_strided_slice %338 {offsets = [0, 384], sizes = [8, 128], strides = [1, 1]} : vector<8x512xf32> to vector<8x128xf32>
    %cst_126 = arith.constant 5.000000e-01 : f32
    %351 = vector.broadcast %cst_126 : f32 to vector<8x128xf32>
    %352 = arith.mulf %350, %351 : vector<8x128xf32>
    %cst_127 = arith.constant 5.000000e-01 : f32
    %353 = vector.broadcast %cst_127 : f32 to vector<8x128xf32>
    %354 = arith.addf %352, %353 : vector<8x128xf32>
    %355 = arith.mulf %348, %303 : vector<8x128xf32>
    %356 = arith.mulf %343, %349 : vector<8x128xf32>
    %357 = arith.addf %355, %356 : vector<8x128xf32>
    %358 = math.tanh %357 : vector<8x128xf32>
    %359 = arith.mulf %354, %358 : vector<8x128xf32>
    %360 = tpu.concatenate %359, %333 in 1 : vector<8x128xf32>, vector<8x128xf32> -> vector<8x256xf32>
    %361 = arith.truncf %360 : vector<8x256xf32> to vector<8x256xbf16>
    %c0_128 = arith.constant 0 : index
    %c0_129 = arith.constant 0 : index
    %362 = vector.load %arg3[%c0_128, %c0_129] : memref<256x1024xbf16, #tpu.memory_space<vmem>>, vector<256x1024xbf16>
    %cst_130 = arith.constant dense<0.000000e+00> : vector<8x1024xf32>
    %363 = tpu.matmul %361, %362, %cst_130 {dimension_numbers = #tpu.dot_dimension_numbers<[1], [0], [0], [1], [0, 0, 1, 1], [], []>} : vector<8x256xbf16>, vector<256x1024xbf16>, vector<8x1024xf32> -> vector<8x1024xf32>
    %364 = vector.extract_strided_slice %363 {offsets = [0, 512], sizes = [8, 512], strides = [1, 1]} : vector<8x1024xf32> to vector<8x512xf32>
    %365 = arith.addf %364, %9 : vector<8x512xf32>
    %366 = math.tanh %365 : vector<8x512xf32>
    %367 = vector.extract_strided_slice %366 {offsets = [0, 0], sizes = [8, 128], strides = [1, 1]} : vector<8x512xf32> to vector<8x128xf32>
    %cst_131 = arith.constant 5.000000e-01 : f32
    %368 = vector.broadcast %cst_131 : f32 to vector<8x128xf32>
    %369 = arith.mulf %367, %368 : vector<8x128xf32>
    %cst_132 = arith.constant 5.000000e-01 : f32
    %370 = vector.broadcast %cst_132 : f32 to vector<8x128xf32>
    %371 = arith.addf %369, %370 : vector<8x128xf32>
    %372 = vector.extract_strided_slice %366 {offsets = [0, 128], sizes = [8, 128], strides = [1, 1]} : vector<8x512xf32> to vector<8x128xf32>
    %cst_133 = arith.constant 5.000000e-01 : f32
    %373 = vector.broadcast %cst_133 : f32 to vector<8x128xf32>
    %374 = arith.mulf %372, %373 : vector<8x128xf32>
    %cst_134 = arith.constant 5.000000e-01 : f32
    %375 = vector.broadcast %cst_134 : f32 to vector<8x128xf32>
    %376 = arith.addf %374, %375 : vector<8x128xf32>
    %377 = vector.extract_strided_slice %366 {offsets = [0, 256], sizes = [8, 128], strides = [1, 1]} : vector<8x512xf32> to vector<8x128xf32>
    %378 = vector.extract_strided_slice %366 {offsets = [0, 384], sizes = [8, 128], strides = [1, 1]} : vector<8x512xf32> to vector<8x128xf32>
    %cst_135 = arith.constant 5.000000e-01 : f32
    %379 = vector.broadcast %cst_135 : f32 to vector<8x128xf32>
    %380 = arith.mulf %378, %379 : vector<8x128xf32>
    %cst_136 = arith.constant 5.000000e-01 : f32
    %381 = vector.broadcast %cst_136 : f32 to vector<8x128xf32>
    %382 = arith.addf %380, %381 : vector<8x128xf32>
    %383 = arith.mulf %376, %331 : vector<8x128xf32>
    %384 = arith.mulf %371, %377 : vector<8x128xf32>
    %385 = arith.addf %383, %384 : vector<8x128xf32>
    %386 = math.tanh %385 : vector<8x128xf32>
    %387 = arith.mulf %382, %386 : vector<8x128xf32>
    %c48_137 = arith.constant 48 : index
    %c0_138 = arith.constant 0 : index
    %388 = vector.load %arg9[%c48_137, %c0_138] : memref<64x128xf32, #tpu.memory_space<vmem>>, vector<8x128xf32>
    tpu.vector_store %arg9[%c48_137, %c0_138], %387 {strides = array<i32>} : memref<64x128xf32, #tpu.memory_space<vmem>>, vector<8x128xf32>,
    %389 = vector.extract_strided_slice %363 {offsets = [0, 0], sizes = [8, 512], strides = [1, 1]} : vector<8x1024xf32> to vector<8x512xf32>
    %c56 = arith.constant 56 : index
    %c0_139 = arith.constant 0 : index
    %390 = vector.load %arg8[%c56, %c0_139] : memref<64x512xf32, #tpu.memory_space<vmem>>, vector<8x512xf32>
    %391 = arith.addf %389, %390 : vector<8x512xf32>
    %392 = math.tanh %391 : vector<8x512xf32>
    %393 = vector.extract_strided_slice %392 {offsets = [0, 0], sizes = [8, 128], strides = [1, 1]} : vector<8x512xf32> to vector<8x128xf32>
    %cst_140 = arith.constant 5.000000e-01 : f32
    %394 = vector.broadcast %cst_140 : f32 to vector<8x128xf32>
    %395 = arith.mulf %393, %394 : vector<8x128xf32>
    %cst_141 = arith.constant 5.000000e-01 : f32
    %396 = vector.broadcast %cst_141 : f32 to vector<8x128xf32>
    %397 = arith.addf %395, %396 : vector<8x128xf32>
    %398 = vector.extract_strided_slice %392 {offsets = [0, 128], sizes = [8, 128], strides = [1, 1]} : vector<8x512xf32> to vector<8x128xf32>
    %cst_142 = arith.constant 5.000000e-01 : f32
    %399 = vector.broadcast %cst_142 : f32 to vector<8x128xf32>
    %400 = arith.mulf %398, %399 : vector<8x128xf32>
    %cst_143 = arith.constant 5.000000e-01 : f32
    %401 = vector.broadcast %cst_143 : f32 to vector<8x128xf32>
    %402 = arith.addf %400, %401 : vector<8x128xf32>
    %403 = vector.extract_strided_slice %392 {offsets = [0, 256], sizes = [8, 128], strides = [1, 1]} : vector<8x512xf32> to vector<8x128xf32>
    %404 = vector.extract_strided_slice %392 {offsets = [0, 384], sizes = [8, 128], strides = [1, 1]} : vector<8x512xf32> to vector<8x128xf32>
    %cst_144 = arith.constant 5.000000e-01 : f32
    %405 = vector.broadcast %cst_144 : f32 to vector<8x128xf32>
    %406 = arith.mulf %404, %405 : vector<8x128xf32>
    %cst_145 = arith.constant 5.000000e-01 : f32
    %407 = vector.broadcast %cst_145 : f32 to vector<8x128xf32>
    %408 = arith.addf %406, %407 : vector<8x128xf32>
    %409 = arith.mulf %402, %357 : vector<8x128xf32>
    %410 = arith.mulf %397, %403 : vector<8x128xf32>
    %411 = arith.addf %409, %410 : vector<8x128xf32>
    %412 = math.tanh %411 : vector<8x128xf32>
    %413 = arith.mulf %408, %412 : vector<8x128xf32>
    %414 = tpu.concatenate %413, %387 in 1 : vector<8x128xf32>, vector<8x128xf32> -> vector<8x256xf32>
    %415 = arith.truncf %414 : vector<8x256xf32> to vector<8x256xbf16>
    %c0_146 = arith.constant 0 : index
    %c0_147 = arith.constant 0 : index
    %416 = vector.load %arg3[%c0_146, %c0_147] : memref<256x1024xbf16, #tpu.memory_space<vmem>>, vector<256x1024xbf16>
    %cst_148 = arith.constant dense<0.000000e+00> : vector<8x1024xf32>
    %417 = tpu.matmul %415, %416, %cst_148 {dimension_numbers = #tpu.dot_dimension_numbers<[1], [0], [0], [1], [0, 0, 1, 1], [], []>} : vector<8x256xbf16>, vector<256x1024xbf16>, vector<8x1024xf32> -> vector<8x1024xf32>
    %418 = vector.extract_strided_slice %417 {offsets = [0, 512], sizes = [8, 512], strides = [1, 1]} : vector<8x1024xf32> to vector<8x512xf32>
    %419 = arith.addf %418, %9 : vector<8x512xf32>
    %420 = math.tanh %419 : vector<8x512xf32>
    %421 = vector.extract_strided_slice %420 {offsets = [0, 0], sizes = [8, 128], strides = [1, 1]} : vector<8x512xf32> to vector<8x128xf32>
    %cst_149 = arith.constant 5.000000e-01 : f32
    %422 = vector.broadcast %cst_149 : f32 to vector<8x128xf32>
    %423 = arith.mulf %421, %422 : vector<8x128xf32>
    %cst_150 = arith.constant 5.000000e-01 : f32
    %424 = vector.broadcast %cst_150 : f32 to vector<8x128xf32>
    %425 = arith.addf %423, %424 : vector<8x128xf32>
    %426 = vector.extract_strided_slice %420 {offsets = [0, 128], sizes = [8, 128], strides = [1, 1]} : vector<8x512xf32> to vector<8x128xf32>
    %cst_151 = arith.constant 5.000000e-01 : f32
    %427 = vector.broadcast %cst_151 : f32 to vector<8x128xf32>
    %428 = arith.mulf %426, %427 : vector<8x128xf32>
    %cst_152 = arith.constant 5.000000e-01 : f32
    %429 = vector.broadcast %cst_152 : f32 to vector<8x128xf32>
    %430 = arith.addf %428, %429 : vector<8x128xf32>
    %431 = vector.extract_strided_slice %420 {offsets = [0, 256], sizes = [8, 128], strides = [1, 1]} : vector<8x512xf32> to vector<8x128xf32>
    %432 = vector.extract_strided_slice %420 {offsets = [0, 384], sizes = [8, 128], strides = [1, 1]} : vector<8x512xf32> to vector<8x128xf32>
    %cst_153 = arith.constant 5.000000e-01 : f32
    %433 = vector.broadcast %cst_153 : f32 to vector<8x128xf32>
    %434 = arith.mulf %432, %433 : vector<8x128xf32>
    %cst_154 = arith.constant 5.000000e-01 : f32
    %435 = vector.broadcast %cst_154 : f32 to vector<8x128xf32>
    %436 = arith.addf %434, %435 : vector<8x128xf32>
    %437 = arith.mulf %430, %385 : vector<8x128xf32>
    %438 = arith.mulf %425, %431 : vector<8x128xf32>
    %439 = arith.addf %437, %438 : vector<8x128xf32>
    %440 = math.tanh %439 : vector<8x128xf32>
    %441 = arith.mulf %436, %440 : vector<8x128xf32>
    %c56_155 = arith.constant 56 : index
    %c0_156 = arith.constant 0 : index
    %442 = vector.load %arg9[%c56_155, %c0_156] : memref<64x128xf32, #tpu.memory_space<vmem>>, vector<8x128xf32>
    tpu.vector_store %arg9[%c56_155, %c0_156], %441 {strides = array<i32>} : memref<64x128xf32, #tpu.memory_space<vmem>>, vector<8x128xf32>,
    %c0_157 = arith.constant 0 : index
    %c0_158 = arith.constant 0 : index
    %443 = vector.load %arg5[%c0_157, %c0_158] : memref<1x128xf32, #tpu.memory_space<vmem>>, vector<1x128xf32>
    %444 = vector.shape_cast %443 : vector<1x128xf32> to vector<1x128xf32>
    %445 = vector.broadcast %444 : vector<1x128xf32> to vector<64x128xf32>
    %c0_159 = arith.constant 0 : index
    %c0_160 = arith.constant 0 : index
    %446 = vector.load %arg9[%c0_159, %c0_160] : memref<64x128xf32, #tpu.memory_space<vmem>>, vector<64x128xf32>
    %447 = arith.mulf %446, %445 : vector<64x128xf32>
    %cst_161 = arith.constant dense<0.000000e+00> : vector<64xf32>
    %448 = vector.multi_reduction <add>, %447, %cst_161 [1] : vector<64x128xf32> to vector<64xf32>
    %449 = vector.shape_cast %448 : vector<64xf32> to vector<64x1xf32>
    %c0_162 = arith.constant 0 : index
    %c0_163 = arith.constant 0 : index
    %450 = vector.load %arg6[%c0_162, %c0_163] : memref<1x1xf32, #tpu.memory_space<vmem>>, vector<1x1xf32>
    %451 = vector.broadcast %450 : vector<1x1xf32> to vector<64x1xf32>
    %452 = arith.addf %449, %451 : vector<64x1xf32>
    %c0_164 = arith.constant 0 : index
    %c0_165 = arith.constant 0 : index
    %453 = vector.load %arg7[%c0_164, %c0_165] : memref<64x1xf32, #tpu.memory_space<vmem>>, vector<64x1xf32>
    tpu.vector_store %arg7[%c0_164, %c0_165], %452 {strides = array<i32>} : memref<64x1xf32, #tpu.memory_space<vmem>>, vector<64x1xf32>,
    return
  }
}

</mosaic_0001>

<llo_original>
// kernel: rnn_forward.1
$region0: #{rnn_forward.1}
  #allocation0 [shape = 'u32[]', space=smem, size = 0x4, offset = 0x4, fixed_abs, tag = 'smem constant byte address 0x4 - core index']
  #allocation1 [shape = 'u32[144,128]{1,0:T(1,128)}', space=vmem, size = 0x12000, scoped, tag = 'internal scratch']
  #allocation2 [shape = 'f32[64,512]{1,0:T(8,128)}', space=vmem, size = 0x20000, scoped, tag = 'scratch operand']
  #allocation3 [shape = 'f32[64,128]{1,0:T(8,128)}', space=vmem, size = 0x8000, scoped, tag = 'scratch operand']
  #allocation4 [shape = 'f32[1,1]{1,0:T(1,128)S(1)}', space=vmem, size = 0x200, scoped, tag = 'scoped memory for rnn_forward.1']
  %s0 = inlined_call_operand.vmem [shape: bf16[64,64], index: 0, kind: input, shape index: {}]
  %s1 = inlined_call_operand.vmem [shape: bf16[64,512], index: 1, kind: input, shape index: {}]
  %s2 = inlined_call_operand.vmem [shape: f32[1,512], index: 2, kind: input, shape index: {}]
  %s3 = inlined_call_operand.vmem [shape: bf16[256,1024], index: 3, kind: input, shape index: {}]
  %s4 = inlined_call_operand.vmem [shape: f32[1,512], index: 4, kind: input, shape index: {}]
  %s5 = inlined_call_operand.vmem [shape: f32[1,128], index: 5, kind: input, shape index: {}]
  %s6 = inlined_call_operand.<no memory space> [shape: f32[1,1], index: 6, kind: input, shape index: {}]
  %s7 = inlined_call_operand.vmem [shape: f32[64,1], index: 7, kind: output, shape index: {}]
  %s8 = sld [smem:[#allocation0]]
  $region38: #{rnn_forward.1} parent=0
    _
  %s10 = ssub.s32 1, %s8
  %s11 = scalar_select 0, %s10, %s8
  %v12 = vstv %s6
  %13 = vst [vmem:[#allocation4] sm:$0x1] %v12
  // Predicated region
  $region2: #{rnn_forward.1} parent=0 // pred_check
    _
  $region3: #{rnn_forward.1} parent=0 // pred_check_branch
    %15 = sbr.rel (0) target = $region5
  $region4: #{rnn_forward.1} parent=0 // pred_region
    _
  $region5: #{rnn_forward.1} parent=0 // pred_fallthru
    _
  // Predicated region
  $region6: #{rnn_forward.1} parent=0 // pred_check
    _
  $region7: #{rnn_forward.1} parent=0 // pred_check_branch
    %17 = sbr.rel (0) target = $region9
  $region8: #{rnn_forward.1} parent=0 // pred_region
    _
  $region9: #{rnn_forward.1} parent=0 // pred_fallthru
    _
  // Predicated region
  $region10: #{rnn_forward.1} parent=0 // pred_check
    _
  $region11: #{rnn_forward.1} parent=0 // pred_check_branch
    %19 = sbr.rel (0) target = $region13
  $region12: #{rnn_forward.1} parent=0 // pred_region
    _
  $region13: #{rnn_forward.1} parent=0 // pred_fallthru
    _
  // Predicated region
  $region14: #{rnn_forward.1} parent=0 // pred_check
    _
  $region15: #{rnn_forward.1} parent=0 // pred_check_branch
    %21 = sbr.rel (0) target = $region17
  $region16: #{rnn_forward.1} parent=0 // pred_region
    _
  $region17: #{rnn_forward.1} parent=0 // pred_fallthru
    _
  // Predicated region
  $region18: #{rnn_forward.1} parent=0 // pred_check
    _
  $region19: #{rnn_forward.1} parent=0 // pred_check_branch
    %23 = sbr.rel (0) target = $region21
  $region20: #{rnn_forward.1} parent=0 // pred_region
    _
  $region21: #{rnn_forward.1} parent=0 // pred_fallthru
    _
  // Predicated region
  $region22: #{rnn_forward.1} parent=0 // pred_check
    _
  $region23: #{rnn_forward.1} parent=0 // pred_check_branch
    %25 = sbr.rel (0) target = $region25
  $region24: #{rnn_forward.1} parent=0 // pred_region
    _
  $region25: #{rnn_forward.1} parent=0 // pred_fallthru
    _
  // Predicated region
  $region26: #{rnn_forward.1} parent=0 // pred_check
    _
  $region27: #{rnn_forward.1} parent=0 // pred_check_branch
    %27 = sbr.rel (0) target = $region29
  $region28: #{rnn_forward.1} parent=0 // pred_region
    _
  $region29: #{rnn_forward.1} parent=0 // pred_fallthru
    _
  %v29 = vld [vmem:[%s0] sm:$0xf]
  %v30 = vld [vmem:[%s0 + $0x4] sm:$0xf]
  %v31 = vld [vmem:[%s0 + $0x8] sm:$0xf]
  %v32 = vld [vmem:[%s0 + $0xc] sm:$0xf]
  %v33 = vld [vmem:[%s0 + $0x10] sm:$0xf]
  %v34 = vld [vmem:[%s0 + $0x14] sm:$0xf]
  %v35 = vld [vmem:[%s0 + $0x18] sm:$0xf]
  %v36 = vld [vmem:[%s0 + $0x1c] sm:$0xf]
  %v37 = vld [vmem:[%s1] sm:$0xff]
  %v38 = vld [vmem:[%s1 + $0x8] sm:$0xff]
  %v39 = vld [vmem:[%s1 + $0x10] sm:$0xff]
  %v40 = vld [vmem:[%s1 + $0x18] sm:$0xff]
  %v41 = vld [vmem:[%s1 + $0x20] sm:$0xff]
  %v42 = vld [vmem:[%s1 + $0x28] sm:$0xff]
  %v43 = vld [vmem:[%s1 + $0x30] sm:$0xff]
  %v44 = vld [vmem:[%s1 + $0x38] sm:$0xff]
  %v45 = vld [vmem:[%s1 + $0x40] sm:$0xff]
  %v46 = vld [vmem:[%s1 + $0x48] sm:$0xff]
  %v47 = vld [vmem:[%s1 + $0x50] sm:$0xff]
  %v48 = vld [vmem:[%s1 + $0x58] sm:$0xff]
  %v49 = vld [vmem:[%s1 + $0x60] sm:$0xff]
  %v50 = vld [vmem:[%s1 + $0x68] sm:$0xff]
  %v51 = vld [vmem:[%s1 + $0x70] sm:$0xff]
  %v52 = vld [vmem:[%s1 + $0x78] sm:$0xff]
  %v53 = vld [vmem:[%s2] sm:$0xf]
  %v55 = vlaneseq
  %v56 = vshrl.u32 %v55, 7
  %v57 = vsub.s32 0, %v56
  %v58 = vrot.slane %v53, %v57
  %v59 = vlaneseq
  %v60 = vshrl.u32 %v59, 7
  %v61 = vsub.s32 1, %v60
  %v62 = vrot.slane %v53, %v61
  %v63 = vlaneseq
  %v64 = vshrl.u32 %v63, 7
  %v65 = vsub.s32 2, %v64
  %v66 = vrot.slane %v53, %v65
  %v67 = vlaneseq
  %v68 = vshrl.u32 %v67, 7
  %v69 = vsub.s32 3, %v68
  %v70 = vrot.slane %v53, %v69
  %v83 = vunpack.c.l.b16 %v29
  %v84 = vunpack.c.l.b16 %v30
  %v85 = vunpack.c.l.b16 %v31
  %v86 = vunpack.c.l.b16 %v32
  %v87 = vunpack.c.l.b16 %v33
  %v88 = vunpack.c.l.b16 %v34
  %v89 = vunpack.c.l.b16 %v35
  %v90 = vunpack.c.l.b16 %v36
  %v91 = vpack.c.b16 %v84, %v83
  %v92 = vpack.c.b16 %v86, %v85
  %v93 = vpack.c.b16 %v88, %v87
  %v94 = vpack.c.b16 %v90, %v89
  %v111 = vunpack.c.l.b16 %v37
  %v112 = vunpack.c.h.b16 %v37
  %v113 = vunpack.c.l.b16 %v38
  %v114 = vunpack.c.h.b16 %v38
  %v115 = vunpack.c.l.b16 %v39
  %v116 = vunpack.c.h.b16 %v39
  %v117 = vunpack.c.l.b16 %v40
  %v118 = vunpack.c.h.b16 %v40
  %v119 = vunpack.c.l.b16 %v41
  %v120 = vunpack.c.h.b16 %v41
  %v121 = vunpack.c.l.b16 %v42
  %v122 = vunpack.c.h.b16 %v42
  %v123 = vunpack.c.l.b16 %v43
  %v124 = vunpack.c.h.b16 %v43
  %v125 = vunpack.c.l.b16 %v44
  %v126 = vunpack.c.h.b16 %v44
  %v127 = vunpack.c.l.b16 %v45
  %v128 = vunpack.c.h.b16 %v45
  %v129 = vunpack.c.l.b16 %v46
  %v130 = vunpack.c.h.b16 %v46
  %v131 = vunpack.c.l.b16 %v47
  %v132 = vunpack.c.h.b16 %v47
  %v133 = vunpack.c.l.b16 %v48
  %v134 = vunpack.c.h.b16 %v48
  %v135 = vunpack.c.l.b16 %v49
  %v136 = vunpack.c.h.b16 %v49
  %v137 = vunpack.c.l.b16 %v50
  %v138 = vunpack.c.h.b16 %v50
  %v139 = vunpack.c.l.b16 %v51
  %v140 = vunpack.c.h.b16 %v51
  %v141 = vunpack.c.l.b16 %v52
  %v142 = vunpack.c.h.b16 %v52
  %v143 = vpack.c.b16 %v115, %v111
  %v144 = vpack.c.b16 %v116, %v112
  %v145 = vpack.c.b16 %v117, %v113
  %v146 = vpack.c.b16 %v118, %v114
  %v147 = vpack.c.b16 %v123, %v119
  %v148 = vpack.c.b16 %v124, %v120
  %v149 = vpack.c.b16 %v125, %v121
  %v150 = vpack.c.b16 %v126, %v122
  %v151 = vpack.c.b16 %v131, %v127
  %v152 = vpack.c.b16 %v132, %v128
  %v153 = vpack.c.b16 %v133, %v129
  %v154 = vpack.c.b16 %v134, %v130
  %v155 = vpack.c.b16 %v139, %v135
  %v156 = vpack.c.b16 %v140, %v136
  %v157 = vpack.c.b16 %v141, %v137
  %v158 = vpack.c.b16 %v142, %v138
  %vm175 = vcmask 523264
  %v177 = vsel %vm175, %v91, 0
  %v180 = vsel %vm175, %v92, 0
  %v183 = vsel %vm175, %v93, 0
  %v186 = vsel %vm175, %v94, 0
  %188 = vmatprep.subr.bf16.mxu0 0
  %189 = vmatpush1.bf16.msra.mxu0 0
  %190 = vmatprep.subr.bf16.mxu0 0
  %191 = vmatpush1.bf16.msra.mxu0 0
  %192 = vmatprep.subr.bf16.mxu0 0
  %193 = vmatpush1.bf16.msra.mxu0 0
  %194 = vmatprep.subr.bf16.mxu0 0
  %195 = vmatpush1.bf16.msra.mxu0 0
  %196 = vmatprep.subr.bf16.mxu0 %v156
  %197 = vmatpush1.bf16.msra.mxu0 %v155
  %198 = vmatprep.subr.bf16.mxu0 %v152
  %199 = vmatpush1.bf16.msra.mxu0 %v151
  %200 = vmatprep.subr.bf16.mxu0 %v148
  %201 = vmatpush1.bf16.msra.mxu0 %v147
  %202 = vmatprep.subr.bf16.mxu0 %v144
  %203 = vmatpush1.bf16.msra.mxu0 %v143
  %204 = vmatprep.subr.bf16.mxu0 0
  %205 = vmatpush2.bf16.msra.mxu0 0
  %206 = vmatprep.subr.bf16.mxu0 0
  %207 = vmatpush2.bf16.msra.mxu0 0
  %208 = vmatprep.subr.bf16.mxu0 0
  %209 = vmatpush2.bf16.msra.mxu0 0
  %210 = vmatprep.subr.bf16.mxu0 0
  %211 = vmatpush2.bf16.msra.mxu0 0
  %212 = vmatprep.subr.bf16.mxu0 0
  %213 = vmatpush2.bf16.msra.mxu0 0
  %214 = vmatprep.subr.bf16.mxu0 0
  %215 = vmatpush2.bf16.msra.mxu0 0
  %216 = vmatprep.subr.bf16.mxu0 0
  %217 = vmatpush2.bf16.msra.mxu0 0
  %218 = vmatprep.subr.bf16.mxu0 0
  %219 = vmatpush2.bf16.msra.mxu0 0
  %220 = vmatprep.mubr.bf16.mxu0 0
  %221 = vmatmul.mubr.bf16.gmra.mxu0 %v177
  %v222 = vpop.f32.mrf.mxu0
  %v223 = vadd.f32 %v58, %v222
  %v224 = vpop.f32.mrf.mxu0
  %v225 = vadd.f32 %v62, %v224
  %v226 = vpop.f32.mrf.mxu0
  %v227 = vadd.f32 %v58, %v226
  %v228 = vpop.f32.mrf.mxu0
  %v229 = vadd.f32 %v62, %v228
  %230 = vmatprep.mubr.bf16.mxu0 0
  %231 = vmatmul.mubr.bf16.gmra.mxu0 %v180
  %v232 = vpop.f32.mrf.mxu0
  %v233 = vadd.f32 %v58, %v232
  %v234 = vpop.f32.mrf.mxu0
  %v235 = vadd.f32 %v62, %v234
  %v236 = vpop.f32.mrf.mxu0
  %v237 = vadd.f32 %v58, %v236
  %v238 = vpop.f32.mrf.mxu0
  %v239 = vadd.f32 %v62, %v238
  %240 = vmatprep.mubr.bf16.mxu0 0
  %241 = vmatmul.mubr.bf16.gmra.mxu0 %v183
  %v242 = vpop.f32.mrf.mxu0
  %v243 = vadd.f32 %v58, %v242
  %v244 = vpop.f32.mrf.mxu0
  %v245 = vadd.f32 %v62, %v244
  %v246 = vpop.f32.mrf.mxu0
  %v247 = vadd.f32 %v58, %v246
  %v248 = vpop.f32.mrf.mxu0
  %v249 = vadd.f32 %v62, %v248
  %250 = vmatprep.mubr.bf16.mxu0 0
  %251 = vmatmul.mubr.bf16.gmra.mxu0 %v186
  %v252 = vpop.f32.mrf.mxu0
  %v253 = vadd.f32 %v58, %v252
  %v254 = vpop.f32.mrf.mxu0
  %v255 = vadd.f32 %v62, %v254
  %v256 = vpop.f32.mrf.mxu0
  %v257 = vadd.f32 %v58, %v256
  %v258 = vpop.f32.mrf.mxu0
  %v259 = vadd.f32 %v62, %v258
  %260 = vdwg.mxu0
  %261 = vmatprep.subr.bf16.mxu0 0
  %262 = vmatpush1.bf16.msra.mxu0 0
  %263 = vmatprep.subr.bf16.mxu0 0
  %264 = vmatpush1.bf16.msra.mxu0 0
  %265 = vmatprep.subr.bf16.mxu0 0
  %266 = vmatpush1.bf16.msra.mxu0 0
  %267 = vmatprep.subr.bf16.mxu0 0
  %268 = vmatpush1.bf16.msra.mxu0 0
  %269 = vmatprep.subr.bf16.mxu0 %v158
  %270 = vmatpush1.bf16.msra.mxu0 %v157
  %271 = vmatprep.subr.bf16.mxu0 %v154
  %272 = vmatpush1.bf16.msra.mxu0 %v153
  %273 = vmatprep.subr.bf16.mxu0 %v150
  %274 = vmatpush1.bf16.msra.mxu0 %v149
  %275 = vmatprep.subr.bf16.mxu0 %v146
  %276 = vmatpush1.bf16.msra.mxu0 %v145
  %277 = vmatprep.subr.bf16.mxu0 0
  %278 = vmatpush2.bf16.msra.mxu0 0
  %279 = vmatprep.subr.bf16.mxu0 0
  %280 = vmatpush2.bf16.msra.mxu0 0
  %281 = vmatprep.subr.bf16.mxu0 0
  %282 = vmatpush2.bf16.msra.mxu0 0
  %283 = vmatprep.subr.bf16.mxu0 0
  %284 = vmatpush2.bf16.msra.mxu0 0
  %285 = vmatprep.subr.bf16.mxu0 0
  %286 = vmatpush2.bf16.msra.mxu0 0
  %287 = vmatprep.subr.bf16.mxu0 0
  %288 = vmatpush2.bf16.msra.mxu0 0
  %289 = vmatprep.subr.bf16.mxu0 0
  %290 = vmatpush2.bf16.msra.mxu0 0
  %291 = vmatprep.subr.bf16.mxu0 0
  %292 = vmatpush2.bf16.msra.mxu0 0
  %293 = vmatprep.mubr.bf16.mxu0 0
  %294 = vmatmul.mubr.bf16.gmra.mxu0 %v177
  %v295 = vpop.f32.mrf.mxu0
  %v296 = vadd.f32 %v66, %v295
  %v297 = vpop.f32.mrf.mxu0
  %v298 = vadd.f32 %v70, %v297
  %v299 = vpop.f32.mrf.mxu0
  %v300 = vadd.f32 %v66, %v299
  %v301 = vpop.f32.mrf.mxu0
  %v302 = vadd.f32 %v70, %v301
  %303 = vmatprep.mubr.bf16.mxu0 0
  %304 = vmatmul.mubr.bf16.gmra.mxu0 %v180
  %v305 = vpop.f32.mrf.mxu0
  %v306 = vadd.f32 %v66, %v305
  %v307 = vpop.f32.mrf.mxu0
  %v308 = vadd.f32 %v70, %v307
  %v309 = vpop.f32.mrf.mxu0
  %v310 = vadd.f32 %v66, %v309
  %v311 = vpop.f32.mrf.mxu0
  %v312 = vadd.f32 %v70, %v311
  %313 = vmatprep.mubr.bf16.mxu0 0
  %314 = vmatmul.mubr.bf16.gmra.mxu0 %v183
  %v315 = vpop.f32.mrf.mxu0
  %v316 = vadd.f32 %v66, %v315
  %v317 = vpop.f32.mrf.mxu0
  %v318 = vadd.f32 %v70, %v317
  %v319 = vpop.f32.mrf.mxu0
  %v320 = vadd.f32 %v66, %v319
  %v321 = vpop.f32.mrf.mxu0
  %v322 = vadd.f32 %v70, %v321
  %323 = vmatprep.mubr.bf16.mxu0 0
  %324 = vmatmul.mubr.bf16.gmra.mxu0 %v186
  %v325 = vpop.f32.mrf.mxu0
  %v326 = vadd.f32 %v66, %v325
  %v327 = vpop.f32.mrf.mxu0
  %v328 = vadd.f32 %v70, %v327
  %v329 = vpop.f32.mrf.mxu0
  %v330 = vadd.f32 %v66, %v329
  %v331 = vpop.f32.mrf.mxu0
  %v332 = vadd.f32 %v70, %v331
  %333 = vdwg.mxu0
  %334 = vst [vmem:[#allocation2] sm:$0xff] %v223
  %335 = vst [vmem:[#allocation2 + $0x8] sm:$0xff] %v225
  %336 = vst [vmem:[#allocation2 + $0x10] sm:$0xff] %v296
  %337 = vst [vmem:[#allocation2 + $0x18] sm:$0xff] %v298
  %338 = vst [vmem:[#allocation2 + $0x20] sm:$0xff] %v227
  %339 = vst [vmem:[#allocation2 + $0x28] sm:$0xff] %v229
  %340 = vst [vmem:[#allocation2 + $0x30] sm:$0xff] %v300
  %341 = vst [vmem:[#allocation2 + $0x38] sm:$0xff] %v302
  %342 = vst [vmem:[#allocation2 + $0x40] sm:$0xff] %v233
  %343 = vst [vmem:[#allocation2 + $0x48] sm:$0xff] %v235
  %344 = vst [vmem:[#allocation2 + $0x50] sm:$0xff] %v306
  %345 = vst [vmem:[#allocation2 + $0x58] sm:$0xff] %v308
  %346 = vst [vmem:[#allocation2 + $0x60] sm:$0xff] %v237
  %347 = vst [vmem:[#allocation2 + $0x68] sm:$0xff] %v239
  %348 = vst [vmem:[#allocation2 + $0x70] sm:$0xff] %v310
  %349 = vst [vmem:[#allocation2 + $0x78] sm:$0xff] %v312
  %350 = vst [vmem:[#allocation2 + $0x80] sm:$0xff] %v243
  %351 = vst [vmem:[#allocation2 + $0x88] sm:$0xff] %v245
  %352 = vst [vmem:[#allocation2 + $0x90] sm:$0xff] %v316
  %353 = vst [vmem:[#allocation2 + $0x98] sm:$0xff] %v318
  %354 = vst [vmem:[#allocation2 + $0xa0] sm:$0xff] %v247
  %355 = vst [vmem:[#allocation2 + $0xa8] sm:$0xff] %v249
  %356 = vst [vmem:[#allocation2 + $0xb0] sm:$0xff] %v320
  %357 = vst [vmem:[#allocation2 + $0xb8] sm:$0xff] %v322
  %358 = vst [vmem:[#allocation2 + $0xc0] sm:$0xff] %v253
  %359 = vst [vmem:[#allocation2 + $0xc8] sm:$0xff] %v255
  %360 = vst [vmem:[#allocation2 + $0xd0] sm:$0xff] %v326
  %361 = vst [vmem:[#allocation2 + $0xd8] sm:$0xff] %v328
  %362 = vst [vmem:[#allocation2 + $0xe0] sm:$0xff] %v257
  %363 = vst [vmem:[#allocation2 + $0xe8] sm:$0xff] %v259
  %364 = vst [vmem:[#allocation2 + $0xf0] sm:$0xff] %v330
  %365 = vst [vmem:[#allocation2 + $0xf8] sm:$0xff] %v332
  %v366 = vld [vmem:[%s4] sm:$0xf]
  %v368 = vlaneseq
  %v369 = vshrl.u32 %v368, 7
  %v370 = vsub.s32 0, %v369
  %v371 = vrot.slane %v366, %v370
  %v372 = vlaneseq
  %v373 = vshrl.u32 %v372, 7
  %v374 = vsub.s32 1, %v373
  %v375 = vrot.slane %v366, %v374
  %v376 = vlaneseq
  %v377 = vshrl.u32 %v376, 7
  %v378 = vsub.s32 2, %v377
  %v379 = vrot.slane %v366, %v378
  %v380 = vlaneseq
  %v381 = vshrl.u32 %v380, 7
  %v382 = vsub.s32 3, %v381
  %v383 = vrot.slane %v366, %v382
  %v388 = vld [vmem:[#allocation2] sm:$0xff]
  %v389 = vld [vmem:[#allocation2 + $0x8] sm:$0xff]
  %v390 = vld [vmem:[#allocation2 + $0x10] sm:$0xff]
  %v391 = vld [vmem:[#allocation2 + $0x18] sm:$0xff]
  %v392 = vtanh.pop %v388
  %v393 = vtanh.pop %v389
  %v394 = vtanh.pop %v390
  %v395 = vtanh.pop %v391
  %v396 = vmul.f32 %v392, 0.5
  %v397 = vadd.f32 %v396, 0.5
  %v398 = vmul.f32 %v393, 0.5
  %v399 = vadd.f32 %v398, 0.5
  %v400 = vmul.f32 %v395, 0.5
  %v401 = vadd.f32 %v400, 0.5
  %v402 = vmul.f32 %v399, 0.0
  %v403 = vmul.f32 %v397, %v394
  %v404 = vadd.f32 %v402, %v403
  %v405 = vtanh.pop %v404
  %v406 = vmul.f32 %v401, %v405
  %v407 = vpack.c.bf16 %v406, %v406
  %v408 = vpack.c.bf16 0.0, 0.0
  %v409 = vld [vmem:[%s3] sm:$0xff]
  %v410 = vld [vmem:[%s3 + $0x8] sm:$0xff]
  %v411 = vld [vmem:[%s3 + $0x10] sm:$0xff]
  %v412 = vld [vmem:[%s3 + $0x18] sm:$0xff]
  %v413 = vld [vmem:[%s3 + $0x20] sm:$0xff]
  %v414 = vld [vmem:[%s3 + $0x28] sm:$0xff]
  %v415 = vld [vmem:[%s3 + $0x30] sm:$0xff]
  %v416 = vld [vmem:[%s3 + $0x38] sm:$0xff]
  %v417 = vld [vmem:[%s3 + $0x40] sm:$0xff]
  %v418 = vld [vmem:[%s3 + $0x48] sm:$0xff]
  %v419 = vld [vmem:[%s3 + $0x50] sm:$0xff]
  %v420 = vld [vmem:[%s3 + $0x58] sm:$0xff]
  %v421 = vld [vmem:[%s3 + $0x60] sm:$0xff]
  %v422 = vld [vmem:[%s3 + $0x68] sm:$0xff]
  %v423 = vld [vmem:[%s3 + $0x70] sm:$0xff]
  %v424 = vld [vmem:[%s3 + $0x78] sm:$0xff]
  %v425 = vld [vmem:[%s3 + $0x80] sm:$0xff]
  %v426 = vld [vmem:[%s3 + $0x88] sm:$0xff]
  %v427 = vld [vmem:[%s3 + $0x90] sm:$0xff]
  %v428 = vld [vmem:[%s3 + $0x98] sm:$0xff]
  %v429 = vld [vmem:[%s3 + $0xa0] sm:$0xff]
  %v430 = vld [vmem:[%s3 + $0xa8] sm:$0xff]
  %v431 = vld [vmem:[%s3 + $0xb0] sm:$0xff]
  %v432 = vld [vmem:[%s3 + $0xb8] sm:$0xff]
  %v433 = vld [vmem:[%s3 + $0xc0] sm:$0xff]
  %v434 = vld [vmem:[%s3 + $0xc8] sm:$0xff]
  %v435 = vld [vmem:[%s3 + $0xd0] sm:$0xff]
  %v436 = vld [vmem:[%s3 + $0xd8] sm:$0xff]
  %v437 = vld [vmem:[%s3 + $0xe0] sm:$0xff]
  %v438 = vld [vmem:[%s3 + $0xe8] sm:$0xff]
  %v439 = vld [vmem:[%s3 + $0xf0] sm:$0xff]
  %v440 = vld [vmem:[%s3 + $0xf8] sm:$0xff]
  %v441 = vld [vmem:[%s3 + $0x100] sm:$0xff]
  %v442 = vld [vmem:[%s3 + $0x108] sm:$0xff]
  %v443 = vld [vmem:[%s3 + $0x110] sm:$0xff]
  %v444 = vld [vmem:[%s3 + $0x118] sm:$0xff]
  %v445 = vld [vmem:[%s3 + $0x120] sm:$0xff]
  %v446 = vld [vmem:[%s3 + $0x128] sm:$0xff]
  %v447 = vld [vmem:[%s3 + $0x130] sm:$0xff]
  %v448 = vld [vmem:[%s3 + $0x138] sm:$0xff]
  %v449 = vld [vmem:[%s3 + $0x140] sm:$0xff]
  %v450 = vld [vmem:[%s3 + $0x148] sm:$0xff]
  %v451 = vld [vmem:[%s3 + $0x150] sm:$0xff]
  %v452 = vld [vmem:[%s3 + $0x158] sm:$0xff]
  %v453 = vld [vmem:[%s3 + $0x160] sm:$0xff]
  %v454 = vld [vmem:[%s3 + $0x168] sm:$0xff]
  %v455 = vld [vmem:[%s3 + $0x170] sm:$0xff]
  %v456 = vld [vmem:[%s3 + $0x178] sm:$0xff]
  %v457 = vld [vmem:[%s3 + $0x180] sm:$0xff]
  %v458 = vld [vmem:[%s3 + $0x188] sm:$0xff]
  %v459 = vld [vmem:[%s3 + $0x190] sm:$0xff]
  %v460 = vld [vmem:[%s3 + $0x198] sm:$0xff]
  %v461 = vld [vmem:[%s3 + $0x1a0] sm:$0xff]
  %v462 = vld [vmem:[%s3 + $0x1a8] sm:$0xff]
  %v463 = vld [vmem:[%s3 + $0x1b0] sm:$0xff]
  %v464 = vld [vmem:[%s3 + $0x1b8] sm:$0xff]
  %v465 = vld [vmem:[%s3 + $0x1c0] sm:$0xff]
  %v466 = vld [vmem:[%s3 + $0x1c8] sm:$0xff]
  %v467 = vld [vmem:[%s3 + $0x1d0] sm:$0xff]
  %v468 = vld [vmem:[%s3 + $0x1d8] sm:$0xff]
  %v469 = vld [vmem:[%s3 + $0x1e0] sm:$0xff]
  %v470 = vld [vmem:[%s3 + $0x1e8] sm:$0xff]
  %v471 = vld [vmem:[%s3 + $0x1f0] sm:$0xff]
  %v472 = vld [vmem:[%s3 + $0x1f8] sm:$0xff]
  %v473 = vld [vmem:[%s3 + $0x200] sm:$0xff]
  %v474 = vld [vmem:[%s3 + $0x208] sm:$0xff]
  %v475 = vld [vmem:[%s3 + $0x210] sm:$0xff]
  %v476 = vld [vmem:[%s3 + $0x218] sm:$0xff]
  %v477 = vld [vmem:[%s3 + $0x220] sm:$0xff]
  %v478 = vld [vmem:[%s3 + $0x228] sm:$0xff]
  %v479 = vld [vmem:[%s3 + $0x230] sm:$0xff]
  %v480 = vld [vmem:[%s3 + $0x238] sm:$0xff]
  %v481 = vld [vmem:[%s3 + $0x240] sm:$0xff]
  %v482 = vld [vmem:[%s3 + $0x248] sm:$0xff]
  %v483 = vld [vmem:[%s3 + $0x250] sm:$0xff]
  %v484 = vld [vmem:[%s3 + $0x258] sm:$0xff]
  %v485 = vld [vmem:[%s3 + $0x260] sm:$0xff]
  %v486 = vld [vmem:[%s3 + $0x268] sm:$0xff]
  %v487 = vld [vmem:[%s3 + $0x270] sm:$0xff]
  %v488 = vld [vmem:[%s3 + $0x278] sm:$0xff]
  %v489 = vld [vmem:[%s3 + $0x280] sm:$0xff]
  %v490 = vld [vmem:[%s3 + $0x288] sm:$0xff]
  %v491 = vld [vmem:[%s3 + $0x290] sm:$0xff]
  %v492 = vld [vmem:[%s3 + $0x298] sm:$0xff]
  %v493 = vld [vmem:[%s3 + $0x2a0] sm:$0xff]
  %v494 = vld [vmem:[%s3 + $0x2a8] sm:$0xff]
  %v495 = vld [vmem:[%s3 + $0x2b0] sm:$0xff]
  %v496 = vld [vmem:[%s3 + $0x2b8] sm:$0xff]
  %v497 = vld [vmem:[%s3 + $0x2c0] sm:$0xff]
  %v498 = vld [vmem:[%s3 + $0x2c8] sm:$0xff]
  %v499 = vld [vmem:[%s3 + $0x2d0] sm:$0xff]
  %v500 = vld [vmem:[%s3 + $0x2d8] sm:$0xff]
  %v501 = vld [vmem:[%s3 + $0x2e0] sm:$0xff]
  %v502 = vld [vmem:[%s3 + $0x2e8] sm:$0xff]
  %v503 = vld [vmem:[%s3 + $0x2f0] sm:$0xff]
  %v504 = vld [vmem:[%s3 + $0x2f8] sm:$0xff]
  %v505 = vld [vmem:[%s3 + $0x300] sm:$0xff]
  %v506 = vld [vmem:[%s3 + $0x308] sm:$0xff]
  %v507 = vld [vmem:[%s3 + $0x310] sm:$0xff]
  %v508 = vld [vmem:[%s3 + $0x318] sm:$0xff]
  %v509 = vld [vmem:[%s3 + $0x320] sm:$0xff]
  %v510 = vld [vmem:[%s3 + $0x328] sm:$0xff]
  %v511 = vld [vmem:[%s3 + $0x330] sm:$0xff]
  %v512 = vld [vmem:[%s3 + $0x338] sm:$0xff]
  %v513 = vld [vmem:[%s3 + $0x340] sm:$0xff]
  %v514 = vld [vmem:[%s3 + $0x348] sm:$0xff]
  %v515 = vld [vmem:[%s3 + $0x350] sm:$0xff]
  %v516 = vld [vmem:[%s3 + $0x358] sm:$0xff]
  %v517 = vld [vmem:[%s3 + $0x360] sm:$0xff]
  %v518 = vld [vmem:[%s3 + $0x368] sm:$0xff]
  %v519 = vld [vmem:[%s3 + $0x370] sm:$0xff]
  %v520 = vld [vmem:[%s3 + $0x378] sm:$0xff]
  %v521 = vld [vmem:[%s3 + $0x380] sm:$0xff]
  %v522 = vld [vmem:[%s3 + $0x388] sm:$0xff]
  %v523 = vld [vmem:[%s3 + $0x390] sm:$0xff]
  %v524 = vld [vmem:[%s3 + $0x398] sm:$0xff]
  %v525 = vld [vmem:[%s3 + $0x3a0] sm:$0xff]
  %v526 = vld [vmem:[%s3 + $0x3a8] sm:$0xff]
  %v527 = vld [vmem:[%s3 + $0x3b0] sm:$0xff]
  %v528 = vld [vmem:[%s3 + $0x3b8] sm:$0xff]
  %v529 = vld [vmem:[%s3 + $0x3c0] sm:$0xff]
  %v530 = vld [vmem:[%s3 + $0x3c8] sm:$0xff]
  %v531 = vld [vmem:[%s3 + $0x3d0] sm:$0xff]
  %v532 = vld [vmem:[%s3 + $0x3d8] sm:$0xff]
  %v533 = vld [vmem:[%s3 + $0x3e0] sm:$0xff]
  %v534 = vld [vmem:[%s3 + $0x3e8] sm:$0xff]
  %v535 = vld [vmem:[%s3 + $0x3f0] sm:$0xff]
  %v536 = vld [vmem:[%s3 + $0x3f8] sm:$0xff]
  %v665 = vunpack.c.l.b16 %v409
  %v666 = vunpack.c.h.b16 %v409
  %v667 = vunpack.c.l.b16 %v410
  %v668 = vunpack.c.h.b16 %v410
  %v669 = vunpack.c.l.b16 %v411
  %v670 = vunpack.c.h.b16 %v411
  %v671 = vunpack.c.l.b16 %v412
  %v672 = vunpack.c.h.b16 %v412
  %v673 = vunpack.c.l.b16 %v413
  %v674 = vunpack.c.h.b16 %v413
  %v675 = vunpack.c.l.b16 %v414
  %v676 = vunpack.c.h.b16 %v414
  %v677 = vunpack.c.l.b16 %v415
  %v678 = vunpack.c.h.b16 %v415
  %v679 = vunpack.c.l.b16 %v416
  %v680 = vunpack.c.h.b16 %v416
  %v681 = vunpack.c.l.b16 %v417
  %v682 = vunpack.c.h.b16 %v417
  %v683 = vunpack.c.l.b16 %v418
  %v684 = vunpack.c.h.b16 %v418
  %v685 = vunpack.c.l.b16 %v419
  %v686 = vunpack.c.h.b16 %v419
  %v687 = vunpack.c.l.b16 %v420
  %v688 = vunpack.c.h.b16 %v420
  %v689 = vunpack.c.l.b16 %v421
  %v690 = vunpack.c.h.b16 %v421
  %v691 = vunpack.c.l.b16 %v422
  %v692 = vunpack.c.h.b16 %v422
  %v693 = vunpack.c.l.b16 %v423
  %v694 = vunpack.c.h.b16 %v423
  %v695 = vunpack.c.l.b16 %v424
  %v696 = vunpack.c.h.b16 %v424
  %v697 = vunpack.c.l.b16 %v425
  %v698 = vunpack.c.h.b16 %v425
  %v699 = vunpack.c.l.b16 %v426
  %v700 = vunpack.c.h.b16 %v426
  %v701 = vunpack.c.l.b16 %v427
  %v702 = vunpack.c.h.b16 %v427
  %v703 = vunpack.c.l.b16 %v428
  %v704 = vunpack.c.h.b16 %v428
  %v705 = vunpack.c.l.b16 %v429
  %v706 = vunpack.c.h.b16 %v429
  %v707 = vunpack.c.l.b16 %v430
  %v708 = vunpack.c.h.b16 %v430
  %v709 = vunpack.c.l.b16 %v431
  %v710 = vunpack.c.h.b16 %v431
  %v711 = vunpack.c.l.b16 %v432
  %v712 = vunpack.c.h.b16 %v432
  %v713 = vunpack.c.l.b16 %v433
  %v714 = vunpack.c.h.b16 %v433
  %v715 = vunpack.c.l.b16 %v434
  %v716 = vunpack.c.h.b16 %v434
  %v717 = vunpack.c.l.b16 %v435
  %v718 = vunpack.c.h.b16 %v435
  %v719 = vunpack.c.l.b16 %v436
  %v720 = vunpack.c.h.b16 %v436
  %v721 = vunpack.c.l.b16 %v437
  %v722 = vunpack.c.h.b16 %v437
  %v723 = vunpack.c.l.b16 %v438
  %v724 = vunpack.c.h.b16 %v438
  %v725 = vunpack.c.l.b16 %v439
  %v726 = vunpack.c.h.b16 %v439
  %v727 = vunpack.c.l.b16 %v440
  %v728 = vunpack.c.h.b16 %v440
  %v729 = vunpack.c.l.b16 %v441
  %v730 = vunpack.c.h.b16 %v441
  %v731 = vunpack.c.l.b16 %v442
  %v732 = vunpack.c.h.b16 %v442
  %v733 = vunpack.c.l.b16 %v443
  %v734 = vunpack.c.h.b16 %v443
  %v735 = vunpack.c.l.b16 %v444
  %v736 = vunpack.c.h.b16 %v444
  %v737 = vunpack.c.l.b16 %v445
  %v738 = vunpack.c.h.b16 %v445
  %v739 = vunpack.c.l.b16 %v446
  %v740 = vunpack.c.h.b16 %v446
  %v741 = vunpack.c.l.b16 %v447
  %v742 = vunpack.c.h.b16 %v447
  %v743 = vunpack.c.l.b16 %v448
  %v744 = vunpack.c.h.b16 %v448
  %v745 = vunpack.c.l.b16 %v449
  %v746 = vunpack.c.h.b16 %v449
  %v747 = vunpack.c.l.b16 %v450
  %v748 = vunpack.c.h.b16 %v450
  %v749 = vunpack.c.l.b16 %v451
  %v750 = vunpack.c.h.b16 %v451
  %v751 = vunpack.c.l.b16 %v452
  %v752 = vunpack.c.h.b16 %v452
  %v753 = vunpack.c.l.b16 %v453
  %v754 = vunpack.c.h.b16 %v453
  %v755 = vunpack.c.l.b16 %v454
  %v756 = vunpack.c.h.b16 %v454
  %v757 = vunpack.c.l.b16 %v455
  %v758 = vunpack.c.h.b16 %v455
  %v759 = vunpack.c.l.b16 %v456
  %v760 = vunpack.c.h.b16 %v456
  %v761 = vunpack.c.l.b16 %v457
  %v762 = vunpack.c.h.b16 %v457
  %v763 = vunpack.c.l.b16 %v458
  %v764 = vunpack.c.h.b16 %v458
  %v765 = vunpack.c.l.b16 %v459
  %v766 = vunpack.c.h.b16 %v459
  %v767 = vunpack.c.l.b16 %v460
  %v768 = vunpack.c.h.b16 %v460
  %v769 = vunpack.c.l.b16 %v461
  %v770 = vunpack.c.h.b16 %v461
  %v771 = vunpack.c.l.b16 %v462
  %v772 = vunpack.c.h.b16 %v462
  %v773 = vunpack.c.l.b16 %v463
  %v774 = vunpack.c.h.b16 %v463
  %v775 = vunpack.c.l.b16 %v464
  %v776 = vunpack.c.h.b16 %v464
  %v777 = vunpack.c.l.b16 %v465
  %v778 = vunpack.c.h.b16 %v465
  %v779 = vunpack.c.l.b16 %v466
  %v780 = vunpack.c.h.b16 %v466
  %v781 = vunpack.c.l.b16 %v467
  %v782 = vunpack.c.h.b16 %v467
  %v783 = vunpack.c.l.b16 %v468
  %v784 = vunpack.c.h.b16 %v468
  %v785 = vunpack.c.l.b16 %v469
  %v786 = vunpack.c.h.b16 %v469
  %v787 = vunpack.c.l.b16 %v470
  %v788 = vunpack.c.h.b16 %v470
  %v789 = vunpack.c.l.b16 %v471
  %v790 = vunpack.c.h.b16 %v471
  %v791 = vunpack.c.l.b16 %v472
  %v792 = vunpack.c.h.b16 %v472
  %v793 = vunpack.c.l.b16 %v473
  %v794 = vunpack.c.h.b16 %v473
  %v795 = vunpack.c.l.b16 %v474
  %v796 = vunpack.c.h.b16 %v474
  %v797 = vunpack.c.l.b16 %v475
  %v798 = vunpack.c.h.b16 %v475
  %v799 = vunpack.c.l.b16 %v476
  %v800 = vunpack.c.h.b16 %v476
  %v801 = vunpack.c.l.b16 %v477
  %v802 = vunpack.c.h.b16 %v477
  %v803 = vunpack.c.l.b16 %v478
  %v804 = vunpack.c.h.b16 %v478
  %v805 = vunpack.c.l.b16 %v479
  %v806 = vunpack.c.h.b16 %v479
  %v807 = vunpack.c.l.b16 %v480
  %v808 = vunpack.c.h.b16 %v480
  %v809 = vunpack.c.l.b16 %v481
  %v810 = vunpack.c.h.b16 %v481
  %v811 = vunpack.c.l.b16 %v482
  %v812 = vunpack.c.h.b16 %v482
  %v813 = vunpack.c.l.b16 %v483
  %v814 = vunpack.c.h.b16 %v483
  %v815 = vunpack.c.l.b16 %v484
  %v816 = vunpack.c.h.b16 %v484
  %v817 = vunpack.c.l.b16 %v485
  %v818 = vunpack.c.h.b16 %v485
  %v819 = vunpack.c.l.b16 %v486
  %v820 = vunpack.c.h.b16 %v486
  %v821 = vunpack.c.l.b16 %v487
  %v822 = vunpack.c.h.b16 %v487
  %v823 = vunpack.c.l.b16 %v488
  %v824 = vunpack.c.h.b16 %v488
  %v825 = vunpack.c.l.b16 %v489
  %v826 = vunpack.c.h.b16 %v489
  %v827 = vunpack.c.l.b16 %v490
  %v828 = vunpack.c.h.b16 %v490
  %v829 = vunpack.c.l.b16 %v491
  %v830 = vunpack.c.h.b16 %v491
  %v831 = vunpack.c.l.b16 %v492
  %v832 = vunpack.c.h.b16 %v492
  %v833 = vunpack.c.l.b16 %v493
  %v834 = vunpack.c.h.b16 %v493
  %v835 = vunpack.c.l.b16 %v494
  %v836 = vunpack.c.h.b16 %v494
  %v837 = vunpack.c.l.b16 %v495
  %v838 = vunpack.c.h.b16 %v495
  %v839 = vunpack.c.l.b16 %v496
  %v840 = vunpack.c.h.b16 %v496
  %v841 = vunpack.c.l.b16 %v497
  %v842 = vunpack.c.h.b16 %v497
  %v843 = vunpack.c.l.b16 %v498
  %v844 = vunpack.c.h.b16 %v498
  %v845 = vunpack.c.l.b16 %v499
  %v846 = vunpack.c.h.b16 %v499
  %v847 = vunpack.c.l.b16 %v500
  %v848 = vunpack.c.h.b16 %v500
  %v849 = vunpack.c.l.b16 %v501
  %v850 = vunpack.c.h.b16 %v501
  %v851 = vunpack.c.l.b16 %v502
  %v852 = vunpack.c.h.b16 %v502
  %v853 = vunpack.c.l.b16 %v503
  %v854 = vunpack.c.h.b16 %v503
  %v855 = vunpack.c.l.b16 %v504
  %v856 = vunpack.c.h.b16 %v504
  %v857 = vunpack.c.l.b16 %v505
  %v858 = vunpack.c.h.b16 %v505
  %v859 = vunpack.c.l.b16 %v506
  %v860 = vunpack.c.h.b16 %v506
  %v861 = vunpack.c.l.b16 %v507
  %v862 = vunpack.c.h.b16 %v507
  %v863 = vunpack.c.l.b16 %v508
  %v864 = vunpack.c.h.b16 %v508
  %v865 = vunpack.c.l.b16 %v509
  %v866 = vunpack.c.h.b16 %v509
  %v867 = vunpack.c.l.b16 %v510
  %v868 = vunpack.c.h.b16 %v510
  %v869 = vunpack.c.l.b16 %v511
  %v870 = vunpack.c.h.b16 %v511
  %v871 = vunpack.c.l.b16 %v512
  %v872 = vunpack.c.h.b16 %v512
  %v873 = vunpack.c.l.b16 %v513
  %v874 = vunpack.c.h.b16 %v513
  %v875 = vunpack.c.l.b16 %v514
  %v876 = vunpack.c.h.b16 %v514
  %v877 = vunpack.c.l.b16 %v515
  %v878 = vunpack.c.h.b16 %v515
  %v879 = vunpack.c.l.b16 %v516
  %v880 = vunpack.c.h.b16 %v516
  %v881 = vunpack.c.l.b16 %v517
  %v882 = vunpack.c.h.b16 %v517
  %v883 = vunpack.c.l.b16 %v518
  %v884 = vunpack.c.h.b16 %v518
  %v885 = vunpack.c.l.b16 %v519
  %v886 = vunpack.c.h.b16 %v519
  %v887 = vunpack.c.l.b16 %v520
  %v888 = vunpack.c.h.b16 %v520
  %v889 = vunpack.c.l.b16 %v521
  %v890 = vunpack.c.h.b16 %v521
  %v891 = vunpack.c.l.b16 %v522
  %v892 = vunpack.c.h.b16 %v522
  %v893 = vunpack.c.l.b16 %v523
  %v894 = vunpack.c.h.b16 %v523
  %v895 = vunpack.c.l.b16 %v524
  %v896 = vunpack.c.h.b16 %v524
  %v897 = vunpack.c.l.b16 %v525
  %v898 = vunpack.c.h.b16 %v525
  %v899 = vunpack.c.l.b16 %v526
  %v900 = vunpack.c.h.b16 %v526
  %v901 = vunpack.c.l.b16 %v527
  %v902 = vunpack.c.h.b16 %v527
  %v903 = vunpack.c.l.b16 %v528
  %v904 = vunpack.c.h.b16 %v528
  %v905 = vunpack.c.l.b16 %v529
  %v906 = vunpack.c.h.b16 %v529
  %v907 = vunpack.c.l.b16 %v530
  %v908 = vunpack.c.h.b16 %v530
  %v909 = vunpack.c.l.b16 %v531
  %v910 = vunpack.c.h.b16 %v531
  %v911 = vunpack.c.l.b16 %v532
  %v912 = vunpack.c.h.b16 %v532
  %v913 = vunpack.c.l.b16 %v533
  %v914 = vunpack.c.h.b16 %v533
  %v915 = vunpack.c.l.b16 %v534
  %v916 = vunpack.c.h.b16 %v534
  %v917 = vunpack.c.l.b16 %v535
  %v918 = vunpack.c.h.b16 %v535
  %v919 = vunpack.c.l.b16 %v536
  %v920 = vunpack.c.h.b16 %v536
  %v921 = vpack.c.b16 %v673, %v665
  %v922 = vpack.c.b16 %v674, %v666
  %v923 = vpack.c.b16 %v675, %v667
  %v924 = vpack.c.b16 %v676, %v668
  %v925 = vpack.c.b16 %v677, %v669
  %v926 = vpack.c.b16 %v678, %v670
  %v927 = vpack.c.b16 %v679, %v671
  %v928 = vpack.c.b16 %v680, %v672
  %v929 = vpack.c.b16 %v689, %v681
  %v930 = vpack.c.b16 %v690, %v682
  %v931 = vpack.c.b16 %v691, %v683
  %v932 = vpack.c.b16 %v692, %v684
  %v933 = vpack.c.b16 %v693, %v685
  %v934 = vpack.c.b16 %v694, %v686
  %v935 = vpack.c.b16 %v695, %v687
  %v936 = vpack.c.b16 %v696, %v688
  %v937 = vpack.c.b16 %v705, %v697
  %v938 = vpack.c.b16 %v706, %v698
  %v939 = vpack.c.b16 %v707, %v699
  %v940 = vpack.c.b16 %v708, %v700
  %v941 = vpack.c.b16 %v709, %v701
  %v942 = vpack.c.b16 %v710, %v702
  %v943 = vpack.c.b16 %v711, %v703
  %v944 = vpack.c.b16 %v712, %v704
  %v945 = vpack.c.b16 %v721, %v713
  %v946 = vpack.c.b16 %v722, %v714
  %v947 = vpack.c.b16 %v723, %v715
  %v948 = vpack.c.b16 %v724, %v716
  %v949 = vpack.c.b16 %v725, %v717
  %v950 = vpack.c.b16 %v726, %v718
  %v951 = vpack.c.b16 %v727, %v719
  %v952 = vpack.c.b16 %v728, %v720
  %v953 = vpack.c.b16 %v737, %v729
  %v954 = vpack.c.b16 %v738, %v730
  %v955 = vpack.c.b16 %v739, %v731
  %v956 = vpack.c.b16 %v740, %v732
  %v957 = vpack.c.b16 %v741, %v733
  %v958 = vpack.c.b16 %v742, %v734
  %v959 = vpack.c.b16 %v743, %v735
  %v960 = vpack.c.b16 %v744, %v736
  %v961 = vpack.c.b16 %v753, %v745
  %v962 = vpack.c.b16 %v754, %v746
  %v963 = vpack.c.b16 %v755, %v747
  %v964 = vpack.c.b16 %v756, %v748
  %v965 = vpack.c.b16 %v757, %v749
  %v966 = vpack.c.b16 %v758, %v750
  %v967 = vpack.c.b16 %v759, %v751
  %v968 = vpack.c.b16 %v760, %v752
  %v969 = vpack.c.b16 %v769, %v761
  %v970 = vpack.c.b16 %v770, %v762
  %v971 = vpack.c.b16 %v771, %v763
  %v972 = vpack.c.b16 %v772, %v764
  %v973 = vpack.c.b16 %v773, %v765
  %v974 = vpack.c.b16 %v774, %v766
  %v975 = vpack.c.b16 %v775, %v767
  %v976 = vpack.c.b16 %v776, %v768
  %v977 = vpack.c.b16 %v785, %v777
  %v978 = vpack.c.b16 %v786, %v778
  %v979 = vpack.c.b16 %v787, %v779
  %v980 = vpack.c.b16 %v788, %v780
  %v981 = vpack.c.b16 %v789, %v781
  %v982 = vpack.c.b16 %v790, %v782
  %v983 = vpack.c.b16 %v791, %v783
  %v984 = vpack.c.b16 %v792, %v784
  %v985 = vpack.c.b16 %v801, %v793
  %v986 = vpack.c.b16 %v802, %v794
  %v987 = vpack.c.b16 %v803, %v795
  %v988 = vpack.c.b16 %v804, %v796
  %v989 = vpack.c.b16 %v805, %v797
  %v990 = vpack.c.b16 %v806, %v798
  %v991 = vpack.c.b16 %v807, %v799
  %v992 = vpack.c.b16 %v808, %v800
  %v993 = vpack.c.b16 %v817, %v809
  %v994 = vpack.c.b16 %v818, %v810
  %v995 = vpack.c.b16 %v819, %v811
  %v996 = vpack.c.b16 %v820, %v812
  %v997 = vpack.c.b16 %v821, %v813
  %v998 = vpack.c.b16 %v822, %v814
  %v999 = vpack.c.b16 %v823, %v815
  %v1000 = vpack.c.b16 %v824, %v816
  %v1001 = vpack.c.b16 %v833, %v825
  %v1002 = vpack.c.b16 %v834, %v826
  %v1003 = vpack.c.b16 %v835, %v827
  %v1004 = vpack.c.b16 %v836, %v828
  %v1005 = vpack.c.b16 %v837, %v829
  %v1006 = vpack.c.b16 %v838, %v830
  %v1007 = vpack.c.b16 %v839, %v831
  %v1008 = vpack.c.b16 %v840, %v832
  %v1009 = vpack.c.b16 %v849, %v841
  %v1010 = vpack.c.b16 %v850, %v842
  %v1011 = vpack.c.b16 %v851, %v843
  %v1012 = vpack.c.b16 %v852, %v844
  %v1013 = vpack.c.b16 %v853, %v845
  %v1014 = vpack.c.b16 %v854, %v846
  %v1015 = vpack.c.b16 %v855, %v847
  %v1016 = vpack.c.b16 %v856, %v848
  %v1017 = vpack.c.b16 %v865, %v857
  %v1018 = vpack.c.b16 %v866, %v858
  %v1019 = vpack.c.b16 %v867, %v859
  %v1020 = vpack.c.b16 %v868, %v860
  %v1021 = vpack.c.b16 %v869, %v861
  %v1022 = vpack.c.b16 %v870, %v862
  %v1023 = vpack.c.b16 %v871, %v863
  %v1024 = vpack.c.b16 %v872, %v864
  %v1025 = vpack.c.b16 %v881, %v873
  %v1026 = vpack.c.b16 %v882, %v874
  %v1027 = vpack.c.b16 %v883, %v875
  %v1028 = vpack.c.b16 %v884, %v876
  %v1029 = vpack.c.b16 %v885, %v877
  %v1030 = vpack.c.b16 %v886, %v878
  %v1031 = vpack.c.b16 %v887, %v879
  %v1032 = vpack.c.b16 %v888, %v880
  %v1033 = vpack.c.b16 %v897, %v889
  %v1034 = vpack.c.b16 %v898, %v890
  %v1035 = vpack.c.b16 %v899, %v891
  %v1036 = vpack.c.b16 %v900, %v892
  %v1037 = vpack.c.b16 %v901, %v893
  %v1038 = vpack.c.b16 %v902, %v894
  %v1039 = vpack.c.b16 %v903, %v895
  %v1040 = vpack.c.b16 %v904, %v896
  %v1041 = vpack.c.b16 %v913, %v905
  %v1042 = vpack.c.b16 %v914, %v906
  %v1043 = vpack.c.b16 %v915, %v907
  %v1044 = vpack.c.b16 %v916, %v908
  %v1045 = vpack.c.b16 %v917, %v909
  %v1046 = vpack.c.b16 %v918, %v910
  %v1047 = vpack.c.b16 %v919, %v911
  %v1048 = vpack.c.b16 %v920, %v912
  %1177 = vmatprep.subr.bf16.mxu0 %v978
  %1178 = vmatpush1.bf16.msra.mxu0 %v977
  %1179 = vmatprep.subr.bf16.mxu0 %v970
  %1180 = vmatpush1.bf16.msra.mxu0 %v969
  %1181 = vmatprep.subr.bf16.mxu0 %v962
  %1182 = vmatpush1.bf16.msra.mxu0 %v961
  %1183 = vmatprep.subr.bf16.mxu0 %v954
  %1184 = vmatpush1.bf16.msra.mxu0 %v953
  %1185 = vmatprep.subr.bf16.mxu0 %v946
  %1186 = vmatpush1.bf16.msra.mxu0 %v945
  %1187 = vmatprep.subr.bf16.mxu0 %v938
  %1188 = vmatpush1.bf16.msra.mxu0 %v937
  %1189 = vmatprep.subr.bf16.mxu0 %v930
  %1190 = vmatpush1.bf16.msra.mxu0 %v929
  %1191 = vmatprep.subr.bf16.mxu0 %v922
  %1192 = vmatpush1.bf16.msra.mxu0 %v921
  %1193 = vmatprep.subr.bf16.mxu0 %v1042
  %1194 = vmatpush2.bf16.msra.mxu0 %v1041
  %1195 = vmatprep.subr.bf16.mxu0 %v1034
  %1196 = vmatpush2.bf16.msra.mxu0 %v1033
  %1197 = vmatprep.subr.bf16.mxu0 %v1026
  %1198 = vmatpush2.bf16.msra.mxu0 %v1025
  %1199 = vmatprep.subr.bf16.mxu0 %v1018
  %1200 = vmatpush2.bf16.msra.mxu0 %v1017
  %1201 = vmatprep.subr.bf16.mxu0 %v1010
  %1202 = vmatpush2.bf16.msra.mxu0 %v1009
  %1203 = vmatprep.subr.bf16.mxu0 %v1002
  %1204 = vmatpush2.bf16.msra.mxu0 %v1001
  %1205 = vmatprep.subr.bf16.mxu0 %v994
  %1206 = vmatpush2.bf16.msra.mxu0 %v993
  %1207 = vmatprep.subr.bf16.mxu0 %v986
  %1208 = vmatpush2.bf16.msra.mxu0 %v985
  %1209 = vmatprep.mubr.bf16.mxu0 %v408
  %1210 = vmatmul.mubr.bf16.gmra.mxu0 %v407
  %v1211 = vpop.f32.mrf.mxu0
  %v1212 = vadd.f32 0.0, %v1211
  %v1213 = vpop.f32.mrf.mxu0
  %v1214 = vadd.f32 0.0, %v1213
  %v1215 = vpop.f32.mrf.mxu0
  %v1216 = vpop.f32.mrf.mxu0
  %1217 = vdwg.mxu0
  %1218 = vmatprep.subr.bf16.mxu0 %v980
  %1219 = vmatpush1.bf16.msra.mxu0 %v979
  %1220 = vmatprep.subr.bf16.mxu0 %v972
  %1221 = vmatpush1.bf16.msra.mxu0 %v971
  %1222 = vmatprep.subr.bf16.mxu0 %v964
  %1223 = vmatpush1.bf16.msra.mxu0 %v963
  %1224 = vmatprep.subr.bf16.mxu0 %v956
  %1225 = vmatpush1.bf16.msra.mxu0 %v955
  %1226 = vmatprep.subr.bf16.mxu0 %v948
  %1227 = vmatpush1.bf16.msra.mxu0 %v947
  %1228 = vmatprep.subr.bf16.mxu0 %v940
  %1229 = vmatpush1.bf16.msra.mxu0 %v939
  %1230 = vmatprep.subr.bf16.mxu0 %v932
  %1231 = vmatpush1.bf16.msra.mxu0 %v931
  %1232 = vmatprep.subr.bf16.mxu0 %v924
  %1233 = vmatpush1.bf16.msra.mxu0 %v923
  %1234 = vmatprep.subr.bf16.mxu0 %v1044
  %1235 = vmatpush2.bf16.msra.mxu0 %v1043
  %1236 = vmatprep.subr.bf16.mxu0 %v1036
  %1237 = vmatpush2.bf16.msra.mxu0 %v1035
  %1238 = vmatprep.subr.bf16.mxu0 %v1028
  %1239 = vmatpush2.bf16.msra.mxu0 %v1027
  %1240 = vmatprep.subr.bf16.mxu0 %v1020
  %1241 = vmatpush2.bf16.msra.mxu0 %v1019
  %1242 = vmatprep.subr.bf16.mxu0 %v1012
  %1243 = vmatpush2.bf16.msra.mxu0 %v1011
  %1244 = vmatprep.subr.bf16.mxu0 %v1004
  %1245 = vmatpush2.bf16.msra.mxu0 %v1003
  %1246 = vmatprep.subr.bf16.mxu0 %v996
  %1247 = vmatpush2.bf16.msra.mxu0 %v995
  %1248 = vmatprep.subr.bf16.mxu0 %v988
  %1249 = vmatpush2.bf16.msra.mxu0 %v987
  %1250 = vmatprep.mubr.bf16.mxu0 %v408
  %1251 = vmatmul.mubr.bf16.gmra.mxu0 %v407
  %v1252 = vpop.f32.mrf.mxu0
  %v1253 = vadd.f32 0.0, %v1252
  %v1254 = vpop.f32.mrf.mxu0
  %v1255 = vadd.f32 0.0, %v1254
  %v1256 = vpop.f32.mrf.mxu0
  %v1257 = vpop.f32.mrf.mxu0
  %1258 = vdwg.mxu0
  %1259 = vmatprep.subr.bf16.mxu0 %v982
  %1260 = vmatpush1.bf16.msra.mxu0 %v981
  %1261 = vmatprep.subr.bf16.mxu0 %v974
  %1262 = vmatpush1.bf16.msra.mxu0 %v973
  %1263 = vmatprep.subr.bf16.mxu0 %v966
  %1264 = vmatpush1.bf16.msra.mxu0 %v965
  %1265 = vmatprep.subr.bf16.mxu0 %v958
  %1266 = vmatpush1.bf16.msra.mxu0 %v957
  %1267 = vmatprep.subr.bf16.mxu0 %v950
  %1268 = vmatpush1.bf16.msra.mxu0 %v949
  %1269 = vmatprep.subr.bf16.mxu0 %v942
  %1270 = vmatpush1.bf16.msra.mxu0 %v941
  %1271 = vmatprep.subr.bf16.mxu0 %v934
  %1272 = vmatpush1.bf16.msra.mxu0 %v933
  %1273 = vmatprep.subr.bf16.mxu0 %v926
  %1274 = vmatpush1.bf16.msra.mxu0 %v925
  %1275 = vmatprep.subr.bf16.mxu0 %v1046
  %1276 = vmatpush2.bf16.msra.mxu0 %v1045
  %1277 = vmatprep.subr.bf16.mxu0 %v1038
  %1278 = vmatpush2.bf16.msra.mxu0 %v1037
  %1279 = vmatprep.subr.bf16.mxu0 %v1030
  %1280 = vmatpush2.bf16.msra.mxu0 %v1029
  %1281 = vmatprep.subr.bf16.mxu0 %v1022
  %1282 = vmatpush2.bf16.msra.mxu0 %v1021
  %1283 = vmatprep.subr.bf16.mxu0 %v1014
  %1284 = vmatpush2.bf16.msra.mxu0 %v1013
  %1285 = vmatprep.subr.bf16.mxu0 %v1006
  %1286 = vmatpush2.bf16.msra.mxu0 %v1005
  %1287 = vmatprep.subr.bf16.mxu0 %v998
  %1288 = vmatpush2.bf16.msra.mxu0 %v997
  %1289 = vmatprep.subr.bf16.mxu0 %v990
  %1290 = vmatpush2.bf16.msra.mxu0 %v989
  %1291 = vmatprep.mubr.bf16.mxu0 %v408
  %1292 = vmatmul.mubr.bf16.gmra.mxu0 %v407
  %v1293 = vpop.f32.mrf.mxu0
  %v1294 = vadd.f32 0.0, %v1293
  %v1295 = vpop.f32.mrf.mxu0
  %v1296 = vadd.f32 0.0, %v1295
  %v1297 = vpop.f32.mrf.mxu0
  %v1298 = vpop.f32.mrf.mxu0
  %1299 = vdwg.mxu0
  %1300 = vmatprep.subr.bf16.mxu0 %v984
  %1301 = vmatpush1.bf16.msra.mxu0 %v983
  %1302 = vmatprep.subr.bf16.mxu0 %v976
  %1303 = vmatpush1.bf16.msra.mxu0 %v975
  %1304 = vmatprep.subr.bf16.mxu0 %v968
  %1305 = vmatpush1.bf16.msra.mxu0 %v967
  %1306 = vmatprep.subr.bf16.mxu0 %v960
  %1307 = vmatpush1.bf16.msra.mxu0 %v959
  %1308 = vmatprep.subr.bf16.mxu0 %v952
  %1309 = vmatpush1.bf16.msra.mxu0 %v951
  %1310 = vmatprep.subr.bf16.mxu0 %v944
  %1311 = vmatpush1.bf16.msra.mxu0 %v943
  %1312 = vmatprep.subr.bf16.mxu0 %v936
  %1313 = vmatpush1.bf16.msra.mxu0 %v935
  %1314 = vmatprep.subr.bf16.mxu0 %v928
  %1315 = vmatpush1.bf16.msra.mxu0 %v927
  %1316 = vmatprep.subr.bf16.mxu0 %v1048
  %1317 = vmatpush2.bf16.msra.mxu0 %v1047
  %1318 = vmatprep.subr.bf16.mxu0 %v1040
  %1319 = vmatpush2.bf16.msra.mxu0 %v1039
  %1320 = vmatprep.subr.bf16.mxu0 %v1032
  %1321 = vmatpush2.bf16.msra.mxu0 %v1031
  %1322 = vmatprep.subr.bf16.mxu0 %v1024
  %1323 = vmatpush2.bf16.msra.mxu0 %v1023
  %1324 = vmatprep.subr.bf16.mxu0 %v1016
  %1325 = vmatpush2.bf16.msra.mxu0 %v1015
  %1326 = vmatprep.subr.bf16.mxu0 %v1008
  %1327 = vmatpush2.bf16.msra.mxu0 %v1007
  %1328 = vmatprep.subr.bf16.mxu0 %v1000
  %1329 = vmatpush2.bf16.msra.mxu0 %v999
  %1330 = vmatprep.subr.bf16.mxu0 %v992
  %1331 = vmatpush2.bf16.msra.mxu0 %v991
  %1332 = vmatprep.mubr.bf16.mxu0 %v408
  %1333 = vmatmul.mubr.bf16.gmra.mxu0 %v407
  %v1334 = vpop.f32.mrf.mxu0
  %v1335 = vadd.f32 0.0, %v1334
  %v1336 = vpop.f32.mrf.mxu0
  %v1337 = vadd.f32 0.0, %v1336
  %v1338 = vpop.f32.mrf.mxu0
  %v1339 = vpop.f32.mrf.mxu0
  %1340 = vdwg.mxu0
  %v1341 = vadd.f32 %v1294, %v371
  %v1342 = vadd.f32 %v1296, %v375
  %v1343 = vadd.f32 %v1335, %v379
  %v1344 = vadd.f32 %v1337, %v383
  %v1345 = vtanh.pop %v1341
  %v1346 = vtanh.pop %v1342
  %v1347 = vtanh.pop %v1343
  %v1348 = vtanh.pop %v1344
  %v1349 = vmul.f32 %v1345, 0.5
  %v1350 = vadd.f32 %v1349, 0.5
  %v1351 = vmul.f32 %v1346, 0.5
  %v1352 = vadd.f32 %v1351, 0.5
  %v1353 = vmul.f32 %v1348, 0.5
  %v1354 = vadd.f32 %v1353, 0.5
  %v1355 = vmul.f32 %v1352, 0.0
  %v1356 = vmul.f32 %v1350, %v1347
  %v1357 = vadd.f32 %v1355, %v1356
  %v1358 = vtanh.pop %v1357
  %v1359 = vmul.f32 %v1354, %v1358
  %1360 = vst [vmem:[#allocation3] sm:$0xff] %v1359
  %v1361 = vld [vmem:[#allocation2 + $0x20] sm:$0xff]
  %v1362 = vld [vmem:[#allocation2 + $0x28] sm:$0xff]
  %v1363 = vld [vmem:[#allocation2 + $0x30] sm:$0xff]
  %v1364 = vld [vmem:[#allocation2 + $0x38] sm:$0xff]
  %v1365 = vadd.f32 %v1212, %v1361
  %v1366 = vadd.f32 %v1214, %v1362
  %v1367 = vadd.f32 %v1253, %v1363
  %v1368 = vadd.f32 %v1255, %v1364
  %v1369 = vtanh.pop %v1365
  %v1370 = vtanh.pop %v1366
  %v1371 = vtanh.pop %v1367
  %v1372 = vtanh.pop %v1368
  %v1373 = vmul.f32 %v1369, 0.5
  %v1374 = vadd.f32 %v1373, 0.5
  %v1375 = vmul.f32 %v1370, 0.5
  %v1376 = vadd.f32 %v1375, 0.5
  %v1377 = vmul.f32 %v1372, 0.5
  %v1378 = vadd.f32 %v1377, 0.5
  %v1379 = vmul.f32 %v1376, %v404
  %v1380 = vmul.f32 %v1374, %v1371
  %v1381 = vadd.f32 %v1379, %v1380
  %v1382 = vtanh.pop %v1381
  %v1383 = vmul.f32 %v1378, %v1382
  %v1384 = vpack.c.bf16 %v1383, %v1383
  %v1385 = vpack.c.bf16 %v1359, %v1359
  %v1386 = vld [vmem:[%s3] sm:$0xff]
  %v1387 = vld [vmem:[%s3 + $0x8] sm:$0xff]
  %v1388 = vld [vmem:[%s3 + $0x10] sm:$0xff]
  %v1389 = vld [vmem:[%s3 + $0x18] sm:$0xff]
  %v1390 = vld [vmem:[%s3 + $0x20] sm:$0xff]
  %v1391 = vld [vmem:[%s3 + $0x28] sm:$0xff]
  %v1392 = vld [vmem:[%s3 + $0x30] sm:$0xff]
  %v1393 = vld [vmem:[%s3 + $0x38] sm:$0xff]
  %v1394 = vld [vmem:[%s3 + $0x40] sm:$0xff]
  %v1395 = vld [vmem:[%s3 + $0x48] sm:$0xff]
  %v1396 = vld [vmem:[%s3 + $0x50] sm:$0xff]
  %v1397 = vld [vmem:[%s3 + $0x58] sm:$0xff]
  %v1398 = vld [vmem:[%s3 + $0x60] sm:$0xff]
  %v1399 = vld [vmem:[%s3 + $0x68] sm:$0xff]
  %v1400 = vld [vmem:[%s3 + $0x70] sm:$0xff]
  %v1401 = vld [vmem:[%s3 + $0x78] sm:$0xff]
  %v1402 = vld [vmem:[%s3 + $0x80] sm:$0xff]
  %v1403 = vld [vmem:[%s3 + $0x88] sm:$0xff]
  %v1404 = vld [vmem:[%s3 + $0x90] sm:$0xff]
  %v1405 = vld [vmem:[%s3 + $0x98] sm:$0xff]
  %v1406 = vld [vmem:[%s3 + $0xa0] sm:$0xff]
  %v1407 = vld [vmem:[%s3 + $0xa8] sm:$0xff]
  %v1408 = vld [vmem:[%s3 + $0xb0] sm:$0xff]
  %v1409 = vld [vmem:[%s3 + $0xb8] sm:$0xff]
  %v1410 = vld [vmem:[%s3 + $0xc0] sm:$0xff]
  %v1411 = vld [vmem:[%s3 + $0xc8] sm:$0xff]
  %v1412 = vld [vmem:[%s3 + $0xd0] sm:$0xff]
  %v1413 = vld [vmem:[%s3 + $0xd8] sm:$0xff]
  %v1414 = vld [vmem:[%s3 + $0xe0] sm:$0xff]
  %v1415 = vld [vmem:[%s3 + $0xe8] sm:$0xff]
  %v1416 = vld [vmem:[%s3 + $0xf0] sm:$0xff]
  %v1417 = vld [vmem:[%s3 + $0xf8] sm:$0xff]
  %v1418 = vld [vmem:[%s3 + $0x100] sm:$0xff]
  %v1419 = vld [vmem:[%s3 + $0x108] sm:$0xff]
  %v1420 = vld [vmem:[%s3 + $0x110] sm:$0xff]
  %v1421 = vld [vmem:[%s3 + $0x118] sm:$0xff]
  %v1422 = vld [vmem:[%s3 + $0x120] sm:$0xff]
  %v1423 = vld [vmem:[%s3 + $0x128] sm:$0xff]
  %v1424 = vld [vmem:[%s3 + $0x130] sm:$0xff]
  %v1425 = vld [vmem:[%s3 + $0x138] sm:$0xff]
  %v1426 = vld [vmem:[%s3 + $0x140] sm:$0xff]
  %v1427 = vld [vmem:[%s3 + $0x148] sm:$0xff]
  %v1428 = vld [vmem:[%s3 + $0x150] sm:$0xff]
  %v1429 = vld [vmem:[%s3 + $0x158] sm:$0xff]
  %v1430 = vld [vmem:[%s3 + $0x160] sm:$0xff]
  %v1431 = vld [vmem:[%s3 + $0x168] sm:$0xff]
  %v1432 = vld [vmem:[%s3 + $0x170] sm:$0xff]
  %v1433 = vld [vmem:[%s3 + $0x178] sm:$0xff]
  %v1434 = vld [vmem:[%s3 + $0x180] sm:$0xff]
  %v1435 = vld [vmem:[%s3 + $0x188] sm:$0xff]
  %v1436 = vld [vmem:[%s3 + $0x190] sm:$0xff]
  %v1437 = vld [vmem:[%s3 + $0x198] sm:$0xff]
  %v1438 = vld [vmem:[%s3 + $0x1a0] sm:$0xff]
  %v1439 = vld [vmem:[%s3 + $0x1a8] sm:$0xff]
  %v1440 = vld [vmem:[%s3 + $0x1b0] sm:$0xff]
  %v1441 = vld [vmem:[%s3 + $0x1b8] sm:$0xff]
  %v1442 = vld [vmem:[%s3 + $0x1c0] sm:$0xff]
  %v1443 = vld [vmem:[%s3 + $0x1c8] sm:$0xff]
  %v1444 = vld [vmem:[%s3 + $0x1d0] sm:$0xff]
  %v1445 = vld [vmem:[%s3 + $0x1d8] sm:$0xff]
  %v1446 = vld [vmem:[%s3 + $0x1e0] sm:$0xff]
  %v1447 = vld [vmem:[%s3 + $0x1e8] sm:$0xff]
  %v1448 = vld [vmem:[%s3 + $0x1f0] sm:$0xff]
  %v1449 = vld [vmem:[%s3 + $0x1f8] sm:$0xff]
  %v1450 = vld [vmem:[%s3 + $0x200] sm:$0xff]
  %v1451 = vld [vmem:[%s3 + $0x208] sm:$0xff]
  %v1452 = vld [vmem:[%s3 + $0x210] sm:$0xff]
  %v1453 = vld [vmem:[%s3 + $0x218] sm:$0xff]
  %v1454 = vld [vmem:[%s3 + $0x220] sm:$0xff]
  %v1455 = vld [vmem:[%s3 + $0x228] sm:$0xff]
  %v1456 = vld [vmem:[%s3 + $0x230] sm:$0xff]
  %v1457 = vld [vmem:[%s3 + $0x238] sm:$0xff]
  %v1458 = vld [vmem:[%s3 + $0x240] sm:$0xff]
  %v1459 = vld [vmem:[%s3 + $0x248] sm:$0xff]
  %v1460 = vld [vmem:[%s3 + $0x250] sm:$0xff]
  %v1461 = vld [vmem:[%s3 + $0x258] sm:$0xff]
  %v1462 = vld [vmem:[%s3 + $0x260] sm:$0xff]
  %v1463 = vld [vmem:[%s3 + $0x268] sm:$0xff]
  %v1464 = vld [vmem:[%s3 + $0x270] sm:$0xff]
  %v1465 = vld [vmem:[%s3 + $0x278] sm:$0xff]
  %v1466 = vld [vmem:[%s3 + $0x280] sm:$0xff]
  %v1467 = vld [vmem:[%s3 + $0x288] sm:$0xff]
  %v1468 = vld [vmem:[%s3 + $0x290] sm:$0xff]
  %v1469 = vld [vmem:[%s3 + $0x298] sm:$0xff]
  %v1470 = vld [vmem:[%s3 + $0x2a0] sm:$0xff]
  %v1471 = vld [vmem:[%s3 + $0x2a8] sm:$0xff]
  %v1472 = vld [vmem:[%s3 + $0x2b0] sm:$0xff]
  %v1473 = vld [vmem:[%s3 + $0x2b8] sm:$0xff]
  %v1474 = vld [vmem:[%s3 + $0x2c0] sm:$0xff]
  %v1475 = vld [vmem:[%s3 + $0x2c8] sm:$0xff]
  %v1476 = vld [vmem:[%s3 + $0x2d0] sm:$0xff]
  %v1477 = vld [vmem:[%s3 + $0x2d8] sm:$0xff]
  %v1478 = vld [vmem:[%s3 + $0x2e0] sm:$0xff]
  %v1479 = vld [vmem:[%s3 + $0x2e8] sm:$0xff]
  %v1480 = vld [vmem:[%s3 + $0x2f0] sm:$0xff]
  %v1481 = vld [vmem:[%s3 + $0x2f8] sm:$0xff]
  %v1482 = vld [vmem:[%s3 + $0x300] sm:$0xff]
  %v1483 = vld [vmem:[%s3 + $0x308] sm:$0xff]
  %v1484 = vld [vmem:[%s3 + $0x310] sm:$0xff]
  %v1485 = vld [vmem:[%s3 + $0x318] sm:$0xff]
  %v1486 = vld [vmem:[%s3 + $0x320] sm:$0xff]
  %v1487 = vld [vmem:[%s3 + $0x328] sm:$0xff]
  %v1488 = vld [vmem:[%s3 + $0x330] sm:$0xff]
  %v1489 = vld [vmem:[%s3 + $0x338] sm:$0xff]
  %v1490 = vld [vmem:[%s3 + $0x340] sm:$0xff]
  %v1491 = vld [vmem:[%s3 + $0x348] sm:$0xff]
  %v1492 = vld [vmem:[%s3 + $0x350] sm:$0xff]
  %v1493 = vld [vmem:[%s3 + $0x358] sm:$0xff]
  %v1494 = vld [vmem:[%s3 + $0x360] sm:$0xff]
  %v1495 = vld [vmem:[%s3 + $0x368] sm:$0xff]
  %v1496 = vld [vmem:[%s3 + $0x370] sm:$0xff]
  %v1497 = vld [vmem:[%s3 + $0x378] sm:$0xff]
  %v1498 = vld [vmem:[%s3 + $0x380] sm:$0xff]
  %v1499 = vld [vmem:[%s3 + $0x388] sm:$0xff]
  %v1500 = vld [vmem:[%s3 + $0x390] sm:$0xff]
  %v1501 = vld [vmem:[%s3 + $0x398] sm:$0xff]
  %v1502 = vld [vmem:[%s3 + $0x3a0] sm:$0xff]
  %v1503 = vld [vmem:[%s3 + $0x3a8] sm:$0xff]
  %v1504 = vld [vmem:[%s3 + $0x3b0] sm:$0xff]
  %v1505 = vld [vmem:[%s3 + $0x3b8] sm:$0xff]
  %v1506 = vld [vmem:[%s3 + $0x3c0] sm:$0xff]
  %v1507 = vld [vmem:[%s3 + $0x3c8] sm:$0xff]
  %v1508 = vld [vmem:[%s3 + $0x3d0] sm:$0xff]
  %v1509 = vld [vmem:[%s3 + $0x3d8] sm:$0xff]
  %v1510 = vld [vmem:[%s3 + $0x3e0] sm:$0xff]
  %v1511 = vld [vmem:[%s3 + $0x3e8] sm:$0xff]
  %v1512 = vld [vmem:[%s3 + $0x3f0] sm:$0xff]
  %v1513 = vld [vmem:[%s3 + $0x3f8] sm:$0xff]
  %v1642 = vunpack.c.l.b16 %v1386
  %v1643 = vunpack.c.h.b16 %v1386
  %v1644 = vunpack.c.l.b16 %v1387
  %v1645 = vunpack.c.h.b16 %v1387
  %v1646 = vunpack.c.l.b16 %v1388
  %v1647 = vunpack.c.h.b16 %v1388
  %v1648 = vunpack.c.l.b16 %v1389
  %v1649 = vunpack.c.h.b16 %v1389
  %v1650 = vunpack.c.l.b16 %v1390
  %v1651 = vunpack.c.h.b16 %v1390
  %v1652 = vunpack.c.l.b16 %v1391
  %v1653 = vunpack.c.h.b16 %v1391
  %v1654 = vunpack.c.l.b16 %v1392
  %v1655 = vunpack.c.h.b16 %v1392
  %v1656 = vunpack.c.l.b16 %v1393
  %v1657 = vunpack.c.h.b16 %v1393
  %v1658 = vunpack.c.l.b16 %v1394
  %v1659 = vunpack.c.h.b16 %v1394
  %v1660 = vunpack.c.l.b16 %v1395
  %v1661 = vunpack.c.h.b16 %v1395
  %v1662 = vunpack.c.l.b16 %v1396
  %v1663 = vunpack.c.h.b16 %v1396
  %v1664 = vunpack.c.l.b16 %v1397
  %v1665 = vunpack.c.h.b16 %v1397
  %v1666 = vunpack.c.l.b16 %v1398
  %v1667 = vunpack.c.h.b16 %v1398
  %v1668 = vunpack.c.l.b16 %v1399
  %v1669 = vunpack.c.h.b16 %v1399
  %v1670 = vunpack.c.l.b16 %v1400
  %v1671 = vunpack.c.h.b16 %v1400
  %v1672 = vunpack.c.l.b16 %v1401
  %v1673 = vunpack.c.h.b16 %v1401
  %v1674 = vunpack.c.l.b16 %v1402
  %v1675 = vunpack.c.h.b16 %v1402
  %v1676 = vunpack.c.l.b16 %v1403
  %v1677 = vunpack.c.h.b16 %v1403
  %v1678 = vunpack.c.l.b16 %v1404
  %v1679 = vunpack.c.h.b16 %v1404
  %v1680 = vunpack.c.l.b16 %v1405
  %v1681 = vunpack.c.h.b16 %v1405
  %v1682 = vunpack.c.l.b16 %v1406
  %v1683 = vunpack.c.h.b16 %v1406
  %v1684 = vunpack.c.l.b16 %v1407
  %v1685 = vunpack.c.h.b16 %v1407
  %v1686 = vunpack.c.l.b16 %v1408
  %v1687 = vunpack.c.h.b16 %v1408
  %v1688 = vunpack.c.l.b16 %v1409
  %v1689 = vunpack.c.h.b16 %v1409
  %v1690 = vunpack.c.l.b16 %v1410
  %v1691 = vunpack.c.h.b16 %v1410
  %v1692 = vunpack.c.l.b16 %v1411
  %v1693 = vunpack.c.h.b16 %v1411
  %v1694 = vunpack.c.l.b16 %v1412
  %v1695 = vunpack.c.h.b16 %v1412
  %v1696 = vunpack.c.l.b16 %v1413
  %v1697 = vunpack.c.h.b16 %v1413
  %v1698 = vunpack.c.l.b16 %v1414
  %v1699 = vunpack.c.h.b16 %v1414
  %v1700 = vunpack.c.l.b16 %v1415
  %v1701 = vunpack.c.h.b16 %v1415
  %v1702 = vunpack.c.l.b16 %v1416
  %v1703 = vunpack.c.h.b16 %v1416
  %v1704 = vunpack.c.l.b16 %v1417
  %v1705 = vunpack.c.h.b16 %v1417
  %v1706 = vunpack.c.l.b16 %v1418
  %v1707 = vunpack.c.h.b16 %v1418
  %v1708 = vunpack.c.l.b16 %v1419
  %v1709 = vunpack.c.h.b16 %v1419
  %v1710 = vunpack.c.l.b16 %v1420
  %v1711 = vunpack.c.h.b16 %v1420
  %v1712 = vunpack.c.l.b16 %v1421
  %v1713 = vunpack.c.h.b16 %v1421
  %v1714 = vunpack.c.l.b16 %v1422
  %v1715 = vunpack.c.h.b16 %v1422
  %v1716 = vunpack.c.l.b16 %v1423
  %v1717 = vunpack.c.h.b16 %v1423
  %v1718 = vunpack.c.l.b16 %v1424
  %v1719 = vunpack.c.h.b16 %v1424
  %v1720 = vunpack.c.l.b16 %v1425
  %v1721 = vunpack.c.h.b16 %v1425
  %v1722 = vunpack.c.l.b16 %v1426
  %v1723 = vunpack.c.h.b16 %v1426
  %v1724 = vunpack.c.l.b16 %v1427
  %v1725 = vunpack.c.h.b16 %v1427
  %v1726 = vunpack.c.l.b16 %v1428
  %v1727 = vunpack.c.h.b16 %v1428
  %v1728 = vunpack.c.l.b16 %v1429
  %v1729 = vunpack.c.h.b16 %v1429
  %v1730 = vunpack.c.l.b16 %v1430
  %v1731 = vunpack.c.h.b16 %v1430
  %v1732 = vunpack.c.l.b16 %v1431
  %v1733 = vunpack.c.h.b16 %v1431
  %v1734 = vunpack.c.l.b16 %v1432
  %v1735 = vunpack.c.h.b16 %v1432
  %v1736 = vunpack.c.l.b16 %v1433
  %v1737 = vunpack.c.h.b16 %v1433
  %v1738 = vunpack.c.l.b16 %v1434
  %v1739 = vunpack.c.h.b16 %v1434
  %v1740 = vunpack.c.l.b16 %v1435
  %v1741 = vunpack.c.h.b16 %v1435
  %v1742 = vunpack.c.l.b16 %v1436
  %v1743 = vunpack.c.h.b16 %v1436
  %v1744 = vunpack.c.l.b16 %v1437
  %v1745 = vunpack.c.h.b16 %v1437
  %v1746 = vunpack.c.l.b16 %v1438
  %v1747 = vunpack.c.h.b16 %v1438
  %v1748 = vunpack.c.l.b16 %v1439
  %v1749 = vunpack.c.h.b16 %v1439
  %v1750 = vunpack.c.l.b16 %v1440
  %v1751 = vunpack.c.h.b16 %v1440
  %v1752 = vunpack.c.l.b16 %v1441
  %v1753 = vunpack.c.h.b16 %v1441
  %v1754 = vunpack.c.l.b16 %v1442
  %v1755 = vunpack.c.h.b16 %v1442
  %v1756 = vunpack.c.l.b16 %v1443
  %v1757 = vunpack.c.h.b16 %v1443
  %v1758 = vunpack.c.l.b16 %v1444
  %v1759 = vunpack.c.h.b16 %v1444
  %v1760 = vunpack.c.l.b16 %v1445
  %v1761 = vunpack.c.h.b16 %v1445
  %v1762 = vunpack.c.l.b16 %v1446
  %v1763 = vunpack.c.h.b16 %v1446
  %v1764 = vunpack.c.l.b16 %v1447
  %v1765 = vunpack.c.h.b16 %v1447
  %v1766 = vunpack.c.l.b16 %v1448
  %v1767 = vunpack.c.h.b16 %v1448
  %v1768 = vunpack.c.l.b16 %v1449
  %v1769 = vunpack.c.h.b16 %v1449
  %v1770 = vunpack.c.l.b16 %v1450
  %v1771 = vunpack.c.h.b16 %v1450
  %v1772 = vunpack.c.l.b16 %v1451
  %v1773 = vunpack.c.h.b16 %v1451
  %v1774 = vunpack.c.l.b16 %v1452
  %v1775 = vunpack.c.h.b16 %v1452
  %v1776 = vunpack.c.l.b16 %v1453
  %v1777 = vunpack.c.h.b16 %v1453
  %v1778 = vunpack.c.l.b16 %v1454
  %v1779 = vunpack.c.h.b16 %v1454
  %v1780 = vunpack.c.l.b16 %v1455
  %v1781 = vunpack.c.h.b16 %v1455
  %v1782 = vunpack.c.l.b16 %v1456
  %v1783 = vunpack.c.h.b16 %v1456
  %v1784 = vunpack.c.l.b16 %v1457
  %v1785 = vunpack.c.h.b16 %v1457
  %v1786 = vunpack.c.l.b16 %v1458
  %v1787 = vunpack.c.h.b16 %v1458
  %v1788 = vunpack.c.l.b16 %v1459
  %v1789 = vunpack.c.h.b16 %v1459
  %v1790 = vunpack.c.l.b16 %v1460
  %v1791 = vunpack.c.h.b16 %v1460
  %v1792 = vunpack.c.l.b16 %v1461
  %v1793 = vunpack.c.h.b16 %v1461
  %v1794 = vunpack.c.l.b16 %v1462
  %v1795 = vunpack.c.h.b16 %v1462
  %v1796 = vunpack.c.l.b16 %v1463
  %v1797 = vunpack.c.h.b16 %v1463
  %v1798 = vunpack.c.l.b16 %v1464
  %v1799 = vunpack.c.h.b16 %v1464
  %v1800 = vunpack.c.l.b16 %v1465
  %v1801 = vunpack.c.h.b16 %v1465
  %v1802 = vunpack.c.l.b16 %v1466
  %v1803 = vunpack.c.h.b16 %v1466
  %v1804 = vunpack.c.l.b16 %v1467
  %v1805 = vunpack.c.h.b16 %v1467
  %v1806 = vunpack.c.l.b16 %v1468
  %v1807 = vunpack.c.h.b16 %v1468
  %v1808 = vunpack.c.l.b16 %v1469
  %v1809 = vunpack.c.h.b16 %v1469
  %v1810 = vunpack.c.l.b16 %v1470
  %v1811 = vunpack.c.h.b16 %v1470
  %v1812 = vunpack.c.l.b16 %v1471
  %v1813 = vunpack.c.h.b16 %v1471
  %v1814 = vunpack.c.l.b16 %v1472
  %v1815 = vunpack.c.h.b16 %v1472
  %v1816 = vunpack.c.l.b16 %v1473
  %v1817 = vunpack.c.h.b16 %v1473
  %v1818 = vunpack.c.l.b16 %v1474
  %v1819 = vunpack.c.h.b16 %v1474
  %v1820 = vunpack.c.l.b16 %v1475
  %v1821 = vunpack.c.h.b16 %v1475
  %v1822 = vunpack.c.l.b16 %v1476
  %v1823 = vunpack.c.h.b16 %v1476
  %v1824 = vunpack.c.l.b16 %v1477
  %v1825 = vunpack.c.h.b16 %v1477
  %v1826 = vunpack.c.l.b16 %v1478
  %v1827 = vunpack.c.h.b16 %v1478
  %v1828 = vunpack.c.l.b16 %v1479
  %v1829 = vunpack.c.h.b16 %v1479
  %v1830 = vunpack.c.l.b16 %v1480
  %v1831 = vunpack.c.h.b16 %v1480
  %v1832 = vunpack.c.l.b16 %v1481
  %v1833 = vunpack.c.h.b16 %v1481
  %v1834 = vunpack.c.l.b16 %v1482
  %v1835 = vunpack.c.h.b16 %v1482
  %v1836 = vunpack.c.l.b16 %v1483
  %v1837 = vunpack.c.h.b16 %v1483
  %v1838 = vunpack.c.l.b16 %v1484
  %v1839 = vunpack.c.h.b16 %v1484
  %v1840 = vunpack.c.l.b16 %v1485
  %v1841 = vunpack.c.h.b16 %v1485
  %v1842 = vunpack.c.l.b16 %v1486
  %v1843 = vunpack.c.h.b16 %v1486
  %v1844 = vunpack.c.l.b16 %v1487
  %v1845 = vunpack.c.h.b16 %v1487
  %v1846 = vunpack.c.l.b16 %v1488
  %v1847 = vunpack.c.h.b16 %v1488
  %v1848 = vunpack.c.l.b16 %v1489
  %v1849 = vunpack.c.h.b16 %v1489
  %v1850 = vunpack.c.l.b16 %v1490
  %v1851 = vunpack.c.h.b16 %v1490
  %v1852 = vunpack.c.l.b16 %v1491
  %v1853 = vunpack.c.h.b16 %v1491
  %v1854 = vunpack.c.l.b16 %v1492
  %v1855 = vunpack.c.h.b16 %v1492
  %v1856 = vunpack.c.l.b16 %v1493
  %v1857 = vunpack.c.h.b16 %v1493
  %v1858 = vunpack.c.l.b16 %v1494
  %v1859 = vunpack.c.h.b16 %v1494
  %v1860 = vunpack.c.l.b16 %v1495
  %v1861 = vunpack.c.h.b16 %v1495
  %v1862 = vunpack.c.l.b16 %v1496
  %v1863 = vunpack.c.h.b16 %v1496
  %v1864 = vunpack.c.l.b16 %v1497
  %v1865 = vunpack.c.h.b16 %v1497
  %v1866 = vunpack.c.l.b16 %v1498
  %v1867 = vunpack.c.h.b16 %v1498
  %v1868 = vunpack.c.l.b16 %v1499
  %v1869 = vunpack.c.h.b16 %v1499
  %v1870 = vunpack.c.l.b16 %v1500
  %v1871 = vunpack.c.h.b16 %v1500
  %v1872 = vunpack.c.l.b16 %v1501
  %v1873 = vunpack.c.h.b16 %v1501
  %v1874 = vunpack.c.l.b16 %v1502
  %v1875 = vunpack.c.h.b16 %v1502
  %v1876 = vunpack.c.l.b16 %v1503
  %v1877 = vunpack.c.h.b16 %v1503
  %v1878 = vunpack.c.l.b16 %v1504
  %v1879 = vunpack.c.h.b16 %v1504
  %v1880 = vunpack.c.l.b16 %v1505
  %v1881 = vunpack.c.h.b16 %v1505
  %v1882 = vunpack.c.l.b16 %v1506
  %v1883 = vunpack.c.h.b16 %v1506
  %v1884 = vunpack.c.l.b16 %v1507
  %v1885 = vunpack.c.h.b16 %v1507
  %v1886 = vunpack.c.l.b16 %v1508
  %v1887 = vunpack.c.h.b16 %v1508
  %v1888 = vunpack.c.l.b16 %v1509
  %v1889 = vunpack.c.h.b16 %v1509
  %v1890 = vunpack.c.l.b16 %v1510
  %v1891 = vunpack.c.h.b16 %v1510
  %v1892 = vunpack.c.l.b16 %v1511
  %v1893 = vunpack.c.h.b16 %v1511
  %v1894 = vunpack.c.l.b16 %v1512
  %v1895 = vunpack.c.h.b16 %v1512
  %v1896 = vunpack.c.l.b16 %v1513
  %v1897 = vunpack.c.h.b16 %v1513
  %v1898 = vpack.c.b16 %v1650, %v1642
  %v1899 = vpack.c.b16 %v1651, %v1643
  %v1900 = vpack.c.b16 %v1652, %v1644
  %v1901 = vpack.c.b16 %v1653, %v1645
  %v1902 = vpack.c.b16 %v1654, %v1646
  %v1903 = vpack.c.b16 %v1655, %v1647
  %v1904 = vpack.c.b16 %v1656, %v1648
  %v1905 = vpack.c.b16 %v1657, %v1649
  %v1906 = vpack.c.b16 %v1666, %v1658
  %v1907 = vpack.c.b16 %v1667, %v1659
  %v1908 = vpack.c.b16 %v1668, %v1660
  %v1909 = vpack.c.b16 %v1669, %v1661
  %v1910 = vpack.c.b16 %v1670, %v1662
  %v1911 = vpack.c.b16 %v1671, %v1663
  %v1912 = vpack.c.b16 %v1672, %v1664
  %v1913 = vpack.c.b16 %v1673, %v1665
  %v1914 = vpack.c.b16 %v1682, %v1674
  %v1915 = vpack.c.b16 %v1683, %v1675
  %v1916 = vpack.c.b16 %v1684, %v1676
  %v1917 = vpack.c.b16 %v1685, %v1677
  %v1918 = vpack.c.b16 %v1686, %v1678
  %v1919 = vpack.c.b16 %v1687, %v1679
  %v1920 = vpack.c.b16 %v1688, %v1680
  %v1921 = vpack.c.b16 %v1689, %v1681
  %v1922 = vpack.c.b16 %v1698, %v1690
  %v1923 = vpack.c.b16 %v1699, %v1691
  %v1924 = vpack.c.b16 %v1700, %v1692
  %v1925 = vpack.c.b16 %v1701, %v1693
  %v1926 = vpack.c.b16 %v1702, %v1694
  %v1927 = vpack.c.b16 %v1703, %v1695
  %v1928 = vpack.c.b16 %v1704, %v1696
  %v1929 = vpack.c.b16 %v1705, %v1697
  %v1930 = vpack.c.b16 %v1714, %v1706
  %v1931 = vpack.c.b16 %v1715, %v1707
  %v1932 = vpack.c.b16 %v1716, %v1708
  %v1933 = vpack.c.b16 %v1717, %v1709
  %v1934 = vpack.c.b16 %v1718, %v1710
  %v1935 = vpack.c.b16 %v1719, %v1711
  %v1936 = vpack.c.b16 %v1720, %v1712
  %v1937 = vpack.c.b16 %v1721, %v1713
  %v1938 = vpack.c.b16 %v1730, %v1722
  %v1939 = vpack.c.b16 %v1731, %v1723
  %v1940 = vpack.c.b16 %v1732, %v1724
  %v1941 = vpack.c.b16 %v1733, %v1725
  %v1942 = vpack.c.b16 %v1734, %v1726
  %v1943 = vpack.c.b16 %v1735, %v1727
  %v1944 = vpack.c.b16 %v1736, %v1728
  %v1945 = vpack.c.b16 %v1737, %v1729
  %v1946 = vpack.c.b16 %v1746, %v1738
  %v1947 = vpack.c.b16 %v1747, %v1739
  %v1948 = vpack.c.b16 %v1748, %v1740
  %v1949 = vpack.c.b16 %v1749, %v1741
  %v1950 = vpack.c.b16 %v1750, %v1742
  %v1951 = vpack.c.b16 %v1751, %v1743
  %v1952 = vpack.c.b16 %v1752, %v1744
  %v1953 = vpack.c.b16 %v1753, %v1745
  %v1954 = vpack.c.b16 %v1762, %v1754
  %v1955 = vpack.c.b16 %v1763, %v1755
  %v1956 = vpack.c.b16 %v1764, %v1756
  %v1957 = vpack.c.b16 %v1765, %v1757
  %v1958 = vpack.c.b16 %v1766, %v1758
  %v1959 = vpack.c.b16 %v1767, %v1759
  %v1960 = vpack.c.b16 %v1768, %v1760
  %v1961 = vpack.c.b16 %v1769, %v1761
  %v1962 = vpack.c.b16 %v1778, %v1770
  %v1963 = vpack.c.b16 %v1779, %v1771
  %v1964 = vpack.c.b16 %v1780, %v1772
  %v1965 = vpack.c.b16 %v1781, %v1773
  %v1966 = vpack.c.b16 %v1782, %v1774
  %v1967 = vpack.c.b16 %v1783, %v1775
  %v1968 = vpack.c.b16 %v1784, %v1776
  %v1969 = vpack.c.b16 %v1785, %v1777
  %v1970 = vpack.c.b16 %v1794, %v1786
  %v1971 = vpack.c.b16 %v1795, %v1787
  %v1972 = vpack.c.b16 %v1796, %v1788
  %v1973 = vpack.c.b16 %v1797, %v1789
  %v1974 = vpack.c.b16 %v1798, %v1790
  %v1975 = vpack.c.b16 %v1799, %v1791
  %v1976 = vpack.c.b16 %v1800, %v1792
  %v1977 = vpack.c.b16 %v1801, %v1793
  %v1978 = vpack.c.b16 %v1810, %v1802
  %v1979 = vpack.c.b16 %v1811, %v1803
  %v1980 = vpack.c.b16 %v1812, %v1804
  %v1981 = vpack.c.b16 %v1813, %v1805
  %v1982 = vpack.c.b16 %v1814, %v1806
  %v1983 = vpack.c.b16 %v1815, %v1807
  %v1984 = vpack.c.b16 %v1816, %v1808
  %v1985 = vpack.c.b16 %v1817, %v1809
  %v1986 = vpack.c.b16 %v1826, %v1818
  %v1987 = vpack.c.b16 %v1827, %v1819
  %v1988 = vpack.c.b16 %v1828, %v1820
  %v1989 = vpack.c.b16 %v1829, %v1821
  %v1990 = vpack.c.b16 %v1830, %v1822
  %v1991 = vpack.c.b16 %v1831, %v1823
  %v1992 = vpack.c.b16 %v1832, %v1824
  %v1993 = vpack.c.b16 %v1833, %v1825
  %v1994 = vpack.c.b16 %v1842, %v1834
  %v1995 = vpack.c.b16 %v1843, %v1835
  %v1996 = vpack.c.b16 %v1844, %v1836
  %v1997 = vpack.c.b16 %v1845, %v1837
  %v1998 = vpack.c.b16 %v1846, %v1838
  %v1999 = vpack.c.b16 %v1847, %v1839
  %v2000 = vpack.c.b16 %v1848, %v1840
  %v2001 = vpack.c.b16 %v1849, %v1841
  %v2002 = vpack.c.b16 %v1858, %v1850
  %v2003 = vpack.c.b16 %v1859, %v1851
  %v2004 = vpack.c.b16 %v1860, %v1852
  %v2005 = vpack.c.b16 %v1861, %v1853
  %v2006 = vpack.c.b16 %v1862, %v1854
  %v2007 = vpack.c.b16 %v1863, %v1855
  %v2008 = vpack.c.b16 %v1864, %v1856
  %v2009 = vpack.c.b16 %v1865, %v1857
  %v2010 = vpack.c.b16 %v1874, %v1866
  %v2011 = vpack.c.b16 %v1875, %v1867
  %v2012 = vpack.c.b16 %v1876, %v1868
  %v2013 = vpack.c.b16 %v1877, %v1869
  %v2014 = vpack.c.b16 %v1878, %v1870
  %v2015 = vpack.c.b16 %v1879, %v1871
  %v2016 = vpack.c.b16 %v1880, %v1872
  %v2017 = vpack.c.b16 %v1881, %v1873
  %v2018 = vpack.c.b16 %v1890, %v1882
  %v2019 = vpack.c.b16 %v1891, %v1883
  %v2020 = vpack.c.b16 %v1892, %v1884
  %v2021 = vpack.c.b16 %v1893, %v1885
  %v2022 = vpack.c.b16 %v1894, %v1886
  %v2023 = vpack.c.b16 %v1895, %v1887
  %v2024 = vpack.c.b16 %v1896, %v1888
  %v2025 = vpack.c.b16 %v1897, %v1889
  %2154 = vmatprep.subr.bf16.mxu0 %v1955
  %2155 = vmatpush1.bf16.msra.mxu0 %v1954
  %2156 = vmatprep.subr.bf16.mxu0 %v1947
  %2157 = vmatpush1.bf16.msra.mxu0 %v1946
  %2158 = vmatprep.subr.bf16.mxu0 %v1939
  %2159 = vmatpush1.bf16.msra.mxu0 %v1938
  %2160 = vmatprep.subr.bf16.mxu0 %v1931
  %2161 = vmatpush1.bf16.msra.mxu0 %v1930
  %2162 = vmatprep.subr.bf16.mxu0 %v1923
  %2163 = vmatpush1.bf16.msra.mxu0 %v1922
  %2164 = vmatprep.subr.bf16.mxu0 %v1915
  %2165 = vmatpush1.bf16.msra.mxu0 %v1914
  %2166 = vmatprep.subr.bf16.mxu0 %v1907
  %2167 = vmatpush1.bf16.msra.mxu0 %v1906
  %2168 = vmatprep.subr.bf16.mxu0 %v1899
  %2169 = vmatpush1.bf16.msra.mxu0 %v1898
  %2170 = vmatprep.subr.bf16.mxu0 %v2019
  %2171 = vmatpush2.bf16.msra.mxu0 %v2018
  %2172 = vmatprep.subr.bf16.mxu0 %v2011
  %2173 = vmatpush2.bf16.msra.mxu0 %v2010
  %2174 = vmatprep.subr.bf16.mxu0 %v2003
  %2175 = vmatpush2.bf16.msra.mxu0 %v2002
  %2176 = vmatprep.subr.bf16.mxu0 %v1995
  %2177 = vmatpush2.bf16.msra.mxu0 %v1994
  %2178 = vmatprep.subr.bf16.mxu0 %v1987
  %2179 = vmatpush2.bf16.msra.mxu0 %v1986
  %2180 = vmatprep.subr.bf16.mxu0 %v1979
  %2181 = vmatpush2.bf16.msra.mxu0 %v1978
  %2182 = vmatprep.subr.bf16.mxu0 %v1971
  %2183 = vmatpush2.bf16.msra.mxu0 %v1970
  %2184 = vmatprep.subr.bf16.mxu0 %v1963
  %2185 = vmatpush2.bf16.msra.mxu0 %v1962
  %2186 = vmatprep.mubr.bf16.mxu0 %v1385
  %2187 = vmatmul.mubr.bf16.gmra.mxu0 %v1384
  %v2188 = vpop.f32.mrf.mxu0
  %v2189 = vadd.f32 0.0, %v2188
  %v2190 = vpop.f32.mrf.mxu0
  %v2191 = vadd.f32 0.0, %v2190
  %v2192 = vpop.f32.mrf.mxu0
  %v2193 = vpop.f32.mrf.mxu0
  %2194 = vdwg.mxu0
  %2195 = vmatprep.subr.bf16.mxu0 %v1957
  %2196 = vmatpush1.bf16.msra.mxu0 %v1956
  %2197 = vmatprep.subr.bf16.mxu0 %v1949
  %2198 = vmatpush1.bf16.msra.mxu0 %v1948
  %2199 = vmatprep.subr.bf16.mxu0 %v1941
  %2200 = vmatpush1.bf16.msra.mxu0 %v1940
  %2201 = vmatprep.subr.bf16.mxu0 %v1933
  %2202 = vmatpush1.bf16.msra.mxu0 %v1932
  %2203 = vmatprep.subr.bf16.mxu0 %v1925
  %2204 = vmatpush1.bf16.msra.mxu0 %v1924
  %2205 = vmatprep.subr.bf16.mxu0 %v1917
  %2206 = vmatpush1.bf16.msra.mxu0 %v1916
  %2207 = vmatprep.subr.bf16.mxu0 %v1909
  %2208 = vmatpush1.bf16.msra.mxu0 %v1908
  %2209 = vmatprep.subr.bf16.mxu0 %v1901
  %2210 = vmatpush1.bf16.msra.mxu0 %v1900
  %2211 = vmatprep.subr.bf16.mxu0 %v2021
  %2212 = vmatpush2.bf16.msra.mxu0 %v2020
  %2213 = vmatprep.subr.bf16.mxu0 %v2013
  %2214 = vmatpush2.bf16.msra.mxu0 %v2012
  %2215 = vmatprep.subr.bf16.mxu0 %v2005
  %2216 = vmatpush2.bf16.msra.mxu0 %v2004
  %2217 = vmatprep.subr.bf16.mxu0 %v1997
  %2218 = vmatpush2.bf16.msra.mxu0 %v1996
  %2219 = vmatprep.subr.bf16.mxu0 %v1989
  %2220 = vmatpush2.bf16.msra.mxu0 %v1988
  %2221 = vmatprep.subr.bf16.mxu0 %v1981
  %2222 = vmatpush2.bf16.msra.mxu0 %v1980
  %2223 = vmatprep.subr.bf16.mxu0 %v1973
  %2224 = vmatpush2.bf16.msra.mxu0 %v1972
  %2225 = vmatprep.subr.bf16.mxu0 %v1965
  %2226 = vmatpush2.bf16.msra.mxu0 %v1964
  %2227 = vmatprep.mubr.bf16.mxu0 %v1385
  %2228 = vmatmul.mubr.bf16.gmra.mxu0 %v1384
  %v2229 = vpop.f32.mrf.mxu0
  %v2230 = vadd.f32 0.0, %v2229
  %v2231 = vpop.f32.mrf.mxu0
  %v2232 = vadd.f32 0.0, %v2231
  %v2233 = vpop.f32.mrf.mxu0
  %v2234 = vpop.f32.mrf.mxu0
  %2235 = vdwg.mxu0
  %2236 = vmatprep.subr.bf16.mxu0 %v1959
  %2237 = vmatpush1.bf16.msra.mxu0 %v1958
  %2238 = vmatprep.subr.bf16.mxu0 %v1951
  %2239 = vmatpush1.bf16.msra.mxu0 %v1950
  %2240 = vmatprep.subr.bf16.mxu0 %v1943
  %2241 = vmatpush1.bf16.msra.mxu0 %v1942
  %2242 = vmatprep.subr.bf16.mxu0 %v1935
  %2243 = vmatpush1.bf16.msra.mxu0 %v1934
  %2244 = vmatprep.subr.bf16.mxu0 %v1927
  %2245 = vmatpush1.bf16.msra.mxu0 %v1926
  %2246 = vmatprep.subr.bf16.mxu0 %v1919
  %2247 = vmatpush1.bf16.msra.mxu0 %v1918
  %2248 = vmatprep.subr.bf16.mxu0 %v1911
  %2249 = vmatpush1.bf16.msra.mxu0 %v1910
  %2250 = vmatprep.subr.bf16.mxu0 %v1903
  %2251 = vmatpush1.bf16.msra.mxu0 %v1902
  %2252 = vmatprep.subr.bf16.mxu0 %v2023
  %2253 = vmatpush2.bf16.msra.mxu0 %v2022
  %2254 = vmatprep.subr.bf16.mxu0 %v2015
  %2255 = vmatpush2.bf16.msra.mxu0 %v2014
  %2256 = vmatprep.subr.bf16.mxu0 %v2007
  %2257 = vmatpush2.bf16.msra.mxu0 %v2006
  %2258 = vmatprep.subr.bf16.mxu0 %v1999
  %2259 = vmatpush2.bf16.msra.mxu0 %v1998
  %2260 = vmatprep.subr.bf16.mxu0 %v1991
  %2261 = vmatpush2.bf16.msra.mxu0 %v1990
  %2262 = vmatprep.subr.bf16.mxu0 %v1983
  %2263 = vmatpush2.bf16.msra.mxu0 %v1982
  %2264 = vmatprep.subr.bf16.mxu0 %v1975
  %2265 = vmatpush2.bf16.msra.mxu0 %v1974
  %2266 = vmatprep.subr.bf16.mxu0 %v1967
  %2267 = vmatpush2.bf16.msra.mxu0 %v1966
  %2268 = vmatprep.mubr.bf16.mxu0 %v1385
  %2269 = vmatmul.mubr.bf16.gmra.mxu0 %v1384
  %v2270 = vpop.f32.mrf.mxu0
  %v2271 = vadd.f32 0.0, %v2270
  %v2272 = vpop.f32.mrf.mxu0
  %v2273 = vadd.f32 0.0, %v2272
  %v2274 = vpop.f32.mrf.mxu0
  %v2275 = vpop.f32.mrf.mxu0
  %2276 = vdwg.mxu0
  %2277 = vmatprep.subr.bf16.mxu0 %v1961
  %2278 = vmatpush1.bf16.msra.mxu0 %v1960
  %2279 = vmatprep.subr.bf16.mxu0 %v1953
  %2280 = vmatpush1.bf16.msra.mxu0 %v1952
  %2281 = vmatprep.subr.bf16.mxu0 %v1945
  %2282 = vmatpush1.bf16.msra.mxu0 %v1944
  %2283 = vmatprep.subr.bf16.mxu0 %v1937
  %2284 = vmatpush1.bf16.msra.mxu0 %v1936
  %2285 = vmatprep.subr.bf16.mxu0 %v1929
  %2286 = vmatpush1.bf16.msra.mxu0 %v1928
  %2287 = vmatprep.subr.bf16.mxu0 %v1921
  %2288 = vmatpush1.bf16.msra.mxu0 %v1920
  %2289 = vmatprep.subr.bf16.mxu0 %v1913
  %2290 = vmatpush1.bf16.msra.mxu0 %v1912
  %2291 = vmatprep.subr.bf16.mxu0 %v1905
  %2292 = vmatpush1.bf16.msra.mxu0 %v1904
  %2293 = vmatprep.subr.bf16.mxu0 %v2025
  %2294 = vmatpush2.bf16.msra.mxu0 %v2024
  %2295 = vmatprep.subr.bf16.mxu0 %v2017
  %2296 = vmatpush2.bf16.msra.mxu0 %v2016
  %2297 = vmatprep.subr.bf16.mxu0 %v2009
  %2298 = vmatpush2.bf16.msra.mxu0 %v2008
  %2299 = vmatprep.subr.bf16.mxu0 %v2001
  %2300 = vmatpush2.bf16.msra.mxu0 %v2000
  %2301 = vmatprep.subr.bf16.mxu0 %v1993
  %2302 = vmatpush2.bf16.msra.mxu0 %v1992
  %2303 = vmatprep.subr.bf16.mxu0 %v1985
  %2304 = vmatpush2.bf16.msra.mxu0 %v1984
  %2305 = vmatprep.subr.bf16.mxu0 %v1977
  %2306 = vmatpush2.bf16.msra.mxu0 %v1976
  %2307 = vmatprep.subr.bf16.mxu0 %v1969
  %2308 = vmatpush2.bf16.msra.mxu0 %v1968
  %2309 = vmatprep.mubr.bf16.mxu0 %v1385
  %2310 = vmatmul.mubr.bf16.gmra.mxu0 %v1384
  %v2311 = vpop.f32.mrf.mxu0
  %v2312 = vadd.f32 0.0, %v2311
  %v2313 = vpop.f32.mrf.mxu0
  %v2314 = vadd.f32 0.0, %v2313
  %v2315 = vpop.f32.mrf.mxu0
  %v2316 = vpop.f32.mrf.mxu0
  %2317 = vdwg.mxu0
  %v2318 = vadd.f32 %v2271, %v371
  %v2319 = vadd.f32 %v2273, %v375
  %v2320 = vadd.f32 %v2312, %v379
  %v2321 = vadd.f32 %v2314, %v383
  %v2322 = vtanh.pop %v2318
  %v2323 = vtanh.pop %v2319
  %v2324 = vtanh.pop %v2320
  %v2325 = vtanh.pop %v2321
  %v2326 = vmul.f32 %v2322, 0.5
  %v2327 = vadd.f32 %v2326, 0.5
  %v2328 = vmul.f32 %v2323, 0.5
  %v2329 = vadd.f32 %v2328, 0.5
  %v2330 = vmul.f32 %v2325, 0.5
  %v2331 = vadd.f32 %v2330, 0.5
  %v2332 = vmul.f32 %v2329, %v1357
  %v2333 = vmul.f32 %v2327, %v2324
  %v2334 = vadd.f32 %v2332, %v2333
  %v2335 = vtanh.pop %v2334
  %v2336 = vmul.f32 %v2331, %v2335
  %2337 = vst [vmem:[#allocation3 + $0x8] sm:$0xff] %v2336
  %v2338 = vld [vmem:[#allocation2 + $0x40] sm:$0xff]
  %v2339 = vld [vmem:[#allocation2 + $0x48] sm:$0xff]
  %v2340 = vld [vmem:[#allocation2 + $0x50] sm:$0xff]
  %v2341 = vld [vmem:[#allocation2 + $0x58] sm:$0xff]
  %v2342 = vadd.f32 %v2189, %v2338
  %v2343 = vadd.f32 %v2191, %v2339
  %v2344 = vadd.f32 %v2230, %v2340
  %v2345 = vadd.f32 %v2232, %v2341
  %v2346 = vtanh.pop %v2342
  %v2347 = vtanh.pop %v2343
  %v2348 = vtanh.pop %v2344
  %v2349 = vtanh.pop %v2345
  %v2350 = vmul.f32 %v2346, 0.5
  %v2351 = vadd.f32 %v2350, 0.5
  %v2352 = vmul.f32 %v2347, 0.5
  %v2353 = vadd.f32 %v2352, 0.5
  %v2354 = vmul.f32 %v2349, 0.5
  %v2355 = vadd.f32 %v2354, 0.5
  %v2356 = vmul.f32 %v2353, %v1381
  %v2357 = vmul.f32 %v2351, %v2348
  %v2358 = vadd.f32 %v2356, %v2357
  %v2359 = vtanh.pop %v2358
  %v2360 = vmul.f32 %v2355, %v2359
  %v2361 = vpack.c.bf16 %v2360, %v2360
  %v2362 = vpack.c.bf16 %v2336, %v2336
  %v2363 = vld [vmem:[%s3] sm:$0xff]
  %v2364 = vld [vmem:[%s3 + $0x8] sm:$0xff]
  %v2365 = vld [vmem:[%s3 + $0x10] sm:$0xff]
  %v2366 = vld [vmem:[%s3 + $0x18] sm:$0xff]
  %v2367 = vld [vmem:[%s3 + $0x20] sm:$0xff]
  %v2368 = vld [vmem:[%s3 + $0x28] sm:$0xff]
  %v2369 = vld [vmem:[%s3 + $0x30] sm:$0xff]
  %v2370 = vld [vmem:[%s3 + $0x38] sm:$0xff]
  %v2371 = vld [vmem:[%s3 + $0x40] sm:$0xff]
  %v2372 = vld [vmem:[%s3 + $0x48] sm:$0xff]
  %v2373 = vld [vmem:[%s3 + $0x50] sm:$0xff]
  %v2374 = vld [vmem:[%s3 + $0x58] sm:$0xff]
  %v2375 = vld [vmem:[%s3 + $0x60] sm:$0xff]
  %v2376 = vld [vmem:[%s3 + $0x68] sm:$0xff]
  %v2377 = vld [vmem:[%s3 + $0x70] sm:$0xff]
  %v2378 = vld [vmem:[%s3 + $0x78] sm:$0xff]
  %v2379 = vld [vmem:[%s3 + $0x80] sm:$0xff]
  %v2380 = vld [vmem:[%s3 + $0x88] sm:$0xff]
  %v2381 = vld [vmem:[%s3 + $0x90] sm:$0xff]
  %v2382 = vld [vmem:[%s3 + $0x98] sm:$0xff]
  %v2383 = vld [vmem:[%s3 + $0xa0] sm:$0xff]
  %v2384 = vld [vmem:[%s3 + $0xa8] sm:$0xff]
  %v2385 = vld [vmem:[%s3 + $0xb0] sm:$0xff]
  %v2386 = vld [vmem:[%s3 + $0xb8] sm:$0xff]
  %v2387 = vld [vmem:[%s3 + $0xc0] sm:$0xff]
  %v2388 = vld [vmem:[%s3 + $0xc8] sm:$0xff]
  %v2389 = vld [vmem:[%s3 + $0xd0] sm:$0xff]
  %v2390 = vld [vmem:[%s3 + $0xd8] sm:$0xff]
  %v2391 = vld [vmem:[%s3 + $0xe0] sm:$0xff]
  %v2392 = vld [vmem:[%s3 + $0xe8] sm:$0xff]
  %v2393 = vld [vmem:[%s3 + $0xf0] sm:$0xff]
  %v2394 = vld [vmem:[%s3 + $0xf8] sm:$0xff]
  %v2395 = vld [vmem:[%s3 + $0x100] sm:$0xff]
  %v2396 = vld [vmem:[%s3 + $0x108] sm:$0xff]
  %v2397 = vld [vmem:[%s3 + $0x110] sm:$0xff]
  %v2398 = vld [vmem:[%s3 + $0x118] sm:$0xff]
  %v2399 = vld [vmem:[%s3 + $0x120] sm:$0xff]
  %v2400 = vld [vmem:[%s3 + $0x128] sm:$0xff]
  %v2401 = vld [vmem:[%s3 + $0x130] sm:$0xff]
  %v2402 = vld [vmem:[%s3 + $0x138] sm:$0xff]
  %v2403 = vld [vmem:[%s3 + $0x140] sm:$0xff]
  %v2404 = vld [vmem:[%s3 + $0x148] sm:$0xff]
  %v2405 = vld [vmem:[%s3 + $0x150] sm:$0xff]
  %v2406 = vld [vmem:[%s3 + $0x158] sm:$0xff]
  %v2407 = vld [vmem:[%s3 + $0x160] sm:$0xff]
  %v2408 = vld [vmem:[%s3 + $0x168] sm:$0xff]
  %v2409 = vld [vmem:[%s3 + $0x170] sm:$0xff]
  %v2410 = vld [vmem:[%s3 + $0x178] sm:$0xff]
  %v2411 = vld [vmem:[%s3 + $0x180] sm:$0xff]
  %v2412 = vld [vmem:[%s3 + $0x188] sm:$0xff]
  %v2413 = vld [vmem:[%s3 + $0x190] sm:$0xff]
  %v2414 = vld [vmem:[%s3 + $0x198] sm:$0xff]
  %v2415 = vld [vmem:[%s3 + $0x1a0] sm:$0xff]
  %v2416 = vld [vmem:[%s3 + $0x1a8] sm:$0xff]
  %v2417 = vld [vmem:[%s3 + $0x1b0] sm:$0xff]
  %v2418 = vld [vmem:[%s3 + $0x1b8] sm:$0xff]
  %v2419 = vld [vmem:[%s3 + $0x1c0] sm:$0xff]
  %v2420 = vld [vmem:[%s3 + $0x1c8] sm:$0xff]
  %v2421 = vld [vmem:[%s3 + $0x1d0] sm:$0xff]
  %v2422 = vld [vmem:[%s3 + $0x1d8] sm:$0xff]
  %v2423 = vld [vmem:[%s3 + $0x1e0] sm:$0xff]
  %v2424 = vld [vmem:[%s3 + $0x1e8] sm:$0xff]
  %v2425 = vld [vmem:[%s3 + $0x1f0] sm:$0xff]
  %v2426 = vld [vmem:[%s3 + $0x1f8] sm:$0xff]
  %v2427 = vld [vmem:[%s3 + $0x200] sm:$0xff]
  %v2428 = vld [vmem:[%s3 + $0x208] sm:$0xff]
  %v2429 = vld [vmem:[%s3 + $0x210] sm:$0xff]
  %v2430 = vld [vmem:[%s3 + $0x218] sm:$0xff]
  %v2431 = vld [vmem:[%s3 + $0x220] sm:$0xff]
  %v2432 = vld [vmem:[%s3 + $0x228] sm:$0xff]
  %v2433 = vld [vmem:[%s3 + $0x230] sm:$0xff]
  %v2434 = vld [vmem:[%s3 + $0x238] sm:$0xff]
  %v2435 = vld [vmem:[%s3 + $0x240] sm:$0xff]
  %v2436 = vld [vmem:[%s3 + $0x248] sm:$0xff]
  %v2437 = vld [vmem:[%s3 + $0x250] sm:$0xff]
  %v2438 = vld [vmem:[%s3 + $0x258] sm:$0xff]
  %v2439 = vld [vmem:[%s3 + $0x260] sm:$0xff]
  %v2440 = vld [vmem:[%s3 + $0x268] sm:$0xff]
  %v2441 = vld [vmem:[%s3 + $0x270] sm:$0xff]
  %v2442 = vld [vmem:[%s3 + $0x278] sm:$0xff]
  %v2443 = vld [vmem:[%s3 + $0x280] sm:$0xff]
  %v2444 = vld [vmem:[%s3 + $0x288] sm:$0xff]
  %v2445 = vld [vmem:[%s3 + $0x290] sm:$0xff]
  %v2446 = vld [vmem:[%s3 + $0x298] sm:$0xff]
  %v2447 = vld [vmem:[%s3 + $0x2a0] sm:$0xff]
  %v2448 = vld [vmem:[%s3 + $0x2a8] sm:$0xff]
  %v2449 = vld [vmem:[%s3 + $0x2b0] sm:$0xff]
  %v2450 = vld [vmem:[%s3 + $0x2b8] sm:$0xff]
  %v2451 = vld [vmem:[%s3 + $0x2c0] sm:$0xff]
  %v2452 = vld [vmem:[%s3 + $0x2c8] sm:$0xff]
  %v2453 = vld [vmem:[%s3 + $0x2d0] sm:$0xff]
  %v2454 = vld [vmem:[%s3 + $0x2d8] sm:$0xff]
  %v2455 = vld [vmem:[%s3 + $0x2e0] sm:$0xff]
  %v2456 = vld [vmem:[%s3 + $0x2e8] sm:$0xff]
  %v2457 = vld [vmem:[%s3 + $0x2f0] sm:$0xff]
  %v2458 = vld [vmem:[%s3 + $0x2f8] sm:$0xff]
  %v2459 = vld [vmem:[%s3 + $0x300] sm:$0xff]
  %v2460 = vld [vmem:[%s3 + $0x308] sm:$0xff]
  %v2461 = vld [vmem:[%s3 + $0x310] sm:$0xff]
  %v2462 = vld [vmem:[%s3 + $0x318] sm:$0xff]
  %v2463 = vld [vmem:[%s3 + $0x320] sm:$0xff]
  %v2464 = vld [vmem:[%s3 + $0x328] sm:$0xff]
  %v2465 = vld [vmem:[%s3 + $0x330] sm:$0xff]
  %v2466 = vld [vmem:[%s3 + $0x338] sm:$0xff]
  %v2467 = vld [vmem:[%s3 + $0x340] sm:$0xff]
  %v2468 = vld [vmem:[%s3 + $0x348] sm:$0xff]
  %v2469 = vld [vmem:[%s3 + $0x350] sm:$0xff]
  %v2470 = vld [vmem:[%s3 + $0x358] sm:$0xff]
  %v2471 = vld [vmem:[%s3 + $0x360] sm:$0xff]
  %v2472 = vld [vmem:[%s3 + $0x368] sm:$0xff]
  %v2473 = vld [vmem:[%s3 + $0x370] sm:$0xff]
  %v2474 = vld [vmem:[%s3 + $0x378] sm:$0xff]
  %v2475 = vld [vmem:[%s3 + $0x380] sm:$0xff]
  %v2476 = vld [vmem:[%s3 + $0x388] sm:$0xff]
  %v2477 = vld [vmem:[%s3 + $0x390] sm:$0xff]
  %v2478 = vld [vmem:[%s3 + $0x398] sm:$0xff]
  %v2479 = vld [vmem:[%s3 + $0x3a0] sm:$0xff]
  %v2480 = vld [vmem:[%s3 + $0x3a8] sm:$0xff]
  %v2481 = vld [vmem:[%s3 + $0x3b0] sm:$0xff]
  %v2482 = vld [vmem:[%s3 + $0x3b8] sm:$0xff]
  %v2483 = vld [vmem:[%s3 + $0x3c0] sm:$0xff]
  %v2484 = vld [vmem:[%s3 + $0x3c8] sm:$0xff]
  %v2485 = vld [vmem:[%s3 + $0x3d0] sm:$0xff]
  %v2486 = vld [vmem:[%s3 + $0x3d8] sm:$0xff]
  %v2487 = vld [vmem:[%s3 + $0x3e0] sm:$0xff]
  %v2488 = vld [vmem:[%s3 + $0x3e8] sm:$0xff]
  %v2489 = vld [vmem:[%s3 + $0x3f0] sm:$0xff]
  %v2490 = vld [vmem:[%s3 + $0x3f8] sm:$0xff]
  %v2619 = vunpack.c.l.b16 %v2363
  %v2620 = vunpack.c.h.b16 %v2363
  %v2621 = vunpack.c.l.b16 %v2364
  %v2622 = vunpack.c.h.b16 %v2364
  %v2623 = vunpack.c.l.b16 %v2365
  %v2624 = vunpack.c.h.b16 %v2365
  %v2625 = vunpack.c.l.b16 %v2366
  %v2626 = vunpack.c.h.b16 %v2366
  %v2627 = vunpack.c.l.b16 %v2367
  %v2628 = vunpack.c.h.b16 %v2367
  %v2629 = vunpack.c.l.b16 %v2368
  %v2630 = vunpack.c.h.b16 %v2368
  %v2631 = vunpack.c.l.b16 %v2369
  %v2632 = vunpack.c.h.b16 %v2369
  %v2633 = vunpack.c.l.b16 %v2370
  %v2634 = vunpack.c.h.b16 %v2370
  %v2635 = vunpack.c.l.b16 %v2371
  %v2636 = vunpack.c.h.b16 %v2371
  %v2637 = vunpack.c.l.b16 %v2372
  %v2638 = vunpack.c.h.b16 %v2372
  %v2639 = vunpack.c.l.b16 %v2373
  %v2640 = vunpack.c.h.b16 %v2373
  %v2641 = vunpack.c.l.b16 %v2374
  %v2642 = vunpack.c.h.b16 %v2374
  %v2643 = vunpack.c.l.b16 %v2375
  %v2644 = vunpack.c.h.b16 %v2375
  %v2645 = vunpack.c.l.b16 %v2376
  %v2646 = vunpack.c.h.b16 %v2376
  %v2647 = vunpack.c.l.b16 %v2377
  %v2648 = vunpack.c.h.b16 %v2377
  %v2649 = vunpack.c.l.b16 %v2378
  %v2650 = vunpack.c.h.b16 %v2378
  %v2651 = vunpack.c.l.b16 %v2379
  %v2652 = vunpack.c.h.b16 %v2379
  %v2653 = vunpack.c.l.b16 %v2380
  %v2654 = vunpack.c.h.b16 %v2380
  %v2655 = vunpack.c.l.b16 %v2381
  %v2656 = vunpack.c.h.b16 %v2381
  %v2657 = vunpack.c.l.b16 %v2382
  %v2658 = vunpack.c.h.b16 %v2382
  %v2659 = vunpack.c.l.b16 %v2383
  %v2660 = vunpack.c.h.b16 %v2383
  %v2661 = vunpack.c.l.b16 %v2384
  %v2662 = vunpack.c.h.b16 %v2384
  %v2663 = vunpack.c.l.b16 %v2385
  %v2664 = vunpack.c.h.b16 %v2385
  %v2665 = vunpack.c.l.b16 %v2386
  %v2666 = vunpack.c.h.b16 %v2386
  %v2667 = vunpack.c.l.b16 %v2387
  %v2668 = vunpack.c.h.b16 %v2387
  %v2669 = vunpack.c.l.b16 %v2388
  %v2670 = vunpack.c.h.b16 %v2388
  %v2671 = vunpack.c.l.b16 %v2389
  %v2672 = vunpack.c.h.b16 %v2389
  %v2673 = vunpack.c.l.b16 %v2390
  %v2674 = vunpack.c.h.b16 %v2390
  %v2675 = vunpack.c.l.b16 %v2391
  %v2676 = vunpack.c.h.b16 %v2391
  %v2677 = vunpack.c.l.b16 %v2392
  %v2678 = vunpack.c.h.b16 %v2392
  %v2679 = vunpack.c.l.b16 %v2393
  %v2680 = vunpack.c.h.b16 %v2393
  %v2681 = vunpack.c.l.b16 %v2394
  %v2682 = vunpack.c.h.b16 %v2394
  %v2683 = vunpack.c.l.b16 %v2395
  %v2684 = vunpack.c.h.b16 %v2395
  %v2685 = vunpack.c.l.b16 %v2396
  %v2686 = vunpack.c.h.b16 %v2396
  %v2687 = vunpack.c.l.b16 %v2397
  %v2688 = vunpack.c.h.b16 %v2397
  %v2689 = vunpack.c.l.b16 %v2398
  %v2690 = vunpack.c.h.b16 %v2398
  %v2691 = vunpack.c.l.b16 %v2399
  %v2692 = vunpack.c.h.b16 %v2399
  %v2693 = vunpack.c.l.b16 %v2400
  %v2694 = vunpack.c.h.b16 %v2400
  %v2695 = vunpack.c.l.b16 %v2401
  %v2696 = vunpack.c.h.b16 %v2401
  %v2697 = vunpack.c.l.b16 %v2402
  %v2698 = vunpack.c.h.b16 %v2402
  %v2699 = vunpack.c.l.b16 %v2403
  %v2700 = vunpack.c.h.b16 %v2403
  %v2701 = vunpack.c.l.b16 %v2404
  %v2702 = vunpack.c.h.b16 %v2404
  %v2703 = vunpack.c.l.b16 %v2405
  %v2704 = vunpack.c.h.b16 %v2405
  %v2705 = vunpack.c.l.b16 %v2406
  %v2706 = vunpack.c.h.b16 %v2406
  %v2707 = vunpack.c.l.b16 %v2407
  %v2708 = vunpack.c.h.b16 %v2407
  %v2709 = vunpack.c.l.b16 %v2408
  %v2710 = vunpack.c.h.b16 %v2408
  %v2711 = vunpack.c.l.b16 %v2409
  %v2712 = vunpack.c.h.b16 %v2409
  %v2713 = vunpack.c.l.b16 %v2410
  %v2714 = vunpack.c.h.b16 %v2410
  %v2715 = vunpack.c.l.b16 %v2411
  %v2716 = vunpack.c.h.b16 %v2411
  %v2717 = vunpack.c.l.b16 %v2412
  %v2718 = vunpack.c.h.b16 %v2412
  %v2719 = vunpack.c.l.b16 %v2413
  %v2720 = vunpack.c.h.b16 %v2413
  %v2721 = vunpack.c.l.b16 %v2414
  %v2722 = vunpack.c.h.b16 %v2414
  %v2723 = vunpack.c.l.b16 %v2415
  %v2724 = vunpack.c.h.b16 %v2415
  %v2725 = vunpack.c.l.b16 %v2416
  %v2726 = vunpack.c.h.b16 %v2416
  %v2727 = vunpack.c.l.b16 %v2417
  %v2728 = vunpack.c.h.b16 %v2417
  %v2729 = vunpack.c.l.b16 %v2418
  %v2730 = vunpack.c.h.b16 %v2418
  %v2731 = vunpack.c.l.b16 %v2419
  %v2732 = vunpack.c.h.b16 %v2419
  %v2733 = vunpack.c.l.b16 %v2420
  %v2734 = vunpack.c.h.b16 %v2420
  %v2735 = vunpack.c.l.b16 %v2421
  %v2736 = vunpack.c.h.b16 %v2421
  %v2737 = vunpack.c.l.b16 %v2422
  %v2738 = vunpack.c.h.b16 %v2422
  %v2739 = vunpack.c.l.b16 %v2423
  %v2740 = vunpack.c.h.b16 %v2423
  %v2741 = vunpack.c.l.b16 %v2424
  %v2742 = vunpack.c.h.b16 %v2424
  %v2743 = vunpack.c.l.b16 %v2425
  %v2744 = vunpack.c.h.b16 %v2425
  %v2745 = vunpack.c.l.b16 %v2426
  %v2746 = vunpack.c.h.b16 %v2426
  %v2747 = vunpack.c.l.b16 %v2427
  %v2748 = vunpack.c.h.b16 %v2427
  %v2749 = vunpack.c.l.b16 %v2428
  %v2750 = vunpack.c.h.b16 %v2428
  %v2751 = vunpack.c.l.b16 %v2429
  %v2752 = vunpack.c.h.b16 %v2429
  %v2753 = vunpack.c.l.b16 %v2430
  %v2754 = vunpack.c.h.b16 %v2430
  %v2755 = vunpack.c.l.b16 %v2431
  %v2756 = vunpack.c.h.b16 %v2431
  %v2757 = vunpack.c.l.b16 %v2432
  %v2758 = vunpack.c.h.b16 %v2432
  %v2759 = vunpack.c.l.b16 %v2433
  %v2760 = vunpack.c.h.b16 %v2433
  %v2761 = vunpack.c.l.b16 %v2434
  %v2762 = vunpack.c.h.b16 %v2434
  %v2763 = vunpack.c.l.b16 %v2435
  %v2764 = vunpack.c.h.b16 %v2435
  %v2765 = vunpack.c.l.b16 %v2436
  %v2766 = vunpack.c.h.b16 %v2436
  %v2767 = vunpack.c.l.b16 %v2437
  %v2768 = vunpack.c.h.b16 %v2437
  %v2769 = vunpack.c.l.b16 %v2438
  %v2770 = vunpack.c.h.b16 %v2438
  %v2771 = vunpack.c.l.b16 %v2439
  %v2772 = vunpack.c.h.b16 %v2439
  %v2773 = vunpack.c.l.b16 %v2440
  %v2774 = vunpack.c.h.b16 %v2440
  %v2775 = vunpack.c.l.b16 %v2441
  %v2776 = vunpack.c.h.b16 %v2441
  %v2777 = vunpack.c.l.b16 %v2442
  %v2778 = vunpack.c.h.b16 %v2442
  %v2779 = vunpack.c.l.b16 %v2443
  %v2780 = vunpack.c.h.b16 %v2443
  %v2781 = vunpack.c.l.b16 %v2444
  %v2782 = vunpack.c.h.b16 %v2444
  %v2783 = vunpack.c.l.b16 %v2445
  %v2784 = vunpack.c.h.b16 %v2445
  %v2785 = vunpack.c.l.b16 %v2446
  %v2786 = vunpack.c.h.b16 %v2446
  %v2787 = vunpack.c.l.b16 %v2447
  %v2788 = vunpack.c.h.b16 %v2447
  %v2789 = vunpack.c.l.b16 %v2448
  %v2790 = vunpack.c.h.b16 %v2448
  %v2791 = vunpack.c.l.b16 %v2449
  %v2792 = vunpack.c.h.b16 %v2449
  %v2793 = vunpack.c.l.b16 %v2450
  %v2794 = vunpack.c.h.b16 %v2450
  %v2795 = vunpack.c.l.b16 %v2451
  %v2796 = vunpack.c.h.b16 %v2451
  %v2797 = vunpack.c.l.b16 %v2452
  %v2798 = vunpack.c.h.b16 %v2452
  %v2799 = vunpack.c.l.b16 %v2453
  %v2800 = vunpack.c.h.b16 %v2453
  %v2801 = vunpack.c.l.b16 %v2454
  %v2802 = vunpack.c.h.b16 %v2454
  %v2803 = vunpack.c.l.b16 %v2455
  %v2804 = vunpack.c.h.b16 %v2455
  %v2805 = vunpack.c.l.b16 %v2456
  %v2806 = vunpack.c.h.b16 %v2456
  %v2807 = vunpack.c.l.b16 %v2457
  %v2808 = vunpack.c.h.b16 %v2457
  %v2809 = vunpack.c.l.b16 %v2458
  %v2810 = vunpack.c.h.b16 %v2458
  %v2811 = vunpack.c.l.b16 %v2459
  %v2812 = vunpack.c.h.b16 %v2459
  %v2813 = vunpack.c.l.b16 %v2460
  %v2814 = vunpack.c.h.b16 %v2460
  %v2815 = vunpack.c.l.b16 %v2461
  %v2816 = vunpack.c.h.b16 %v2461
  %v2817 = vunpack.c.l.b16 %v2462
  %v2818 = vunpack.c.h.b16 %v2462
  %v2819 = vunpack.c.l.b16 %v2463
  %v2820 = vunpack.c.h.b16 %v2463
  %v2821 = vunpack.c.l.b16 %v2464
  %v2822 = vunpack.c.h.b16 %v2464
  %v2823 = vunpack.c.l.b16 %v2465
  %v2824 = vunpack.c.h.b16 %v2465
  %v2825 = vunpack.c.l.b16 %v2466
  %v2826 = vunpack.c.h.b16 %v2466
  %v2827 = vunpack.c.l.b16 %v2467
  %v2828 = vunpack.c.h.b16 %v2467
  %v2829 = vunpack.c.l.b16 %v2468
  %v2830 = vunpack.c.h.b16 %v2468
  %v2831 = vunpack.c.l.b16 %v2469
  %v2832 = vunpack.c.h.b16 %v2469
  %v2833 = vunpack.c.l.b16 %v2470
  %v2834 = vunpack.c.h.b16 %v2470
  %v2835 = vunpack.c.l.b16 %v2471
  %v2836 = vunpack.c.h.b16 %v2471
  %v2837 = vunpack.c.l.b16 %v2472
  %v2838 = vunpack.c.h.b16 %v2472
  %v2839 = vunpack.c.l.b16 %v2473
  %v2840 = vunpack.c.h.b16 %v2473
  %v2841 = vunpack.c.l.b16 %v2474
  %v2842 = vunpack.c.h.b16 %v2474
  %v2843 = vunpack.c.l.b16 %v2475
  %v2844 = vunpack.c.h.b16 %v2475
  %v2845 = vunpack.c.l.b16 %v2476
  %v2846 = vunpack.c.h.b16 %v2476
  %v2847 = vunpack.c.l.b16 %v2477
  %v2848 = vunpack.c.h.b16 %v2477
  %v2849 = vunpack.c.l.b16 %v2478
  %v2850 = vunpack.c.h.b16 %v2478
  %v2851 = vunpack.c.l.b16 %v2479
  %v2852 = vunpack.c.h.b16 %v2479
  %v2853 = vunpack.c.l.b16 %v2480
  %v2854 = vunpack.c.h.b16 %v2480
  %v2855 = vunpack.c.l.b16 %v2481
  %v2856 = vunpack.c.h.b16 %v2481
  %v2857 = vunpack.c.l.b16 %v2482
  %v2858 = vunpack.c.h.b16 %v2482
  %v2859 = vunpack.c.l.b16 %v2483
  %v2860 = vunpack.c.h.b16 %v2483
  %v2861 = vunpack.c.l.b16 %v2484
  %v2862 = vunpack.c.h.b16 %v2484
  %v2863 = vunpack.c.l.b16 %v2485
  %v2864 = vunpack.c.h.b16 %v2485
  %v2865 = vunpack.c.l.b16 %v2486
  %v2866 = vunpack.c.h.b16 %v2486
  %v2867 = vunpack.c.l.b16 %v2487
  %v2868 = vunpack.c.h.b16 %v2487
  %v2869 = vunpack.c.l.b16 %v2488
  %v2870 = vunpack.c.h.b16 %v2488
  %v2871 = vunpack.c.l.b16 %v2489
  %v2872 = vunpack.c.h.b16 %v2489
  %v2873 = vunpack.c.l.b16 %v2490
  %v2874 = vunpack.c.h.b16 %v2490
  %v2875 = vpack.c.b16 %v2627, %v2619
  %v2876 = vpack.c.b16 %v2628, %v2620
  %v2877 = vpack.c.b16 %v2629, %v2621
  %v2878 = vpack.c.b16 %v2630, %v2622
  %v2879 = vpack.c.b16 %v2631, %v2623
  %v2880 = vpack.c.b16 %v2632, %v2624
  %v2881 = vpack.c.b16 %v2633, %v2625
  %v2882 = vpack.c.b16 %v2634, %v2626
  %v2883 = vpack.c.b16 %v2643, %v2635
  %v2884 = vpack.c.b16 %v2644, %v2636
  %v2885 = vpack.c.b16 %v2645, %v2637
  %v2886 = vpack.c.b16 %v2646, %v2638
  %v2887 = vpack.c.b16 %v2647, %v2639
  %v2888 = vpack.c.b16 %v2648, %v2640
  %v2889 = vpack.c.b16 %v2649, %v2641
  %v2890 = vpack.c.b16 %v2650, %v2642
  %v2891 = vpack.c.b16 %v2659, %v2651
  %v2892 = vpack.c.b16 %v2660, %v2652
  %v2893 = vpack.c.b16 %v2661, %v2653
  %v2894 = vpack.c.b16 %v2662, %v2654
  %v2895 = vpack.c.b16 %v2663, %v2655
  %v2896 = vpack.c.b16 %v2664, %v2656
  %v2897 = vpack.c.b16 %v2665, %v2657
  %v2898 = vpack.c.b16 %v2666, %v2658
  %v2899 = vpack.c.b16 %v2675, %v2667
  %v2900 = vpack.c.b16 %v2676, %v2668
  %v2901 = vpack.c.b16 %v2677, %v2669
  %v2902 = vpack.c.b16 %v2678, %v2670
  %v2903 = vpack.c.b16 %v2679, %v2671
  %v2904 = vpack.c.b16 %v2680, %v2672
  %v2905 = vpack.c.b16 %v2681, %v2673
  %v2906 = vpack.c.b16 %v2682, %v2674
  %v2907 = vpack.c.b16 %v2691, %v2683
  %v2908 = vpack.c.b16 %v2692, %v2684
  %v2909 = vpack.c.b16 %v2693, %v2685
  %v2910 = vpack.c.b16 %v2694, %v2686
  %v2911 = vpack.c.b16 %v2695, %v2687
  %v2912 = vpack.c.b16 %v2696, %v2688
  %v2913 = vpack.c.b16 %v2697, %v2689
  %v2914 = vpack.c.b16 %v2698, %v2690
  %v2915 = vpack.c.b16 %v2707, %v2699
  %v2916 = vpack.c.b16 %v2708, %v2700
  %v2917 = vpack.c.b16 %v2709, %v2701
  %v2918 = vpack.c.b16 %v2710, %v2702
  %v2919 = vpack.c.b16 %v2711, %v2703
  %v2920 = vpack.c.b16 %v2712, %v2704
  %v2921 = vpack.c.b16 %v2713, %v2705
  %v2922 = vpack.c.b16 %v2714, %v2706
  %v2923 = vpack.c.b16 %v2723, %v2715
  %v2924 = vpack.c.b16 %v2724, %v2716
  %v2925 = vpack.c.b16 %v2725, %v2717
  %v2926 = vpack.c.b16 %v2726, %v2718
  %v2927 = vpack.c.b16 %v2727, %v2719
  %v2928 = vpack.c.b16 %v2728, %v2720
  %v2929 = vpack.c.b16 %v2729, %v2721
  %v2930 = vpack.c.b16 %v2730, %v2722
  %v2931 = vpack.c.b16 %v2739, %v2731
  %v2932 = vpack.c.b16 %v2740, %v2732
  %v2933 = vpack.c.b16 %v2741, %v2733
  %v2934 = vpack.c.b16 %v2742, %v2734
  %v2935 = vpack.c.b16 %v2743, %v2735
  %v2936 = vpack.c.b16 %v2744, %v2736
  %v2937 = vpack.c.b16 %v2745, %v2737
  %v2938 = vpack.c.b16 %v2746, %v2738
  %v2939 = vpack.c.b16 %v2755, %v2747
  %v2940 = vpack.c.b16 %v2756, %v2748
  %v2941 = vpack.c.b16 %v2757, %v2749
  %v2942 = vpack.c.b16 %v2758, %v2750
  %v2943 = vpack.c.b16 %v2759, %v2751
  %v2944 = vpack.c.b16 %v2760, %v2752
  %v2945 = vpack.c.b16 %v2761, %v2753
  %v2946 = vpack.c.b16 %v2762, %v2754
  %v2947 = vpack.c.b16 %v2771, %v2763
  %v2948 = vpack.c.b16 %v2772, %v2764
  %v2949 = vpack.c.b16 %v2773, %v2765
  %v2950 = vpack.c.b16 %v2774, %v2766
  %v2951 = vpack.c.b16 %v2775, %v2767
  %v2952 = vpack.c.b16 %v2776, %v2768
  %v2953 = vpack.c.b16 %v2777, %v2769
  %v2954 = vpack.c.b16 %v2778, %v2770
  %v2955 = vpack.c.b16 %v2787, %v2779
  %v2956 = vpack.c.b16 %v2788, %v2780
  %v2957 = vpack.c.b16 %v2789, %v2781
  %v2958 = vpack.c.b16 %v2790, %v2782
  %v2959 = vpack.c.b16 %v2791, %v2783
  %v2960 = vpack.c.b16 %v2792, %v2784
  %v2961 = vpack.c.b16 %v2793, %v2785
  %v2962 = vpack.c.b16 %v2794, %v2786
  %v2963 = vpack.c.b16 %v2803, %v2795
  %v2964 = vpack.c.b16 %v2804, %v2796
  %v2965 = vpack.c.b16 %v2805, %v2797
  %v2966 = vpack.c.b16 %v2806, %v2798
  %v2967 = vpack.c.b16 %v2807, %v2799
  %v2968 = vpack.c.b16 %v2808, %v2800
  %v2969 = vpack.c.b16 %v2809, %v2801
  %v2970 = vpack.c.b16 %v2810, %v2802
  %v2971 = vpack.c.b16 %v2819, %v2811
  %v2972 = vpack.c.b16 %v2820, %v2812
  %v2973 = vpack.c.b16 %v2821, %v2813
  %v2974 = vpack.c.b16 %v2822, %v2814
  %v2975 = vpack.c.b16 %v2823, %v2815
  %v2976 = vpack.c.b16 %v2824, %v2816
  %v2977 = vpack.c.b16 %v2825, %v2817
  %v2978 = vpack.c.b16 %v2826, %v2818
  %v2979 = vpack.c.b16 %v2835, %v2827
  %v2980 = vpack.c.b16 %v2836, %v2828
  %v2981 = vpack.c.b16 %v2837, %v2829
  %v2982 = vpack.c.b16 %v2838, %v2830
  %v2983 = vpack.c.b16 %v2839, %v2831
  %v2984 = vpack.c.b16 %v2840, %v2832
  %v2985 = vpack.c.b16 %v2841, %v2833
  %v2986 = vpack.c.b16 %v2842, %v2834
  %v2987 = vpack.c.b16 %v2851, %v2843
  %v2988 = vpack.c.b16 %v2852, %v2844
  %v2989 = vpack.c.b16 %v2853, %v2845
  %v2990 = vpack.c.b16 %v2854, %v2846
  %v2991 = vpack.c.b16 %v2855, %v2847
  %v2992 = vpack.c.b16 %v2856, %v2848
  %v2993 = vpack.c.b16 %v2857, %v2849
  %v2994 = vpack.c.b16 %v2858, %v2850
  %v2995 = vpack.c.b16 %v2867, %v2859
  %v2996 = vpack.c.b16 %v2868, %v2860
  %v2997 = vpack.c.b16 %v2869, %v2861
  %v2998 = vpack.c.b16 %v2870, %v2862
  %v2999 = vpack.c.b16 %v2871, %v2863
  %v3000 = vpack.c.b16 %v2872, %v2864
  %v3001 = vpack.c.b16 %v2873, %v2865
  %v3002 = vpack.c.b16 %v2874, %v2866
  %3131 = vmatprep.subr.bf16.mxu0 %v2932
  %3132 = vmatpush1.bf16.msra.mxu0 %v2931
  %3133 = vmatprep.subr.bf16.mxu0 %v2924
  %3134 = vmatpush1.bf16.msra.mxu0 %v2923
  %3135 = vmatprep.subr.bf16.mxu0 %v2916
  %3136 = vmatpush1.bf16.msra.mxu0 %v2915
  %3137 = vmatprep.subr.bf16.mxu0 %v2908
  %3138 = vmatpush1.bf16.msra.mxu0 %v2907
  %3139 = vmatprep.subr.bf16.mxu0 %v2900
  %3140 = vmatpush1.bf16.msra.mxu0 %v2899
  %3141 = vmatprep.subr.bf16.mxu0 %v2892
  %3142 = vmatpush1.bf16.msra.mxu0 %v2891
  %3143 = vmatprep.subr.bf16.mxu0 %v2884
  %3144 = vmatpush1.bf16.msra.mxu0 %v2883
  %3145 = vmatprep.subr.bf16.mxu0 %v2876
  %3146 = vmatpush1.bf16.msra.mxu0 %v2875
  %3147 = vmatprep.subr.bf16.mxu0 %v2996
  %3148 = vmatpush2.bf16.msra.mxu0 %v2995
  %3149 = vmatprep.subr.bf16.mxu0 %v2988
  %3150 = vmatpush2.bf16.msra.mxu0 %v2987
  %3151 = vmatprep.subr.bf16.mxu0 %v2980
  %3152 = vmatpush2.bf16.msra.mxu0 %v2979
  %3153 = vmatprep.subr.bf16.mxu0 %v2972
  %3154 = vmatpush2.bf16.msra.mxu0 %v2971
  %3155 = vmatprep.subr.bf16.mxu0 %v2964
  %3156 = vmatpush2.bf16.msra.mxu0 %v2963
  %3157 = vmatprep.subr.bf16.mxu0 %v2956
  %3158 = vmatpush2.bf16.msra.mxu0 %v2955
  %3159 = vmatprep.subr.bf16.mxu0 %v2948
  %3160 = vmatpush2.bf16.msra.mxu0 %v2947
  %3161 = vmatprep.subr.bf16.mxu0 %v2940
  %3162 = vmatpush2.bf16.msra.mxu0 %v2939
  %3163 = vmatprep.mubr.bf16.mxu0 %v2362
  %3164 = vmatmul.mubr.bf16.gmra.mxu0 %v2361
  %v3165 = vpop.f32.mrf.mxu0
  %v3166 = vadd.f32 0.0, %v3165
  %v3167 = vpop.f32.mrf.mxu0
  %v3168 = vadd.f32 0.0, %v3167
  %v3169 = vpop.f32.mrf.mxu0
  %v3170 = vpop.f32.mrf.mxu0
  %3171 = vdwg.mxu0
  %3172 = vmatprep.subr.bf16.mxu0 %v2934
  %3173 = vmatpush1.bf16.msra.mxu0 %v2933
  %3174 = vmatprep.subr.bf16.mxu0 %v2926
  %3175 = vmatpush1.bf16.msra.mxu0 %v2925
  %3176 = vmatprep.subr.bf16.mxu0 %v2918
  %3177 = vmatpush1.bf16.msra.mxu0 %v2917
  %3178 = vmatprep.subr.bf16.mxu0 %v2910
  %3179 = vmatpush1.bf16.msra.mxu0 %v2909
  %3180 = vmatprep.subr.bf16.mxu0 %v2902
  %3181 = vmatpush1.bf16.msra.mxu0 %v2901
  %3182 = vmatprep.subr.bf16.mxu0 %v2894
  %3183 = vmatpush1.bf16.msra.mxu0 %v2893
  %3184 = vmatprep.subr.bf16.mxu0 %v2886
  %3185 = vmatpush1.bf16.msra.mxu0 %v2885
  %3186 = vmatprep.subr.bf16.mxu0 %v2878
  %3187 = vmatpush1.bf16.msra.mxu0 %v2877
  %3188 = vmatprep.subr.bf16.mxu0 %v2998
  %3189 = vmatpush2.bf16.msra.mxu0 %v2997
  %3190 = vmatprep.subr.bf16.mxu0 %v2990
  %3191 = vmatpush2.bf16.msra.mxu0 %v2989
  %3192 = vmatprep.subr.bf16.mxu0 %v2982
  %3193 = vmatpush2.bf16.msra.mxu0 %v2981
  %3194 = vmatprep.subr.bf16.mxu0 %v2974
  %3195 = vmatpush2.bf16.msra.mxu0 %v2973
  %3196 = vmatprep.subr.bf16.mxu0 %v2966
  %3197 = vmatpush2.bf16.msra.mxu0 %v2965
  %3198 = vmatprep.subr.bf16.mxu0 %v2958
  %3199 = vmatpush2.bf16.msra.mxu0 %v2957
  %3200 = vmatprep.subr.bf16.mxu0 %v2950
  %3201 = vmatpush2.bf16.msra.mxu0 %v2949
  %3202 = vmatprep.subr.bf16.mxu0 %v2942
  %3203 = vmatpush2.bf16.msra.mxu0 %v2941
  %3204 = vmatprep.mubr.bf16.mxu0 %v2362
  %3205 = vmatmul.mubr.bf16.gmra.mxu0 %v2361
  %v3206 = vpop.f32.mrf.mxu0
  %v3207 = vadd.f32 0.0, %v3206
  %v3208 = vpop.f32.mrf.mxu0
  %v3209 = vadd.f32 0.0, %v3208
  %v3210 = vpop.f32.mrf.mxu0
  %v3211 = vpop.f32.mrf.mxu0
  %3212 = vdwg.mxu0
  %3213 = vmatprep.subr.bf16.mxu0 %v2936
  %3214 = vmatpush1.bf16.msra.mxu0 %v2935
  %3215 = vmatprep.subr.bf16.mxu0 %v2928
  %3216 = vmatpush1.bf16.msra.mxu0 %v2927
  %3217 = vmatprep.subr.bf16.mxu0 %v2920
  %3218 = vmatpush1.bf16.msra.mxu0 %v2919
  %3219 = vmatprep.subr.bf16.mxu0 %v2912
  %3220 = vmatpush1.bf16.msra.mxu0 %v2911
  %3221 = vmatprep.subr.bf16.mxu0 %v2904
  %3222 = vmatpush1.bf16.msra.mxu0 %v2903
  %3223 = vmatprep.subr.bf16.mxu0 %v2896
  %3224 = vmatpush1.bf16.msra.mxu0 %v2895
  %3225 = vmatprep.subr.bf16.mxu0 %v2888
  %3226 = vmatpush1.bf16.msra.mxu0 %v2887
  %3227 = vmatprep.subr.bf16.mxu0 %v2880
  %3228 = vmatpush1.bf16.msra.mxu0 %v2879
  %3229 = vmatprep.subr.bf16.mxu0 %v3000
  %3230 = vmatpush2.bf16.msra.mxu0 %v2999
  %3231 = vmatprep.subr.bf16.mxu0 %v2992
  %3232 = vmatpush2.bf16.msra.mxu0 %v2991
  %3233 = vmatprep.subr.bf16.mxu0 %v2984
  %3234 = vmatpush2.bf16.msra.mxu0 %v2983
  %3235 = vmatprep.subr.bf16.mxu0 %v2976
  %3236 = vmatpush2.bf16.msra.mxu0 %v2975
  %3237 = vmatprep.subr.bf16.mxu0 %v2968
  %3238 = vmatpush2.bf16.msra.mxu0 %v2967
  %3239 = vmatprep.subr.bf16.mxu0 %v2960
  %3240 = vmatpush2.bf16.msra.mxu0 %v2959
  %3241 = vmatprep.subr.bf16.mxu0 %v2952
  %3242 = vmatpush2.bf16.msra.mxu0 %v2951
  %3243 = vmatprep.subr.bf16.mxu0 %v2944
  %3244 = vmatpush2.bf16.msra.mxu0 %v2943
  %3245 = vmatprep.mubr.bf16.mxu0 %v2362
  %3246 = vmatmul.mubr.bf16.gmra.mxu0 %v2361
  %v3247 = vpop.f32.mrf.mxu0
  %v3248 = vadd.f32 0.0, %v3247
  %v3249 = vpop.f32.mrf.mxu0
  %v3250 = vadd.f32 0.0, %v3249
  %v3251 = vpop.f32.mrf.mxu0
  %v3252 = vpop.f32.mrf.mxu0
  %3253 = vdwg.mxu0
  %3254 = vmatprep.subr.bf16.mxu0 %v2938
  %3255 = vmatpush1.bf16.msra.mxu0 %v2937
  %3256 = vmatprep.subr.bf16.mxu0 %v2930
  %3257 = vmatpush1.bf16.msra.mxu0 %v2929
  %3258 = vmatprep.subr.bf16.mxu0 %v2922
  %3259 = vmatpush1.bf16.msra.mxu0 %v2921
  %3260 = vmatprep.subr.bf16.mxu0 %v2914
  %3261 = vmatpush1.bf16.msra.mxu0 %v2913
  %3262 = vmatprep.subr.bf16.mxu0 %v2906
  %3263 = vmatpush1.bf16.msra.mxu0 %v2905
  %3264 = vmatprep.subr.bf16.mxu0 %v2898
  %3265 = vmatpush1.bf16.msra.mxu0 %v2897
  %3266 = vmatprep.subr.bf16.mxu0 %v2890
  %3267 = vmatpush1.bf16.msra.mxu0 %v2889
  %3268 = vmatprep.subr.bf16.mxu0 %v2882
  %3269 = vmatpush1.bf16.msra.mxu0 %v2881
  %3270 = vmatprep.subr.bf16.mxu0 %v3002
  %3271 = vmatpush2.bf16.msra.mxu0 %v3001
  %3272 = vmatprep.subr.bf16.mxu0 %v2994
  %3273 = vmatpush2.bf16.msra.mxu0 %v2993
  %3274 = vmatprep.subr.bf16.mxu0 %v2986
  %3275 = vmatpush2.bf16.msra.mxu0 %v2985
  %3276 = vmatprep.subr.bf16.mxu0 %v2978
  %3277 = vmatpush2.bf16.msra.mxu0 %v2977
  %3278 = vmatprep.subr.bf16.mxu0 %v2970
  %3279 = vmatpush2.bf16.msra.mxu0 %v2969
  %3280 = vmatprep.subr.bf16.mxu0 %v2962
  %3281 = vmatpush2.bf16.msra.mxu0 %v2961
  %3282 = vmatprep.subr.bf16.mxu0 %v2954
  %3283 = vmatpush2.bf16.msra.mxu0 %v2953
  %3284 = vmatprep.subr.bf16.mxu0 %v2946
  %3285 = vmatpush2.bf16.msra.mxu0 %v2945
  %3286 = vmatprep.mubr.bf16.mxu0 %v2362
  %3287 = vmatmul.mubr.bf16.gmra.mxu0 %v2361
  %v3288 = vpop.f32.mrf.mxu0
  %v3289 = vadd.f32 0.0, %v3288
  %v3290 = vpop.f32.mrf.mxu0
  %v3291 = vadd.f32 0.0, %v3290
  %v3292 = vpop.f32.mrf.mxu0
  %v3293 = vpop.f32.mrf.mxu0
  %3294 = vdwg.mxu0
  %v3295 = vadd.f32 %v3248, %v371
  %v3296 = vadd.f32 %v3250, %v375
  %v3297 = vadd.f32 %v3289, %v379
  %v3298 = vadd.f32 %v3291, %v383
  %v3299 = vtanh.pop %v3295
  %v3300 = vtanh.pop %v3296
  %v3301 = vtanh.pop %v3297
  %v3302 = vtanh.pop %v3298
  %v3303 = vmul.f32 %v3299, 0.5
  %v3304 = vadd.f32 %v3303, 0.5
  %v3305 = vmul.f32 %v3300, 0.5
  %v3306 = vadd.f32 %v3305, 0.5
  %v3307 = vmul.f32 %v3302, 0.5
  %v3308 = vadd.f32 %v3307, 0.5
  %v3309 = vmul.f32 %v3306, %v2334
  %v3310 = vmul.f32 %v3304, %v3301
  %v3311 = vadd.f32 %v3309, %v3310
  %v3312 = vtanh.pop %v3311
  %v3313 = vmul.f32 %v3308, %v3312
  %3314 = vst [vmem:[#allocation3 + $0x10] sm:$0xff] %v3313
  %v3315 = vld [vmem:[#allocation2 + $0x60] sm:$0xff]
  %v3316 = vld [vmem:[#allocation2 + $0x68] sm:$0xff]
  %v3317 = vld [vmem:[#allocation2 + $0x70] sm:$0xff]
  %v3318 = vld [vmem:[#allocation2 + $0x78] sm:$0xff]
  %v3319 = vadd.f32 %v3166, %v3315
  %v3320 = vadd.f32 %v3168, %v3316
  %v3321 = vadd.f32 %v3207, %v3317
  %v3322 = vadd.f32 %v3209, %v3318
  %v3323 = vtanh.pop %v3319
  %v3324 = vtanh.pop %v3320
  %v3325 = vtanh.pop %v3321
  %v3326 = vtanh.pop %v3322
  %v3327 = vmul.f32 %v3323, 0.5
  %v3328 = vadd.f32 %v3327, 0.5
  %v3329 = vmul.f32 %v3324, 0.5
  %v3330 = vadd.f32 %v3329, 0.5
  %v3331 = vmul.f32 %v3326, 0.5
  %v3332 = vadd.f32 %v3331, 0.5
  %v3333 = vmul.f32 %v3330, %v2358
  %v3334 = vmul.f32 %v3328, %v3325
  %v3335 = vadd.f32 %v3333, %v3334
  %v3336 = vtanh.pop %v3335
  %v3337 = vmul.f32 %v3332, %v3336
  %v3338 = vpack.c.bf16 %v3337, %v3337
  %v3339 = vpack.c.bf16 %v3313, %v3313
  %v3340 = vld [vmem:[%s3] sm:$0xff]
  %v3341 = vld [vmem:[%s3 + $0x8] sm:$0xff]
  %v3342 = vld [vmem:[%s3 + $0x10] sm:$0xff]
  %v3343 = vld [vmem:[%s3 + $0x18] sm:$0xff]
  %v3344 = vld [vmem:[%s3 + $0x20] sm:$0xff]
  %v3345 = vld [vmem:[%s3 + $0x28] sm:$0xff]
  %v3346 = vld [vmem:[%s3 + $0x30] sm:$0xff]
  %v3347 = vld [vmem:[%s3 + $0x38] sm:$0xff]
  %v3348 = vld [vmem:[%s3 + $0x40] sm:$0xff]
  %v3349 = vld [vmem:[%s3 + $0x48] sm:$0xff]
  %v3350 = vld [vmem:[%s3 + $0x50] sm:$0xff]
  %v3351 = vld [vmem:[%s3 + $0x58] sm:$0xff]
  %v3352 = vld [vmem:[%s3 + $0x60] sm:$0xff]
  %v3353 = vld [vmem:[%s3 + $0x68] sm:$0xff]
  %v3354 = vld [vmem:[%s3 + $0x70] sm:$0xff]
  %v3355 = vld [vmem:[%s3 + $0x78] sm:$0xff]
  %v3356 = vld [vmem:[%s3 + $0x80] sm:$0xff]
  %v3357 = vld [vmem:[%s3 + $0x88] sm:$0xff]
  %v3358 = vld [vmem:[%s3 + $0x90] sm:$0xff]
  %v3359 = vld [vmem:[%s3 + $0x98] sm:$0xff]
  %v3360 = vld [vmem:[%s3 + $0xa0] sm:$0xff]
  %v3361 = vld [vmem:[%s3 + $0xa8] sm:$0xff]
  %v3362 = vld [vmem:[%s3 + $0xb0] sm:$0xff]
  %v3363 = vld [vmem:[%s3 + $0xb8] sm:$0xff]
  %v3364 = vld [vmem:[%s3 + $0xc0] sm:$0xff]
  %v3365 = vld [vmem:[%s3 + $0xc8] sm:$0xff]
  %v3366 = vld [vmem:[%s3 + $0xd0] sm:$0xff]
  %v3367 = vld [vmem:[%s3 + $0xd8] sm:$0xff]
  %v3368 = vld [vmem:[%s3 + $0xe0] sm:$0xff]
  %v3369 = vld [vmem:[%s3 + $0xe8] sm:$0xff]
  %v3370 = vld [vmem:[%s3 + $0xf0] sm:$0xff]
  %v3371 = vld [vmem:[%s3 + $0xf8] sm:$0xff]
  %v3372 = vld [vmem:[%s3 + $0x100] sm:$0xff]
  %v3373 = vld [vmem:[%s3 + $0x108] sm:$0xff]
  %v3374 = vld [vmem:[%s3 + $0x110] sm:$0xff]
  %v3375 = vld [vmem:[%s3 + $0x118] sm:$0xff]
  %v3376 = vld [vmem:[%s3 + $0x120] sm:$0xff]
  %v3377 = vld [vmem:[%s3 + $0x128] sm:$0xff]
  %v3378 = vld [vmem:[%s3 + $0x130] sm:$0xff]
  %v3379 = vld [vmem:[%s3 + $0x138] sm:$0xff]
  %v3380 = vld [vmem:[%s3 + $0x140] sm:$0xff]
  %v3381 = vld [vmem:[%s3 + $0x148] sm:$0xff]
  %v3382 = vld [vmem:[%s3 + $0x150] sm:$0xff]
  %v3383 = vld [vmem:[%s3 + $0x158] sm:$0xff]
  %v3384 = vld [vmem:[%s3 + $0x160] sm:$0xff]
  %v3385 = vld [vmem:[%s3 + $0x168] sm:$0xff]
  %v3386 = vld [vmem:[%s3 + $0x170] sm:$0xff]
  %v3387 = vld [vmem:[%s3 + $0x178] sm:$0xff]
  %v3388 = vld [vmem:[%s3 + $0x180] sm:$0xff]
  %v3389 = vld [vmem:[%s3 + $0x188] sm:$0xff]
  %v3390 = vld [vmem:[%s3 + $0x190] sm:$0xff]
  %v3391 = vld [vmem:[%s3 + $0x198] sm:$0xff]
  %v3392 = vld [vmem:[%s3 + $0x1a0] sm:$0xff]
  %v3393 = vld [vmem:[%s3 + $0x1a8] sm:$0xff]
  %v3394 = vld [vmem:[%s3 + $0x1b0] sm:$0xff]
  %v3395 = vld [vmem:[%s3 + $0x1b8] sm:$0xff]
  %v3396 = vld [vmem:[%s3 + $0x1c0] sm:$0xff]
  %v3397 = vld [vmem:[%s3 + $0x1c8] sm:$0xff]
  %v3398 = vld [vmem:[%s3 + $0x1d0] sm:$0xff]
  %v3399 = vld [vmem:[%s3 + $0x1d8] sm:$0xff]
  %v3400 = vld [vmem:[%s3 + $0x1e0] sm:$0xff]
  %v3401 = vld [vmem:[%s3 + $0x1e8] sm:$0xff]
  %v3402 = vld [vmem:[%s3 + $0x1f0] sm:$0xff]
  %v3403 = vld [vmem:[%s3 + $0x1f8] sm:$0xff]
  %v3404 = vld [vmem:[%s3 + $0x200] sm:$0xff]
  %v3405 = vld [vmem:[%s3 + $0x208] sm:$0xff]
  %v3406 = vld [vmem:[%s3 + $0x210] sm:$0xff]
  %v3407 = vld [vmem:[%s3 + $0x218] sm:$0xff]
  %v3408 = vld [vmem:[%s3 + $0x220] sm:$0xff]
  %v3409 = vld [vmem:[%s3 + $0x228] sm:$0xff]
  %v3410 = vld [vmem:[%s3 + $0x230] sm:$0xff]
  %v3411 = vld [vmem:[%s3 + $0x238] sm:$0xff]
  %v3412 = vld [vmem:[%s3 + $0x240] sm:$0xff]
  %v3413 = vld [vmem:[%s3 + $0x248] sm:$0xff]
  %v3414 = vld [vmem:[%s3 + $0x250] sm:$0xff]
  %v3415 = vld [vmem:[%s3 + $0x258] sm:$0xff]
  %v3416 = vld [vmem:[%s3 + $0x260] sm:$0xff]
  %v3417 = vld [vmem:[%s3 + $0x268] sm:$0xff]
  %v3418 = vld [vmem:[%s3 + $0x270] sm:$0xff]
  %v3419 = vld [vmem:[%s3 + $0x278] sm:$0xff]
  %v3420 = vld [vmem:[%s3 + $0x280] sm:$0xff]
  %v3421 = vld [vmem:[%s3 + $0x288] sm:$0xff]
  %v3422 = vld [vmem:[%s3 + $0x290] sm:$0xff]
  %v3423 = vld [vmem:[%s3 + $0x298] sm:$0xff]
  %v3424 = vld [vmem:[%s3 + $0x2a0] sm:$0xff]
  %v3425 = vld [vmem:[%s3 + $0x2a8] sm:$0xff]
  %v3426 = vld [vmem:[%s3 + $0x2b0] sm:$0xff]
  %v3427 = vld [vmem:[%s3 + $0x2b8] sm:$0xff]
  %v3428 = vld [vmem:[%s3 + $0x2c0] sm:$0xff]
  %v3429 = vld [vmem:[%s3 + $0x2c8] sm:$0xff]
  %v3430 = vld [vmem:[%s3 + $0x2d0] sm:$0xff]
  %v3431 = vld [vmem:[%s3 + $0x2d8] sm:$0xff]
  %v3432 = vld [vmem:[%s3 + $0x2e0] sm:$0xff]
  %v3433 = vld [vmem:[%s3 + $0x2e8] sm:$0xff]
  %v3434 = vld [vmem:[%s3 + $0x2f0] sm:$0xff]
  %v3435 = vld [vmem:[%s3 + $0x2f8] sm:$0xff]
  %v3436 = vld [vmem:[%s3 + $0x300] sm:$0xff]
  %v3437 = vld [vmem:[%s3 + $0x308] sm:$0xff]
  %v3438 = vld [vmem:[%s3 + $0x310] sm:$0xff]
  %v3439 = vld [vmem:[%s3 + $0x318] sm:$0xff]
  %v3440 = vld [vmem:[%s3 + $0x320] sm:$0xff]
  %v3441 = vld [vmem:[%s3 + $0x328] sm:$0xff]
  %v3442 = vld [vmem:[%s3 + $0x330] sm:$0xff]
  %v3443 = vld [vmem:[%s3 + $0x338] sm:$0xff]
  %v3444 = vld [vmem:[%s3 + $0x340] sm:$0xff]
  %v3445 = vld [vmem:[%s3 + $0x348] sm:$0xff]
  %v3446 = vld [vmem:[%s3 + $0x350] sm:$0xff]
  %v3447 = vld [vmem:[%s3 + $0x358] sm:$0xff]
  %v3448 = vld [vmem:[%s3 + $0x360] sm:$0xff]
  %v3449 = vld [vmem:[%s3 + $0x368] sm:$0xff]
  %v3450 = vld [vmem:[%s3 + $0x370] sm:$0xff]
  %v3451 = vld [vmem:[%s3 + $0x378] sm:$0xff]
  %v3452 = vld [vmem:[%s3 + $0x380] sm:$0xff]
  %v3453 = vld [vmem:[%s3 + $0x388] sm:$0xff]
  %v3454 = vld [vmem:[%s3 + $0x390] sm:$0xff]
  %v3455 = vld [vmem:[%s3 + $0x398] sm:$0xff]
  %v3456 = vld [vmem:[%s3 + $0x3a0] sm:$0xff]
  %v3457 = vld [vmem:[%s3 + $0x3a8] sm:$0xff]
  %v3458 = vld [vmem:[%s3 + $0x3b0] sm:$0xff]
  %v3459 = vld [vmem:[%s3 + $0x3b8] sm:$0xff]
  %v3460 = vld [vmem:[%s3 + $0x3c0] sm:$0xff]
  %v3461 = vld [vmem:[%s3 + $0x3c8] sm:$0xff]
  %v3462 = vld [vmem:[%s3 + $0x3d0] sm:$0xff]
  %v3463 = vld [vmem:[%s3 + $0x3d8] sm:$0xff]
  %v3464 = vld [vmem:[%s3 + $0x3e0] sm:$0xff]
  %v3465 = vld [vmem:[%s3 + $0x3e8] sm:$0xff]
  %v3466 = vld [vmem:[%s3 + $0x3f0] sm:$0xff]
  %v3467 = vld [vmem:[%s3 + $0x3f8] sm:$0xff]
  %v3596 = vunpack.c.l.b16 %v3340
  %v3597 = vunpack.c.h.b16 %v3340
  %v3598 = vunpack.c.l.b16 %v3341
  %v3599 = vunpack.c.h.b16 %v3341
  %v3600 = vunpack.c.l.b16 %v3342
  %v3601 = vunpack.c.h.b16 %v3342
  %v3602 = vunpack.c.l.b16 %v3343
  %v3603 = vunpack.c.h.b16 %v3343
  %v3604 = vunpack.c.l.b16 %v3344
  %v3605 = vunpack.c.h.b16 %v3344
  %v3606 = vunpack.c.l.b16 %v3345
  %v3607 = vunpack.c.h.b16 %v3345
  %v3608 = vunpack.c.l.b16 %v3346
  %v3609 = vunpack.c.h.b16 %v3346
  %v3610 = vunpack.c.l.b16 %v3347
  %v3611 = vunpack.c.h.b16 %v3347
  %v3612 = vunpack.c.l.b16 %v3348
  %v3613 = vunpack.c.h.b16 %v3348
  %v3614 = vunpack.c.l.b16 %v3349
  %v3615 = vunpack.c.h.b16 %v3349
  %v3616 = vunpack.c.l.b16 %v3350
  %v3617 = vunpack.c.h.b16 %v3350
  %v3618 = vunpack.c.l.b16 %v3351
  %v3619 = vunpack.c.h.b16 %v3351
  %v3620 = vunpack.c.l.b16 %v3352
  %v3621 = vunpack.c.h.b16 %v3352
  %v3622 = vunpack.c.l.b16 %v3353
  %v3623 = vunpack.c.h.b16 %v3353
  %v3624 = vunpack.c.l.b16 %v3354
  %v3625 = vunpack.c.h.b16 %v3354
  %v3626 = vunpack.c.l.b16 %v3355
  %v3627 = vunpack.c.h.b16 %v3355
  %v3628 = vunpack.c.l.b16 %v3356
  %v3629 = vunpack.c.h.b16 %v3356
  %v3630 = vunpack.c.l.b16 %v3357
  %v3631 = vunpack.c.h.b16 %v3357
  %v3632 = vunpack.c.l.b16 %v3358
  %v3633 = vunpack.c.h.b16 %v3358
  %v3634 = vunpack.c.l.b16 %v3359
  %v3635 = vunpack.c.h.b16 %v3359
  %v3636 = vunpack.c.l.b16 %v3360
  %v3637 = vunpack.c.h.b16 %v3360
  %v3638 = vunpack.c.l.b16 %v3361
  %v3639 = vunpack.c.h.b16 %v3361
  %v3640 = vunpack.c.l.b16 %v3362
  %v3641 = vunpack.c.h.b16 %v3362
  %v3642 = vunpack.c.l.b16 %v3363
  %v3643 = vunpack.c.h.b16 %v3363
  %v3644 = vunpack.c.l.b16 %v3364
  %v3645 = vunpack.c.h.b16 %v3364
  %v3646 = vunpack.c.l.b16 %v3365
  %v3647 = vunpack.c.h.b16 %v3365
  %v3648 = vunpack.c.l.b16 %v3366
  %v3649 = vunpack.c.h.b16 %v3366
  %v3650 = vunpack.c.l.b16 %v3367
  %v3651 = vunpack.c.h.b16 %v3367
  %v3652 = vunpack.c.l.b16 %v3368
  %v3653 = vunpack.c.h.b16 %v3368
  %v3654 = vunpack.c.l.b16 %v3369
  %v3655 = vunpack.c.h.b16 %v3369
  %v3656 = vunpack.c.l.b16 %v3370
  %v3657 = vunpack.c.h.b16 %v3370
  %v3658 = vunpack.c.l.b16 %v3371
  %v3659 = vunpack.c.h.b16 %v3371
  %v3660 = vunpack.c.l.b16 %v3372
  %v3661 = vunpack.c.h.b16 %v3372
  %v3662 = vunpack.c.l.b16 %v3373
  %v3663 = vunpack.c.h.b16 %v3373
  %v3664 = vunpack.c.l.b16 %v3374
  %v3665 = vunpack.c.h.b16 %v3374
  %v3666 = vunpack.c.l.b16 %v3375
  %v3667 = vunpack.c.h.b16 %v3375
  %v3668 = vunpack.c.l.b16 %v3376
  %v3669 = vunpack.c.h.b16 %v3376
  %v3670 = vunpack.c.l.b16 %v3377
  %v3671 = vunpack.c.h.b16 %v3377
  %v3672 = vunpack.c.l.b16 %v3378
  %v3673 = vunpack.c.h.b16 %v3378
  %v3674 = vunpack.c.l.b16 %v3379
  %v3675 = vunpack.c.h.b16 %v3379
  %v3676 = vunpack.c.l.b16 %v3380
  %v3677 = vunpack.c.h.b16 %v3380
  %v3678 = vunpack.c.l.b16 %v3381
  %v3679 = vunpack.c.h.b16 %v3381
  %v3680 = vunpack.c.l.b16 %v3382
  %v3681 = vunpack.c.h.b16 %v3382
  %v3682 = vunpack.c.l.b16 %v3383
  %v3683 = vunpack.c.h.b16 %v3383
  %v3684 = vunpack.c.l.b16 %v3384
  %v3685 = vunpack.c.h.b16 %v3384
  %v3686 = vunpack.c.l.b16 %v3385
  %v3687 = vunpack.c.h.b16 %v3385
  %v3688 = vunpack.c.l.b16 %v3386
  %v3689 = vunpack.c.h.b16 %v3386
  %v3690 = vunpack.c.l.b16 %v3387
  %v3691 = vunpack.c.h.b16 %v3387
  %v3692 = vunpack.c.l.b16 %v3388
  %v3693 = vunpack.c.h.b16 %v3388
  %v3694 = vunpack.c.l.b16 %v3389
  %v3695 = vunpack.c.h.b16 %v3389
  %v3696 = vunpack.c.l.b16 %v3390
  %v3697 = vunpack.c.h.b16 %v3390
  %v3698 = vunpack.c.l.b16 %v3391
  %v3699 = vunpack.c.h.b16 %v3391
  %v3700 = vunpack.c.l.b16 %v3392
  %v3701 = vunpack.c.h.b16 %v3392
  %v3702 = vunpack.c.l.b16 %v3393
  %v3703 = vunpack.c.h.b16 %v3393
  %v3704 = vunpack.c.l.b16 %v3394
  %v3705 = vunpack.c.h.b16 %v3394
  %v3706 = vunpack.c.l.b16 %v3395
  %v3707 = vunpack.c.h.b16 %v3395
  %v3708 = vunpack.c.l.b16 %v3396
  %v3709 = vunpack.c.h.b16 %v3396
  %v3710 = vunpack.c.l.b16 %v3397
  %v3711 = vunpack.c.h.b16 %v3397
  %v3712 = vunpack.c.l.b16 %v3398
  %v3713 = vunpack.c.h.b16 %v3398
  %v3714 = vunpack.c.l.b16 %v3399
  %v3715 = vunpack.c.h.b16 %v3399
  %v3716 = vunpack.c.l.b16 %v3400
  %v3717 = vunpack.c.h.b16 %v3400
  %v3718 = vunpack.c.l.b16 %v3401
  %v3719 = vunpack.c.h.b16 %v3401
  %v3720 = vunpack.c.l.b16 %v3402
  %v3721 = vunpack.c.h.b16 %v3402
  %v3722 = vunpack.c.l.b16 %v3403
  %v3723 = vunpack.c.h.b16 %v3403
  %v3724 = vunpack.c.l.b16 %v3404
  %v3725 = vunpack.c.h.b16 %v3404
  %v3726 = vunpack.c.l.b16 %v3405
  %v3727 = vunpack.c.h.b16 %v3405
  %v3728 = vunpack.c.l.b16 %v3406
  %v3729 = vunpack.c.h.b16 %v3406
  %v3730 = vunpack.c.l.b16 %v3407
  %v3731 = vunpack.c.h.b16 %v3407
  %v3732 = vunpack.c.l.b16 %v3408
  %v3733 = vunpack.c.h.b16 %v3408
  %v3734 = vunpack.c.l.b16 %v3409
  %v3735 = vunpack.c.h.b16 %v3409
  %v3736 = vunpack.c.l.b16 %v3410
  %v3737 = vunpack.c.h.b16 %v3410
  %v3738 = vunpack.c.l.b16 %v3411
  %v3739 = vunpack.c.h.b16 %v3411
  %v3740 = vunpack.c.l.b16 %v3412
  %v3741 = vunpack.c.h.b16 %v3412
  %v3742 = vunpack.c.l.b16 %v3413
  %v3743 = vunpack.c.h.b16 %v3413
  %v3744 = vunpack.c.l.b16 %v3414
  %v3745 = vunpack.c.h.b16 %v3414
  %v3746 = vunpack.c.l.b16 %v3415
  %v3747 = vunpack.c.h.b16 %v3415
  %v3748 = vunpack.c.l.b16 %v3416
  %v3749 = vunpack.c.h.b16 %v3416
  %v3750 = vunpack.c.l.b16 %v3417
  %v3751 = vunpack.c.h.b16 %v3417
  %v3752 = vunpack.c.l.b16 %v3418
  %v3753 = vunpack.c.h.b16 %v3418
  %v3754 = vunpack.c.l.b16 %v3419
  %v3755 = vunpack.c.h.b16 %v3419
  %v3756 = vunpack.c.l.b16 %v3420
  %v3757 = vunpack.c.h.b16 %v3420
  %v3758 = vunpack.c.l.b16 %v3421
  %v3759 = vunpack.c.h.b16 %v3421
  %v3760 = vunpack.c.l.b16 %v3422
  %v3761 = vunpack.c.h.b16 %v3422
  %v3762 = vunpack.c.l.b16 %v3423
  %v3763 = vunpack.c.h.b16 %v3423
  %v3764 = vunpack.c.l.b16 %v3424
  %v3765 = vunpack.c.h.b16 %v3424
  %v3766 = vunpack.c.l.b16 %v3425
  %v3767 = vunpack.c.h.b16 %v3425
  %v3768 = vunpack.c.l.b16 %v3426
  %v3769 = vunpack.c.h.b16 %v3426
  %v3770 = vunpack.c.l.b16 %v3427
  %v3771 = vunpack.c.h.b16 %v3427
  %v3772 = vunpack.c.l.b16 %v3428
  %v3773 = vunpack.c.h.b16 %v3428
  %v3774 = vunpack.c.l.b16 %v3429
  %v3775 = vunpack.c.h.b16 %v3429
  %v3776 = vunpack.c.l.b16 %v3430
  %v3777 = vunpack.c.h.b16 %v3430
  %v3778 = vunpack.c.l.b16 %v3431
  %v3779 = vunpack.c.h.b16 %v3431
  %v3780 = vunpack.c.l.b16 %v3432
  %v3781 = vunpack.c.h.b16 %v3432
  %v3782 = vunpack.c.l.b16 %v3433
  %v3783 = vunpack.c.h.b16 %v3433
  %v3784 = vunpack.c.l.b16 %v3434
  %v3785 = vunpack.c.h.b16 %v3434
  %v3786 = vunpack.c.l.b16 %v3435
  %v3787 = vunpack.c.h.b16 %v3435
  %v3788 = vunpack.c.l.b16 %v3436
  %v3789 = vunpack.c.h.b16 %v3436
  %v3790 = vunpack.c.l.b16 %v3437
  %v3791 = vunpack.c.h.b16 %v3437
  %v3792 = vunpack.c.l.b16 %v3438
  %v3793 = vunpack.c.h.b16 %v3438
  %v3794 = vunpack.c.l.b16 %v3439
  %v3795 = vunpack.c.h.b16 %v3439
  %v3796 = vunpack.c.l.b16 %v3440
  %v3797 = vunpack.c.h.b16 %v3440
  %v3798 = vunpack.c.l.b16 %v3441
  %v3799 = vunpack.c.h.b16 %v3441
  %v3800 = vunpack.c.l.b16 %v3442
  %v3801 = vunpack.c.h.b16 %v3442
  %v3802 = vunpack.c.l.b16 %v3443
  %v3803 = vunpack.c.h.b16 %v3443
  %v3804 = vunpack.c.l.b16 %v3444
  %v3805 = vunpack.c.h.b16 %v3444
  %v3806 = vunpack.c.l.b16 %v3445
  %v3807 = vunpack.c.h.b16 %v3445
  %v3808 = vunpack.c.l.b16 %v3446
  %v3809 = vunpack.c.h.b16 %v3446
  %v3810 = vunpack.c.l.b16 %v3447
  %v3811 = vunpack.c.h.b16 %v3447
  %v3812 = vunpack.c.l.b16 %v3448
  %v3813 = vunpack.c.h.b16 %v3448
  %v3814 = vunpack.c.l.b16 %v3449
  %v3815 = vunpack.c.h.b16 %v3449
  %v3816 = vunpack.c.l.b16 %v3450
  %v3817 = vunpack.c.h.b16 %v3450
  %v3818 = vunpack.c.l.b16 %v3451
  %v3819 = vunpack.c.h.b16 %v3451
  %v3820 = vunpack.c.l.b16 %v3452
  %v3821 = vunpack.c.h.b16 %v3452
  %v3822 = vunpack.c.l.b16 %v3453
  %v3823 = vunpack.c.h.b16 %v3453
  %v3824 = vunpack.c.l.b16 %v3454
  %v3825 = vunpack.c.h.b16 %v3454
  %v3826 = vunpack.c.l.b16 %v3455
  %v3827 = vunpack.c.h.b16 %v3455
  %v3828 = vunpack.c.l.b16 %v3456
  %v3829 = vunpack.c.h.b16 %v3456
  %v3830 = vunpack.c.l.b16 %v3457
  %v3831 = vunpack.c.h.b16 %v3457
  %v3832 = vunpack.c.l.b16 %v3458
  %v3833 = vunpack.c.h.b16 %v3458
  %v3834 = vunpack.c.l.b16 %v3459
  %v3835 = vunpack.c.h.b16 %v3459
  %v3836 = vunpack.c.l.b16 %v3460
  %v3837 = vunpack.c.h.b16 %v3460
  %v3838 = vunpack.c.l.b16 %v3461
  %v3839 = vunpack.c.h.b16 %v3461
  %v3840 = vunpack.c.l.b16 %v3462
  %v3841 = vunpack.c.h.b16 %v3462
  %v3842 = vunpack.c.l.b16 %v3463
  %v3843 = vunpack.c.h.b16 %v3463
  %v3844 = vunpack.c.l.b16 %v3464
  %v3845 = vunpack.c.h.b16 %v3464
  %v3846 = vunpack.c.l.b16 %v3465
  %v3847 = vunpack.c.h.b16 %v3465
  %v3848 = vunpack.c.l.b16 %v3466
  %v3849 = vunpack.c.h.b16 %v3466
  %v3850 = vunpack.c.l.b16 %v3467
  %v3851 = vunpack.c.h.b16 %v3467
  %v3852 = vpack.c.b16 %v3604, %v3596
  %v3853 = vpack.c.b16 %v3605, %v3597
  %v3854 = vpack.c.b16 %v3606, %v3598
  %v3855 = vpack.c.b16 %v3607, %v3599
  %v3856 = vpack.c.b16 %v3608, %v3600
  %v3857 = vpack.c.b16 %v3609, %v3601
  %v3858 = vpack.c.b16 %v3610, %v3602
  %v3859 = vpack.c.b16 %v3611, %v3603
  %v3860 = vpack.c.b16 %v3620, %v3612
  %v3861 = vpack.c.b16 %v3621, %v3613
  %v3862 = vpack.c.b16 %v3622, %v3614
  %v3863 = vpack.c.b16 %v3623, %v3615
  %v3864 = vpack.c.b16 %v3624, %v3616
  %v3865 = vpack.c.b16 %v3625, %v3617
  %v3866 = vpack.c.b16 %v3626, %v3618
  %v3867 = vpack.c.b16 %v3627, %v3619
  %v3868 = vpack.c.b16 %v3636, %v3628
  %v3869 = vpack.c.b16 %v3637, %v3629
  %v3870 = vpack.c.b16 %v3638, %v3630
  %v3871 = vpack.c.b16 %v3639, %v3631
  %v3872 = vpack.c.b16 %v3640, %v3632
  %v3873 = vpack.c.b16 %v3641, %v3633
  %v3874 = vpack.c.b16 %v3642, %v3634
  %v3875 = vpack.c.b16 %v3643, %v3635
  %v3876 = vpack.c.b16 %v3652, %v3644
  %v3877 = vpack.c.b16 %v3653, %v3645
  %v3878 = vpack.c.b16 %v3654, %v3646
  %v3879 = vpack.c.b16 %v3655, %v3647
  %v3880 = vpack.c.b16 %v3656, %v3648
  %v3881 = vpack.c.b16 %v3657, %v3649
  %v3882 = vpack.c.b16 %v3658, %v3650
  %v3883 = vpack.c.b16 %v3659, %v3651
  %v3884 = vpack.c.b16 %v3668, %v3660
  %v3885 = vpack.c.b16 %v3669, %v3661
  %v3886 = vpack.c.b16 %v3670, %v3662
  %v3887 = vpack.c.b16 %v3671, %v3663
  %v3888 = vpack.c.b16 %v3672, %v3664
  %v3889 = vpack.c.b16 %v3673, %v3665
  %v3890 = vpack.c.b16 %v3674, %v3666
  %v3891 = vpack.c.b16 %v3675, %v3667
  %v3892 = vpack.c.b16 %v3684, %v3676
  %v3893 = vpack.c.b16 %v3685, %v3677
  %v3894 = vpack.c.b16 %v3686, %v3678
  %v3895 = vpack.c.b16 %v3687, %v3679
  %v3896 = vpack.c.b16 %v3688, %v3680
  %v3897 = vpack.c.b16 %v3689, %v3681
  %v3898 = vpack.c.b16 %v3690, %v3682
  %v3899 = vpack.c.b16 %v3691, %v3683
  %v3900 = vpack.c.b16 %v3700, %v3692
  %v3901 = vpack.c.b16 %v3701, %v3693
  %v3902 = vpack.c.b16 %v3702, %v3694
  %v3903 = vpack.c.b16 %v3703, %v3695
  %v3904 = vpack.c.b16 %v3704, %v3696
  %v3905 = vpack.c.b16 %v3705, %v3697
  %v3906 = vpack.c.b16 %v3706, %v3698
  %v3907 = vpack.c.b16 %v3707, %v3699
  %v3908 = vpack.c.b16 %v3716, %v3708
  %v3909 = vpack.c.b16 %v3717, %v3709
  %v3910 = vpack.c.b16 %v3718, %v3710
  %v3911 = vpack.c.b16 %v3719, %v3711
  %v3912 = vpack.c.b16 %v3720, %v3712
  %v3913 = vpack.c.b16 %v3721, %v3713
  %v3914 = vpack.c.b16 %v3722, %v3714
  %v3915 = vpack.c.b16 %v3723, %v3715
  %v3916 = vpack.c.b16 %v3732, %v3724
  %v3917 = vpack.c.b16 %v3733, %v3725
  %v3918 = vpack.c.b16 %v3734, %v3726
  %v3919 = vpack.c.b16 %v3735, %v3727
  %v3920 = vpack.c.b16 %v3736, %v3728
  %v3921 = vpack.c.b16 %v3737, %v3729
  %v3922 = vpack.c.b16 %v3738, %v3730
  %v3923 = vpack.c.b16 %v3739, %v3731
  %v3924 = vpack.c.b16 %v3748, %v3740
  %v3925 = vpack.c.b16 %v3749, %v3741
  %v3926 = vpack.c.b16 %v3750, %v3742
  %v3927 = vpack.c.b16 %v3751, %v3743
  %v3928 = vpack.c.b16 %v3752, %v3744
  %v3929 = vpack.c.b16 %v3753, %v3745
  %v3930 = vpack.c.b16 %v3754, %v3746
  %v3931 = vpack.c.b16 %v3755, %v3747
  %v3932 = vpack.c.b16 %v3764, %v3756
  %v3933 = vpack.c.b16 %v3765, %v3757
  %v3934 = vpack.c.b16 %v3766, %v3758
  %v3935 = vpack.c.b16 %v3767, %v3759
  %v3936 = vpack.c.b16 %v3768, %v3760
  %v3937 = vpack.c.b16 %v3769, %v3761
  %v3938 = vpack.c.b16 %v3770, %v3762
  %v3939 = vpack.c.b16 %v3771, %v3763
  %v3940 = vpack.c.b16 %v3780, %v3772
  %v3941 = vpack.c.b16 %v3781, %v3773
  %v3942 = vpack.c.b16 %v3782, %v3774
  %v3943 = vpack.c.b16 %v3783, %v3775
  %v3944 = vpack.c.b16 %v3784, %v3776
  %v3945 = vpack.c.b16 %v3785, %v3777
  %v3946 = vpack.c.b16 %v3786, %v3778
  %v3947 = vpack.c.b16 %v3787, %v3779
  %v3948 = vpack.c.b16 %v3796, %v3788
  %v3949 = vpack.c.b16 %v3797, %v3789
  %v3950 = vpack.c.b16 %v3798, %v3790
  %v3951 = vpack.c.b16 %v3799, %v3791
  %v3952 = vpack.c.b16 %v3800, %v3792
  %v3953 = vpack.c.b16 %v3801, %v3793
  %v3954 = vpack.c.b16 %v3802, %v3794
  %v3955 = vpack.c.b16 %v3803, %v3795
  %v3956 = vpack.c.b16 %v3812, %v3804
  %v3957 = vpack.c.b16 %v3813, %v3805
  %v3958 = vpack.c.b16 %v3814, %v3806
  %v3959 = vpack.c.b16 %v3815, %v3807
  %v3960 = vpack.c.b16 %v3816, %v3808
  %v3961 = vpack.c.b16 %v3817, %v3809
  %v3962 = vpack.c.b16 %v3818, %v3810
  %v3963 = vpack.c.b16 %v3819, %v3811
  %v3964 = vpack.c.b16 %v3828, %v3820
  %v3965 = vpack.c.b16 %v3829, %v3821
  %v3966 = vpack.c.b16 %v3830, %v3822
  %v3967 = vpack.c.b16 %v3831, %v3823
  %v3968 = vpack.c.b16 %v3832, %v3824
  %v3969 = vpack.c.b16 %v3833, %v3825
  %v3970 = vpack.c.b16 %v3834, %v3826
  %v3971 = vpack.c.b16 %v3835, %v3827
  %v3972 = vpack.c.b16 %v3844, %v3836
  %v3973 = vpack.c.b16 %v3845, %v3837
  %v3974 = vpack.c.b16 %v3846, %v3838
  %v3975 = vpack.c.b16 %v3847, %v3839
  %v3976 = vpack.c.b16 %v3848, %v3840
  %v3977 = vpack.c.b16 %v3849, %v3841
  %v3978 = vpack.c.b16 %v3850, %v3842
  %v3979 = vpack.c.b16 %v3851, %v3843
  %4108 = vmatprep.subr.bf16.mxu0 %v3909
  %4109 = vmatpush1.bf16.msra.mxu0 %v3908
  %4110 = vmatprep.subr.bf16.mxu0 %v3901
  %4111 = vmatpush1.bf16.msra.mxu0 %v3900
  %4112 = vmatprep.subr.bf16.mxu0 %v3893
  %4113 = vmatpush1.bf16.msra.mxu0 %v3892
  %4114 = vmatprep.subr.bf16.mxu0 %v3885
  %4115 = vmatpush1.bf16.msra.mxu0 %v3884
  %4116 = vmatprep.subr.bf16.mxu0 %v3877
  %4117 = vmatpush1.bf16.msra.mxu0 %v3876
  %4118 = vmatprep.subr.bf16.mxu0 %v3869
  %4119 = vmatpush1.bf16.msra.mxu0 %v3868
  %4120 = vmatprep.subr.bf16.mxu0 %v3861
  %4121 = vmatpush1.bf16.msra.mxu0 %v3860
  %4122 = vmatprep.subr.bf16.mxu0 %v3853
  %4123 = vmatpush1.bf16.msra.mxu0 %v3852
  %4124 = vmatprep.subr.bf16.mxu0 %v3973
  %4125 = vmatpush2.bf16.msra.mxu0 %v3972
  %4126 = vmatprep.subr.bf16.mxu0 %v3965
  %4127 = vmatpush2.bf16.msra.mxu0 %v3964
  %4128 = vmatprep.subr.bf16.mxu0 %v3957
  %4129 = vmatpush2.bf16.msra.mxu0 %v3956
  %4130 = vmatprep.subr.bf16.mxu0 %v3949
  %4131 = vmatpush2.bf16.msra.mxu0 %v3948
  %4132 = vmatprep.subr.bf16.mxu0 %v3941
  %4133 = vmatpush2.bf16.msra.mxu0 %v3940
  %4134 = vmatprep.subr.bf16.mxu0 %v3933
  %4135 = vmatpush2.bf16.msra.mxu0 %v3932
  %4136 = vmatprep.subr.bf16.mxu0 %v3925
  %4137 = vmatpush2.bf16.msra.mxu0 %v3924
  %4138 = vmatprep.subr.bf16.mxu0 %v3917
  %4139 = vmatpush2.bf16.msra.mxu0 %v3916
  %4140 = vmatprep.mubr.bf16.mxu0 %v3339
  %4141 = vmatmul.mubr.bf16.gmra.mxu0 %v3338
  %v4142 = vpop.f32.mrf.mxu0
  %v4143 = vadd.f32 0.0, %v4142
  %v4144 = vpop.f32.mrf.mxu0
  %v4145 = vadd.f32 0.0, %v4144
  %v4146 = vpop.f32.mrf.mxu0
  %v4147 = vpop.f32.mrf.mxu0
  %4148 = vdwg.mxu0
  %4149 = vmatprep.subr.bf16.mxu0 %v3911
  %4150 = vmatpush1.bf16.msra.mxu0 %v3910
  %4151 = vmatprep.subr.bf16.mxu0 %v3903
  %4152 = vmatpush1.bf16.msra.mxu0 %v3902
  %4153 = vmatprep.subr.bf16.mxu0 %v3895
  %4154 = vmatpush1.bf16.msra.mxu0 %v3894
  %4155 = vmatprep.subr.bf16.mxu0 %v3887
  %4156 = vmatpush1.bf16.msra.mxu0 %v3886
  %4157 = vmatprep.subr.bf16.mxu0 %v3879
  %4158 = vmatpush1.bf16.msra.mxu0 %v3878
  %4159 = vmatprep.subr.bf16.mxu0 %v3871
  %4160 = vmatpush1.bf16.msra.mxu0 %v3870
  %4161 = vmatprep.subr.bf16.mxu0 %v3863
  %4162 = vmatpush1.bf16.msra.mxu0 %v3862
  %4163 = vmatprep.subr.bf16.mxu0 %v3855
  %4164 = vmatpush1.bf16.msra.mxu0 %v3854
  %4165 = vmatprep.subr.bf16.mxu0 %v3975
  %4166 = vmatpush2.bf16.msra.mxu0 %v3974
  %4167 = vmatprep.subr.bf16.mxu0 %v3967
  %4168 = vmatpush2.bf16.msra.mxu0 %v3966
  %4169 = vmatprep.subr.bf16.mxu0 %v3959
  %4170 = vmatpush2.bf16.msra.mxu0 %v3958
  %4171 = vmatprep.subr.bf16.mxu0 %v3951
  %4172 = vmatpush2.bf16.msra.mxu0 %v3950
  %4173 = vmatprep.subr.bf16.mxu0 %v3943
  %4174 = vmatpush2.bf16.msra.mxu0 %v3942
  %4175 = vmatprep.subr.bf16.mxu0 %v3935
  %4176 = vmatpush2.bf16.msra.mxu0 %v3934
  %4177 = vmatprep.subr.bf16.mxu0 %v3927
  %4178 = vmatpush2.bf16.msra.mxu0 %v3926
  %4179 = vmatprep.subr.bf16.mxu0 %v3919
  %4180 = vmatpush2.bf16.msra.mxu0 %v3918
  %4181 = vmatprep.mubr.bf16.mxu0 %v3339
  %4182 = vmatmul.mubr.bf16.gmra.mxu0 %v3338
  %v4183 = vpop.f32.mrf.mxu0
  %v4184 = vadd.f32 0.0, %v4183
  %v4185 = vpop.f32.mrf.mxu0
  %v4186 = vadd.f32 0.0, %v4185
  %v4187 = vpop.f32.mrf.mxu0
  %v4188 = vpop.f32.mrf.mxu0
  %4189 = vdwg.mxu0
  %4190 = vmatprep.subr.bf16.mxu0 %v3913
  %4191 = vmatpush1.bf16.msra.mxu0 %v3912
  %4192 = vmatprep.subr.bf16.mxu0 %v3905
  %4193 = vmatpush1.bf16.msra.mxu0 %v3904
  %4194 = vmatprep.subr.bf16.mxu0 %v3897
  %4195 = vmatpush1.bf16.msra.mxu0 %v3896
  %4196 = vmatprep.subr.bf16.mxu0 %v3889
  %4197 = vmatpush1.bf16.msra.mxu0 %v3888
  %4198 = vmatprep.subr.bf16.mxu0 %v3881
  %4199 = vmatpush1.bf16.msra.mxu0 %v3880
  %4200 = vmatprep.subr.bf16.mxu0 %v3873
  %4201 = vmatpush1.bf16.msra.mxu0 %v3872
  %4202 = vmatprep.subr.bf16.mxu0 %v3865
  %4203 = vmatpush1.bf16.msra.mxu0 %v3864
  %4204 = vmatprep.subr.bf16.mxu0 %v3857
  %4205 = vmatpush1.bf16.msra.mxu0 %v3856
  %4206 = vmatprep.subr.bf16.mxu0 %v3977
  %4207 = vmatpush2.bf16.msra.mxu0 %v3976
  %4208 = vmatprep.subr.bf16.mxu0 %v3969
  %4209 = vmatpush2.bf16.msra.mxu0 %v3968
  %4210 = vmatprep.subr.bf16.mxu0 %v3961
  %4211 = vmatpush2.bf16.msra.mxu0 %v3960
  %4212 = vmatprep.subr.bf16.mxu0 %v3953
  %4213 = vmatpush2.bf16.msra.mxu0 %v3952
  %4214 = vmatprep.subr.bf16.mxu0 %v3945
  %4215 = vmatpush2.bf16.msra.mxu0 %v3944
  %4216 = vmatprep.subr.bf16.mxu0 %v3937
  %4217 = vmatpush2.bf16.msra.mxu0 %v3936
  %4218 = vmatprep.subr.bf16.mxu0 %v3929
  %4219 = vmatpush2.bf16.msra.mxu0 %v3928
  %4220 = vmatprep.subr.bf16.mxu0 %v3921
  %4221 = vmatpush2.bf16.msra.mxu0 %v3920
  %4222 = vmatprep.mubr.bf16.mxu0 %v3339
  %4223 = vmatmul.mubr.bf16.gmra.mxu0 %v3338
  %v4224 = vpop.f32.mrf.mxu0
  %v4225 = vadd.f32 0.0, %v4224
  %v4226 = vpop.f32.mrf.mxu0
  %v4227 = vadd.f32 0.0, %v4226
  %v4228 = vpop.f32.mrf.mxu0
  %v4229 = vpop.f32.mrf.mxu0
  %4230 = vdwg.mxu0
  %4231 = vmatprep.subr.bf16.mxu0 %v3915
  %4232 = vmatpush1.bf16.msra.mxu0 %v3914
  %4233 = vmatprep.subr.bf16.mxu0 %v3907
  %4234 = vmatpush1.bf16.msra.mxu0 %v3906
  %4235 = vmatprep.subr.bf16.mxu0 %v3899
  %4236 = vmatpush1.bf16.msra.mxu0 %v3898
  %4237 = vmatprep.subr.bf16.mxu0 %v3891
  %4238 = vmatpush1.bf16.msra.mxu0 %v3890
  %4239 = vmatprep.subr.bf16.mxu0 %v3883
  %4240 = vmatpush1.bf16.msra.mxu0 %v3882
  %4241 = vmatprep.subr.bf16.mxu0 %v3875
  %4242 = vmatpush1.bf16.msra.mxu0 %v3874
  %4243 = vmatprep.subr.bf16.mxu0 %v3867
  %4244 = vmatpush1.bf16.msra.mxu0 %v3866
  %4245 = vmatprep.subr.bf16.mxu0 %v3859
  %4246 = vmatpush1.bf16.msra.mxu0 %v3858
  %4247 = vmatprep.subr.bf16.mxu0 %v3979
  %4248 = vmatpush2.bf16.msra.mxu0 %v3978
  %4249 = vmatprep.subr.bf16.mxu0 %v3971
  %4250 = vmatpush2.bf16.msra.mxu0 %v3970
  %4251 = vmatprep.subr.bf16.mxu0 %v3963
  %4252 = vmatpush2.bf16.msra.mxu0 %v3962
  %4253 = vmatprep.subr.bf16.mxu0 %v3955
  %4254 = vmatpush2.bf16.msra.mxu0 %v3954
  %4255 = vmatprep.subr.bf16.mxu0 %v3947
  %4256 = vmatpush2.bf16.msra.mxu0 %v3946
  %4257 = vmatprep.subr.bf16.mxu0 %v3939
  %4258 = vmatpush2.bf16.msra.mxu0 %v3938
  %4259 = vmatprep.subr.bf16.mxu0 %v3931
  %4260 = vmatpush2.bf16.msra.mxu0 %v3930
  %4261 = vmatprep.subr.bf16.mxu0 %v3923
  %4262 = vmatpush2.bf16.msra.mxu0 %v3922
  %4263 = vmatprep.mubr.bf16.mxu0 %v3339
  %4264 = vmatmul.mubr.bf16.gmra.mxu0 %v3338
  %v4265 = vpop.f32.mrf.mxu0
  %v4266 = vadd.f32 0.0, %v4265
  %v4267 = vpop.f32.mrf.mxu0
  %v4268 = vadd.f32 0.0, %v4267
  %v4269 = vpop.f32.mrf.mxu0
  %v4270 = vpop.f32.mrf.mxu0
  %4271 = vdwg.mxu0
  %v4272 = vadd.f32 %v4225, %v371
  %v4273 = vadd.f32 %v4227, %v375
  %v4274 = vadd.f32 %v4266, %v379
  %v4275 = vadd.f32 %v4268, %v383
  %v4276 = vtanh.pop %v4272
  %v4277 = vtanh.pop %v4273
  %v4278 = vtanh.pop %v4274
  %v4279 = vtanh.pop %v4275
  %v4280 = vmul.f32 %v4276, 0.5
  %v4281 = vadd.f32 %v4280, 0.5
  %v4282 = vmul.f32 %v4277, 0.5
  %v4283 = vadd.f32 %v4282, 0.5
  %v4284 = vmul.f32 %v4279, 0.5
  %v4285 = vadd.f32 %v4284, 0.5
  %v4286 = vmul.f32 %v4283, %v3311
  %v4287 = vmul.f32 %v4281, %v4278
  %v4288 = vadd.f32 %v4286, %v4287
  %v4289 = vtanh.pop %v4288
  %v4290 = vmul.f32 %v4285, %v4289
  %4291 = vst [vmem:[#allocation3 + $0x18] sm:$0xff] %v4290
  %v4292 = vld [vmem:[#allocation2 + $0x80] sm:$0xff]
  %v4293 = vld [vmem:[#allocation2 + $0x88] sm:$0xff]
  %v4294 = vld [vmem:[#allocation2 + $0x90] sm:$0xff]
  %v4295 = vld [vmem:[#allocation2 + $0x98] sm:$0xff]
  %v4296 = vadd.f32 %v4143, %v4292
  %v4297 = vadd.f32 %v4145, %v4293
  %v4298 = vadd.f32 %v4184, %v4294
  %v4299 = vadd.f32 %v4186, %v4295
  %v4300 = vtanh.pop %v4296
  %v4301 = vtanh.pop %v4297
  %v4302 = vtanh.pop %v4298
  %v4303 = vtanh.pop %v4299
  %v4304 = vmul.f32 %v4300, 0.5
  %v4305 = vadd.f32 %v4304, 0.5
  %v4306 = vmul.f32 %v4301, 0.5
  %v4307 = vadd.f32 %v4306, 0.5
  %v4308 = vmul.f32 %v4303, 0.5
  %v4309 = vadd.f32 %v4308, 0.5
  %v4310 = vmul.f32 %v4307, %v3335
  %v4311 = vmul.f32 %v4305, %v4302
  %v4312 = vadd.f32 %v4310, %v4311
  %v4313 = vtanh.pop %v4312
  %v4314 = vmul.f32 %v4309, %v4313
  %v4315 = vpack.c.bf16 %v4314, %v4314
  %v4316 = vpack.c.bf16 %v4290, %v4290
  %v4317 = vld [vmem:[%s3] sm:$0xff]
  %v4318 = vld [vmem:[%s3 + $0x8] sm:$0xff]
  %v4319 = vld [vmem:[%s3 + $0x10] sm:$0xff]
  %v4320 = vld [vmem:[%s3 + $0x18] sm:$0xff]
  %v4321 = vld [vmem:[%s3 + $0x20] sm:$0xff]
  %v4322 = vld [vmem:[%s3 + $0x28] sm:$0xff]
  %v4323 = vld [vmem:[%s3 + $0x30] sm:$0xff]
  %v4324 = vld [vmem:[%s3 + $0x38] sm:$0xff]
  %v4325 = vld [vmem:[%s3 + $0x40] sm:$0xff]
  %v4326 = vld [vmem:[%s3 + $0x48] sm:$0xff]
  %v4327 = vld [vmem:[%s3 + $0x50] sm:$0xff]
  %v4328 = vld [vmem:[%s3 + $0x58] sm:$0xff]
  %v4329 = vld [vmem:[%s3 + $0x60] sm:$0xff]
  %v4330 = vld [vmem:[%s3 + $0x68] sm:$0xff]
  %v4331 = vld [vmem:[%s3 + $0x70] sm:$0xff]
  %v4332 = vld [vmem:[%s3 + $0x78] sm:$0xff]
  %v4333 = vld [vmem:[%s3 + $0x80] sm:$0xff]
  %v4334 = vld [vmem:[%s3 + $0x88] sm:$0xff]
  %v4335 = vld [vmem:[%s3 + $0x90] sm:$0xff]
  %v4336 = vld [vmem:[%s3 + $0x98] sm:$0xff]
  %v4337 = vld [vmem:[%s3 + $0xa0] sm:$0xff]
  %v4338 = vld [vmem:[%s3 + $0xa8] sm:$0xff]
  %v4339 = vld [vmem:[%s3 + $0xb0] sm:$0xff]
  %v4340 = vld [vmem:[%s3 + $0xb8] sm:$0xff]
  %v4341 = vld [vmem:[%s3 + $0xc0] sm:$0xff]
  %v4342 = vld [vmem:[%s3 + $0xc8] sm:$0xff]
  %v4343 = vld [vmem:[%s3 + $0xd0] sm:$0xff]
  %v4344 = vld [vmem:[%s3 + $0xd8] sm:$0xff]
  %v4345 = vld [vmem:[%s3 + $0xe0] sm:$0xff]
  %v4346 = vld [vmem:[%s3 + $0xe8] sm:$0xff]
  %v4347 = vld [vmem:[%s3 + $0xf0] sm:$0xff]
  %v4348 = vld [vmem:[%s3 + $0xf8] sm:$0xff]
  %v4349 = vld [vmem:[%s3 + $0x100] sm:$0xff]
  %v4350 = vld [vmem:[%s3 + $0x108] sm:$0xff]
  %v4351 = vld [vmem:[%s3 + $0x110] sm:$0xff]
  %v4352 = vld [vmem:[%s3 + $0x118] sm:$0xff]
  %v4353 = vld [vmem:[%s3 + $0x120] sm:$0xff]
  %v4354 = vld [vmem:[%s3 + $0x128] sm:$0xff]
  %v4355 = vld [vmem:[%s3 + $0x130] sm:$0xff]
  %v4356 = vld [vmem:[%s3 + $0x138] sm:$0xff]
  %v4357 = vld [vmem:[%s3 + $0x140] sm:$0xff]
  %v4358 = vld [vmem:[%s3 + $0x148] sm:$0xff]
  %v4359 = vld [vmem:[%s3 + $0x150] sm:$0xff]
  %v4360 = vld [vmem:[%s3 + $0x158] sm:$0xff]
  %v4361 = vld [vmem:[%s3 + $0x160] sm:$0xff]
  %v4362 = vld [vmem:[%s3 + $0x168] sm:$0xff]
  %v4363 = vld [vmem:[%s3 + $0x170] sm:$0xff]
  %v4364 = vld [vmem:[%s3 + $0x178] sm:$0xff]
  %v4365 = vld [vmem:[%s3 + $0x180] sm:$0xff]
  %v4366 = vld [vmem:[%s3 + $0x188] sm:$0xff]
  %v4367 = vld [vmem:[%s3 + $0x190] sm:$0xff]
  %v4368 = vld [vmem:[%s3 + $0x198] sm:$0xff]
  %v4369 = vld [vmem:[%s3 + $0x1a0] sm:$0xff]
  %v4370 = vld [vmem:[%s3 + $0x1a8] sm:$0xff]
  %v4371 = vld [vmem:[%s3 + $0x1b0] sm:$0xff]
  %v4372 = vld [vmem:[%s3 + $0x1b8] sm:$0xff]
  %v4373 = vld [vmem:[%s3 + $0x1c0] sm:$0xff]
  %v4374 = vld [vmem:[%s3 + $0x1c8] sm:$0xff]
  %v4375 = vld [vmem:[%s3 + $0x1d0] sm:$0xff]
  %v4376 = vld [vmem:[%s3 + $0x1d8] sm:$0xff]
  %v4377 = vld [vmem:[%s3 + $0x1e0] sm:$0xff]
  %v4378 = vld [vmem:[%s3 + $0x1e8] sm:$0xff]
  %v4379 = vld [vmem:[%s3 + $0x1f0] sm:$0xff]
  %v4380 = vld [vmem:[%s3 + $0x1f8] sm:$0xff]
  %v4381 = vld [vmem:[%s3 + $0x200] sm:$0xff]
  %v4382 = vld [vmem:[%s3 + $0x208] sm:$0xff]
  %v4383 = vld [vmem:[%s3 + $0x210] sm:$0xff]
  %v4384 = vld [vmem:[%s3 + $0x218] sm:$0xff]
  %v4385 = vld [vmem:[%s3 + $0x220] sm:$0xff]
  %v4386 = vld [vmem:[%s3 + $0x228] sm:$0xff]
  %v4387 = vld [vmem:[%s3 + $0x230] sm:$0xff]
  %v4388 = vld [vmem:[%s3 + $0x238] sm:$0xff]
  %v4389 = vld [vmem:[%s3 + $0x240] sm:$0xff]
  %v4390 = vld [vmem:[%s3 + $0x248] sm:$0xff]
  %v4391 = vld [vmem:[%s3 + $0x250] sm:$0xff]
  %v4392 = vld [vmem:[%s3 + $0x258] sm:$0xff]
  %v4393 = vld [vmem:[%s3 + $0x260] sm:$0xff]
  %v4394 = vld [vmem:[%s3 + $0x268] sm:$0xff]
  %v4395 = vld [vmem:[%s3 + $0x270] sm:$0xff]
  %v4396 = vld [vmem:[%s3 + $0x278] sm:$0xff]
  %v4397 = vld [vmem:[%s3 + $0x280] sm:$0xff]
  %v4398 = vld [vmem:[%s3 + $0x288] sm:$0xff]
  %v4399 = vld [vmem:[%s3 + $0x290] sm:$0xff]
  %v4400 = vld [vmem:[%s3 + $0x298] sm:$0xff]
  %v4401 = vld [vmem:[%s3 + $0x2a0] sm:$0xff]
  %v4402 = vld [vmem:[%s3 + $0x2a8] sm:$0xff]
  %v4403 = vld [vmem:[%s3 + $0x2b0] sm:$0xff]
  %v4404 = vld [vmem:[%s3 + $0x2b8] sm:$0xff]
  %v4405 = vld [vmem:[%s3 + $0x2c0] sm:$0xff]
  %v4406 = vld [vmem:[%s3 + $0x2c8] sm:$0xff]
  %v4407 = vld [vmem:[%s3 + $0x2d0] sm:$0xff]
  %v4408 = vld [vmem:[%s3 + $0x2d8] sm:$0xff]
  %v4409 = vld [vmem:[%s3 + $0x2e0] sm:$0xff]
  %v4410 = vld [vmem:[%s3 + $0x2e8] sm:$0xff]
  %v4411 = vld [vmem:[%s3 + $0x2f0] sm:$0xff]
  %v4412 = vld [vmem:[%s3 + $0x2f8] sm:$0xff]
  %v4413 = vld [vmem:[%s3 + $0x300] sm:$0xff]
  %v4414 = vld [vmem:[%s3 + $0x308] sm:$0xff]
  %v4415 = vld [vmem:[%s3 + $0x310] sm:$0xff]
  %v4416 = vld [vmem:[%s3 + $0x318] sm:$0xff]
  %v4417 = vld [vmem:[%s3 + $0x320] sm:$0xff]
  %v4418 = vld [vmem:[%s3 + $0x328] sm:$0xff]
  %v4419 = vld [vmem:[%s3 + $0x330] sm:$0xff]
  %v4420 = vld [vmem:[%s3 + $0x338] sm:$0xff]
  %v4421 = vld [vmem:[%s3 + $0x340] sm:$0xff]
  %v4422 = vld [vmem:[%s3 + $0x348] sm:$0xff]
  %v4423 = vld [vmem:[%s3 + $0x350] sm:$0xff]
  %v4424 = vld [vmem:[%s3 + $0x358] sm:$0xff]
  %v4425 = vld [vmem:[%s3 + $0x360] sm:$0xff]
  %v4426 = vld [vmem:[%s3 + $0x368] sm:$0xff]
  %v4427 = vld [vmem:[%s3 + $0x370] sm:$0xff]
  %v4428 = vld [vmem:[%s3 + $0x378] sm:$0xff]
  %v4429 = vld [vmem:[%s3 + $0x380] sm:$0xff]
  %v4430 = vld [vmem:[%s3 + $0x388] sm:$0xff]
  %v4431 = vld [vmem:[%s3 + $0x390] sm:$0xff]
  %v4432 = vld [vmem:[%s3 + $0x398] sm:$0xff]
  %v4433 = vld [vmem:[%s3 + $0x3a0] sm:$0xff]
  %v4434 = vld [vmem:[%s3 + $0x3a8] sm:$0xff]
  %v4435 = vld [vmem:[%s3 + $0x3b0] sm:$0xff]
  %v4436 = vld [vmem:[%s3 + $0x3b8] sm:$0xff]
  %v4437 = vld [vmem:[%s3 + $0x3c0] sm:$0xff]
  %v4438 = vld [vmem:[%s3 + $0x3c8] sm:$0xff]
  %v4439 = vld [vmem:[%s3 + $0x3d0] sm:$0xff]
  %v4440 = vld [vmem:[%s3 + $0x3d8] sm:$0xff]
  %v4441 = vld [vmem:[%s3 + $0x3e0] sm:$0xff]
  %v4442 = vld [vmem:[%s3 + $0x3e8] sm:$0xff]
  %v4443 = vld [vmem:[%s3 + $0x3f0] sm:$0xff]
  %v4444 = vld [vmem:[%s3 + $0x3f8] sm:$0xff]
  %v4573 = vunpack.c.l.b16 %v4317
  %v4574 = vunpack.c.h.b16 %v4317
  %v4575 = vunpack.c.l.b16 %v4318
  %v4576 = vunpack.c.h.b16 %v4318
  %v4577 = vunpack.c.l.b16 %v4319
  %v4578 = vunpack.c.h.b16 %v4319
  %v4579 = vunpack.c.l.b16 %v4320
  %v4580 = vunpack.c.h.b16 %v4320
  %v4581 = vunpack.c.l.b16 %v4321
  %v4582 = vunpack.c.h.b16 %v4321
  %v4583 = vunpack.c.l.b16 %v4322
  %v4584 = vunpack.c.h.b16 %v4322
  %v4585 = vunpack.c.l.b16 %v4323
  %v4586 = vunpack.c.h.b16 %v4323
  %v4587 = vunpack.c.l.b16 %v4324
  %v4588 = vunpack.c.h.b16 %v4324
  %v4589 = vunpack.c.l.b16 %v4325
  %v4590 = vunpack.c.h.b16 %v4325
  %v4591 = vunpack.c.l.b16 %v4326
  %v4592 = vunpack.c.h.b16 %v4326
  %v4593 = vunpack.c.l.b16 %v4327
  %v4594 = vunpack.c.h.b16 %v4327
  %v4595 = vunpack.c.l.b16 %v4328
  %v4596 = vunpack.c.h.b16 %v4328
  %v4597 = vunpack.c.l.b16 %v4329
  %v4598 = vunpack.c.h.b16 %v4329
  %v4599 = vunpack.c.l.b16 %v4330
  %v4600 = vunpack.c.h.b16 %v4330
  %v4601 = vunpack.c.l.b16 %v4331
  %v4602 = vunpack.c.h.b16 %v4331
  %v4603 = vunpack.c.l.b16 %v4332
  %v4604 = vunpack.c.h.b16 %v4332
  %v4605 = vunpack.c.l.b16 %v4333
  %v4606 = vunpack.c.h.b16 %v4333
  %v4607 = vunpack.c.l.b16 %v4334
  %v4608 = vunpack.c.h.b16 %v4334
  %v4609 = vunpack.c.l.b16 %v4335
  %v4610 = vunpack.c.h.b16 %v4335
  %v4611 = vunpack.c.l.b16 %v4336
  %v4612 = vunpack.c.h.b16 %v4336
  %v4613 = vunpack.c.l.b16 %v4337
  %v4614 = vunpack.c.h.b16 %v4337
  %v4615 = vunpack.c.l.b16 %v4338
  %v4616 = vunpack.c.h.b16 %v4338
  %v4617 = vunpack.c.l.b16 %v4339
  %v4618 = vunpack.c.h.b16 %v4339
  %v4619 = vunpack.c.l.b16 %v4340
  %v4620 = vunpack.c.h.b16 %v4340
  %v4621 = vunpack.c.l.b16 %v4341
  %v4622 = vunpack.c.h.b16 %v4341
  %v4623 = vunpack.c.l.b16 %v4342
  %v4624 = vunpack.c.h.b16 %v4342
  %v4625 = vunpack.c.l.b16 %v4343
  %v4626 = vunpack.c.h.b16 %v4343
  %v4627 = vunpack.c.l.b16 %v4344
  %v4628 = vunpack.c.h.b16 %v4344
  %v4629 = vunpack.c.l.b16 %v4345
  %v4630 = vunpack.c.h.b16 %v4345
  %v4631 = vunpack.c.l.b16 %v4346
  %v4632 = vunpack.c.h.b16 %v4346
  %v4633 = vunpack.c.l.b16 %v4347
  %v4634 = vunpack.c.h.b16 %v4347
  %v4635 = vunpack.c.l.b16 %v4348
  %v4636 = vunpack.c.h.b16 %v4348
  %v4637 = vunpack.c.l.b16 %v4349
  %v4638 = vunpack.c.h.b16 %v4349
  %v4639 = vunpack.c.l.b16 %v4350
  %v4640 = vunpack.c.h.b16 %v4350
  %v4641 = vunpack.c.l.b16 %v4351
  %v4642 = vunpack.c.h.b16 %v4351
  %v4643 = vunpack.c.l.b16 %v4352
  %v4644 = vunpack.c.h.b16 %v4352
  %v4645 = vunpack.c.l.b16 %v4353
  %v4646 = vunpack.c.h.b16 %v4353
  %v4647 = vunpack.c.l.b16 %v4354
  %v4648 = vunpack.c.h.b16 %v4354
  %v4649 = vunpack.c.l.b16 %v4355
  %v4650 = vunpack.c.h.b16 %v4355
  %v4651 = vunpack.c.l.b16 %v4356
  %v4652 = vunpack.c.h.b16 %v4356
  %v4653 = vunpack.c.l.b16 %v4357
  %v4654 = vunpack.c.h.b16 %v4357
  %v4655 = vunpack.c.l.b16 %v4358
  %v4656 = vunpack.c.h.b16 %v4358
  %v4657 = vunpack.c.l.b16 %v4359
  %v4658 = vunpack.c.h.b16 %v4359
  %v4659 = vunpack.c.l.b16 %v4360
  %v4660 = vunpack.c.h.b16 %v4360
  %v4661 = vunpack.c.l.b16 %v4361
  %v4662 = vunpack.c.h.b16 %v4361
  %v4663 = vunpack.c.l.b16 %v4362
  %v4664 = vunpack.c.h.b16 %v4362
  %v4665 = vunpack.c.l.b16 %v4363
  %v4666 = vunpack.c.h.b16 %v4363
  %v4667 = vunpack.c.l.b16 %v4364
  %v4668 = vunpack.c.h.b16 %v4364
  %v4669 = vunpack.c.l.b16 %v4365
  %v4670 = vunpack.c.h.b16 %v4365
  %v4671 = vunpack.c.l.b16 %v4366
  %v4672 = vunpack.c.h.b16 %v4366
  %v4673 = vunpack.c.l.b16 %v4367
  %v4674 = vunpack.c.h.b16 %v4367
  %v4675 = vunpack.c.l.b16 %v4368
  %v4676 = vunpack.c.h.b16 %v4368
  %v4677 = vunpack.c.l.b16 %v4369
  %v4678 = vunpack.c.h.b16 %v4369
  %v4679 = vunpack.c.l.b16 %v4370
  %v4680 = vunpack.c.h.b16 %v4370
  %v4681 = vunpack.c.l.b16 %v4371
  %v4682 = vunpack.c.h.b16 %v4371
  %v4683 = vunpack.c.l.b16 %v4372
  %v4684 = vunpack.c.h.b16 %v4372
  %v4685 = vunpack.c.l.b16 %v4373
  %v4686 = vunpack.c.h.b16 %v4373
  %v4687 = vunpack.c.l.b16 %v4374
  %v4688 = vunpack.c.h.b16 %v4374
  %v4689 = vunpack.c.l.b16 %v4375
  %v4690 = vunpack.c.h.b16 %v4375
  %v4691 = vunpack.c.l.b16 %v4376
  %v4692 = vunpack.c.h.b16 %v4376
  %v4693 = vunpack.c.l.b16 %v4377
  %v4694 = vunpack.c.h.b16 %v4377
  %v4695 = vunpack.c.l.b16 %v4378
  %v4696 = vunpack.c.h.b16 %v4378
  %v4697 = vunpack.c.l.b16 %v4379
  %v4698 = vunpack.c.h.b16 %v4379
  %v4699 = vunpack.c.l.b16 %v4380
  %v4700 = vunpack.c.h.b16 %v4380
  %v4701 = vunpack.c.l.b16 %v4381
  %v4702 = vunpack.c.h.b16 %v4381
  %v4703 = vunpack.c.l.b16 %v4382
  %v4704 = vunpack.c.h.b16 %v4382
  %v4705 = vunpack.c.l.b16 %v4383
  %v4706 = vunpack.c.h.b16 %v4383
  %v4707 = vunpack.c.l.b16 %v4384
  %v4708 = vunpack.c.h.b16 %v4384
  %v4709 = vunpack.c.l.b16 %v4385
  %v4710 = vunpack.c.h.b16 %v4385
  %v4711 = vunpack.c.l.b16 %v4386
  %v4712 = vunpack.c.h.b16 %v4386
  %v4713 = vunpack.c.l.b16 %v4387
  %v4714 = vunpack.c.h.b16 %v4387
  %v4715 = vunpack.c.l.b16 %v4388
  %v4716 = vunpack.c.h.b16 %v4388
  %v4717 = vunpack.c.l.b16 %v4389
  %v4718 = vunpack.c.h.b16 %v4389
  %v4719 = vunpack.c.l.b16 %v4390
  %v4720 = vunpack.c.h.b16 %v4390
  %v4721 = vunpack.c.l.b16 %v4391
  %v4722 = vunpack.c.h.b16 %v4391
  %v4723 = vunpack.c.l.b16 %v4392
  %v4724 = vunpack.c.h.b16 %v4392
  %v4725 = vunpack.c.l.b16 %v4393
  %v4726 = vunpack.c.h.b16 %v4393
  %v4727 = vunpack.c.l.b16 %v4394
  %v4728 = vunpack.c.h.b16 %v4394
  %v4729 = vunpack.c.l.b16 %v4395
  %v4730 = vunpack.c.h.b16 %v4395
  %v4731 = vunpack.c.l.b16 %v4396
  %v4732 = vunpack.c.h.b16 %v4396
  %v4733 = vunpack.c.l.b16 %v4397
  %v4734 = vunpack.c.h.b16 %v4397
  %v4735 = vunpack.c.l.b16 %v4398
  %v4736 = vunpack.c.h.b16 %v4398
  %v4737 = vunpack.c.l.b16 %v4399
  %v4738 = vunpack.c.h.b16 %v4399
  %v4739 = vunpack.c.l.b16 %v4400
  %v4740 = vunpack.c.h.b16 %v4400
  %v4741 = vunpack.c.l.b16 %v4401
  %v4742 = vunpack.c.h.b16 %v4401
  %v4743 = vunpack.c.l.b16 %v4402
  %v4744 = vunpack.c.h.b16 %v4402
  %v4745 = vunpack.c.l.b16 %v4403
  %v4746 = vunpack.c.h.b16 %v4403
  %v4747 = vunpack.c.l.b16 %v4404
  %v4748 = vunpack.c.h.b16 %v4404
  %v4749 = vunpack.c.l.b16 %v4405
  %v4750 = vunpack.c.h.b16 %v4405
  %v4751 = vunpack.c.l.b16 %v4406
  %v4752 = vunpack.c.h.b16 %v4406
  %v4753 = vunpack.c.l.b16 %v4407
  %v4754 = vunpack.c.h.b16 %v4407
  %v4755 = vunpack.c.l.b16 %v4408
  %v4756 = vunpack.c.h.b16 %v4408
  %v4757 = vunpack.c.l.b16 %v4409
  %v4758 = vunpack.c.h.b16 %v4409
  %v4759 = vunpack.c.l.b16 %v4410
  %v4760 = vunpack.c.h.b16 %v4410
  %v4761 = vunpack.c.l.b16 %v4411
  %v4762 = vunpack.c.h.b16 %v4411
  %v4763 = vunpack.c.l.b16 %v4412
  %v4764 = vunpack.c.h.b16 %v4412
  %v4765 = vunpack.c.l.b16 %v4413
  %v4766 = vunpack.c.h.b16 %v4413
  %v4767 = vunpack.c.l.b16 %v4414
  %v4768 = vunpack.c.h.b16 %v4414
  %v4769 = vunpack.c.l.b16 %v4415
  %v4770 = vunpack.c.h.b16 %v4415
  %v4771 = vunpack.c.l.b16 %v4416
  %v4772 = vunpack.c.h.b16 %v4416
  %v4773 = vunpack.c.l.b16 %v4417
  %v4774 = vunpack.c.h.b16 %v4417
  %v4775 = vunpack.c.l.b16 %v4418
  %v4776 = vunpack.c.h.b16 %v4418
  %v4777 = vunpack.c.l.b16 %v4419
  %v4778 = vunpack.c.h.b16 %v4419
  %v4779 = vunpack.c.l.b16 %v4420
  %v4780 = vunpack.c.h.b16 %v4420
  %v4781 = vunpack.c.l.b16 %v4421
  %v4782 = vunpack.c.h.b16 %v4421
  %v4783 = vunpack.c.l.b16 %v4422
  %v4784 = vunpack.c.h.b16 %v4422
  %v4785 = vunpack.c.l.b16 %v4423
  %v4786 = vunpack.c.h.b16 %v4423
  %v4787 = vunpack.c.l.b16 %v4424
  %v4788 = vunpack.c.h.b16 %v4424
  %v4789 = vunpack.c.l.b16 %v4425
  %v4790 = vunpack.c.h.b16 %v4425
  %v4791 = vunpack.c.l.b16 %v4426
  %v4792 = vunpack.c.h.b16 %v4426
  %v4793 = vunpack.c.l.b16 %v4427
  %v4794 = vunpack.c.h.b16 %v4427
  %v4795 = vunpack.c.l.b16 %v4428
  %v4796 = vunpack.c.h.b16 %v4428
  %v4797 = vunpack.c.l.b16 %v4429
  %v4798 = vunpack.c.h.b16 %v4429
  %v4799 = vunpack.c.l.b16 %v4430
  %v4800 = vunpack.c.h.b16 %v4430
  %v4801 = vunpack.c.l.b16 %v4431
  %v4802 = vunpack.c.h.b16 %v4431
  %v4803 = vunpack.c.l.b16 %v4432
  %v4804 = vunpack.c.h.b16 %v4432
  %v4805 = vunpack.c.l.b16 %v4433
  %v4806 = vunpack.c.h.b16 %v4433
  %v4807 = vunpack.c.l.b16 %v4434
  %v4808 = vunpack.c.h.b16 %v4434
  %v4809 = vunpack.c.l.b16 %v4435
  %v4810 = vunpack.c.h.b16 %v4435
  %v4811 = vunpack.c.l.b16 %v4436
  %v4812 = vunpack.c.h.b16 %v4436
  %v4813 = vunpack.c.l.b16 %v4437
  %v4814 = vunpack.c.h.b16 %v4437
  %v4815 = vunpack.c.l.b16 %v4438
  %v4816 = vunpack.c.h.b16 %v4438
  %v4817 = vunpack.c.l.b16 %v4439
  %v4818 = vunpack.c.h.b16 %v4439
  %v4819 = vunpack.c.l.b16 %v4440
  %v4820 = vunpack.c.h.b16 %v4440
  %v4821 = vunpack.c.l.b16 %v4441
  %v4822 = vunpack.c.h.b16 %v4441
  %v4823 = vunpack.c.l.b16 %v4442
  %v4824 = vunpack.c.h.b16 %v4442
  %v4825 = vunpack.c.l.b16 %v4443
  %v4826 = vunpack.c.h.b16 %v4443
  %v4827 = vunpack.c.l.b16 %v4444
  %v4828 = vunpack.c.h.b16 %v4444
  %v4829 = vpack.c.b16 %v4581, %v4573
  %v4830 = vpack.c.b16 %v4582, %v4574
  %v4831 = vpack.c.b16 %v4583, %v4575
  %v4832 = vpack.c.b16 %v4584, %v4576
  %v4833 = vpack.c.b16 %v4585, %v4577
  %v4834 = vpack.c.b16 %v4586, %v4578
  %v4835 = vpack.c.b16 %v4587, %v4579
  %v4836 = vpack.c.b16 %v4588, %v4580
  %v4837 = vpack.c.b16 %v4597, %v4589
  %v4838 = vpack.c.b16 %v4598, %v4590
  %v4839 = vpack.c.b16 %v4599, %v4591
  %v4840 = vpack.c.b16 %v4600, %v4592
  %v4841 = vpack.c.b16 %v4601, %v4593
  %v4842 = vpack.c.b16 %v4602, %v4594
  %v4843 = vpack.c.b16 %v4603, %v4595
  %v4844 = vpack.c.b16 %v4604, %v4596
  %v4845 = vpack.c.b16 %v4613, %v4605
  %v4846 = vpack.c.b16 %v4614, %v4606
  %v4847 = vpack.c.b16 %v4615, %v4607
  %v4848 = vpack.c.b16 %v4616, %v4608
  %v4849 = vpack.c.b16 %v4617, %v4609
  %v4850 = vpack.c.b16 %v4618, %v4610
  %v4851 = vpack.c.b16 %v4619, %v4611
  %v4852 = vpack.c.b16 %v4620, %v4612
  %v4853 = vpack.c.b16 %v4629, %v4621
  %v4854 = vpack.c.b16 %v4630, %v4622
  %v4855 = vpack.c.b16 %v4631, %v4623
  %v4856 = vpack.c.b16 %v4632, %v4624
  %v4857 = vpack.c.b16 %v4633, %v4625
  %v4858 = vpack.c.b16 %v4634, %v4626
  %v4859 = vpack.c.b16 %v4635, %v4627
  %v4860 = vpack.c.b16 %v4636, %v4628
  %v4861 = vpack.c.b16 %v4645, %v4637
  %v4862 = vpack.c.b16 %v4646, %v4638
  %v4863 = vpack.c.b16 %v4647, %v4639
  %v4864 = vpack.c.b16 %v4648, %v4640
  %v4865 = vpack.c.b16 %v4649, %v4641
  %v4866 = vpack.c.b16 %v4650, %v4642
  %v4867 = vpack.c.b16 %v4651, %v4643
  %v4868 = vpack.c.b16 %v4652, %v4644
  %v4869 = vpack.c.b16 %v4661, %v4653
  %v4870 = vpack.c.b16 %v4662, %v4654
  %v4871 = vpack.c.b16 %v4663, %v4655
  %v4872 = vpack.c.b16 %v4664, %v4656
  %v4873 = vpack.c.b16 %v4665, %v4657
  %v4874 = vpack.c.b16 %v4666, %v4658
  %v4875 = vpack.c.b16 %v4667, %v4659
  %v4876 = vpack.c.b16 %v4668, %v4660
  %v4877 = vpack.c.b16 %v4677, %v4669
  %v4878 = vpack.c.b16 %v4678, %v4670
  %v4879 = vpack.c.b16 %v4679, %v4671
  %v4880 = vpack.c.b16 %v4680, %v4672
  %v4881 = vpack.c.b16 %v4681, %v4673
  %v4882 = vpack.c.b16 %v4682, %v4674
  %v4883 = vpack.c.b16 %v4683, %v4675
  %v4884 = vpack.c.b16 %v4684, %v4676
  %v4885 = vpack.c.b16 %v4693, %v4685
  %v4886 = vpack.c.b16 %v4694, %v4686
  %v4887 = vpack.c.b16 %v4695, %v4687
  %v4888 = vpack.c.b16 %v4696, %v4688
  %v4889 = vpack.c.b16 %v4697, %v4689
  %v4890 = vpack.c.b16 %v4698, %v4690
  %v4891 = vpack.c.b16 %v4699, %v4691
  %v4892 = vpack.c.b16 %v4700, %v4692
  %v4893 = vpack.c.b16 %v4709, %v4701
  %v4894 = vpack.c.b16 %v4710, %v4702
  %v4895 = vpack.c.b16 %v4711, %v4703
  %v4896 = vpack.c.b16 %v4712, %v4704
  %v4897 = vpack.c.b16 %v4713, %v4705
  %v4898 = vpack.c.b16 %v4714, %v4706
  %v4899 = vpack.c.b16 %v4715, %v4707
  %v4900 = vpack.c.b16 %v4716, %v4708
  %v4901 = vpack.c.b16 %v4725, %v4717
  %v4902 = vpack.c.b16 %v4726, %v4718
  %v4903 = vpack.c.b16 %v4727, %v4719
  %v4904 = vpack.c.b16 %v4728, %v4720
  %v4905 = vpack.c.b16 %v4729, %v4721
  %v4906 = vpack.c.b16 %v4730, %v4722
  %v4907 = vpack.c.b16 %v4731, %v4723
  %v4908 = vpack.c.b16 %v4732, %v4724
  %v4909 = vpack.c.b16 %v4741, %v4733
  %v4910 = vpack.c.b16 %v4742, %v4734
  %v4911 = vpack.c.b16 %v4743, %v4735
  %v4912 = vpack.c.b16 %v4744, %v4736
  %v4913 = vpack.c.b16 %v4745, %v4737
  %v4914 = vpack.c.b16 %v4746, %v4738
  %v4915 = vpack.c.b16 %v4747, %v4739
  %v4916 = vpack.c.b16 %v4748, %v4740
  %v4917 = vpack.c.b16 %v4757, %v4749
  %v4918 = vpack.c.b16 %v4758, %v4750
  %v4919 = vpack.c.b16 %v4759, %v4751
  %v4920 = vpack.c.b16 %v4760, %v4752
  %v4921 = vpack.c.b16 %v4761, %v4753
  %v4922 = vpack.c.b16 %v4762, %v4754
  %v4923 = vpack.c.b16 %v4763, %v4755
  %v4924 = vpack.c.b16 %v4764, %v4756
  %v4925 = vpack.c.b16 %v4773, %v4765
  %v4926 = vpack.c.b16 %v4774, %v4766
  %v4927 = vpack.c.b16 %v4775, %v4767
  %v4928 = vpack.c.b16 %v4776, %v4768
  %v4929 = vpack.c.b16 %v4777, %v4769
  %v4930 = vpack.c.b16 %v4778, %v4770
  %v4931 = vpack.c.b16 %v4779, %v4771
  %v4932 = vpack.c.b16 %v4780, %v4772
  %v4933 = vpack.c.b16 %v4789, %v4781
  %v4934 = vpack.c.b16 %v4790, %v4782
  %v4935 = vpack.c.b16 %v4791, %v4783
  %v4936 = vpack.c.b16 %v4792, %v4784
  %v4937 = vpack.c.b16 %v4793, %v4785
  %v4938 = vpack.c.b16 %v4794, %v4786
  %v4939 = vpack.c.b16 %v4795, %v4787
  %v4940 = vpack.c.b16 %v4796, %v4788
  %v4941 = vpack.c.b16 %v4805, %v4797
  %v4942 = vpack.c.b16 %v4806, %v4798
  %v4943 = vpack.c.b16 %v4807, %v4799
  %v4944 = vpack.c.b16 %v4808, %v4800
  %v4945 = vpack.c.b16 %v4809, %v4801
  %v4946 = vpack.c.b16 %v4810, %v4802
  %v4947 = vpack.c.b16 %v4811, %v4803
  %v4948 = vpack.c.b16 %v4812, %v4804
  %v4949 = vpack.c.b16 %v4821, %v4813
  %v4950 = vpack.c.b16 %v4822, %v4814
  %v4951 = vpack.c.b16 %v4823, %v4815
  %v4952 = vpack.c.b16 %v4824, %v4816
  %v4953 = vpack.c.b16 %v4825, %v4817
  %v4954 = vpack.c.b16 %v4826, %v4818
  %v4955 = vpack.c.b16 %v4827, %v4819
  %v4956 = vpack.c.b16 %v4828, %v4820
  %5085 = vmatprep.subr.bf16.mxu0 %v4886
  %5086 = vmatpush1.bf16.msra.mxu0 %v4885
  %5087 = vmatprep.subr.bf16.mxu0 %v4878
  %5088 = vmatpush1.bf16.msra.mxu0 %v4877
  %5089 = vmatprep.subr.bf16.mxu0 %v4870
  %5090 = vmatpush1.bf16.msra.mxu0 %v4869
  %5091 = vmatprep.subr.bf16.mxu0 %v4862
  %5092 = vmatpush1.bf16.msra.mxu0 %v4861
  %5093 = vmatprep.subr.bf16.mxu0 %v4854
  %5094 = vmatpush1.bf16.msra.mxu0 %v4853
  %5095 = vmatprep.subr.bf16.mxu0 %v4846
  %5096 = vmatpush1.bf16.msra.mxu0 %v4845
  %5097 = vmatprep.subr.bf16.mxu0 %v4838
  %5098 = vmatpush1.bf16.msra.mxu0 %v4837
  %5099 = vmatprep.subr.bf16.mxu0 %v4830
  %5100 = vmatpush1.bf16.msra.mxu0 %v4829
  %5101 = vmatprep.subr.bf16.mxu0 %v4950
  %5102 = vmatpush2.bf16.msra.mxu0 %v4949
  %5103 = vmatprep.subr.bf16.mxu0 %v4942
  %5104 = vmatpush2.bf16.msra.mxu0 %v4941
  %5105 = vmatprep.subr.bf16.mxu0 %v4934
  %5106 = vmatpush2.bf16.msra.mxu0 %v4933
  %5107 = vmatprep.subr.bf16.mxu0 %v4926
  %5108 = vmatpush2.bf16.msra.mxu0 %v4925
  %5109 = vmatprep.subr.bf16.mxu0 %v4918
  %5110 = vmatpush2.bf16.msra.mxu0 %v4917
  %5111 = vmatprep.subr.bf16.mxu0 %v4910
  %5112 = vmatpush2.bf16.msra.mxu0 %v4909
  %5113 = vmatprep.subr.bf16.mxu0 %v4902
  %5114 = vmatpush2.bf16.msra.mxu0 %v4901
  %5115 = vmatprep.subr.bf16.mxu0 %v4894
  %5116 = vmatpush2.bf16.msra.mxu0 %v4893
  %5117 = vmatprep.mubr.bf16.mxu0 %v4316
  %5118 = vmatmul.mubr.bf16.gmra.mxu0 %v4315
  %v5119 = vpop.f32.mrf.mxu0
  %v5120 = vadd.f32 0.0, %v5119
  %v5121 = vpop.f32.mrf.mxu0
  %v5122 = vadd.f32 0.0, %v5121
  %v5123 = vpop.f32.mrf.mxu0
  %v5124 = vpop.f32.mrf.mxu0
  %5125 = vdwg.mxu0
  %5126 = vmatprep.subr.bf16.mxu0 %v4888
  %5127 = vmatpush1.bf16.msra.mxu0 %v4887
  %5128 = vmatprep.subr.bf16.mxu0 %v4880
  %5129 = vmatpush1.bf16.msra.mxu0 %v4879
  %5130 = vmatprep.subr.bf16.mxu0 %v4872
  %5131 = vmatpush1.bf16.msra.mxu0 %v4871
  %5132 = vmatprep.subr.bf16.mxu0 %v4864
  %5133 = vmatpush1.bf16.msra.mxu0 %v4863
  %5134 = vmatprep.subr.bf16.mxu0 %v4856
  %5135 = vmatpush1.bf16.msra.mxu0 %v4855
  %5136 = vmatprep.subr.bf16.mxu0 %v4848
  %5137 = vmatpush1.bf16.msra.mxu0 %v4847
  %5138 = vmatprep.subr.bf16.mxu0 %v4840
  %5139 = vmatpush1.bf16.msra.mxu0 %v4839
  %5140 = vmatprep.subr.bf16.mxu0 %v4832
  %5141 = vmatpush1.bf16.msra.mxu0 %v4831
  %5142 = vmatprep.subr.bf16.mxu0 %v4952
  %5143 = vmatpush2.bf16.msra.mxu0 %v4951
  %5144 = vmatprep.subr.bf16.mxu0 %v4944
  %5145 = vmatpush2.bf16.msra.mxu0 %v4943
  %5146 = vmatprep.subr.bf16.mxu0 %v4936
  %5147 = vmatpush2.bf16.msra.mxu0 %v4935
  %5148 = vmatprep.subr.bf16.mxu0 %v4928
  %5149 = vmatpush2.bf16.msra.mxu0 %v4927
  %5150 = vmatprep.subr.bf16.mxu0 %v4920
  %5151 = vmatpush2.bf16.msra.mxu0 %v4919
  %5152 = vmatprep.subr.bf16.mxu0 %v4912
  %5153 = vmatpush2.bf16.msra.mxu0 %v4911
  %5154 = vmatprep.subr.bf16.mxu0 %v4904
  %5155 = vmatpush2.bf16.msra.mxu0 %v4903
  %5156 = vmatprep.subr.bf16.mxu0 %v4896
  %5157 = vmatpush2.bf16.msra.mxu0 %v4895
  %5158 = vmatprep.mubr.bf16.mxu0 %v4316
  %5159 = vmatmul.mubr.bf16.gmra.mxu0 %v4315
  %v5160 = vpop.f32.mrf.mxu0
  %v5161 = vadd.f32 0.0, %v5160
  %v5162 = vpop.f32.mrf.mxu0
  %v5163 = vadd.f32 0.0, %v5162
  %v5164 = vpop.f32.mrf.mxu0
  %v5165 = vpop.f32.mrf.mxu0
  %5166 = vdwg.mxu0
  %5167 = vmatprep.subr.bf16.mxu0 %v4890
  %5168 = vmatpush1.bf16.msra.mxu0 %v4889
  %5169 = vmatprep.subr.bf16.mxu0 %v4882
  %5170 = vmatpush1.bf16.msra.mxu0 %v4881
  %5171 = vmatprep.subr.bf16.mxu0 %v4874
  %5172 = vmatpush1.bf16.msra.mxu0 %v4873
  %5173 = vmatprep.subr.bf16.mxu0 %v4866
  %5174 = vmatpush1.bf16.msra.mxu0 %v4865
  %5175 = vmatprep.subr.bf16.mxu0 %v4858
  %5176 = vmatpush1.bf16.msra.mxu0 %v4857
  %5177 = vmatprep.subr.bf16.mxu0 %v4850
  %5178 = vmatpush1.bf16.msra.mxu0 %v4849
  %5179 = vmatprep.subr.bf16.mxu0 %v4842
  %5180 = vmatpush1.bf16.msra.mxu0 %v4841
  %5181 = vmatprep.subr.bf16.mxu0 %v4834
  %5182 = vmatpush1.bf16.msra.mxu0 %v4833
  %5183 = vmatprep.subr.bf16.mxu0 %v4954
  %5184 = vmatpush2.bf16.msra.mxu0 %v4953
  %5185 = vmatprep.subr.bf16.mxu0 %v4946
  %5186 = vmatpush2.bf16.msra.mxu0 %v4945
  %5187 = vmatprep.subr.bf16.mxu0 %v4938
  %5188 = vmatpush2.bf16.msra.mxu0 %v4937
  %5189 = vmatprep.subr.bf16.mxu0 %v4930
  %5190 = vmatpush2.bf16.msra.mxu0 %v4929
  %5191 = vmatprep.subr.bf16.mxu0 %v4922
  %5192 = vmatpush2.bf16.msra.mxu0 %v4921
  %5193 = vmatprep.subr.bf16.mxu0 %v4914
  %5194 = vmatpush2.bf16.msra.mxu0 %v4913
  %5195 = vmatprep.subr.bf16.mxu0 %v4906
  %5196 = vmatpush2.bf16.msra.mxu0 %v4905
  %5197 = vmatprep.subr.bf16.mxu0 %v4898
  %5198 = vmatpush2.bf16.msra.mxu0 %v4897
  %5199 = vmatprep.mubr.bf16.mxu0 %v4316
  %5200 = vmatmul.mubr.bf16.gmra.mxu0 %v4315
  %v5201 = vpop.f32.mrf.mxu0
  %v5202 = vadd.f32 0.0, %v5201
  %v5203 = vpop.f32.mrf.mxu0
  %v5204 = vadd.f32 0.0, %v5203
  %v5205 = vpop.f32.mrf.mxu0
  %v5206 = vpop.f32.mrf.mxu0
  %5207 = vdwg.mxu0
  %5208 = vmatprep.subr.bf16.mxu0 %v4892
  %5209 = vmatpush1.bf16.msra.mxu0 %v4891
  %5210 = vmatprep.subr.bf16.mxu0 %v4884
  %5211 = vmatpush1.bf16.msra.mxu0 %v4883
  %5212 = vmatprep.subr.bf16.mxu0 %v4876
  %5213 = vmatpush1.bf16.msra.mxu0 %v4875
  %5214 = vmatprep.subr.bf16.mxu0 %v4868
  %5215 = vmatpush1.bf16.msra.mxu0 %v4867
  %5216 = vmatprep.subr.bf16.mxu0 %v4860
  %5217 = vmatpush1.bf16.msra.mxu0 %v4859
  %5218 = vmatprep.subr.bf16.mxu0 %v4852
  %5219 = vmatpush1.bf16.msra.mxu0 %v4851
  %5220 = vmatprep.subr.bf16.mxu0 %v4844
  %5221 = vmatpush1.bf16.msra.mxu0 %v4843
  %5222 = vmatprep.subr.bf16.mxu0 %v4836
  %5223 = vmatpush1.bf16.msra.mxu0 %v4835
  %5224 = vmatprep.subr.bf16.mxu0 %v4956
  %5225 = vmatpush2.bf16.msra.mxu0 %v4955
  %5226 = vmatprep.subr.bf16.mxu0 %v4948
  %5227 = vmatpush2.bf16.msra.mxu0 %v4947
  %5228 = vmatprep.subr.bf16.mxu0 %v4940
  %5229 = vmatpush2.bf16.msra.mxu0 %v4939
  %5230 = vmatprep.subr.bf16.mxu0 %v4932
  %5231 = vmatpush2.bf16.msra.mxu0 %v4931
  %5232 = vmatprep.subr.bf16.mxu0 %v4924
  %5233 = vmatpush2.bf16.msra.mxu0 %v4923
  %5234 = vmatprep.subr.bf16.mxu0 %v4916
  %5235 = vmatpush2.bf16.msra.mxu0 %v4915
  %5236 = vmatprep.subr.bf16.mxu0 %v4908
  %5237 = vmatpush2.bf16.msra.mxu0 %v4907
  %5238 = vmatprep.subr.bf16.mxu0 %v4900
  %5239 = vmatpush2.bf16.msra.mxu0 %v4899
  %5240 = vmatprep.mubr.bf16.mxu0 %v4316
  %5241 = vmatmul.mubr.bf16.gmra.mxu0 %v4315
  %v5242 = vpop.f32.mrf.mxu0
  %v5243 = vadd.f32 0.0, %v5242
  %v5244 = vpop.f32.mrf.mxu0
  %v5245 = vadd.f32 0.0, %v5244
  %v5246 = vpop.f32.mrf.mxu0
  %v5247 = vpop.f32.mrf.mxu0
  %5248 = vdwg.mxu0
  %v5249 = vadd.f32 %v5202, %v371
  %v5250 = vadd.f32 %v5204, %v375
  %v5251 = vadd.f32 %v5243, %v379
  %v5252 = vadd.f32 %v5245, %v383
  %v5253 = vtanh.pop %v5249
  %v5254 = vtanh.pop %v5250
  %v5255 = vtanh.pop %v5251
  %v5256 = vtanh.pop %v5252
  %v5257 = vmul.f32 %v5253, 0.5
  %v5258 = vadd.f32 %v5257, 0.5
  %v5259 = vmul.f32 %v5254, 0.5
  %v5260 = vadd.f32 %v5259, 0.5
  %v5261 = vmul.f32 %v5256, 0.5
  %v5262 = vadd.f32 %v5261, 0.5
  %v5263 = vmul.f32 %v5260, %v4288
  %v5264 = vmul.f32 %v5258, %v5255
  %v5265 = vadd.f32 %v5263, %v5264
  %v5266 = vtanh.pop %v5265
  %v5267 = vmul.f32 %v5262, %v5266
  %5268 = vst [vmem:[#allocation3 + $0x20] sm:$0xff] %v5267
  %v5269 = vld [vmem:[#allocation2 + $0xa0] sm:$0xff]
  %v5270 = vld [vmem:[#allocation2 + $0xa8] sm:$0xff]
  %v5271 = vld [vmem:[#allocation2 + $0xb0] sm:$0xff]
  %v5272 = vld [vmem:[#allocation2 + $0xb8] sm:$0xff]
  %v5273 = vadd.f32 %v5120, %v5269
  %v5274 = vadd.f32 %v5122, %v5270
  %v5275 = vadd.f32 %v5161, %v5271
  %v5276 = vadd.f32 %v5163, %v5272
  %v5277 = vtanh.pop %v5273
  %v5278 = vtanh.pop %v5274
  %v5279 = vtanh.pop %v5275
  %v5280 = vtanh.pop %v5276
  %v5281 = vmul.f32 %v5277, 0.5
  %v5282 = vadd.f32 %v5281, 0.5
  %v5283 = vmul.f32 %v5278, 0.5
  %v5284 = vadd.f32 %v5283, 0.5
  %v5285 = vmul.f32 %v5280, 0.5
  %v5286 = vadd.f32 %v5285, 0.5
  %v5287 = vmul.f32 %v5284, %v4312
  %v5288 = vmul.f32 %v5282, %v5279
  %v5289 = vadd.f32 %v5287, %v5288
  %v5290 = vtanh.pop %v5289
  %v5291 = vmul.f32 %v5286, %v5290
  %v5292 = vpack.c.bf16 %v5291, %v5291
  %v5293 = vpack.c.bf16 %v5267, %v5267
  %v5294 = vld [vmem:[%s3] sm:$0xff]
  %v5295 = vld [vmem:[%s3 + $0x8] sm:$0xff]
  %v5296 = vld [vmem:[%s3 + $0x10] sm:$0xff]
  %v5297 = vld [vmem:[%s3 + $0x18] sm:$0xff]
  %v5298 = vld [vmem:[%s3 + $0x20] sm:$0xff]
  %v5299 = vld [vmem:[%s3 + $0x28] sm:$0xff]
  %v5300 = vld [vmem:[%s3 + $0x30] sm:$0xff]
  %v5301 = vld [vmem:[%s3 + $0x38] sm:$0xff]
  %v5302 = vld [vmem:[%s3 + $0x40] sm:$0xff]
  %v5303 = vld [vmem:[%s3 + $0x48] sm:$0xff]
  %v5304 = vld [vmem:[%s3 + $0x50] sm:$0xff]
  %v5305 = vld [vmem:[%s3 + $0x58] sm:$0xff]
  %v5306 = vld [vmem:[%s3 + $0x60] sm:$0xff]
  %v5307 = vld [vmem:[%s3 + $0x68] sm:$0xff]
  %v5308 = vld [vmem:[%s3 + $0x70] sm:$0xff]
  %v5309 = vld [vmem:[%s3 + $0x78] sm:$0xff]
  %v5310 = vld [vmem:[%s3 + $0x80] sm:$0xff]
  %v5311 = vld [vmem:[%s3 + $0x88] sm:$0xff]
  %v5312 = vld [vmem:[%s3 + $0x90] sm:$0xff]
  %v5313 = vld [vmem:[%s3 + $0x98] sm:$0xff]
  %v5314 = vld [vmem:[%s3 + $0xa0] sm:$0xff]
  %v5315 = vld [vmem:[%s3 + $0xa8] sm:$0xff]
  %v5316 = vld [vmem:[%s3 + $0xb0] sm:$0xff]
  %v5317 = vld [vmem:[%s3 + $0xb8] sm:$0xff]
  %v5318 = vld [vmem:[%s3 + $0xc0] sm:$0xff]
  %v5319 = vld [vmem:[%s3 + $0xc8] sm:$0xff]
  %v5320 = vld [vmem:[%s3 + $0xd0] sm:$0xff]
  %v5321 = vld [vmem:[%s3 + $0xd8] sm:$0xff]
  %v5322 = vld [vmem:[%s3 + $0xe0] sm:$0xff]
  %v5323 = vld [vmem:[%s3 + $0xe8] sm:$0xff]
  %v5324 = vld [vmem:[%s3 + $0xf0] sm:$0xff]
  %v5325 = vld [vmem:[%s3 + $0xf8] sm:$0xff]
  %v5326 = vld [vmem:[%s3 + $0x100] sm:$0xff]
  %v5327 = vld [vmem:[%s3 + $0x108] sm:$0xff]
  %v5328 = vld [vmem:[%s3 + $0x110] sm:$0xff]
  %v5329 = vld [vmem:[%s3 + $0x118] sm:$0xff]
  %v5330 = vld [vmem:[%s3 + $0x120] sm:$0xff]
  %v5331 = vld [vmem:[%s3 + $0x128] sm:$0xff]
  %v5332 = vld [vmem:[%s3 + $0x130] sm:$0xff]
  %v5333 = vld [vmem:[%s3 + $0x138] sm:$0xff]
  %v5334 = vld [vmem:[%s3 + $0x140] sm:$0xff]
  %v5335 = vld [vmem:[%s3 + $0x148] sm:$0xff]
  %v5336 = vld [vmem:[%s3 + $0x150] sm:$0xff]
  %v5337 = vld [vmem:[%s3 + $0x158] sm:$0xff]
  %v5338 = vld [vmem:[%s3 + $0x160] sm:$0xff]
  %v5339 = vld [vmem:[%s3 + $0x168] sm:$0xff]
  %v5340 = vld [vmem:[%s3 + $0x170] sm:$0xff]
  %v5341 = vld [vmem:[%s3 + $0x178] sm:$0xff]
  %v5342 = vld [vmem:[%s3 + $0x180] sm:$0xff]
  %v5343 = vld [vmem:[%s3 + $0x188] sm:$0xff]
  %v5344 = vld [vmem:[%s3 + $0x190] sm:$0xff]
  %v5345 = vld [vmem:[%s3 + $0x198] sm:$0xff]
  %v5346 = vld [vmem:[%s3 + $0x1a0] sm:$0xff]
  %v5347 = vld [vmem:[%s3 + $0x1a8] sm:$0xff]
  %v5348 = vld [vmem:[%s3 + $0x1b0] sm:$0xff]
  %v5349 = vld [vmem:[%s3 + $0x1b8] sm:$0xff]
  %v5350 = vld [vmem:[%s3 + $0x1c0] sm:$0xff]
  %v5351 = vld [vmem:[%s3 + $0x1c8] sm:$0xff]
  %v5352 = vld [vmem:[%s3 + $0x1d0] sm:$0xff]
  %v5353 = vld [vmem:[%s3 + $0x1d8] sm:$0xff]
  %v5354 = vld [vmem:[%s3 + $0x1e0] sm:$0xff]
  %v5355 = vld [vmem:[%s3 + $0x1e8] sm:$0xff]
  %v5356 = vld [vmem:[%s3 + $0x1f0] sm:$0xff]
  %v5357 = vld [vmem:[%s3 + $0x1f8] sm:$0xff]
  %v5358 = vld [vmem:[%s3 + $0x200] sm:$0xff]
  %v5359 = vld [vmem:[%s3 + $0x208] sm:$0xff]
  %v5360 = vld [vmem:[%s3 + $0x210] sm:$0xff]
  %v5361 = vld [vmem:[%s3 + $0x218] sm:$0xff]
  %v5362 = vld [vmem:[%s3 + $0x220] sm:$0xff]
  %v5363 = vld [vmem:[%s3 + $0x228] sm:$0xff]
  %v5364 = vld [vmem:[%s3 + $0x230] sm:$0xff]
  %v5365 = vld [vmem:[%s3 + $0x238] sm:$0xff]
  %v5366 = vld [vmem:[%s3 + $0x240] sm:$0xff]
  %v5367 = vld [vmem:[%s3 + $0x248] sm:$0xff]
  %v5368 = vld [vmem:[%s3 + $0x250] sm:$0xff]
  %v5369 = vld [vmem:[%s3 + $0x258] sm:$0xff]
  %v5370 = vld [vmem:[%s3 + $0x260] sm:$0xff]
  %v5371 = vld [vmem:[%s3 + $0x268] sm:$0xff]
  %v5372 = vld [vmem:[%s3 + $0x270] sm:$0xff]
  %v5373 = vld [vmem:[%s3 + $0x278] sm:$0xff]
  %v5374 = vld [vmem:[%s3 + $0x280] sm:$0xff]
  %v5375 = vld [vmem:[%s3 + $0x288] sm:$0xff]
  %v5376 = vld [vmem:[%s3 + $0x290] sm:$0xff]
  %v5377 = vld [vmem:[%s3 + $0x298] sm:$0xff]
  %v5378 = vld [vmem:[%s3 + $0x2a0] sm:$0xff]
  %v5379 = vld [vmem:[%s3 + $0x2a8] sm:$0xff]
  %v5380 = vld [vmem:[%s3 + $0x2b0] sm:$0xff]
  %v5381 = vld [vmem:[%s3 + $0x2b8] sm:$0xff]
  %v5382 = vld [vmem:[%s3 + $0x2c0] sm:$0xff]
  %v5383 = vld [vmem:[%s3 + $0x2c8] sm:$0xff]
  %v5384 = vld [vmem:[%s3 + $0x2d0] sm:$0xff]
  %v5385 = vld [vmem:[%s3 + $0x2d8] sm:$0xff]
  %v5386 = vld [vmem:[%s3 + $0x2e0] sm:$0xff]
  %v5387 = vld [vmem:[%s3 + $0x2e8] sm:$0xff]
  %v5388 = vld [vmem:[%s3 + $0x2f0] sm:$0xff]
  %v5389 = vld [vmem:[%s3 + $0x2f8] sm:$0xff]
  %v5390 = vld [vmem:[%s3 + $0x300] sm:$0xff]
  %v5391 = vld [vmem:[%s3 + $0x308] sm:$0xff]
  %v5392 = vld [vmem:[%s3 + $0x310] sm:$0xff]
  %v5393 = vld [vmem:[%s3 + $0x318] sm:$0xff]
  %v5394 = vld [vmem:[%s3 + $0x320] sm:$0xff]
  %v5395 = vld [vmem:[%s3 + $0x328] sm:$0xff]
  %v5396 = vld [vmem:[%s3 + $0x330] sm:$0xff]
  %v5397 = vld [vmem:[%s3 + $0x338] sm:$0xff]
  %v5398 = vld [vmem:[%s3 + $0x340] sm:$0xff]
  %v5399 = vld [vmem:[%s3 + $0x348] sm:$0xff]
  %v5400 = vld [vmem:[%s3 + $0x350] sm:$0xff]
  %v5401 = vld [vmem:[%s3 + $0x358] sm:$0xff]
  %v5402 = vld [vmem:[%s3 + $0x360] sm:$0xff]
  %v5403 = vld [vmem:[%s3 + $0x368] sm:$0xff]
  %v5404 = vld [vmem:[%s3 + $0x370] sm:$0xff]
  %v5405 = vld [vmem:[%s3 + $0x378] sm:$0xff]
  %v5406 = vld [vmem:[%s3 + $0x380] sm:$0xff]
  %v5407 = vld [vmem:[%s3 + $0x388] sm:$0xff]
  %v5408 = vld [vmem:[%s3 + $0x390] sm:$0xff]
  %v5409 = vld [vmem:[%s3 + $0x398] sm:$0xff]
  %v5410 = vld [vmem:[%s3 + $0x3a0] sm:$0xff]
  %v5411 = vld [vmem:[%s3 + $0x3a8] sm:$0xff]
  %v5412 = vld [vmem:[%s3 + $0x3b0] sm:$0xff]
  %v5413 = vld [vmem:[%s3 + $0x3b8] sm:$0xff]
  %v5414 = vld [vmem:[%s3 + $0x3c0] sm:$0xff]
  %v5415 = vld [vmem:[%s3 + $0x3c8] sm:$0xff]
  %v5416 = vld [vmem:[%s3 + $0x3d0] sm:$0xff]
  %v5417 = vld [vmem:[%s3 + $0x3d8] sm:$0xff]
  %v5418 = vld [vmem:[%s3 + $0x3e0] sm:$0xff]
  %v5419 = vld [vmem:[%s3 + $0x3e8] sm:$0xff]
  %v5420 = vld [vmem:[%s3 + $0x3f0] sm:$0xff]
  %v5421 = vld [vmem:[%s3 + $0x3f8] sm:$0xff]
  %v5550 = vunpack.c.l.b16 %v5294
  %v5551 = vunpack.c.h.b16 %v5294
  %v5552 = vunpack.c.l.b16 %v5295
  %v5553 = vunpack.c.h.b16 %v5295
  %v5554 = vunpack.c.l.b16 %v5296
  %v5555 = vunpack.c.h.b16 %v5296
  %v5556 = vunpack.c.l.b16 %v5297
  %v5557 = vunpack.c.h.b16 %v5297
  %v5558 = vunpack.c.l.b16 %v5298
  %v5559 = vunpack.c.h.b16 %v5298
  %v5560 = vunpack.c.l.b16 %v5299
  %v5561 = vunpack.c.h.b16 %v5299
  %v5562 = vunpack.c.l.b16 %v5300
  %v5563 = vunpack.c.h.b16 %v5300
  %v5564 = vunpack.c.l.b16 %v5301
  %v5565 = vunpack.c.h.b16 %v5301
  %v5566 = vunpack.c.l.b16 %v5302
  %v5567 = vunpack.c.h.b16 %v5302
  %v5568 = vunpack.c.l.b16 %v5303
  %v5569 = vunpack.c.h.b16 %v5303
  %v5570 = vunpack.c.l.b16 %v5304
  %v5571 = vunpack.c.h.b16 %v5304
  %v5572 = vunpack.c.l.b16 %v5305
  %v5573 = vunpack.c.h.b16 %v5305
  %v5574 = vunpack.c.l.b16 %v5306
  %v5575 = vunpack.c.h.b16 %v5306
  %v5576 = vunpack.c.l.b16 %v5307
  %v5577 = vunpack.c.h.b16 %v5307
  %v5578 = vunpack.c.l.b16 %v5308
  %v5579 = vunpack.c.h.b16 %v5308
  %v5580 = vunpack.c.l.b16 %v5309
  %v5581 = vunpack.c.h.b16 %v5309
  %v5582 = vunpack.c.l.b16 %v5310
  %v5583 = vunpack.c.h.b16 %v5310
  %v5584 = vunpack.c.l.b16 %v5311
  %v5585 = vunpack.c.h.b16 %v5311
  %v5586 = vunpack.c.l.b16 %v5312
  %v5587 = vunpack.c.h.b16 %v5312
  %v5588 = vunpack.c.l.b16 %v5313
  %v5589 = vunpack.c.h.b16 %v5313
  %v5590 = vunpack.c.l.b16 %v5314
  %v5591 = vunpack.c.h.b16 %v5314
  %v5592 = vunpack.c.l.b16 %v5315
  %v5593 = vunpack.c.h.b16 %v5315
  %v5594 = vunpack.c.l.b16 %v5316
  %v5595 = vunpack.c.h.b16 %v5316
  %v5596 = vunpack.c.l.b16 %v5317
  %v5597 = vunpack.c.h.b16 %v5317
  %v5598 = vunpack.c.l.b16 %v5318
  %v5599 = vunpack.c.h.b16 %v5318
  %v5600 = vunpack.c.l.b16 %v5319
  %v5601 = vunpack.c.h.b16 %v5319
  %v5602 = vunpack.c.l.b16 %v5320
  %v5603 = vunpack.c.h.b16 %v5320
  %v5604 = vunpack.c.l.b16 %v5321
  %v5605 = vunpack.c.h.b16 %v5321
  %v5606 = vunpack.c.l.b16 %v5322
  %v5607 = vunpack.c.h.b16 %v5322
  %v5608 = vunpack.c.l.b16 %v5323
  %v5609 = vunpack.c.h.b16 %v5323
  %v5610 = vunpack.c.l.b16 %v5324
  %v5611 = vunpack.c.h.b16 %v5324
  %v5612 = vunpack.c.l.b16 %v5325
  %v5613 = vunpack.c.h.b16 %v5325
  %v5614 = vunpack.c.l.b16 %v5326
  %v5615 = vunpack.c.h.b16 %v5326
  %v5616 = vunpack.c.l.b16 %v5327
  %v5617 = vunpack.c.h.b16 %v5327
  %v5618 = vunpack.c.l.b16 %v5328
  %v5619 = vunpack.c.h.b16 %v5328
  %v5620 = vunpack.c.l.b16 %v5329
  %v5621 = vunpack.c.h.b16 %v5329
  %v5622 = vunpack.c.l.b16 %v5330
  %v5623 = vunpack.c.h.b16 %v5330
  %v5624 = vunpack.c.l.b16 %v5331
  %v5625 = vunpack.c.h.b16 %v5331
  %v5626 = vunpack.c.l.b16 %v5332
  %v5627 = vunpack.c.h.b16 %v5332
  %v5628 = vunpack.c.l.b16 %v5333
  %v5629 = vunpack.c.h.b16 %v5333
  %v5630 = vunpack.c.l.b16 %v5334
  %v5631 = vunpack.c.h.b16 %v5334
  %v5632 = vunpack.c.l.b16 %v5335
  %v5633 = vunpack.c.h.b16 %v5335
  %v5634 = vunpack.c.l.b16 %v5336
  %v5635 = vunpack.c.h.b16 %v5336
  %v5636 = vunpack.c.l.b16 %v5337
  %v5637 = vunpack.c.h.b16 %v5337
  %v5638 = vunpack.c.l.b16 %v5338
  %v5639 = vunpack.c.h.b16 %v5338
  %v5640 = vunpack.c.l.b16 %v5339
  %v5641 = vunpack.c.h.b16 %v5339
  %v5642 = vunpack.c.l.b16 %v5340
  %v5643 = vunpack.c.h.b16 %v5340
  %v5644 = vunpack.c.l.b16 %v5341
  %v5645 = vunpack.c.h.b16 %v5341
  %v5646 = vunpack.c.l.b16 %v5342
  %v5647 = vunpack.c.h.b16 %v5342
  %v5648 = vunpack.c.l.b16 %v5343
  %v5649 = vunpack.c.h.b16 %v5343
  %v5650 = vunpack.c.l.b16 %v5344
  %v5651 = vunpack.c.h.b16 %v5344
  %v5652 = vunpack.c.l.b16 %v5345
  %v5653 = vunpack.c.h.b16 %v5345
  %v5654 = vunpack.c.l.b16 %v5346
  %v5655 = vunpack.c.h.b16 %v5346
  %v5656 = vunpack.c.l.b16 %v5347
  %v5657 = vunpack.c.h.b16 %v5347
  %v5658 = vunpack.c.l.b16 %v5348
  %v5659 = vunpack.c.h.b16 %v5348
  %v5660 = vunpack.c.l.b16 %v5349
  %v5661 = vunpack.c.h.b16 %v5349
  %v5662 = vunpack.c.l.b16 %v5350
  %v5663 = vunpack.c.h.b16 %v5350
  %v5664 = vunpack.c.l.b16 %v5351
  %v5665 = vunpack.c.h.b16 %v5351
  %v5666 = vunpack.c.l.b16 %v5352
  %v5667 = vunpack.c.h.b16 %v5352
  %v5668 = vunpack.c.l.b16 %v5353
  %v5669 = vunpack.c.h.b16 %v5353
  %v5670 = vunpack.c.l.b16 %v5354
  %v5671 = vunpack.c.h.b16 %v5354
  %v5672 = vunpack.c.l.b16 %v5355
  %v5673 = vunpack.c.h.b16 %v5355
  %v5674 = vunpack.c.l.b16 %v5356
  %v5675 = vunpack.c.h.b16 %v5356
  %v5676 = vunpack.c.l.b16 %v5357
  %v5677 = vunpack.c.h.b16 %v5357
  %v5678 = vunpack.c.l.b16 %v5358
  %v5679 = vunpack.c.h.b16 %v5358
  %v5680 = vunpack.c.l.b16 %v5359
  %v5681 = vunpack.c.h.b16 %v5359
  %v5682 = vunpack.c.l.b16 %v5360
  %v5683 = vunpack.c.h.b16 %v5360
  %v5684 = vunpack.c.l.b16 %v5361
  %v5685 = vunpack.c.h.b16 %v5361
  %v5686 = vunpack.c.l.b16 %v5362
  %v5687 = vunpack.c.h.b16 %v5362
  %v5688 = vunpack.c.l.b16 %v5363
  %v5689 = vunpack.c.h.b16 %v5363
  %v5690 = vunpack.c.l.b16 %v5364
  %v5691 = vunpack.c.h.b16 %v5364
  %v5692 = vunpack.c.l.b16 %v5365
  %v5693 = vunpack.c.h.b16 %v5365
  %v5694 = vunpack.c.l.b16 %v5366
  %v5695 = vunpack.c.h.b16 %v5366
  %v5696 = vunpack.c.l.b16 %v5367
  %v5697 = vunpack.c.h.b16 %v5367
  %v5698 = vunpack.c.l.b16 %v5368
  %v5699 = vunpack.c.h.b16 %v5368
  %v5700 = vunpack.c.l.b16 %v5369
  %v5701 = vunpack.c.h.b16 %v5369
  %v5702 = vunpack.c.l.b16 %v5370
  %v5703 = vunpack.c.h.b16 %v5370
  %v5704 = vunpack.c.l.b16 %v5371
  %v5705 = vunpack.c.h.b16 %v5371
  %v5706 = vunpack.c.l.b16 %v5372
  %v5707 = vunpack.c.h.b16 %v5372
  %v5708 = vunpack.c.l.b16 %v5373
  %v5709 = vunpack.c.h.b16 %v5373
  %v5710 = vunpack.c.l.b16 %v5374
  %v5711 = vunpack.c.h.b16 %v5374
  %v5712 = vunpack.c.l.b16 %v5375
  %v5713 = vunpack.c.h.b16 %v5375
  %v5714 = vunpack.c.l.b16 %v5376
  %v5715 = vunpack.c.h.b16 %v5376
  %v5716 = vunpack.c.l.b16 %v5377
  %v5717 = vunpack.c.h.b16 %v5377
  %v5718 = vunpack.c.l.b16 %v5378
  %v5719 = vunpack.c.h.b16 %v5378
  %v5720 = vunpack.c.l.b16 %v5379
  %v5721 = vunpack.c.h.b16 %v5379
  %v5722 = vunpack.c.l.b16 %v5380
  %v5723 = vunpack.c.h.b16 %v5380
  %v5724 = vunpack.c.l.b16 %v5381
  %v5725 = vunpack.c.h.b16 %v5381
  %v5726 = vunpack.c.l.b16 %v5382
  %v5727 = vunpack.c.h.b16 %v5382
  %v5728 = vunpack.c.l.b16 %v5383
  %v5729 = vunpack.c.h.b16 %v5383
  %v5730 = vunpack.c.l.b16 %v5384
  %v5731 = vunpack.c.h.b16 %v5384
  %v5732 = vunpack.c.l.b16 %v5385
  %v5733 = vunpack.c.h.b16 %v5385
  %v5734 = vunpack.c.l.b16 %v5386
  %v5735 = vunpack.c.h.b16 %v5386
  %v5736 = vunpack.c.l.b16 %v5387
  %v5737 = vunpack.c.h.b16 %v5387
  %v5738 = vunpack.c.l.b16 %v5388
  %v5739 = vunpack.c.h.b16 %v5388
  %v5740 = vunpack.c.l.b16 %v5389
  %v5741 = vunpack.c.h.b16 %v5389
  %v5742 = vunpack.c.l.b16 %v5390
  %v5743 = vunpack.c.h.b16 %v5390
  %v5744 = vunpack.c.l.b16 %v5391
  %v5745 = vunpack.c.h.b16 %v5391
  %v5746 = vunpack.c.l.b16 %v5392
  %v5747 = vunpack.c.h.b16 %v5392
  %v5748 = vunpack.c.l.b16 %v5393
  %v5749 = vunpack.c.h.b16 %v5393
  %v5750 = vunpack.c.l.b16 %v5394
  %v5751 = vunpack.c.h.b16 %v5394
  %v5752 = vunpack.c.l.b16 %v5395
  %v5753 = vunpack.c.h.b16 %v5395
  %v5754 = vunpack.c.l.b16 %v5396
  %v5755 = vunpack.c.h.b16 %v5396
  %v5756 = vunpack.c.l.b16 %v5397
  %v5757 = vunpack.c.h.b16 %v5397
  %v5758 = vunpack.c.l.b16 %v5398
  %v5759 = vunpack.c.h.b16 %v5398
  %v5760 = vunpack.c.l.b16 %v5399
  %v5761 = vunpack.c.h.b16 %v5399
  %v5762 = vunpack.c.l.b16 %v5400
  %v5763 = vunpack.c.h.b16 %v5400
  %v5764 = vunpack.c.l.b16 %v5401
  %v5765 = vunpack.c.h.b16 %v5401
  %v5766 = vunpack.c.l.b16 %v5402
  %v5767 = vunpack.c.h.b16 %v5402
  %v5768 = vunpack.c.l.b16 %v5403
  %v5769 = vunpack.c.h.b16 %v5403
  %v5770 = vunpack.c.l.b16 %v5404
  %v5771 = vunpack.c.h.b16 %v5404
  %v5772 = vunpack.c.l.b16 %v5405
  %v5773 = vunpack.c.h.b16 %v5405
  %v5774 = vunpack.c.l.b16 %v5406
  %v5775 = vunpack.c.h.b16 %v5406
  %v5776 = vunpack.c.l.b16 %v5407
  %v5777 = vunpack.c.h.b16 %v5407
  %v5778 = vunpack.c.l.b16 %v5408
  %v5779 = vunpack.c.h.b16 %v5408
  %v5780 = vunpack.c.l.b16 %v5409
  %v5781 = vunpack.c.h.b16 %v5409
  %v5782 = vunpack.c.l.b16 %v5410
  %v5783 = vunpack.c.h.b16 %v5410
  %v5784 = vunpack.c.l.b16 %v5411
  %v5785 = vunpack.c.h.b16 %v5411
  %v5786 = vunpack.c.l.b16 %v5412
  %v5787 = vunpack.c.h.b16 %v5412
  %v5788 = vunpack.c.l.b16 %v5413
  %v5789 = vunpack.c.h.b16 %v5413
  %v5790 = vunpack.c.l.b16 %v5414
  %v5791 = vunpack.c.h.b16 %v5414
  %v5792 = vunpack.c.l.b16 %v5415
  %v5793 = vunpack.c.h.b16 %v5415
  %v5794 = vunpack.c.l.b16 %v5416
  %v5795 = vunpack.c.h.b16 %v5416
  %v5796 = vunpack.c.l.b16 %v5417
  %v5797 = vunpack.c.h.b16 %v5417
  %v5798 = vunpack.c.l.b16 %v5418
  %v5799 = vunpack.c.h.b16 %v5418
  %v5800 = vunpack.c.l.b16 %v5419
  %v5801 = vunpack.c.h.b16 %v5419
  %v5802 = vunpack.c.l.b16 %v5420
  %v5803 = vunpack.c.h.b16 %v5420
  %v5804 = vunpack.c.l.b16 %v5421
  %v5805 = vunpack.c.h.b16 %v5421
  %v5806 = vpack.c.b16 %v5558, %v5550
  %v5807 = vpack.c.b16 %v5559, %v5551
  %v5808 = vpack.c.b16 %v5560, %v5552
  %v5809 = vpack.c.b16 %v5561, %v5553
  %v5810 = vpack.c.b16 %v5562, %v5554
  %v5811 = vpack.c.b16 %v5563, %v5555
  %v5812 = vpack.c.b16 %v5564, %v5556
  %v5813 = vpack.c.b16 %v5565, %v5557
  %v5814 = vpack.c.b16 %v5574, %v5566
  %v5815 = vpack.c.b16 %v5575, %v5567
  %v5816 = vpack.c.b16 %v5576, %v5568
  %v5817 = vpack.c.b16 %v5577, %v5569
  %v5818 = vpack.c.b16 %v5578, %v5570
  %v5819 = vpack.c.b16 %v5579, %v5571
  %v5820 = vpack.c.b16 %v5580, %v5572
  %v5821 = vpack.c.b16 %v5581, %v5573
  %v5822 = vpack.c.b16 %v5590, %v5582
  %v5823 = vpack.c.b16 %v5591, %v5583
  %v5824 = vpack.c.b16 %v5592, %v5584
  %v5825 = vpack.c.b16 %v5593, %v5585
  %v5826 = vpack.c.b16 %v5594, %v5586
  %v5827 = vpack.c.b16 %v5595, %v5587
  %v5828 = vpack.c.b16 %v5596, %v5588
  %v5829 = vpack.c.b16 %v5597, %v5589
  %v5830 = vpack.c.b16 %v5606, %v5598
  %v5831 = vpack.c.b16 %v5607, %v5599
  %v5832 = vpack.c.b16 %v5608, %v5600
  %v5833 = vpack.c.b16 %v5609, %v5601
  %v5834 = vpack.c.b16 %v5610, %v5602
  %v5835 = vpack.c.b16 %v5611, %v5603
  %v5836 = vpack.c.b16 %v5612, %v5604
  %v5837 = vpack.c.b16 %v5613, %v5605
  %v5838 = vpack.c.b16 %v5622, %v5614
  %v5839 = vpack.c.b16 %v5623, %v5615
  %v5840 = vpack.c.b16 %v5624, %v5616
  %v5841 = vpack.c.b16 %v5625, %v5617
  %v5842 = vpack.c.b16 %v5626, %v5618
  %v5843 = vpack.c.b16 %v5627, %v5619
  %v5844 = vpack.c.b16 %v5628, %v5620
  %v5845 = vpack.c.b16 %v5629, %v5621
  %v5846 = vpack.c.b16 %v5638, %v5630
  %v5847 = vpack.c.b16 %v5639, %v5631
  %v5848 = vpack.c.b16 %v5640, %v5632
  %v5849 = vpack.c.b16 %v5641, %v5633
  %v5850 = vpack.c.b16 %v5642, %v5634
  %v5851 = vpack.c.b16 %v5643, %v5635
  %v5852 = vpack.c.b16 %v5644, %v5636
  %v5853 = vpack.c.b16 %v5645, %v5637
  %v5854 = vpack.c.b16 %v5654, %v5646
  %v5855 = vpack.c.b16 %v5655, %v5647
  %v5856 = vpack.c.b16 %v5656, %v5648
  %v5857 = vpack.c.b16 %v5657, %v5649
  %v5858 = vpack.c.b16 %v5658, %v5650
  %v5859 = vpack.c.b16 %v5659, %v5651
  %v5860 = vpack.c.b16 %v5660, %v5652
  %v5861 = vpack.c.b16 %v5661, %v5653
  %v5862 = vpack.c.b16 %v5670, %v5662
  %v5863 = vpack.c.b16 %v5671, %v5663
  %v5864 = vpack.c.b16 %v5672, %v5664
  %v5865 = vpack.c.b16 %v5673, %v5665
  %v5866 = vpack.c.b16 %v5674, %v5666
  %v5867 = vpack.c.b16 %v5675, %v5667
  %v5868 = vpack.c.b16 %v5676, %v5668
  %v5869 = vpack.c.b16 %v5677, %v5669
  %v5870 = vpack.c.b16 %v5686, %v5678
  %v5871 = vpack.c.b16 %v5687, %v5679
  %v5872 = vpack.c.b16 %v5688, %v5680
  %v5873 = vpack.c.b16 %v5689, %v5681
  %v5874 = vpack.c.b16 %v5690, %v5682
  %v5875 = vpack.c.b16 %v5691, %v5683
  %v5876 = vpack.c.b16 %v5692, %v5684
  %v5877 = vpack.c.b16 %v5693, %v5685
  %v5878 = vpack.c.b16 %v5702, %v5694
  %v5879 = vpack.c.b16 %v5703, %v5695
  %v5880 = vpack.c.b16 %v5704, %v5696
  %v5881 = vpack.c.b16 %v5705, %v5697
  %v5882 = vpack.c.b16 %v5706, %v5698
  %v5883 = vpack.c.b16 %v5707, %v5699
  %v5884 = vpack.c.b16 %v5708, %v5700
  %v5885 = vpack.c.b16 %v5709, %v5701
  %v5886 = vpack.c.b16 %v5718, %v5710
  %v5887 = vpack.c.b16 %v5719, %v5711
  %v5888 = vpack.c.b16 %v5720, %v5712
  %v5889 = vpack.c.b16 %v5721, %v5713
  %v5890 = vpack.c.b16 %v5722, %v5714
  %v5891 = vpack.c.b16 %v5723, %v5715
  %v5892 = vpack.c.b16 %v5724, %v5716
  %v5893 = vpack.c.b16 %v5725, %v5717
  %v5894 = vpack.c.b16 %v5734, %v5726
  %v5895 = vpack.c.b16 %v5735, %v5727
  %v5896 = vpack.c.b16 %v5736, %v5728
  %v5897 = vpack.c.b16 %v5737, %v5729
  %v5898 = vpack.c.b16 %v5738, %v5730
  %v5899 = vpack.c.b16 %v5739, %v5731
  %v5900 = vpack.c.b16 %v5740, %v5732
  %v5901 = vpack.c.b16 %v5741, %v5733
  %v5902 = vpack.c.b16 %v5750, %v5742
  %v5903 = vpack.c.b16 %v5751, %v5743
  %v5904 = vpack.c.b16 %v5752, %v5744
  %v5905 = vpack.c.b16 %v5753, %v5745
  %v5906 = vpack.c.b16 %v5754, %v5746
  %v5907 = vpack.c.b16 %v5755, %v5747
  %v5908 = vpack.c.b16 %v5756, %v5748
  %v5909 = vpack.c.b16 %v5757, %v5749
  %v5910 = vpack.c.b16 %v5766, %v5758
  %v5911 = vpack.c.b16 %v5767, %v5759
  %v5912 = vpack.c.b16 %v5768, %v5760
  %v5913 = vpack.c.b16 %v5769, %v5761
  %v5914 = vpack.c.b16 %v5770, %v5762
  %v5915 = vpack.c.b16 %v5771, %v5763
  %v5916 = vpack.c.b16 %v5772, %v5764
  %v5917 = vpack.c.b16 %v5773, %v5765
  %v5918 = vpack.c.b16 %v5782, %v5774
  %v5919 = vpack.c.b16 %v5783, %v5775
  %v5920 = vpack.c.b16 %v5784, %v5776
  %v5921 = vpack.c.b16 %v5785, %v5777
  %v5922 = vpack.c.b16 %v5786, %v5778
  %v5923 = vpack.c.b16 %v5787, %v5779
  %v5924 = vpack.c.b16 %v5788, %v5780
  %v5925 = vpack.c.b16 %v5789, %v5781
  %v5926 = vpack.c.b16 %v5798, %v5790
  %v5927 = vpack.c.b16 %v5799, %v5791
  %v5928 = vpack.c.b16 %v5800, %v5792
  %v5929 = vpack.c.b16 %v5801, %v5793
  %v5930 = vpack.c.b16 %v5802, %v5794
  %v5931 = vpack.c.b16 %v5803, %v5795
  %v5932 = vpack.c.b16 %v5804, %v5796
  %v5933 = vpack.c.b16 %v5805, %v5797
  %6062 = vmatprep.subr.bf16.mxu0 %v5863
  %6063 = vmatpush1.bf16.msra.mxu0 %v5862
  %6064 = vmatprep.subr.bf16.mxu0 %v5855
  %6065 = vmatpush1.bf16.msra.mxu0 %v5854
  %6066 = vmatprep.subr.bf16.mxu0 %v5847
  %6067 = vmatpush1.bf16.msra.mxu0 %v5846
  %6068 = vmatprep.subr.bf16.mxu0 %v5839
  %6069 = vmatpush1.bf16.msra.mxu0 %v5838
  %6070 = vmatprep.subr.bf16.mxu0 %v5831
  %6071 = vmatpush1.bf16.msra.mxu0 %v5830
  %6072 = vmatprep.subr.bf16.mxu0 %v5823
  %6073 = vmatpush1.bf16.msra.mxu0 %v5822
  %6074 = vmatprep.subr.bf16.mxu0 %v5815
  %6075 = vmatpush1.bf16.msra.mxu0 %v5814
  %6076 = vmatprep.subr.bf16.mxu0 %v5807
  %6077 = vmatpush1.bf16.msra.mxu0 %v5806
  %6078 = vmatprep.subr.bf16.mxu0 %v5927
  %6079 = vmatpush2.bf16.msra.mxu0 %v5926
  %6080 = vmatprep.subr.bf16.mxu0 %v5919
  %6081 = vmatpush2.bf16.msra.mxu0 %v5918
  %6082 = vmatprep.subr.bf16.mxu0 %v5911
  %6083 = vmatpush2.bf16.msra.mxu0 %v5910
  %6084 = vmatprep.subr.bf16.mxu0 %v5903
  %6085 = vmatpush2.bf16.msra.mxu0 %v5902
  %6086 = vmatprep.subr.bf16.mxu0 %v5895
  %6087 = vmatpush2.bf16.msra.mxu0 %v5894
  %6088 = vmatprep.subr.bf16.mxu0 %v5887
  %6089 = vmatpush2.bf16.msra.mxu0 %v5886
  %6090 = vmatprep.subr.bf16.mxu0 %v5879
  %6091 = vmatpush2.bf16.msra.mxu0 %v5878
  %6092 = vmatprep.subr.bf16.mxu0 %v5871
  %6093 = vmatpush2.bf16.msra.mxu0 %v5870
  %6094 = vmatprep.mubr.bf16.mxu0 %v5293
  %6095 = vmatmul.mubr.bf16.gmra.mxu0 %v5292
  %v6096 = vpop.f32.mrf.mxu0
  %v6097 = vadd.f32 0.0, %v6096
  %v6098 = vpop.f32.mrf.mxu0
  %v6099 = vadd.f32 0.0, %v6098
  %v6100 = vpop.f32.mrf.mxu0
  %v6101 = vpop.f32.mrf.mxu0
  %6102 = vdwg.mxu0
  %6103 = vmatprep.subr.bf16.mxu0 %v5865
  %6104 = vmatpush1.bf16.msra.mxu0 %v5864
  %6105 = vmatprep.subr.bf16.mxu0 %v5857
  %6106 = vmatpush1.bf16.msra.mxu0 %v5856
  %6107 = vmatprep.subr.bf16.mxu0 %v5849
  %6108 = vmatpush1.bf16.msra.mxu0 %v5848
  %6109 = vmatprep.subr.bf16.mxu0 %v5841
  %6110 = vmatpush1.bf16.msra.mxu0 %v5840
  %6111 = vmatprep.subr.bf16.mxu0 %v5833
  %6112 = vmatpush1.bf16.msra.mxu0 %v5832
  %6113 = vmatprep.subr.bf16.mxu0 %v5825
  %6114 = vmatpush1.bf16.msra.mxu0 %v5824
  %6115 = vmatprep.subr.bf16.mxu0 %v5817
  %6116 = vmatpush1.bf16.msra.mxu0 %v5816
  %6117 = vmatprep.subr.bf16.mxu0 %v5809
  %6118 = vmatpush1.bf16.msra.mxu0 %v5808
  %6119 = vmatprep.subr.bf16.mxu0 %v5929
  %6120 = vmatpush2.bf16.msra.mxu0 %v5928
  %6121 = vmatprep.subr.bf16.mxu0 %v5921
  %6122 = vmatpush2.bf16.msra.mxu0 %v5920
  %6123 = vmatprep.subr.bf16.mxu0 %v5913
  %6124 = vmatpush2.bf16.msra.mxu0 %v5912
  %6125 = vmatprep.subr.bf16.mxu0 %v5905
  %6126 = vmatpush2.bf16.msra.mxu0 %v5904
  %6127 = vmatprep.subr.bf16.mxu0 %v5897
  %6128 = vmatpush2.bf16.msra.mxu0 %v5896
  %6129 = vmatprep.subr.bf16.mxu0 %v5889
  %6130 = vmatpush2.bf16.msra.mxu0 %v5888
  %6131 = vmatprep.subr.bf16.mxu0 %v5881
  %6132 = vmatpush2.bf16.msra.mxu0 %v5880
  %6133 = vmatprep.subr.bf16.mxu0 %v5873
  %6134 = vmatpush2.bf16.msra.mxu0 %v5872
  %6135 = vmatprep.mubr.bf16.mxu0 %v5293
  %6136 = vmatmul.mubr.bf16.gmra.mxu0 %v5292
  %v6137 = vpop.f32.mrf.mxu0
  %v6138 = vadd.f32 0.0, %v6137
  %v6139 = vpop.f32.mrf.mxu0
  %v6140 = vadd.f32 0.0, %v6139
  %v6141 = vpop.f32.mrf.mxu0
  %v6142 = vpop.f32.mrf.mxu0
  %6143 = vdwg.mxu0
  %6144 = vmatprep.subr.bf16.mxu0 %v5867
  %6145 = vmatpush1.bf16.msra.mxu0 %v5866
  %6146 = vmatprep.subr.bf16.mxu0 %v5859
  %6147 = vmatpush1.bf16.msra.mxu0 %v5858
  %6148 = vmatprep.subr.bf16.mxu0 %v5851
  %6149 = vmatpush1.bf16.msra.mxu0 %v5850
  %6150 = vmatprep.subr.bf16.mxu0 %v5843
  %6151 = vmatpush1.bf16.msra.mxu0 %v5842
  %6152 = vmatprep.subr.bf16.mxu0 %v5835
  %6153 = vmatpush1.bf16.msra.mxu0 %v5834
  %6154 = vmatprep.subr.bf16.mxu0 %v5827
  %6155 = vmatpush1.bf16.msra.mxu0 %v5826
  %6156 = vmatprep.subr.bf16.mxu0 %v5819
  %6157 = vmatpush1.bf16.msra.mxu0 %v5818
  %6158 = vmatprep.subr.bf16.mxu0 %v5811
  %6159 = vmatpush1.bf16.msra.mxu0 %v5810
  %6160 = vmatprep.subr.bf16.mxu0 %v5931
  %6161 = vmatpush2.bf16.msra.mxu0 %v5930
  %6162 = vmatprep.subr.bf16.mxu0 %v5923
  %6163 = vmatpush2.bf16.msra.mxu0 %v5922
  %6164 = vmatprep.subr.bf16.mxu0 %v5915
  %6165 = vmatpush2.bf16.msra.mxu0 %v5914
  %6166 = vmatprep.subr.bf16.mxu0 %v5907
  %6167 = vmatpush2.bf16.msra.mxu0 %v5906
  %6168 = vmatprep.subr.bf16.mxu0 %v5899
  %6169 = vmatpush2.bf16.msra.mxu0 %v5898
  %6170 = vmatprep.subr.bf16.mxu0 %v5891
  %6171 = vmatpush2.bf16.msra.mxu0 %v5890
  %6172 = vmatprep.subr.bf16.mxu0 %v5883
  %6173 = vmatpush2.bf16.msra.mxu0 %v5882
  %6174 = vmatprep.subr.bf16.mxu0 %v5875
  %6175 = vmatpush2.bf16.msra.mxu0 %v5874
  %6176 = vmatprep.mubr.bf16.mxu0 %v5293
  %6177 = vmatmul.mubr.bf16.gmra.mxu0 %v5292
  %v6178 = vpop.f32.mrf.mxu0
  %v6179 = vadd.f32 0.0, %v6178
  %v6180 = vpop.f32.mrf.mxu0
  %v6181 = vadd.f32 0.0, %v6180
  %v6182 = vpop.f32.mrf.mxu0
  %v6183 = vpop.f32.mrf.mxu0
  %6184 = vdwg.mxu0
  %6185 = vmatprep.subr.bf16.mxu0 %v5869
  %6186 = vmatpush1.bf16.msra.mxu0 %v5868
  %6187 = vmatprep.subr.bf16.mxu0 %v5861
  %6188 = vmatpush1.bf16.msra.mxu0 %v5860
  %6189 = vmatprep.subr.bf16.mxu0 %v5853
  %6190 = vmatpush1.bf16.msra.mxu0 %v5852
  %6191 = vmatprep.subr.bf16.mxu0 %v5845
  %6192 = vmatpush1.bf16.msra.mxu0 %v5844
  %6193 = vmatprep.subr.bf16.mxu0 %v5837
  %6194 = vmatpush1.bf16.msra.mxu0 %v5836
  %6195 = vmatprep.subr.bf16.mxu0 %v5829
  %6196 = vmatpush1.bf16.msra.mxu0 %v5828
  %6197 = vmatprep.subr.bf16.mxu0 %v5821
  %6198 = vmatpush1.bf16.msra.mxu0 %v5820
  %6199 = vmatprep.subr.bf16.mxu0 %v5813
  %6200 = vmatpush1.bf16.msra.mxu0 %v5812
  %6201 = vmatprep.subr.bf16.mxu0 %v5933
  %6202 = vmatpush2.bf16.msra.mxu0 %v5932
  %6203 = vmatprep.subr.bf16.mxu0 %v5925
  %6204 = vmatpush2.bf16.msra.mxu0 %v5924
  %6205 = vmatprep.subr.bf16.mxu0 %v5917
  %6206 = vmatpush2.bf16.msra.mxu0 %v5916
  %6207 = vmatprep.subr.bf16.mxu0 %v5909
  %6208 = vmatpush2.bf16.msra.mxu0 %v5908
  %6209 = vmatprep.subr.bf16.mxu0 %v5901
  %6210 = vmatpush2.bf16.msra.mxu0 %v5900
  %6211 = vmatprep.subr.bf16.mxu0 %v5893
  %6212 = vmatpush2.bf16.msra.mxu0 %v5892
  %6213 = vmatprep.subr.bf16.mxu0 %v5885
  %6214 = vmatpush2.bf16.msra.mxu0 %v5884
  %6215 = vmatprep.subr.bf16.mxu0 %v5877
  %6216 = vmatpush2.bf16.msra.mxu0 %v5876
  %6217 = vmatprep.mubr.bf16.mxu0 %v5293
  %6218 = vmatmul.mubr.bf16.gmra.mxu0 %v5292
  %v6219 = vpop.f32.mrf.mxu0
  %v6220 = vadd.f32 0.0, %v6219
  %v6221 = vpop.f32.mrf.mxu0
  %v6222 = vadd.f32 0.0, %v6221
  %v6223 = vpop.f32.mrf.mxu0
  %v6224 = vpop.f32.mrf.mxu0
  %6225 = vdwg.mxu0
  %v6226 = vadd.f32 %v6179, %v371
  %v6227 = vadd.f32 %v6181, %v375
  %v6228 = vadd.f32 %v6220, %v379
  %v6229 = vadd.f32 %v6222, %v383
  %v6230 = vtanh.pop %v6226
  %v6231 = vtanh.pop %v6227
  %v6232 = vtanh.pop %v6228
  %v6233 = vtanh.pop %v6229
  %v6234 = vmul.f32 %v6230, 0.5
  %v6235 = vadd.f32 %v6234, 0.5
  %v6236 = vmul.f32 %v6231, 0.5
  %v6237 = vadd.f32 %v6236, 0.5
  %v6238 = vmul.f32 %v6233, 0.5
  %v6239 = vadd.f32 %v6238, 0.5
  %v6240 = vmul.f32 %v6237, %v5265
  %v6241 = vmul.f32 %v6235, %v6232
  %v6242 = vadd.f32 %v6240, %v6241
  %v6243 = vtanh.pop %v6242
  %v6244 = vmul.f32 %v6239, %v6243
  %6245 = vst [vmem:[#allocation3 + $0x28] sm:$0xff] %v6244
  %v6246 = vld [vmem:[#allocation2 + $0xc0] sm:$0xff]
  %v6247 = vld [vmem:[#allocation2 + $0xc8] sm:$0xff]
  %v6248 = vld [vmem:[#allocation2 + $0xd0] sm:$0xff]
  %v6249 = vld [vmem:[#allocation2 + $0xd8] sm:$0xff]
  %v6250 = vadd.f32 %v6097, %v6246
  %v6251 = vadd.f32 %v6099, %v6247
  %v6252 = vadd.f32 %v6138, %v6248
  %v6253 = vadd.f32 %v6140, %v6249
  %v6254 = vtanh.pop %v6250
  %v6255 = vtanh.pop %v6251
  %v6256 = vtanh.pop %v6252
  %v6257 = vtanh.pop %v6253
  %v6258 = vmul.f32 %v6254, 0.5
  %v6259 = vadd.f32 %v6258, 0.5
  %v6260 = vmul.f32 %v6255, 0.5
  %v6261 = vadd.f32 %v6260, 0.5
  %v6262 = vmul.f32 %v6257, 0.5
  %v6263 = vadd.f32 %v6262, 0.5
  %v6264 = vmul.f32 %v6261, %v5289
  %v6265 = vmul.f32 %v6259, %v6256
  %v6266 = vadd.f32 %v6264, %v6265
  %v6267 = vtanh.pop %v6266
  %v6268 = vmul.f32 %v6263, %v6267
  %v6269 = vpack.c.bf16 %v6268, %v6268
  %v6270 = vpack.c.bf16 %v6244, %v6244
  %v6271 = vld [vmem:[%s3] sm:$0xff]
  %v6272 = vld [vmem:[%s3 + $0x8] sm:$0xff]
  %v6273 = vld [vmem:[%s3 + $0x10] sm:$0xff]
  %v6274 = vld [vmem:[%s3 + $0x18] sm:$0xff]
  %v6275 = vld [vmem:[%s3 + $0x20] sm:$0xff]
  %v6276 = vld [vmem:[%s3 + $0x28] sm:$0xff]
  %v6277 = vld [vmem:[%s3 + $0x30] sm:$0xff]
  %v6278 = vld [vmem:[%s3 + $0x38] sm:$0xff]
  %v6279 = vld [vmem:[%s3 + $0x40] sm:$0xff]
  %v6280 = vld [vmem:[%s3 + $0x48] sm:$0xff]
  %v6281 = vld [vmem:[%s3 + $0x50] sm:$0xff]
  %v6282 = vld [vmem:[%s3 + $0x58] sm:$0xff]
  %v6283 = vld [vmem:[%s3 + $0x60] sm:$0xff]
  %v6284 = vld [vmem:[%s3 + $0x68] sm:$0xff]
  %v6285 = vld [vmem:[%s3 + $0x70] sm:$0xff]
  %v6286 = vld [vmem:[%s3 + $0x78] sm:$0xff]
  %v6287 = vld [vmem:[%s3 + $0x80] sm:$0xff]
  %v6288 = vld [vmem:[%s3 + $0x88] sm:$0xff]
  %v6289 = vld [vmem:[%s3 + $0x90] sm:$0xff]
  %v6290 = vld [vmem:[%s3 + $0x98] sm:$0xff]
  %v6291 = vld [vmem:[%s3 + $0xa0] sm:$0xff]
  %v6292 = vld [vmem:[%s3 + $0xa8] sm:$0xff]
  %v6293 = vld [vmem:[%s3 + $0xb0] sm:$0xff]
  %v6294 = vld [vmem:[%s3 + $0xb8] sm:$0xff]
  %v6295 = vld [vmem:[%s3 + $0xc0] sm:$0xff]
  %v6296 = vld [vmem:[%s3 + $0xc8] sm:$0xff]
  %v6297 = vld [vmem:[%s3 + $0xd0] sm:$0xff]
  %v6298 = vld [vmem:[%s3 + $0xd8] sm:$0xff]
  %v6299 = vld [vmem:[%s3 + $0xe0] sm:$0xff]
  %v6300 = vld [vmem:[%s3 + $0xe8] sm:$0xff]
  %v6301 = vld [vmem:[%s3 + $0xf0] sm:$0xff]
  %v6302 = vld [vmem:[%s3 + $0xf8] sm:$0xff]
  %v6303 = vld [vmem:[%s3 + $0x100] sm:$0xff]
  %v6304 = vld [vmem:[%s3 + $0x108] sm:$0xff]
  %v6305 = vld [vmem:[%s3 + $0x110] sm:$0xff]
  %v6306 = vld [vmem:[%s3 + $0x118] sm:$0xff]
  %v6307 = vld [vmem:[%s3 + $0x120] sm:$0xff]
  %v6308 = vld [vmem:[%s3 + $0x128] sm:$0xff]
  %v6309 = vld [vmem:[%s3 + $0x130] sm:$0xff]
  %v6310 = vld [vmem:[%s3 + $0x138] sm:$0xff]
  %v6311 = vld [vmem:[%s3 + $0x140] sm:$0xff]
  %v6312 = vld [vmem:[%s3 + $0x148] sm:$0xff]
  %v6313 = vld [vmem:[%s3 + $0x150] sm:$0xff]
  %v6314 = vld [vmem:[%s3 + $0x158] sm:$0xff]
  %v6315 = vld [vmem:[%s3 + $0x160] sm:$0xff]
  %v6316 = vld [vmem:[%s3 + $0x168] sm:$0xff]
  %v6317 = vld [vmem:[%s3 + $0x170] sm:$0xff]
  %v6318 = vld [vmem:[%s3 + $0x178] sm:$0xff]
  %v6319 = vld [vmem:[%s3 + $0x180] sm:$0xff]
  %v6320 = vld [vmem:[%s3 + $0x188] sm:$0xff]
  %v6321 = vld [vmem:[%s3 + $0x190] sm:$0xff]
  %v6322 = vld [vmem:[%s3 + $0x198] sm:$0xff]
  %v6323 = vld [vmem:[%s3 + $0x1a0] sm:$0xff]
  %v6324 = vld [vmem:[%s3 + $0x1a8] sm:$0xff]
  %v6325 = vld [vmem:[%s3 + $0x1b0] sm:$0xff]
  %v6326 = vld [vmem:[%s3 + $0x1b8] sm:$0xff]
  %v6327 = vld [vmem:[%s3 + $0x1c0] sm:$0xff]
  %v6328 = vld [vmem:[%s3 + $0x1c8] sm:$0xff]
  %v6329 = vld [vmem:[%s3 + $0x1d0] sm:$0xff]
  %v6330 = vld [vmem:[%s3 + $0x1d8] sm:$0xff]
  %v6331 = vld [vmem:[%s3 + $0x1e0] sm:$0xff]
  %v6332 = vld [vmem:[%s3 + $0x1e8] sm:$0xff]
  %v6333 = vld [vmem:[%s3 + $0x1f0] sm:$0xff]
  %v6334 = vld [vmem:[%s3 + $0x1f8] sm:$0xff]
  %v6335 = vld [vmem:[%s3 + $0x200] sm:$0xff]
  %v6336 = vld [vmem:[%s3 + $0x208] sm:$0xff]
  %v6337 = vld [vmem:[%s3 + $0x210] sm:$0xff]
  %v6338 = vld [vmem:[%s3 + $0x218] sm:$0xff]
  %v6339 = vld [vmem:[%s3 + $0x220] sm:$0xff]
  %v6340 = vld [vmem:[%s3 + $0x228] sm:$0xff]
  %v6341 = vld [vmem:[%s3 + $0x230] sm:$0xff]
  %v6342 = vld [vmem:[%s3 + $0x238] sm:$0xff]
  %v6343 = vld [vmem:[%s3 + $0x240] sm:$0xff]
  %v6344 = vld [vmem:[%s3 + $0x248] sm:$0xff]
  %v6345 = vld [vmem:[%s3 + $0x250] sm:$0xff]
  %v6346 = vld [vmem:[%s3 + $0x258] sm:$0xff]
  %v6347 = vld [vmem:[%s3 + $0x260] sm:$0xff]
  %v6348 = vld [vmem:[%s3 + $0x268] sm:$0xff]
  %v6349 = vld [vmem:[%s3 + $0x270] sm:$0xff]
  %v6350 = vld [vmem:[%s3 + $0x278] sm:$0xff]
  %v6351 = vld [vmem:[%s3 + $0x280] sm:$0xff]
  %v6352 = vld [vmem:[%s3 + $0x288] sm:$0xff]
  %v6353 = vld [vmem:[%s3 + $0x290] sm:$0xff]
  %v6354 = vld [vmem:[%s3 + $0x298] sm:$0xff]
  %v6355 = vld [vmem:[%s3 + $0x2a0] sm:$0xff]
  %v6356 = vld [vmem:[%s3 + $0x2a8] sm:$0xff]
  %v6357 = vld [vmem:[%s3 + $0x2b0] sm:$0xff]
  %v6358 = vld [vmem:[%s3 + $0x2b8] sm:$0xff]
  %v6359 = vld [vmem:[%s3 + $0x2c0] sm:$0xff]
  %v6360 = vld [vmem:[%s3 + $0x2c8] sm:$0xff]
  %v6361 = vld [vmem:[%s3 + $0x2d0] sm:$0xff]
  %v6362 = vld [vmem:[%s3 + $0x2d8] sm:$0xff]
  %v6363 = vld [vmem:[%s3 + $0x2e0] sm:$0xff]
  %v6364 = vld [vmem:[%s3 + $0x2e8] sm:$0xff]
  %v6365 = vld [vmem:[%s3 + $0x2f0] sm:$0xff]
  %v6366 = vld [vmem:[%s3 + $0x2f8] sm:$0xff]
  %v6367 = vld [vmem:[%s3 + $0x300] sm:$0xff]
  %v6368 = vld [vmem:[%s3 + $0x308] sm:$0xff]
  %v6369 = vld [vmem:[%s3 + $0x310] sm:$0xff]
  %v6370 = vld [vmem:[%s3 + $0x318] sm:$0xff]
  %v6371 = vld [vmem:[%s3 + $0x320] sm:$0xff]
  %v6372 = vld [vmem:[%s3 + $0x328] sm:$0xff]
  %v6373 = vld [vmem:[%s3 + $0x330] sm:$0xff]
  %v6374 = vld [vmem:[%s3 + $0x338] sm:$0xff]
  %v6375 = vld [vmem:[%s3 + $0x340] sm:$0xff]
  %v6376 = vld [vmem:[%s3 + $0x348] sm:$0xff]
  %v6377 = vld [vmem:[%s3 + $0x350] sm:$0xff]
  %v6378 = vld [vmem:[%s3 + $0x358] sm:$0xff]
  %v6379 = vld [vmem:[%s3 + $0x360] sm:$0xff]
  %v6380 = vld [vmem:[%s3 + $0x368] sm:$0xff]
  %v6381 = vld [vmem:[%s3 + $0x370] sm:$0xff]
  %v6382 = vld [vmem:[%s3 + $0x378] sm:$0xff]
  %v6383 = vld [vmem:[%s3 + $0x380] sm:$0xff]
  %v6384 = vld [vmem:[%s3 + $0x388] sm:$0xff]
  %v6385 = vld [vmem:[%s3 + $0x390] sm:$0xff]
  %v6386 = vld [vmem:[%s3 + $0x398] sm:$0xff]
  %v6387 = vld [vmem:[%s3 + $0x3a0] sm:$0xff]
  %v6388 = vld [vmem:[%s3 + $0x3a8] sm:$0xff]
  %v6389 = vld [vmem:[%s3 + $0x3b0] sm:$0xff]
  %v6390 = vld [vmem:[%s3 + $0x3b8] sm:$0xff]
  %v6391 = vld [vmem:[%s3 + $0x3c0] sm:$0xff]
  %v6392 = vld [vmem:[%s3 + $0x3c8] sm:$0xff]
  %v6393 = vld [vmem:[%s3 + $0x3d0] sm:$0xff]
  %v6394 = vld [vmem:[%s3 + $0x3d8] sm:$0xff]
  %v6395 = vld [vmem:[%s3 + $0x3e0] sm:$0xff]
  %v6396 = vld [vmem:[%s3 + $0x3e8] sm:$0xff]
  %v6397 = vld [vmem:[%s3 + $0x3f0] sm:$0xff]
  %v6398 = vld [vmem:[%s3 + $0x3f8] sm:$0xff]
  %v6527 = vunpack.c.l.b16 %v6271
  %v6528 = vunpack.c.h.b16 %v6271
  %v6529 = vunpack.c.l.b16 %v6272
  %v6530 = vunpack.c.h.b16 %v6272
  %v6531 = vunpack.c.l.b16 %v6273
  %v6532 = vunpack.c.h.b16 %v6273
  %v6533 = vunpack.c.l.b16 %v6274
  %v6534 = vunpack.c.h.b16 %v6274
  %v6535 = vunpack.c.l.b16 %v6275
  %v6536 = vunpack.c.h.b16 %v6275
  %v6537 = vunpack.c.l.b16 %v6276
  %v6538 = vunpack.c.h.b16 %v6276
  %v6539 = vunpack.c.l.b16 %v6277
  %v6540 = vunpack.c.h.b16 %v6277
  %v6541 = vunpack.c.l.b16 %v6278
  %v6542 = vunpack.c.h.b16 %v6278
  %v6543 = vunpack.c.l.b16 %v6279
  %v6544 = vunpack.c.h.b16 %v6279
  %v6545 = vunpack.c.l.b16 %v6280
  %v6546 = vunpack.c.h.b16 %v6280
  %v6547 = vunpack.c.l.b16 %v6281
  %v6548 = vunpack.c.h.b16 %v6281
  %v6549 = vunpack.c.l.b16 %v6282
  %v6550 = vunpack.c.h.b16 %v6282
  %v6551 = vunpack.c.l.b16 %v6283
  %v6552 = vunpack.c.h.b16 %v6283
  %v6553 = vunpack.c.l.b16 %v6284
  %v6554 = vunpack.c.h.b16 %v6284
  %v6555 = vunpack.c.l.b16 %v6285
  %v6556 = vunpack.c.h.b16 %v6285
  %v6557 = vunpack.c.l.b16 %v6286
  %v6558 = vunpack.c.h.b16 %v6286
  %v6559 = vunpack.c.l.b16 %v6287
  %v6560 = vunpack.c.h.b16 %v6287
  %v6561 = vunpack.c.l.b16 %v6288
  %v6562 = vunpack.c.h.b16 %v6288
  %v6563 = vunpack.c.l.b16 %v6289
  %v6564 = vunpack.c.h.b16 %v6289
  %v6565 = vunpack.c.l.b16 %v6290
  %v6566 = vunpack.c.h.b16 %v6290
  %v6567 = vunpack.c.l.b16 %v6291
  %v6568 = vunpack.c.h.b16 %v6291
  %v6569 = vunpack.c.l.b16 %v6292
  %v6570 = vunpack.c.h.b16 %v6292
  %v6571 = vunpack.c.l.b16 %v6293
  %v6572 = vunpack.c.h.b16 %v6293
  %v6573 = vunpack.c.l.b16 %v6294
  %v6574 = vunpack.c.h.b16 %v6294
  %v6575 = vunpack.c.l.b16 %v6295
  %v6576 = vunpack.c.h.b16 %v6295
  %v6577 = vunpack.c.l.b16 %v6296
  %v6578 = vunpack.c.h.b16 %v6296
  %v6579 = vunpack.c.l.b16 %v6297
  %v6580 = vunpack.c.h.b16 %v6297
  %v6581 = vunpack.c.l.b16 %v6298
  %v6582 = vunpack.c.h.b16 %v6298
  %v6583 = vunpack.c.l.b16 %v6299
  %v6584 = vunpack.c.h.b16 %v6299
  %v6585 = vunpack.c.l.b16 %v6300
  %v6586 = vunpack.c.h.b16 %v6300
  %v6587 = vunpack.c.l.b16 %v6301
  %v6588 = vunpack.c.h.b16 %v6301
  %v6589 = vunpack.c.l.b16 %v6302
  %v6590 = vunpack.c.h.b16 %v6302
  %v6591 = vunpack.c.l.b16 %v6303
  %v6592 = vunpack.c.h.b16 %v6303
  %v6593 = vunpack.c.l.b16 %v6304
  %v6594 = vunpack.c.h.b16 %v6304
  %v6595 = vunpack.c.l.b16 %v6305
  %v6596 = vunpack.c.h.b16 %v6305
  %v6597 = vunpack.c.l.b16 %v6306
  %v6598 = vunpack.c.h.b16 %v6306
  %v6599 = vunpack.c.l.b16 %v6307
  %v6600 = vunpack.c.h.b16 %v6307
  %v6601 = vunpack.c.l.b16 %v6308
  %v6602 = vunpack.c.h.b16 %v6308
  %v6603 = vunpack.c.l.b16 %v6309
  %v6604 = vunpack.c.h.b16 %v6309
  %v6605 = vunpack.c.l.b16 %v6310
  %v6606 = vunpack.c.h.b16 %v6310
  %v6607 = vunpack.c.l.b16 %v6311
  %v6608 = vunpack.c.h.b16 %v6311
  %v6609 = vunpack.c.l.b16 %v6312
  %v6610 = vunpack.c.h.b16 %v6312
  %v6611 = vunpack.c.l.b16 %v6313
  %v6612 = vunpack.c.h.b16 %v6313
  %v6613 = vunpack.c.l.b16 %v6314
  %v6614 = vunpack.c.h.b16 %v6314
  %v6615 = vunpack.c.l.b16 %v6315
  %v6616 = vunpack.c.h.b16 %v6315
  %v6617 = vunpack.c.l.b16 %v6316
  %v6618 = vunpack.c.h.b16 %v6316
  %v6619 = vunpack.c.l.b16 %v6317
  %v6620 = vunpack.c.h.b16 %v6317
  %v6621 = vunpack.c.l.b16 %v6318
  %v6622 = vunpack.c.h.b16 %v6318
  %v6623 = vunpack.c.l.b16 %v6319
  %v6624 = vunpack.c.h.b16 %v6319
  %v6625 = vunpack.c.l.b16 %v6320
  %v6626 = vunpack.c.h.b16 %v6320
  %v6627 = vunpack.c.l.b16 %v6321
  %v6628 = vunpack.c.h.b16 %v6321
  %v6629 = vunpack.c.l.b16 %v6322
  %v6630 = vunpack.c.h.b16 %v6322
  %v6631 = vunpack.c.l.b16 %v6323
  %v6632 = vunpack.c.h.b16 %v6323
  %v6633 = vunpack.c.l.b16 %v6324
  %v6634 = vunpack.c.h.b16 %v6324
  %v6635 = vunpack.c.l.b16 %v6325
  %v6636 = vunpack.c.h.b16 %v6325
  %v6637 = vunpack.c.l.b16 %v6326
  %v6638 = vunpack.c.h.b16 %v6326
  %v6639 = vunpack.c.l.b16 %v6327
  %v6640 = vunpack.c.h.b16 %v6327
  %v6641 = vunpack.c.l.b16 %v6328
  %v6642 = vunpack.c.h.b16 %v6328
  %v6643 = vunpack.c.l.b16 %v6329
  %v6644 = vunpack.c.h.b16 %v6329
  %v6645 = vunpack.c.l.b16 %v6330
  %v6646 = vunpack.c.h.b16 %v6330
  %v6647 = vunpack.c.l.b16 %v6331
  %v6648 = vunpack.c.h.b16 %v6331
  %v6649 = vunpack.c.l.b16 %v6332
  %v6650 = vunpack.c.h.b16 %v6332
  %v6651 = vunpack.c.l.b16 %v6333
  %v6652 = vunpack.c.h.b16 %v6333
  %v6653 = vunpack.c.l.b16 %v6334
  %v6654 = vunpack.c.h.b16 %v6334
  %v6655 = vunpack.c.l.b16 %v6335
  %v6656 = vunpack.c.h.b16 %v6335
  %v6657 = vunpack.c.l.b16 %v6336
  %v6658 = vunpack.c.h.b16 %v6336
  %v6659 = vunpack.c.l.b16 %v6337
  %v6660 = vunpack.c.h.b16 %v6337
  %v6661 = vunpack.c.l.b16 %v6338
  %v6662 = vunpack.c.h.b16 %v6338
  %v6663 = vunpack.c.l.b16 %v6339
  %v6664 = vunpack.c.h.b16 %v6339
  %v6665 = vunpack.c.l.b16 %v6340
  %v6666 = vunpack.c.h.b16 %v6340
  %v6667 = vunpack.c.l.b16 %v6341
  %v6668 = vunpack.c.h.b16 %v6341
  %v6669 = vunpack.c.l.b16 %v6342
  %v6670 = vunpack.c.h.b16 %v6342
  %v6671 = vunpack.c.l.b16 %v6343
  %v6672 = vunpack.c.h.b16 %v6343
  %v6673 = vunpack.c.l.b16 %v6344
  %v6674 = vunpack.c.h.b16 %v6344
  %v6675 = vunpack.c.l.b16 %v6345
  %v6676 = vunpack.c.h.b16 %v6345
  %v6677 = vunpack.c.l.b16 %v6346
  %v6678 = vunpack.c.h.b16 %v6346
  %v6679 = vunpack.c.l.b16 %v6347
  %v6680 = vunpack.c.h.b16 %v6347
  %v6681 = vunpack.c.l.b16 %v6348
  %v6682 = vunpack.c.h.b16 %v6348
  %v6683 = vunpack.c.l.b16 %v6349
  %v6684 = vunpack.c.h.b16 %v6349
  %v6685 = vunpack.c.l.b16 %v6350
  %v6686 = vunpack.c.h.b16 %v6350
  %v6687 = vunpack.c.l.b16 %v6351
  %v6688 = vunpack.c.h.b16 %v6351
  %v6689 = vunpack.c.l.b16 %v6352
  %v6690 = vunpack.c.h.b16 %v6352
  %v6691 = vunpack.c.l.b16 %v6353
  %v6692 = vunpack.c.h.b16 %v6353
  %v6693 = vunpack.c.l.b16 %v6354
  %v6694 = vunpack.c.h.b16 %v6354
  %v6695 = vunpack.c.l.b16 %v6355
  %v6696 = vunpack.c.h.b16 %v6355
  %v6697 = vunpack.c.l.b16 %v6356
  %v6698 = vunpack.c.h.b16 %v6356
  %v6699 = vunpack.c.l.b16 %v6357
  %v6700 = vunpack.c.h.b16 %v6357
  %v6701 = vunpack.c.l.b16 %v6358
  %v6702 = vunpack.c.h.b16 %v6358
  %v6703 = vunpack.c.l.b16 %v6359
  %v6704 = vunpack.c.h.b16 %v6359
  %v6705 = vunpack.c.l.b16 %v6360
  %v6706 = vunpack.c.h.b16 %v6360
  %v6707 = vunpack.c.l.b16 %v6361
  %v6708 = vunpack.c.h.b16 %v6361
  %v6709 = vunpack.c.l.b16 %v6362
  %v6710 = vunpack.c.h.b16 %v6362
  %v6711 = vunpack.c.l.b16 %v6363
  %v6712 = vunpack.c.h.b16 %v6363
  %v6713 = vunpack.c.l.b16 %v6364
  %v6714 = vunpack.c.h.b16 %v6364
  %v6715 = vunpack.c.l.b16 %v6365
  %v6716 = vunpack.c.h.b16 %v6365
  %v6717 = vunpack.c.l.b16 %v6366
  %v6718 = vunpack.c.h.b16 %v6366
  %v6719 = vunpack.c.l.b16 %v6367
  %v6720 = vunpack.c.h.b16 %v6367
  %v6721 = vunpack.c.l.b16 %v6368
  %v6722 = vunpack.c.h.b16 %v6368
  %v6723 = vunpack.c.l.b16 %v6369
  %v6724 = vunpack.c.h.b16 %v6369
  %v6725 = vunpack.c.l.b16 %v6370
  %v6726 = vunpack.c.h.b16 %v6370
  %v6727 = vunpack.c.l.b16 %v6371
  %v6728 = vunpack.c.h.b16 %v6371
  %v6729 = vunpack.c.l.b16 %v6372
  %v6730 = vunpack.c.h.b16 %v6372
  %v6731 = vunpack.c.l.b16 %v6373
  %v6732 = vunpack.c.h.b16 %v6373
  %v6733 = vunpack.c.l.b16 %v6374
  %v6734 = vunpack.c.h.b16 %v6374
  %v6735 = vunpack.c.l.b16 %v6375
  %v6736 = vunpack.c.h.b16 %v6375
  %v6737 = vunpack.c.l.b16 %v6376
  %v6738 = vunpack.c.h.b16 %v6376
  %v6739 = vunpack.c.l.b16 %v6377
  %v6740 = vunpack.c.h.b16 %v6377
  %v6741 = vunpack.c.l.b16 %v6378
  %v6742 = vunpack.c.h.b16 %v6378
  %v6743 = vunpack.c.l.b16 %v6379
  %v6744 = vunpack.c.h.b16 %v6379
  %v6745 = vunpack.c.l.b16 %v6380
  %v6746 = vunpack.c.h.b16 %v6380
  %v6747 = vunpack.c.l.b16 %v6381
  %v6748 = vunpack.c.h.b16 %v6381
  %v6749 = vunpack.c.l.b16 %v6382
  %v6750 = vunpack.c.h.b16 %v6382
  %v6751 = vunpack.c.l.b16 %v6383
  %v6752 = vunpack.c.h.b16 %v6383
  %v6753 = vunpack.c.l.b16 %v6384
  %v6754 = vunpack.c.h.b16 %v6384
  %v6755 = vunpack.c.l.b16 %v6385
  %v6756 = vunpack.c.h.b16 %v6385
  %v6757 = vunpack.c.l.b16 %v6386
  %v6758 = vunpack.c.h.b16 %v6386
  %v6759 = vunpack.c.l.b16 %v6387
  %v6760 = vunpack.c.h.b16 %v6387
  %v6761 = vunpack.c.l.b16 %v6388
  %v6762 = vunpack.c.h.b16 %v6388
  %v6763 = vunpack.c.l.b16 %v6389
  %v6764 = vunpack.c.h.b16 %v6389
  %v6765 = vunpack.c.l.b16 %v6390
  %v6766 = vunpack.c.h.b16 %v6390
  %v6767 = vunpack.c.l.b16 %v6391
  %v6768 = vunpack.c.h.b16 %v6391
  %v6769 = vunpack.c.l.b16 %v6392
  %v6770 = vunpack.c.h.b16 %v6392
  %v6771 = vunpack.c.l.b16 %v6393
  %v6772 = vunpack.c.h.b16 %v6393
  %v6773 = vunpack.c.l.b16 %v6394
  %v6774 = vunpack.c.h.b16 %v6394
  %v6775 = vunpack.c.l.b16 %v6395
  %v6776 = vunpack.c.h.b16 %v6395
  %v6777 = vunpack.c.l.b16 %v6396
  %v6778 = vunpack.c.h.b16 %v6396
  %v6779 = vunpack.c.l.b16 %v6397
  %v6780 = vunpack.c.h.b16 %v6397
  %v6781 = vunpack.c.l.b16 %v6398
  %v6782 = vunpack.c.h.b16 %v6398
  %v6783 = vpack.c.b16 %v6535, %v6527
  %v6784 = vpack.c.b16 %v6536, %v6528
  %v6785 = vpack.c.b16 %v6537, %v6529
  %v6786 = vpack.c.b16 %v6538, %v6530
  %v6787 = vpack.c.b16 %v6539, %v6531
  %v6788 = vpack.c.b16 %v6540, %v6532
  %v6789 = vpack.c.b16 %v6541, %v6533
  %v6790 = vpack.c.b16 %v6542, %v6534
  %v6791 = vpack.c.b16 %v6551, %v6543
  %v6792 = vpack.c.b16 %v6552, %v6544
  %v6793 = vpack.c.b16 %v6553, %v6545
  %v6794 = vpack.c.b16 %v6554, %v6546
  %v6795 = vpack.c.b16 %v6555, %v6547
  %v6796 = vpack.c.b16 %v6556, %v6548
  %v6797 = vpack.c.b16 %v6557, %v6549
  %v6798 = vpack.c.b16 %v6558, %v6550
  %v6799 = vpack.c.b16 %v6567, %v6559
  %v6800 = vpack.c.b16 %v6568, %v6560
  %v6801 = vpack.c.b16 %v6569, %v6561
  %v6802 = vpack.c.b16 %v6570, %v6562
  %v6803 = vpack.c.b16 %v6571, %v6563
  %v6804 = vpack.c.b16 %v6572, %v6564
  %v6805 = vpack.c.b16 %v6573, %v6565
  %v6806 = vpack.c.b16 %v6574, %v6566
  %v6807 = vpack.c.b16 %v6583, %v6575
  %v6808 = vpack.c.b16 %v6584, %v6576
  %v6809 = vpack.c.b16 %v6585, %v6577
  %v6810 = vpack.c.b16 %v6586, %v6578
  %v6811 = vpack.c.b16 %v6587, %v6579
  %v6812 = vpack.c.b16 %v6588, %v6580
  %v6813 = vpack.c.b16 %v6589, %v6581
  %v6814 = vpack.c.b16 %v6590, %v6582
  %v6815 = vpack.c.b16 %v6599, %v6591
  %v6816 = vpack.c.b16 %v6600, %v6592
  %v6817 = vpack.c.b16 %v6601, %v6593
  %v6818 = vpack.c.b16 %v6602, %v6594
  %v6819 = vpack.c.b16 %v6603, %v6595
  %v6820 = vpack.c.b16 %v6604, %v6596
  %v6821 = vpack.c.b16 %v6605, %v6597
  %v6822 = vpack.c.b16 %v6606, %v6598
  %v6823 = vpack.c.b16 %v6615, %v6607
  %v6824 = vpack.c.b16 %v6616, %v6608
  %v6825 = vpack.c.b16 %v6617, %v6609
  %v6826 = vpack.c.b16 %v6618, %v6610
  %v6827 = vpack.c.b16 %v6619, %v6611
  %v6828 = vpack.c.b16 %v6620, %v6612
  %v6829 = vpack.c.b16 %v6621, %v6613
  %v6830 = vpack.c.b16 %v6622, %v6614
  %v6831 = vpack.c.b16 %v6631, %v6623
  %v6832 = vpack.c.b16 %v6632, %v6624
  %v6833 = vpack.c.b16 %v6633, %v6625
  %v6834 = vpack.c.b16 %v6634, %v6626
  %v6835 = vpack.c.b16 %v6635, %v6627
  %v6836 = vpack.c.b16 %v6636, %v6628
  %v6837 = vpack.c.b16 %v6637, %v6629
  %v6838 = vpack.c.b16 %v6638, %v6630
  %v6839 = vpack.c.b16 %v6647, %v6639
  %v6840 = vpack.c.b16 %v6648, %v6640
  %v6841 = vpack.c.b16 %v6649, %v6641
  %v6842 = vpack.c.b16 %v6650, %v6642
  %v6843 = vpack.c.b16 %v6651, %v6643
  %v6844 = vpack.c.b16 %v6652, %v6644
  %v6845 = vpack.c.b16 %v6653, %v6645
  %v6846 = vpack.c.b16 %v6654, %v6646
  %v6847 = vpack.c.b16 %v6663, %v6655
  %v6848 = vpack.c.b16 %v6664, %v6656
  %v6849 = vpack.c.b16 %v6665, %v6657
  %v6850 = vpack.c.b16 %v6666, %v6658
  %v6851 = vpack.c.b16 %v6667, %v6659
  %v6852 = vpack.c.b16 %v6668, %v6660
  %v6853 = vpack.c.b16 %v6669, %v6661
  %v6854 = vpack.c.b16 %v6670, %v6662
  %v6855 = vpack.c.b16 %v6679, %v6671
  %v6856 = vpack.c.b16 %v6680, %v6672
  %v6857 = vpack.c.b16 %v6681, %v6673
  %v6858 = vpack.c.b16 %v6682, %v6674
  %v6859 = vpack.c.b16 %v6683, %v6675
  %v6860 = vpack.c.b16 %v6684, %v6676
  %v6861 = vpack.c.b16 %v6685, %v6677
  %v6862 = vpack.c.b16 %v6686, %v6678
  %v6863 = vpack.c.b16 %v6695, %v6687
  %v6864 = vpack.c.b16 %v6696, %v6688
  %v6865 = vpack.c.b16 %v6697, %v6689
  %v6866 = vpack.c.b16 %v6698, %v6690
  %v6867 = vpack.c.b16 %v6699, %v6691
  %v6868 = vpack.c.b16 %v6700, %v6692
  %v6869 = vpack.c.b16 %v6701, %v6693
  %v6870 = vpack.c.b16 %v6702, %v6694
  %v6871 = vpack.c.b16 %v6711, %v6703
  %v6872 = vpack.c.b16 %v6712, %v6704
  %v6873 = vpack.c.b16 %v6713, %v6705
  %v6874 = vpack.c.b16 %v6714, %v6706
  %v6875 = vpack.c.b16 %v6715, %v6707
  %v6876 = vpack.c.b16 %v6716, %v6708
  %v6877 = vpack.c.b16 %v6717, %v6709
  %v6878 = vpack.c.b16 %v6718, %v6710
  %v6879 = vpack.c.b16 %v6727, %v6719
  %v6880 = vpack.c.b16 %v6728, %v6720
  %v6881 = vpack.c.b16 %v6729, %v6721
  %v6882 = vpack.c.b16 %v6730, %v6722
  %v6883 = vpack.c.b16 %v6731, %v6723
  %v6884 = vpack.c.b16 %v6732, %v6724
  %v6885 = vpack.c.b16 %v6733, %v6725
  %v6886 = vpack.c.b16 %v6734, %v6726
  %v6887 = vpack.c.b16 %v6743, %v6735
  %v6888 = vpack.c.b16 %v6744, %v6736
  %v6889 = vpack.c.b16 %v6745, %v6737
  %v6890 = vpack.c.b16 %v6746, %v6738
  %v6891 = vpack.c.b16 %v6747, %v6739
  %v6892 = vpack.c.b16 %v6748, %v6740
  %v6893 = vpack.c.b16 %v6749, %v6741
  %v6894 = vpack.c.b16 %v6750, %v6742
  %v6895 = vpack.c.b16 %v6759, %v6751
  %v6896 = vpack.c.b16 %v6760, %v6752
  %v6897 = vpack.c.b16 %v6761, %v6753
  %v6898 = vpack.c.b16 %v6762, %v6754
  %v6899 = vpack.c.b16 %v6763, %v6755
  %v6900 = vpack.c.b16 %v6764, %v6756
  %v6901 = vpack.c.b16 %v6765, %v6757
  %v6902 = vpack.c.b16 %v6766, %v6758
  %v6903 = vpack.c.b16 %v6775, %v6767
  %v6904 = vpack.c.b16 %v6776, %v6768
  %v6905 = vpack.c.b16 %v6777, %v6769
  %v6906 = vpack.c.b16 %v6778, %v6770
  %v6907 = vpack.c.b16 %v6779, %v6771
  %v6908 = vpack.c.b16 %v6780, %v6772
  %v6909 = vpack.c.b16 %v6781, %v6773
  %v6910 = vpack.c.b16 %v6782, %v6774
  %7039 = vmatprep.subr.bf16.mxu0 %v6840
  %7040 = vmatpush1.bf16.msra.mxu0 %v6839
  %7041 = vmatprep.subr.bf16.mxu0 %v6832
  %7042 = vmatpush1.bf16.msra.mxu0 %v6831
  %7043 = vmatprep.subr.bf16.mxu0 %v6824
  %7044 = vmatpush1.bf16.msra.mxu0 %v6823
  %7045 = vmatprep.subr.bf16.mxu0 %v6816
  %7046 = vmatpush1.bf16.msra.mxu0 %v6815
  %7047 = vmatprep.subr.bf16.mxu0 %v6808
  %7048 = vmatpush1.bf16.msra.mxu0 %v6807
  %7049 = vmatprep.subr.bf16.mxu0 %v6800
  %7050 = vmatpush1.bf16.msra.mxu0 %v6799
  %7051 = vmatprep.subr.bf16.mxu0 %v6792
  %7052 = vmatpush1.bf16.msra.mxu0 %v6791
  %7053 = vmatprep.subr.bf16.mxu0 %v6784
  %7054 = vmatpush1.bf16.msra.mxu0 %v6783
  %7055 = vmatprep.subr.bf16.mxu0 %v6904
  %7056 = vmatpush2.bf16.msra.mxu0 %v6903
  %7057 = vmatprep.subr.bf16.mxu0 %v6896
  %7058 = vmatpush2.bf16.msra.mxu0 %v6895
  %7059 = vmatprep.subr.bf16.mxu0 %v6888
  %7060 = vmatpush2.bf16.msra.mxu0 %v6887
  %7061 = vmatprep.subr.bf16.mxu0 %v6880
  %7062 = vmatpush2.bf16.msra.mxu0 %v6879
  %7063 = vmatprep.subr.bf16.mxu0 %v6872
  %7064 = vmatpush2.bf16.msra.mxu0 %v6871
  %7065 = vmatprep.subr.bf16.mxu0 %v6864
  %7066 = vmatpush2.bf16.msra.mxu0 %v6863
  %7067 = vmatprep.subr.bf16.mxu0 %v6856
  %7068 = vmatpush2.bf16.msra.mxu0 %v6855
  %7069 = vmatprep.subr.bf16.mxu0 %v6848
  %7070 = vmatpush2.bf16.msra.mxu0 %v6847
  %7071 = vmatprep.mubr.bf16.mxu0 %v6270
  %7072 = vmatmul.mubr.bf16.gmra.mxu0 %v6269
  %v7073 = vpop.f32.mrf.mxu0
  %v7074 = vadd.f32 0.0, %v7073
  %v7075 = vpop.f32.mrf.mxu0
  %v7076 = vadd.f32 0.0, %v7075
  %v7077 = vpop.f32.mrf.mxu0
  %v7078 = vpop.f32.mrf.mxu0
  %7079 = vdwg.mxu0
  %7080 = vmatprep.subr.bf16.mxu0 %v6842
  %7081 = vmatpush1.bf16.msra.mxu0 %v6841
  %7082 = vmatprep.subr.bf16.mxu0 %v6834
  %7083 = vmatpush1.bf16.msra.mxu0 %v6833
  %7084 = vmatprep.subr.bf16.mxu0 %v6826
  %7085 = vmatpush1.bf16.msra.mxu0 %v6825
  %7086 = vmatprep.subr.bf16.mxu0 %v6818
  %7087 = vmatpush1.bf16.msra.mxu0 %v6817
  %7088 = vmatprep.subr.bf16.mxu0 %v6810
  %7089 = vmatpush1.bf16.msra.mxu0 %v6809
  %7090 = vmatprep.subr.bf16.mxu0 %v6802
  %7091 = vmatpush1.bf16.msra.mxu0 %v6801
  %7092 = vmatprep.subr.bf16.mxu0 %v6794
  %7093 = vmatpush1.bf16.msra.mxu0 %v6793
  %7094 = vmatprep.subr.bf16.mxu0 %v6786
  %7095 = vmatpush1.bf16.msra.mxu0 %v6785
  %7096 = vmatprep.subr.bf16.mxu0 %v6906
  %7097 = vmatpush2.bf16.msra.mxu0 %v6905
  %7098 = vmatprep.subr.bf16.mxu0 %v6898
  %7099 = vmatpush2.bf16.msra.mxu0 %v6897
  %7100 = vmatprep.subr.bf16.mxu0 %v6890
  %7101 = vmatpush2.bf16.msra.mxu0 %v6889
  %7102 = vmatprep.subr.bf16.mxu0 %v6882
  %7103 = vmatpush2.bf16.msra.mxu0 %v6881
  %7104 = vmatprep.subr.bf16.mxu0 %v6874
  %7105 = vmatpush2.bf16.msra.mxu0 %v6873
  %7106 = vmatprep.subr.bf16.mxu0 %v6866
  %7107 = vmatpush2.bf16.msra.mxu0 %v6865
  %7108 = vmatprep.subr.bf16.mxu0 %v6858
  %7109 = vmatpush2.bf16.msra.mxu0 %v6857
  %7110 = vmatprep.subr.bf16.mxu0 %v6850
  %7111 = vmatpush2.bf16.msra.mxu0 %v6849
  %7112 = vmatprep.mubr.bf16.mxu0 %v6270
  %7113 = vmatmul.mubr.bf16.gmra.mxu0 %v6269
  %v7114 = vpop.f32.mrf.mxu0
  %v7115 = vadd.f32 0.0, %v7114
  %v7116 = vpop.f32.mrf.mxu0
  %v7117 = vadd.f32 0.0, %v7116
  %v7118 = vpop.f32.mrf.mxu0
  %v7119 = vpop.f32.mrf.mxu0
  %7120 = vdwg.mxu0
  %7121 = vmatprep.subr.bf16.mxu0 %v6844
  %7122 = vmatpush1.bf16.msra.mxu0 %v6843
  %7123 = vmatprep.subr.bf16.mxu0 %v6836
  %7124 = vmatpush1.bf16.msra.mxu0 %v6835
  %7125 = vmatprep.subr.bf16.mxu0 %v6828
  %7126 = vmatpush1.bf16.msra.mxu0 %v6827
  %7127 = vmatprep.subr.bf16.mxu0 %v6820
  %7128 = vmatpush1.bf16.msra.mxu0 %v6819
  %7129 = vmatprep.subr.bf16.mxu0 %v6812
  %7130 = vmatpush1.bf16.msra.mxu0 %v6811
  %7131 = vmatprep.subr.bf16.mxu0 %v6804
  %7132 = vmatpush1.bf16.msra.mxu0 %v6803
  %7133 = vmatprep.subr.bf16.mxu0 %v6796
  %7134 = vmatpush1.bf16.msra.mxu0 %v6795
  %7135 = vmatprep.subr.bf16.mxu0 %v6788
  %7136 = vmatpush1.bf16.msra.mxu0 %v6787
  %7137 = vmatprep.subr.bf16.mxu0 %v6908
  %7138 = vmatpush2.bf16.msra.mxu0 %v6907
  %7139 = vmatprep.subr.bf16.mxu0 %v6900
  %7140 = vmatpush2.bf16.msra.mxu0 %v6899
  %7141 = vmatprep.subr.bf16.mxu0 %v6892
  %7142 = vmatpush2.bf16.msra.mxu0 %v6891
  %7143 = vmatprep.subr.bf16.mxu0 %v6884
  %7144 = vmatpush2.bf16.msra.mxu0 %v6883
  %7145 = vmatprep.subr.bf16.mxu0 %v6876
  %7146 = vmatpush2.bf16.msra.mxu0 %v6875
  %7147 = vmatprep.subr.bf16.mxu0 %v6868
  %7148 = vmatpush2.bf16.msra.mxu0 %v6867
  %7149 = vmatprep.subr.bf16.mxu0 %v6860
  %7150 = vmatpush2.bf16.msra.mxu0 %v6859
  %7151 = vmatprep.subr.bf16.mxu0 %v6852
  %7152 = vmatpush2.bf16.msra.mxu0 %v6851
  %7153 = vmatprep.mubr.bf16.mxu0 %v6270
  %7154 = vmatmul.mubr.bf16.gmra.mxu0 %v6269
  %v7155 = vpop.f32.mrf.mxu0
  %v7156 = vadd.f32 0.0, %v7155
  %v7157 = vpop.f32.mrf.mxu0
  %v7158 = vadd.f32 0.0, %v7157
  %v7159 = vpop.f32.mrf.mxu0
  %v7160 = vpop.f32.mrf.mxu0
  %7161 = vdwg.mxu0
  %7162 = vmatprep.subr.bf16.mxu0 %v6846
  %7163 = vmatpush1.bf16.msra.mxu0 %v6845
  %7164 = vmatprep.subr.bf16.mxu0 %v6838
  %7165 = vmatpush1.bf16.msra.mxu0 %v6837
  %7166 = vmatprep.subr.bf16.mxu0 %v6830
  %7167 = vmatpush1.bf16.msra.mxu0 %v6829
  %7168 = vmatprep.subr.bf16.mxu0 %v6822
  %7169 = vmatpush1.bf16.msra.mxu0 %v6821
  %7170 = vmatprep.subr.bf16.mxu0 %v6814
  %7171 = vmatpush1.bf16.msra.mxu0 %v6813
  %7172 = vmatprep.subr.bf16.mxu0 %v6806
  %7173 = vmatpush1.bf16.msra.mxu0 %v6805
  %7174 = vmatprep.subr.bf16.mxu0 %v6798
  %7175 = vmatpush1.bf16.msra.mxu0 %v6797
  %7176 = vmatprep.subr.bf16.mxu0 %v6790
  %7177 = vmatpush1.bf16.msra.mxu0 %v6789
  %7178 = vmatprep.subr.bf16.mxu0 %v6910
  %7179 = vmatpush2.bf16.msra.mxu0 %v6909
  %7180 = vmatprep.subr.bf16.mxu0 %v6902
  %7181 = vmatpush2.bf16.msra.mxu0 %v6901
  %7182 = vmatprep.subr.bf16.mxu0 %v6894
  %7183 = vmatpush2.bf16.msra.mxu0 %v6893
  %7184 = vmatprep.subr.bf16.mxu0 %v6886
  %7185 = vmatpush2.bf16.msra.mxu0 %v6885
  %7186 = vmatprep.subr.bf16.mxu0 %v6878
  %7187 = vmatpush2.bf16.msra.mxu0 %v6877
  %7188 = vmatprep.subr.bf16.mxu0 %v6870
  %7189 = vmatpush2.bf16.msra.mxu0 %v6869
  %7190 = vmatprep.subr.bf16.mxu0 %v6862
  %7191 = vmatpush2.bf16.msra.mxu0 %v6861
  %7192 = vmatprep.subr.bf16.mxu0 %v6854
  %7193 = vmatpush2.bf16.msra.mxu0 %v6853
  %7194 = vmatprep.mubr.bf16.mxu0 %v6270
  %7195 = vmatmul.mubr.bf16.gmra.mxu0 %v6269
  %v7196 = vpop.f32.mrf.mxu0
  %v7197 = vadd.f32 0.0, %v7196
  %v7198 = vpop.f32.mrf.mxu0
  %v7199 = vadd.f32 0.0, %v7198
  %v7200 = vpop.f32.mrf.mxu0
  %v7201 = vpop.f32.mrf.mxu0
  %7202 = vdwg.mxu0
  %v7203 = vadd.f32 %v7156, %v371
  %v7204 = vadd.f32 %v7158, %v375
  %v7205 = vadd.f32 %v7197, %v379
  %v7206 = vadd.f32 %v7199, %v383
  %v7207 = vtanh.pop %v7203
  %v7208 = vtanh.pop %v7204
  %v7209 = vtanh.pop %v7205
  %v7210 = vtanh.pop %v7206
  %v7211 = vmul.f32 %v7207, 0.5
  %v7212 = vadd.f32 %v7211, 0.5
  %v7213 = vmul.f32 %v7208, 0.5
  %v7214 = vadd.f32 %v7213, 0.5
  %v7215 = vmul.f32 %v7210, 0.5
  %v7216 = vadd.f32 %v7215, 0.5
  %v7217 = vmul.f32 %v7214, %v6242
  %v7218 = vmul.f32 %v7212, %v7209
  %v7219 = vadd.f32 %v7217, %v7218
  %v7220 = vtanh.pop %v7219
  %v7221 = vmul.f32 %v7216, %v7220
  %7222 = vst [vmem:[#allocation3 + $0x30] sm:$0xff] %v7221
  %v7223 = vld [vmem:[#allocation2 + $0xe0] sm:$0xff]
  %v7224 = vld [vmem:[#allocation2 + $0xe8] sm:$0xff]
  %v7225 = vld [vmem:[#allocation2 + $0xf0] sm:$0xff]
  %v7226 = vld [vmem:[#allocation2 + $0xf8] sm:$0xff]
  %v7227 = vadd.f32 %v7074, %v7223
  %v7228 = vadd.f32 %v7076, %v7224
  %v7229 = vadd.f32 %v7115, %v7225
  %v7230 = vadd.f32 %v7117, %v7226
  %v7231 = vtanh.pop %v7227
  %v7232 = vtanh.pop %v7228
  %v7233 = vtanh.pop %v7229
  %v7234 = vtanh.pop %v7230
  %v7235 = vmul.f32 %v7231, 0.5
  %v7236 = vadd.f32 %v7235, 0.5
  %v7237 = vmul.f32 %v7232, 0.5
  %v7238 = vadd.f32 %v7237, 0.5
  %v7239 = vmul.f32 %v7234, 0.5
  %v7240 = vadd.f32 %v7239, 0.5
  %v7241 = vmul.f32 %v7238, %v6266
  %v7242 = vmul.f32 %v7236, %v7233
  %v7243 = vadd.f32 %v7241, %v7242
  %v7244 = vtanh.pop %v7243
  %v7245 = vmul.f32 %v7240, %v7244
  %v7246 = vpack.c.bf16 %v7245, %v7245
  %v7247 = vpack.c.bf16 %v7221, %v7221
  %v7248 = vld [vmem:[%s3 + $0x10] sm:$0xff]
  %v7249 = vld [vmem:[%s3 + $0x18] sm:$0xff]
  %v7250 = vld [vmem:[%s3 + $0x30] sm:$0xff]
  %v7251 = vld [vmem:[%s3 + $0x38] sm:$0xff]
  %v7252 = vld [vmem:[%s3 + $0x50] sm:$0xff]
  %v7253 = vld [vmem:[%s3 + $0x58] sm:$0xff]
  %v7254 = vld [vmem:[%s3 + $0x70] sm:$0xff]
  %v7255 = vld [vmem:[%s3 + $0x78] sm:$0xff]
  %v7256 = vld [vmem:[%s3 + $0x90] sm:$0xff]
  %v7257 = vld [vmem:[%s3 + $0x98] sm:$0xff]
  %v7258 = vld [vmem:[%s3 + $0xb0] sm:$0xff]
  %v7259 = vld [vmem:[%s3 + $0xb8] sm:$0xff]
  %v7260 = vld [vmem:[%s3 + $0xd0] sm:$0xff]
  %v7261 = vld [vmem:[%s3 + $0xd8] sm:$0xff]
  %v7262 = vld [vmem:[%s3 + $0xf0] sm:$0xff]
  %v7263 = vld [vmem:[%s3 + $0xf8] sm:$0xff]
  %v7264 = vld [vmem:[%s3 + $0x110] sm:$0xff]
  %v7265 = vld [vmem:[%s3 + $0x118] sm:$0xff]
  %v7266 = vld [vmem:[%s3 + $0x130] sm:$0xff]
  %v7267 = vld [vmem:[%s3 + $0x138] sm:$0xff]
  %v7268 = vld [vmem:[%s3 + $0x150] sm:$0xff]
  %v7269 = vld [vmem:[%s3 + $0x158] sm:$0xff]
  %v7270 = vld [vmem:[%s3 + $0x170] sm:$0xff]
  %v7271 = vld [vmem:[%s3 + $0x178] sm:$0xff]
  %v7272 = vld [vmem:[%s3 + $0x190] sm:$0xff]
  %v7273 = vld [vmem:[%s3 + $0x198] sm:$0xff]
  %v7274 = vld [vmem:[%s3 + $0x1b0] sm:$0xff]
  %v7275 = vld [vmem:[%s3 + $0x1b8] sm:$0xff]
  %v7276 = vld [vmem:[%s3 + $0x1d0] sm:$0xff]
  %v7277 = vld [vmem:[%s3 + $0x1d8] sm:$0xff]
  %v7278 = vld [vmem:[%s3 + $0x1f0] sm:$0xff]
  %v7279 = vld [vmem:[%s3 + $0x1f8] sm:$0xff]
  %v7280 = vld [vmem:[%s3 + $0x210] sm:$0xff]
  %v7281 = vld [vmem:[%s3 + $0x218] sm:$0xff]
  %v7282 = vld [vmem:[%s3 + $0x230] sm:$0xff]
  %v7283 = vld [vmem:[%s3 + $0x238] sm:$0xff]
  %v7284 = vld [vmem:[%s3 + $0x250] sm:$0xff]
  %v7285 = vld [vmem:[%s3 + $0x258] sm:$0xff]
  %v7286 = vld [vmem:[%s3 + $0x270] sm:$0xff]
  %v7287 = vld [vmem:[%s3 + $0x278] sm:$0xff]
  %v7288 = vld [vmem:[%s3 + $0x290] sm:$0xff]
  %v7289 = vld [vmem:[%s3 + $0x298] sm:$0xff]
  %v7290 = vld [vmem:[%s3 + $0x2b0] sm:$0xff]
  %v7291 = vld [vmem:[%s3 + $0x2b8] sm:$0xff]
  %v7292 = vld [vmem:[%s3 + $0x2d0] sm:$0xff]
  %v7293 = vld [vmem:[%s3 + $0x2d8] sm:$0xff]
  %v7294 = vld [vmem:[%s3 + $0x2f0] sm:$0xff]
  %v7295 = vld [vmem:[%s3 + $0x2f8] sm:$0xff]
  %v7296 = vld [vmem:[%s3 + $0x310] sm:$0xff]
  %v7297 = vld [vmem:[%s3 + $0x318] sm:$0xff]
  %v7298 = vld [vmem:[%s3 + $0x330] sm:$0xff]
  %v7299 = vld [vmem:[%s3 + $0x338] sm:$0xff]
  %v7300 = vld [vmem:[%s3 + $0x350] sm:$0xff]
  %v7301 = vld [vmem:[%s3 + $0x358] sm:$0xff]
  %v7302 = vld [vmem:[%s3 + $0x370] sm:$0xff]
  %v7303 = vld [vmem:[%s3 + $0x378] sm:$0xff]
  %v7304 = vld [vmem:[%s3 + $0x390] sm:$0xff]
  %v7305 = vld [vmem:[%s3 + $0x398] sm:$0xff]
  %v7306 = vld [vmem:[%s3 + $0x3b0] sm:$0xff]
  %v7307 = vld [vmem:[%s3 + $0x3b8] sm:$0xff]
  %v7308 = vld [vmem:[%s3 + $0x3d0] sm:$0xff]
  %v7309 = vld [vmem:[%s3 + $0x3d8] sm:$0xff]
  %v7310 = vld [vmem:[%s3 + $0x3f0] sm:$0xff]
  %v7311 = vld [vmem:[%s3 + $0x3f8] sm:$0xff]
  %v7376 = vunpack.c.l.b16 %v7248
  %v7377 = vunpack.c.h.b16 %v7248
  %v7378 = vunpack.c.l.b16 %v7249
  %v7379 = vunpack.c.h.b16 %v7249
  %v7380 = vunpack.c.l.b16 %v7250
  %v7381 = vunpack.c.h.b16 %v7250
  %v7382 = vunpack.c.l.b16 %v7251
  %v7383 = vunpack.c.h.b16 %v7251
  %v7384 = vunpack.c.l.b16 %v7252
  %v7385 = vunpack.c.h.b16 %v7252
  %v7386 = vunpack.c.l.b16 %v7253
  %v7387 = vunpack.c.h.b16 %v7253
  %v7388 = vunpack.c.l.b16 %v7254
  %v7389 = vunpack.c.h.b16 %v7254
  %v7390 = vunpack.c.l.b16 %v7255
  %v7391 = vunpack.c.h.b16 %v7255
  %v7392 = vunpack.c.l.b16 %v7256
  %v7393 = vunpack.c.h.b16 %v7256
  %v7394 = vunpack.c.l.b16 %v7257
  %v7395 = vunpack.c.h.b16 %v7257
  %v7396 = vunpack.c.l.b16 %v7258
  %v7397 = vunpack.c.h.b16 %v7258
  %v7398 = vunpack.c.l.b16 %v7259
  %v7399 = vunpack.c.h.b16 %v7259
  %v7400 = vunpack.c.l.b16 %v7260
  %v7401 = vunpack.c.h.b16 %v7260
  %v7402 = vunpack.c.l.b16 %v7261
  %v7403 = vunpack.c.h.b16 %v7261
  %v7404 = vunpack.c.l.b16 %v7262
  %v7405 = vunpack.c.h.b16 %v7262
  %v7406 = vunpack.c.l.b16 %v7263
  %v7407 = vunpack.c.h.b16 %v7263
  %v7408 = vunpack.c.l.b16 %v7264
  %v7409 = vunpack.c.h.b16 %v7264
  %v7410 = vunpack.c.l.b16 %v7265
  %v7411 = vunpack.c.h.b16 %v7265
  %v7412 = vunpack.c.l.b16 %v7266
  %v7413 = vunpack.c.h.b16 %v7266
  %v7414 = vunpack.c.l.b16 %v7267
  %v7415 = vunpack.c.h.b16 %v7267
  %v7416 = vunpack.c.l.b16 %v7268
  %v7417 = vunpack.c.h.b16 %v7268
  %v7418 = vunpack.c.l.b16 %v7269
  %v7419 = vunpack.c.h.b16 %v7269
  %v7420 = vunpack.c.l.b16 %v7270
  %v7421 = vunpack.c.h.b16 %v7270
  %v7422 = vunpack.c.l.b16 %v7271
  %v7423 = vunpack.c.h.b16 %v7271
  %v7424 = vunpack.c.l.b16 %v7272
  %v7425 = vunpack.c.h.b16 %v7272
  %v7426 = vunpack.c.l.b16 %v7273
  %v7427 = vunpack.c.h.b16 %v7273
  %v7428 = vunpack.c.l.b16 %v7274
  %v7429 = vunpack.c.h.b16 %v7274
  %v7430 = vunpack.c.l.b16 %v7275
  %v7431 = vunpack.c.h.b16 %v7275
  %v7432 = vunpack.c.l.b16 %v7276
  %v7433 = vunpack.c.h.b16 %v7276
  %v7434 = vunpack.c.l.b16 %v7277
  %v7435 = vunpack.c.h.b16 %v7277
  %v7436 = vunpack.c.l.b16 %v7278
  %v7437 = vunpack.c.h.b16 %v7278
  %v7438 = vunpack.c.l.b16 %v7279
  %v7439 = vunpack.c.h.b16 %v7279
  %v7440 = vunpack.c.l.b16 %v7280
  %v7441 = vunpack.c.h.b16 %v7280
  %v7442 = vunpack.c.l.b16 %v7281
  %v7443 = vunpack.c.h.b16 %v7281
  %v7444 = vunpack.c.l.b16 %v7282
  %v7445 = vunpack.c.h.b16 %v7282
  %v7446 = vunpack.c.l.b16 %v7283
  %v7447 = vunpack.c.h.b16 %v7283
  %v7448 = vunpack.c.l.b16 %v7284
  %v7449 = vunpack.c.h.b16 %v7284
  %v7450 = vunpack.c.l.b16 %v7285
  %v7451 = vunpack.c.h.b16 %v7285
  %v7452 = vunpack.c.l.b16 %v7286
  %v7453 = vunpack.c.h.b16 %v7286
  %v7454 = vunpack.c.l.b16 %v7287
  %v7455 = vunpack.c.h.b16 %v7287
  %v7456 = vunpack.c.l.b16 %v7288
  %v7457 = vunpack.c.h.b16 %v7288
  %v7458 = vunpack.c.l.b16 %v7289
  %v7459 = vunpack.c.h.b16 %v7289
  %v7460 = vunpack.c.l.b16 %v7290
  %v7461 = vunpack.c.h.b16 %v7290
  %v7462 = vunpack.c.l.b16 %v7291
  %v7463 = vunpack.c.h.b16 %v7291
  %v7464 = vunpack.c.l.b16 %v7292
  %v7465 = vunpack.c.h.b16 %v7292
  %v7466 = vunpack.c.l.b16 %v7293
  %v7467 = vunpack.c.h.b16 %v7293
  %v7468 = vunpack.c.l.b16 %v7294
  %v7469 = vunpack.c.h.b16 %v7294
  %v7470 = vunpack.c.l.b16 %v7295
  %v7471 = vunpack.c.h.b16 %v7295
  %v7472 = vunpack.c.l.b16 %v7296
  %v7473 = vunpack.c.h.b16 %v7296
  %v7474 = vunpack.c.l.b16 %v7297
  %v7475 = vunpack.c.h.b16 %v7297
  %v7476 = vunpack.c.l.b16 %v7298
  %v7477 = vunpack.c.h.b16 %v7298
  %v7478 = vunpack.c.l.b16 %v7299
  %v7479 = vunpack.c.h.b16 %v7299
  %v7480 = vunpack.c.l.b16 %v7300
  %v7481 = vunpack.c.h.b16 %v7300
  %v7482 = vunpack.c.l.b16 %v7301
  %v7483 = vunpack.c.h.b16 %v7301
  %v7484 = vunpack.c.l.b16 %v7302
  %v7485 = vunpack.c.h.b16 %v7302
  %v7486 = vunpack.c.l.b16 %v7303
  %v7487 = vunpack.c.h.b16 %v7303
  %v7488 = vunpack.c.l.b16 %v7304
  %v7489 = vunpack.c.h.b16 %v7304
  %v7490 = vunpack.c.l.b16 %v7305
  %v7491 = vunpack.c.h.b16 %v7305
  %v7492 = vunpack.c.l.b16 %v7306
  %v7493 = vunpack.c.h.b16 %v7306
  %v7494 = vunpack.c.l.b16 %v7307
  %v7495 = vunpack.c.h.b16 %v7307
  %v7496 = vunpack.c.l.b16 %v7308
  %v7497 = vunpack.c.h.b16 %v7308
  %v7498 = vunpack.c.l.b16 %v7309
  %v7499 = vunpack.c.h.b16 %v7309
  %v7500 = vunpack.c.l.b16 %v7310
  %v7501 = vunpack.c.h.b16 %v7310
  %v7502 = vunpack.c.l.b16 %v7311
  %v7503 = vunpack.c.h.b16 %v7311
  %v7504 = vpack.c.b16 %v7380, %v7376
  %v7505 = vpack.c.b16 %v7381, %v7377
  %v7506 = vpack.c.b16 %v7382, %v7378
  %v7507 = vpack.c.b16 %v7383, %v7379
  %v7508 = vpack.c.b16 %v7388, %v7384
  %v7509 = vpack.c.b16 %v7389, %v7385
  %v7510 = vpack.c.b16 %v7390, %v7386
  %v7511 = vpack.c.b16 %v7391, %v7387
  %v7512 = vpack.c.b16 %v7396, %v7392
  %v7513 = vpack.c.b16 %v7397, %v7393
  %v7514 = vpack.c.b16 %v7398, %v7394
  %v7515 = vpack.c.b16 %v7399, %v7395
  %v7516 = vpack.c.b16 %v7404, %v7400
  %v7517 = vpack.c.b16 %v7405, %v7401
  %v7518 = vpack.c.b16 %v7406, %v7402
  %v7519 = vpack.c.b16 %v7407, %v7403
  %v7520 = vpack.c.b16 %v7412, %v7408
  %v7521 = vpack.c.b16 %v7413, %v7409
  %v7522 = vpack.c.b16 %v7414, %v7410
  %v7523 = vpack.c.b16 %v7415, %v7411
  %v7524 = vpack.c.b16 %v7420, %v7416
  %v7525 = vpack.c.b16 %v7421, %v7417
  %v7526 = vpack.c.b16 %v7422, %v7418
  %v7527 = vpack.c.b16 %v7423, %v7419
  %v7528 = vpack.c.b16 %v7428, %v7424
  %v7529 = vpack.c.b16 %v7429, %v7425
  %v7530 = vpack.c.b16 %v7430, %v7426
  %v7531 = vpack.c.b16 %v7431, %v7427
  %v7532 = vpack.c.b16 %v7436, %v7432
  %v7533 = vpack.c.b16 %v7437, %v7433
  %v7534 = vpack.c.b16 %v7438, %v7434
  %v7535 = vpack.c.b16 %v7439, %v7435
  %v7536 = vpack.c.b16 %v7444, %v7440
  %v7537 = vpack.c.b16 %v7445, %v7441
  %v7538 = vpack.c.b16 %v7446, %v7442
  %v7539 = vpack.c.b16 %v7447, %v7443
  %v7540 = vpack.c.b16 %v7452, %v7448
  %v7541 = vpack.c.b16 %v7453, %v7449
  %v7542 = vpack.c.b16 %v7454, %v7450
  %v7543 = vpack.c.b16 %v7455, %v7451
  %v7544 = vpack.c.b16 %v7460, %v7456
  %v7545 = vpack.c.b16 %v7461, %v7457
  %v7546 = vpack.c.b16 %v7462, %v7458
  %v7547 = vpack.c.b16 %v7463, %v7459
  %v7548 = vpack.c.b16 %v7468, %v7464
  %v7549 = vpack.c.b16 %v7469, %v7465
  %v7550 = vpack.c.b16 %v7470, %v7466
  %v7551 = vpack.c.b16 %v7471, %v7467
  %v7552 = vpack.c.b16 %v7476, %v7472
  %v7553 = vpack.c.b16 %v7477, %v7473
  %v7554 = vpack.c.b16 %v7478, %v7474
  %v7555 = vpack.c.b16 %v7479, %v7475
  %v7556 = vpack.c.b16 %v7484, %v7480
  %v7557 = vpack.c.b16 %v7485, %v7481
  %v7558 = vpack.c.b16 %v7486, %v7482
  %v7559 = vpack.c.b16 %v7487, %v7483
  %v7560 = vpack.c.b16 %v7492, %v7488
  %v7561 = vpack.c.b16 %v7493, %v7489
  %v7562 = vpack.c.b16 %v7494, %v7490
  %v7563 = vpack.c.b16 %v7495, %v7491
  %v7564 = vpack.c.b16 %v7500, %v7496
  %v7565 = vpack.c.b16 %v7501, %v7497
  %v7566 = vpack.c.b16 %v7502, %v7498
  %v7567 = vpack.c.b16 %v7503, %v7499
  %7632 = vmatprep.subr.bf16.mxu0 %v7533
  %7633 = vmatpush1.bf16.msra.mxu0 %v7532
  %7634 = vmatprep.subr.bf16.mxu0 %v7529
  %7635 = vmatpush1.bf16.msra.mxu0 %v7528
  %7636 = vmatprep.subr.bf16.mxu0 %v7525
  %7637 = vmatpush1.bf16.msra.mxu0 %v7524
  %7638 = vmatprep.subr.bf16.mxu0 %v7521
  %7639 = vmatpush1.bf16.msra.mxu0 %v7520
  %7640 = vmatprep.subr.bf16.mxu0 %v7517
  %7641 = vmatpush1.bf16.msra.mxu0 %v7516
  %7642 = vmatprep.subr.bf16.mxu0 %v7513
  %7643 = vmatpush1.bf16.msra.mxu0 %v7512
  %7644 = vmatprep.subr.bf16.mxu0 %v7509
  %7645 = vmatpush1.bf16.msra.mxu0 %v7508
  %7646 = vmatprep.subr.bf16.mxu0 %v7505
  %7647 = vmatpush1.bf16.msra.mxu0 %v7504
  %7648 = vmatprep.subr.bf16.mxu0 %v7565
  %7649 = vmatpush2.bf16.msra.mxu0 %v7564
  %7650 = vmatprep.subr.bf16.mxu0 %v7561
  %7651 = vmatpush2.bf16.msra.mxu0 %v7560
  %7652 = vmatprep.subr.bf16.mxu0 %v7557
  %7653 = vmatpush2.bf16.msra.mxu0 %v7556
  %7654 = vmatprep.subr.bf16.mxu0 %v7553
  %7655 = vmatpush2.bf16.msra.mxu0 %v7552
  %7656 = vmatprep.subr.bf16.mxu0 %v7549
  %7657 = vmatpush2.bf16.msra.mxu0 %v7548
  %7658 = vmatprep.subr.bf16.mxu0 %v7545
  %7659 = vmatpush2.bf16.msra.mxu0 %v7544
  %7660 = vmatprep.subr.bf16.mxu0 %v7541
  %7661 = vmatpush2.bf16.msra.mxu0 %v7540
  %7662 = vmatprep.subr.bf16.mxu0 %v7537
  %7663 = vmatpush2.bf16.msra.mxu0 %v7536
  %7664 = vmatprep.mubr.bf16.mxu0 %v7247
  %7665 = vmatmul.mubr.bf16.gmra.mxu0 %v7246
  %v7666 = vpop.f32.mrf.mxu0
  %v7667 = vadd.f32 0.0, %v7666
  %v7668 = vpop.f32.mrf.mxu0
  %v7669 = vadd.f32 0.0, %v7668
  %v7670 = vpop.f32.mrf.mxu0
  %v7671 = vpop.f32.mrf.mxu0
  %7672 = vdwg.mxu0
  %7673 = vmatprep.subr.bf16.mxu0 %v7535
  %7674 = vmatpush1.bf16.msra.mxu0 %v7534
  %7675 = vmatprep.subr.bf16.mxu0 %v7531
  %7676 = vmatpush1.bf16.msra.mxu0 %v7530
  %7677 = vmatprep.subr.bf16.mxu0 %v7527
  %7678 = vmatpush1.bf16.msra.mxu0 %v7526
  %7679 = vmatprep.subr.bf16.mxu0 %v7523
  %7680 = vmatpush1.bf16.msra.mxu0 %v7522
  %7681 = vmatprep.subr.bf16.mxu0 %v7519
  %7682 = vmatpush1.bf16.msra.mxu0 %v7518
  %7683 = vmatprep.subr.bf16.mxu0 %v7515
  %7684 = vmatpush1.bf16.msra.mxu0 %v7514
  %7685 = vmatprep.subr.bf16.mxu0 %v7511
  %7686 = vmatpush1.bf16.msra.mxu0 %v7510
  %7687 = vmatprep.subr.bf16.mxu0 %v7507
  %7688 = vmatpush1.bf16.msra.mxu0 %v7506
  %7689 = vmatprep.subr.bf16.mxu0 %v7567
  %7690 = vmatpush2.bf16.msra.mxu0 %v7566
  %7691 = vmatprep.subr.bf16.mxu0 %v7563
  %7692 = vmatpush2.bf16.msra.mxu0 %v7562
  %7693 = vmatprep.subr.bf16.mxu0 %v7559
  %7694 = vmatpush2.bf16.msra.mxu0 %v7558
  %7695 = vmatprep.subr.bf16.mxu0 %v7555
  %7696 = vmatpush2.bf16.msra.mxu0 %v7554
  %7697 = vmatprep.subr.bf16.mxu0 %v7551
  %7698 = vmatpush2.bf16.msra.mxu0 %v7550
  %7699 = vmatprep.subr.bf16.mxu0 %v7547
  %7700 = vmatpush2.bf16.msra.mxu0 %v7546
  %7701 = vmatprep.subr.bf16.mxu0 %v7543
  %7702 = vmatpush2.bf16.msra.mxu0 %v7542
  %7703 = vmatprep.subr.bf16.mxu0 %v7539
  %7704 = vmatpush2.bf16.msra.mxu0 %v7538
  %7705 = vmatprep.mubr.bf16.mxu0 %v7247
  %7706 = vmatmul.mubr.bf16.gmra.mxu0 %v7246
  %v7707 = vpop.f32.mrf.mxu0
  %v7708 = vadd.f32 0.0, %v7707
  %v7709 = vpop.f32.mrf.mxu0
  %v7710 = vadd.f32 0.0, %v7709
  %v7711 = vpop.f32.mrf.mxu0
  %v7712 = vpop.f32.mrf.mxu0
  %7713 = vdwg.mxu0
  %v7714 = vadd.f32 %v7667, %v371
  %v7715 = vadd.f32 %v7669, %v375
  %v7716 = vadd.f32 %v7708, %v379
  %v7717 = vadd.f32 %v7710, %v383
  %v7718 = vtanh.pop %v7714
  %v7719 = vtanh.pop %v7715
  %v7720 = vtanh.pop %v7716
  %v7721 = vtanh.pop %v7717
  %v7722 = vmul.f32 %v7718, 0.5
  %v7723 = vadd.f32 %v7722, 0.5
  %v7724 = vmul.f32 %v7719, 0.5
  %v7725 = vadd.f32 %v7724, 0.5
  %v7726 = vmul.f32 %v7721, 0.5
  %v7727 = vadd.f32 %v7726, 0.5
  %v7728 = vmul.f32 %v7725, %v7219
  %v7729 = vmul.f32 %v7723, %v7720
  %v7730 = vadd.f32 %v7728, %v7729
  %v7731 = vtanh.pop %v7730
  %v7732 = vmul.f32 %v7727, %v7731
  %7733 = vst [vmem:[#allocation3 + $0x38] sm:$0xff] %v7732
  %v7734 = vld [vmem:[%s5] sm:$0x1]
  %v7736 = vlaneseq
  %v7737 = vshrl.u32 %v7736, 7
  %v7738 = vsub.s32 0, %v7737
  %v7739 = vrot.slane %v7734, %v7738
  %v7741 = vld [vmem:[#allocation3] sm:$0xff]
  %v7742 = vld [vmem:[#allocation3 + $0x8] sm:$0xff]
  %v7743 = vld [vmem:[#allocation3 + $0x10] sm:$0xff]
  %v7744 = vld [vmem:[#allocation3 + $0x18] sm:$0xff]
  %v7745 = vld [vmem:[#allocation3 + $0x20] sm:$0xff]
  %v7746 = vld [vmem:[#allocation3 + $0x28] sm:$0xff]
  %v7747 = vld [vmem:[#allocation3 + $0x30] sm:$0xff]
  %v7748 = vld [vmem:[#allocation3 + $0x38] sm:$0xff]
  %v7749 = vmul.f32 %v7741, %v7739
  %v7750 = vmul.f32 %v7742, %v7739
  %v7751 = vmul.f32 %v7743, %v7739
  %v7752 = vmul.f32 %v7744, %v7739
  %v7753 = vmul.f32 %v7745, %v7739
  %v7754 = vmul.f32 %v7746, %v7739
  %v7755 = vmul.f32 %v7747, %v7739
  %v7756 = vmul.f32 %v7748, %v7739
  %7757 = vadd.xlane.f32.xlu0 %v7749
  %v7758 = vpop.xlane.xlu0 %7757
  %7759 = vadd.xlane.f32.xlu0 %v7750
  %v7760 = vpop.xlane.xlu0 %7759
  %7761 = vadd.xlane.f32.xlu0 %v7751
  %v7762 = vpop.xlane.xlu0 %7761
  %7763 = vadd.xlane.f32.xlu0 %v7752
  %v7764 = vpop.xlane.xlu0 %7763
  %7765 = vadd.xlane.f32.xlu0 %v7753
  %v7766 = vpop.xlane.xlu0 %7765
  %7767 = vadd.xlane.f32.xlu0 %v7754
  %v7768 = vpop.xlane.xlu0 %7767
  %7769 = vadd.xlane.f32.xlu0 %v7755
  %v7770 = vpop.xlane.xlu0 %7769
  %7771 = vadd.xlane.f32.xlu0 %v7756
  %v7772 = vpop.xlane.xlu0 %7771
  %v7773 = vld [vmem:[#allocation4] sm:$0x1]
  %v7775 = vlaneseq
  %v7776 = vshrl.u32 %v7775, 7
  %v7777 = vsub.s32 0, %v7776
  %v7778 = vrot.slane %v7773, %v7777
  %v7780 = vadd.f32 %v7758, %v7778
  %v7781 = vadd.f32 %v7760, %v7778
  %v7782 = vadd.f32 %v7762, %v7778
  %v7783 = vadd.f32 %v7764, %v7778
  %v7784 = vadd.f32 %v7766, %v7778
  %v7785 = vadd.f32 %v7768, %v7778
  %v7786 = vadd.f32 %v7770, %v7778
  %v7787 = vadd.f32 %v7772, %v7778
  %vm7788 = vcmask 7168
  %7789 = vst.msk [vmem:[%s7] sm:$0xff] %vm7788, %v7780
  %7790 = vst.msk [vmem:[%s7 + $0x8] sm:$0xff] %vm7788, %v7781
  %7791 = vst.msk [vmem:[%s7 + $0x10] sm:$0xff] %vm7788, %v7782
  %7792 = vst.msk [vmem:[%s7 + $0x18] sm:$0xff] %vm7788, %v7783
  %7793 = vst.msk [vmem:[%s7 + $0x20] sm:$0xff] %vm7788, %v7784
  %7794 = vst.msk [vmem:[%s7 + $0x28] sm:$0xff] %vm7788, %v7785
  %7795 = vst.msk [vmem:[%s7 + $0x30] sm:$0xff] %vm7788, %v7786
  %7796 = vst.msk [vmem:[%s7 + $0x38] sm:$0xff] %vm7788, %v7787
  // Predicated region
  $region30: #{rnn_forward.1} parent=0 // pred_check
    _
  $region31: #{rnn_forward.1} parent=0 // pred_check_branch
    %7798 = sbr.rel (0) target = $region33
  $region32: #{rnn_forward.1} parent=0 // pred_region
    _
  $region33: #{rnn_forward.1} parent=0 // pred_fallthru
    _
  // Predicated region
  $region34: #{rnn_forward.1} parent=0 // pred_check
    _
  $region35: #{rnn_forward.1} parent=0 // pred_check_branch
    %7800 = sbr.rel (0) target = $region37
  $region36: #{rnn_forward.1} parent=0 // pred_region
    _
  $region37: #{rnn_forward.1} parent=0 // pred_fallthru
    _

</llo_original>
